<compile_context>
chip_gen: v7x
topology: tpu7x:2x2x1
jax: 0.10.0
libtpu: 0.0.40
codegen_flags: <defaults>
</compile_context>

<pallas_src>
import functools

import numpy as np
import jax
import jax.numpy as jnp
from jax.experimental import pallas as pl
from jax.experimental.pallas import tpu as pltpu

FEAT = 512        # per-frame feature width implied by `features.view(B, T, 512)`
T_FRAMES = 7      # Conv1d(in_channels=7) fixes the sequence length
NCLS = 4          # classifier output classes
MID = 200         # classifier hidden width
NCLS_PAD = 128    # lane-padded class count (unmasked stores; sliced to 4 outside)
MID_PAD = 256     # lane-padded classifier hidden width


def _round_up(x, m):
    return (x + m - 1) // m * m


def _cdiv(a, b):
    return -(-a // b)


def _chip_kind():
    """Best-effort TPU generation detection (used only for tile / VMEM tuning)."""
    try:
        kind = jax.devices()[0].device_kind.lower()
    except Exception:
        kind = ""
    if "v5" in kind and ("lite" in kind or "v5e" in kind):
        return "v5e"
    if "v7" in kind:
        return "v7x"
    if "v6" in kind:
        return "v6e"
    return "other"


def _gen_config(chip):
    # bt_cap: row-tile cap, kt_cap: K-tile cap, x_buffers: x pipeline depth,
    # vmem_cap: scoped-VMEM request ceiling.
    if chip == "v5e":
        return dict(bt_cap=128, kt_cap=2048, x_buffers=3, vmem_cap=64 * 2**20)
    if chip == "v7x":
        return dict(bt_cap=256, kt_cap=4096, x_buffers=2, vmem_cap=48 * 2**20)
    if chip == "v6e":
        return dict(bt_cap=256, kt_cap=4096, x_buffers=2, vmem_cap=96 * 2**20)
    return dict(bt_cap=256, kt_cap=2048, x_buffers=2, vmem_cap=64 * 2**20)


def _choose_row_tile(b, chip, bt_cap):
    """Row (batch) tile, 16-aligned; on v7x prefer >= 2 tiles for megacore."""
    align = 16                              # bf16 sublane tile
    bmin = _round_up(b, align)
    n_tiles = _cdiv(bmin, bt_cap)
    if chip == "v7x" and bmin > align:
        n_tiles = max(n_tiles, 2)           # span both TensorCores
    bt = _round_up(_cdiv(bmin, n_tiles), align)
    return bt, bt * n_tiles


def _choose_k_tile(chw, kt_cap):
    """K tile: pad CHW to a multiple of 128, then as few K tiles as possible."""
    chw128 = _round_up(chw, 128)
    if chw128 <= kt_cap:
        return chw128, chw128, 1
    n_k = _cdiv(chw128, kt_cap)
    kt = _round_up(_cdiv(chw128, n_k), 128)
    return kt, kt * n_k, n_k


def _x_block_spec(shape, index_map, buffers):
    """x BlockSpec with optional >2-deep buffering (v5e); safe fallback."""
    if buffers is not None and buffers != 2:
        try:
            return pl.BlockSpec(shape, index_map, pipeline_mode=pl.Buffered(buffers))
        except (TypeError, AttributeError):
            pass
    return pl.BlockSpec(shape, index_map)


def _ltsm_conv_kernel(convw_ref, convb_ref,                       # SMEM scalars
                      x_ref, wnet_ref, bnet_ref,                  # backbone
                      wih_ref, bih_ref, whh_ref, bhh_ref,         # GRU
                      w1h_ref, w1c_ref, b1_ref, w2_ref, b2_ref,   # classifier
                      out_ref,                                    # (Bt, 128) logits
                      *scratch, n_t, n_k, hp, bt):
    f32, bf16 = jnp.float32, jnp.bfloat16

    if n_k > 1:
        acc_ref, conv_ref, xg_ref = scratch
        ki, ti = pl.program_id(1), pl.program_id(2)
        first_step = jnp.logical_and(ki == 0, ti == 0)
    else:
        conv_ref, xg_ref = scratch
        ki, ti = None, pl.program_id(1)
        first_step = ti == 0

    # ---- per-row-tile init of the Conv1d accumulator -------------------------
    @pl.when(first_step)
    def _():
        conv_ref[...] = jnp.zeros_like(conv_ref)

    if n_k > 1:
        # K-tiled backbone matmul, per-frame f32 accumulators (init at ki==0).
        @pl.when(ki == 0)
        def _():
            acc_ref[ti] = jnp.zeros((bt, FEAT), f32)

        acc_ref[ti] += jnp.dot(x_ref[...], wnet_ref[...], preferred_element_type=f32)

    def per_frame_tail():
        if n_k > 1:
            pre = acc_ref[ti]
        else:
            # n_k == 1 specialization: single-shot backbone matmul, no RMW.
            pre = jnp.dot(x_ref[...], wnet_ref[...], preferred_element_type=f32)
        f = jnp.maximum(pre + bnet_ref[...], 0.0)                  # (Bt, 512) f32
        # Conv1d(7 -> 1, kernel_size=1): one aligned FMA per frame on resident data.
        conv_ref[...] += convw_ref[0, ti] * f
        # GRU input gates for this frame, staged time-major in bf16 scratch
        # (bih is added in f32 at use inside the recurrence).
        xg_ref[ti] = jnp.dot(f.astype(bf16), wih_ref[...],
                             preferred_element_type=f32).astype(bf16)

        # ---- head (last frame): GRU recurrence + classifier ------------------
        @pl.when(ti == n_t - 1)
        def _():
            conv_out = conv_ref[...] + convb_ref[0, 0]             # (Bt, 512)
            h = jnp.zeros((bt, hp), f32)
            for t in range(n_t):                                   # T = 7, unrolled
                xg_t = xg_ref[t].astype(f32) + bih_ref[...]        # (Bt, 3*Hp)
                hg = (jnp.dot(h.astype(bf16), whh_ref[...],
                              preferred_element_type=f32) + bhh_ref[...])
                r = jax.nn.sigmoid(xg_t[:, 0 * hp:1 * hp] + hg[:, 0 * hp:1 * hp])
                z = jax.nn.sigmoid(xg_t[:, 1 * hp:2 * hp] + hg[:, 1 * hp:2 * hp])
                n = jnp.tanh(xg_t[:, 2 * hp:3 * hp] + r * hg[:, 2 * hp:3 * hp])
                h = (1.0 - z) * n + z * h                          # (Bt, Hp)
            # classifier: cat([h, conv_out], 1) @ W1 as a split matmul, then W2.
            z1 = (jnp.dot(h.astype(bf16), w1h_ref[...], preferred_element_type=f32)
                  + jnp.dot(conv_out.astype(bf16), w1c_ref[...],
                            preferred_element_type=f32)
                  + b1_ref[...])                                   # (Bt, 256)
            out_ref[...] = (jnp.dot(z1.astype(bf16), w2_ref[...],
                                    preferred_element_type=f32)
                            + b2_ref[...])                         # (Bt, 128)

    if n_k > 1:
        @pl.when(ki == n_k - 1)
        def _():
            per_frame_tail()
    else:
        per_frame_tail()


def _pad_gates(w, h, hp, axis):
    """Zero-pad each of the 3 GRU gate blocks (size h) to hp along `axis`."""
    parts = jnp.split(w, 3, axis=axis)
    pad = [(0, 0)] * w.ndim
    pad[axis] = (0, hp - h)
    return jnp.concatenate([jnp.pad(p, pad) for p in parts], axis=axis)


def prepare_params(params, kt_cap):
    """Pad weights to lane/sublane-friendly shapes; cast matmul operands to bf16."""
    f32, bf16 = jnp.float32, jnp.bfloat16
    chw = params["wnet"].shape[0]
    h = params["whh"].shape[0]
    hp = _round_up(h, 128)                       # lane-padded hidden width
    kt, chwp, n_k = _choose_k_tile(chw, kt_cap)

    p = {}
    p["wnet"] = jnp.pad(params["wnet"], ((0, chwp - chw), (0, 0))).astype(bf16)
    p["bnet"] = params["bnet"].reshape(1, FEAT).astype(f32)
    p["convw"] = params["convw"].reshape(1, T_FRAMES).astype(f32)
    p["convb"] = params["convb"].reshape(1, 1).astype(f32)
    p["wih"] = _pad_gates(params["wih"], h, hp, axis=1).astype(bf16)
    p["bih"] = _pad_gates(params["bih"].reshape(1, 3 * h), h, hp, axis=1).astype(f32)
    p["whh"] = jnp.pad(_pad_gates(params["whh"], h, hp, axis=1),
                       ((0, hp - h), (0, 0))).astype(bf16)
    p["bhh"] = _pad_gates(params["bhh"].reshape(1, 3 * h), h, hp, axis=1).astype(f32)
    p["w1h"] = jnp.pad(params["w1"][:h], ((0, hp - h), (0, MID_PAD - MID))).astype(bf16)
    p["w1c"] = jnp.pad(params["w1"][h:], ((0, 0), (0, MID_PAD - MID))).astype(bf16)
    p["b1"] = jnp.pad(params["b1"].reshape(1, MID),
                      ((0, 0), (0, MID_PAD - MID))).astype(f32)
    p["w2"] = jnp.pad(params["w2"],
                      ((0, MID_PAD - MID), (0, NCLS_PAD - NCLS))).astype(bf16)
    p["b2"] = jnp.pad(params["b2"].reshape(1, NCLS),
                      ((0, 0), (0, NCLS_PAD - NCLS))).astype(f32)
    return p, hp, kt, chwp, n_k


def prepare_x(x, chwp, bpad):
    """(B,T,C,H,W) f32 -> (Bpad, T*CHWpad) bf16 (reshape + zero pad; no transpose)."""
    b, t, c, hh, ww = x.shape
    chw = c * hh * ww
    x2 = x.reshape(b, t, chw)
    x2 = jnp.pad(x2, ((0, bpad - b), (0, 0), (0, chwp - chw)))
    return x2.astype(jnp.bfloat16).reshape(bpad, t * chwp)


def ltsm_conv_forward(x, params, x_buffers=None):
    """x: (B, T=7, C, H, W) float32 -> (B, 4) float32 logits."""
    B, T = x.shape[0], x.shape[1]
    if T != T_FRAMES:
        raise ValueError("LTSM_conv requires T == 7 (Conv1d in_channels=7).")

    chip = _chip_kind()
    cfg = _gen_config(chip)
    if x_buffers is None:
        x_buffers = cfg["x_buffers"]

    p, HP, KT, CHWP, n_k = prepare_params(params, cfg["kt_cap"])
    BT, BPAD = _choose_row_tile(B, chip, cfg["bt_cap"])
    x2 = prepare_x(x, CHWP, BPAD)
    n_b = BPAD // BT

    kernel = functools.partial(_ltsm_conv_kernel, n_t=T, n_k=n_k, hp=HP, bt=BT)
    smem = pl.BlockSpec(memory_space=pltpu.MemorySpace.SMEM)

    if n_k > 1:
        grid = (n_b, n_k, T)
        dims = ("parallel", "arbitrary", "arbitrary")
        x_map = lambda bi, ki, ti: (bi, ti * n_k + ki)   # (b,t)->time-major + K tiling
        wnet_map = lambda bi, ki, ti: (ki, 0)
        c_map = lambda bi, ki, ti: (0, 0)
        o_map = lambda bi, ki, ti: (bi, 0)
    else:
        grid = (n_b, T)
        dims = ("parallel", "arbitrary")
        x_map = lambda bi, ti: (bi, ti)
        wnet_map = lambda bi, ti: (0, 0)
        c_map = lambda bi, ti: (0, 0)
        o_map = lambda bi, ti: (bi, 0)

    def const(shape):
        # Index-invariant weights; default double buffering (~1-2 MiB total) is
        # acceptable here since VMEM is not the binding constraint at these tiles.
        return pl.BlockSpec(shape, c_map)

    in_specs = [
        smem, smem,                                                   # convw, convb
        _x_block_spec((BT, KT), x_map, x_buffers),                    # x (streamed)
        pl.BlockSpec((KT, FEAT), wnet_map),                           # wnet (streamed)
        const((1, FEAT)),                                             # bnet
        const((FEAT, 3 * HP)),                                        # wih
        const((1, 3 * HP)),                                           # bih
        const((HP, 3 * HP)),                                          # whh
        const((1, 3 * HP)),                                           # bhh
        const((HP, MID_PAD)),                                         # w1h
        const((FEAT, MID_PAD)),                                       # w1c
        const((1, MID_PAD)),                                          # b1
        const((MID_PAD, NCLS_PAD)),                                   # w2
        const((1, NCLS_PAD)),                                         # b2
    ]
    out_spec = pl.BlockSpec((BT, NCLS_PAD), o_map)

    scratch_shapes = []
    if n_k > 1:
        scratch_shapes.append(pltpu.VMEM((T, BT, FEAT), jnp.float32))  # backbone acc
    scratch_shapes += [
        pltpu.VMEM((BT, FEAT), jnp.float32),           # Conv1d accumulator
        pltpu.VMEM((T, BT, 3 * HP), jnp.bfloat16),     # staged GRU input gates (bf16)
    ]

    # ---- scoped-VMEM budget: actual tile usage + 25% headroom, per-gen cap ----
    weight_vmem = 2 * 2 * (KT * FEAT + FEAT * 3 * HP + HP * 3 * HP
                           + HP * MID_PAD + FEAT * MID_PAD + MID_PAD * NCLS_PAD)
    bias_vmem = 2 * 4 * (FEAT + 2 * (3 * HP) + MID_PAD + NCLS_PAD)
    scratch_vmem = ((T * BT * FEAT * 4 if n_k > 1 else 0)
                    + BT * FEAT * 4 + T * BT * 3 * HP * 2)
    vmem_use = (x_buffers * BT * KT * 2 + weight_vmem + bias_vmem
                + 2 * BT * NCLS_PAD * 4 + scratch_vmem)
    vmem_limit = int(min(cfg["vmem_cap"], max(32 * 2**20, int(vmem_use * 1.25))))

    flops = (2 * T * BPAD * CHWP * FEAT            # backbone matmul
             + 2 * T * BPAD * FEAT * 3 * HP        # GRU input gates
             + 2 * T * BPAD * HP * 3 * HP          # GRU hidden gates
             + 2 * BPAD * (HP + FEAT) * MID_PAD    # classifier L1
             + 2 * BPAD * MID_PAD * NCLS_PAD)      # classifier L2
    weight_bytes = sum(int(v.size) * v.dtype.itemsize for v in p.values())
    bytes_accessed = (int(x2.size) * 2                         # x streamed once (bf16)
                      + int(p["wnet"].size) * 2 * max(n_b - 1, 0)  # wnet re-stream
                      + weight_bytes
                      + BPAD * NCLS_PAD * 4)
    cost = pl.CostEstimate(flops=flops, transcendentals=3 * T * BPAD * HP,
                           bytes_accessed=bytes_accessed)

    out = pl.pallas_call(
        kernel,
        out_shape=jax.ShapeDtypeStruct((BPAD, NCLS_PAD), jnp.float32),
        grid=grid,
        in_specs=in_specs,
        out_specs=out_spec,
        scratch_shapes=scratch_shapes,
        compiler_params=pltpu.CompilerParams(
            # Row tiles are independent -> megacore-shardable; K / T carry
            # VMEM-scratch state -> sequential.
            dimension_semantics=dims,
            vmem_limit_bytes=vmem_limit),
        cost_estimate=cost,
    )(p["convw"], p["convb"], x2, p["wnet"], p["bnet"],
      p["wih"], p["bih"], p["whh"], p["bhh"],
      p["w1h"], p["w1c"], p["b1"], p["w2"], p["b2"])

    return out[:B, :NCLS]


def init_params(key, chw, hidden):
    """Deterministic synthetic parameters (PyTorch-style uniform init),
    stored in math-ready (right-multiply) layout."""
    ks = jax.random.split(key, 12)

    def u(k, shape, fan_in):
        b = 1.0 / np.sqrt(fan_in)
        return jax.random.uniform(k, shape, jnp.float32, -b, b)

    return {
        "wnet": u(ks[0], (chw, FEAT), chw),                  # backbone Linear(CHW, 512)
        "bnet": u(ks[1], (FEAT,), chw),
        "convw": u(ks[2], (T_FRAMES,), T_FRAMES),            # Conv1d(7 -> 1, k=1)
        "convb": u(ks[3], (), T_FRAMES),
        "wih": u(ks[4], (FEAT, 3 * hidden), FEAT),           # GRU, gate order [r|z|n]
        "bih": u(ks[5], (3 * hidden,), hidden),
        "whh": u(ks[6], (hidden, 3 * hidden), hidden),
        "bhh": u(ks[7], (3 * hidden,), hidden),
        "w1": u(ks[8], (hidden + FEAT, MID), hidden + FEAT), # Linear(H+512, 200)
        "b1": u(ks[9], (MID,), hidden + FEAT),
        "w2": u(ks[10], (MID, NCLS), MID),                   # Linear(200, 4)
        "b2": u(ks[11], (NCLS,), MID),
    }


def reference_forward(x, params):
    """Pure-JAX mirror of the kernel math (same padding + bf16 operand casts)."""
    f32, bf16 = jnp.float32, jnp.bfloat16
    B, T = x.shape[0], x.shape[1]
    chip = _chip_kind()
    cfg = _gen_config(chip)
    p, HP, KT, CHWP, _ = prepare_params(params, cfg["kt_cap"])
    BT, BPAD = _choose_row_tile(B, chip, cfg["bt_cap"])
    x2 = prepare_x(x, CHWP, BPAD)
    x3 = x2.reshape(BPAD, T, CHWP)

    feats = jnp.maximum(
        jnp.einsum("btk,kf->btf", x3, p["wnet"], preferred_element_type=f32)
        + p["bnet"][0], 0.0)                                        # (BPAD, T, 512)
    conv_out = jnp.einsum("t,btf->bf", p["convw"][0], feats) + p["convb"][0, 0]
    xg = jnp.einsum("btf,fg->btg", feats.astype(bf16), p["wih"],
                    preferred_element_type=f32).astype(bf16)        # (BPAD, T, 3HP)
    h = jnp.zeros((BPAD, HP), f32)
    for t in range(T):
        xg_t = xg[:, t].astype(f32) + p["bih"][0]
        hg = jnp.dot(h.astype(bf16), p["whh"], preferred_element_type=f32) + p["bhh"][0]
        r = jax.nn.sigmoid(xg_t[:, 0 * HP:1 * HP] + hg[:, 0 * HP:1 * HP])
        z = jax.nn.sigmoid(xg_t[:, 1 * HP:2 * HP] + hg[:, 1 * HP:2 * HP])
        n = jnp.tanh(xg_t[:, 2 * HP:3 * HP] + r * hg[:, 2 * HP:3 * HP])
        h = (1.0 - z) * n + z * h
    z1 = (jnp.dot(h.astype(bf16), p["w1h"], preferred_element_type=f32)
          + jnp.dot(conv_out.astype(bf16), p["w1c"], preferred_element_type=f32)
          + p["b1"][0])
    logits = jnp.dot(z1.astype(bf16), p["w2"], preferred_element_type=f32) + p["b2"][0]
    return logits[:B, :NCLS]


if __name__ == "__main__":
    B, T, C, Hi, Wi = 2, 7, 3, 8, 8     # T must be 7 (Conv1d in_channels=7)
    hidden = 32

    key = jax.random.PRNGKey(0)
    k_x, k_p = jax.random.split(key)
    x = jax.random.normal(k_x, (B, T, C, Hi, Wi), dtype=jnp.float32)
    params = init_params(k_p, C * Hi * Wi, hidden)

    try:
        out = jax.block_until_ready(jax.jit(ltsm_conv_forward)(x, params))
    except Exception:
        # Fallback for jax/libtpu builds where pipeline_mode=pl.Buffered(n) is not
        # supported in the pallas_call pipeline (only reachable on v5e configs).
        out = jax.block_until_ready(
            jax.jit(functools.partial(ltsm_conv_forward, x_buffers=2))(x, params))
    assert out.shape == (B, NCLS)

    ref = jax.block_until_ready(reference_forward(x, params))
    np.testing.assert_allclose(np.asarray(out), np.asarray(ref), rtol=2e-3, atol=2e-3)

    print("KERNEL_OK")
</pallas_src>

<mosaic_0001>
module attributes {stable_mosaic.version = 11 : i64} {
  func.func @_ltsm_conv_kernel(%arg0: i32, %arg1: i32, %arg2: memref<1x7xf32, #tpu.memory_space<smem>>, %arg3: memref<1x1xf32, #tpu.memory_space<smem>>, %arg4: memref<16x256xbf16, #tpu.memory_space<vmem>>, %arg5: memref<256x512xbf16, #tpu.memory_space<vmem>>, %arg6: memref<1x512xf32, #tpu.memory_space<vmem>>, %arg7: memref<512x384xbf16, #tpu.memory_space<vmem>>, %arg8: memref<1x384xf32, #tpu.memory_space<vmem>>, %arg9: memref<128x384xbf16, #tpu.memory_space<vmem>>, %arg10: memref<1x384xf32, #tpu.memory_space<vmem>>, %arg11: memref<128x256xbf16, #tpu.memory_space<vmem>>, %arg12: memref<512x256xbf16, #tpu.memory_space<vmem>>, %arg13: memref<1x256xf32, #tpu.memory_space<vmem>>, %arg14: memref<256x128xbf16, #tpu.memory_space<vmem>>, %arg15: memref<1x128xf32, #tpu.memory_space<vmem>>, %arg16: memref<16x128xf32, #tpu.memory_space<vmem>>, %arg17: memref<16x512xf32, #tpu.memory_space<vmem>>, %arg18: memref<7x16x384xbf16, #tpu.memory_space<vmem>>) attributes {dimension_semantics = [#tpu.dimension_semantics<parallel>, #tpu.dimension_semantics<arbitrary>], iteration_bounds = array<i64: 1, 7>, scalar_prefetch = 0 : i64, scratch_operands = 2 : i64, tpu.core_type = #tpu.core_type<tc>, window_params = [{transform_indices = @transform_0, window_bounds = array<i64: 1, 7>}, {transform_indices = @transform_1, window_bounds = array<i64: 1, 1>}, {transform_indices = @transform_2, window_bounds = array<i64: 16, 256>}, {pipeline_mode = #tpu.pipeline_mode<synchronous>, transform_indices = @transform_3, window_bounds = array<i64: 256, 512>}, {pipeline_mode = #tpu.pipeline_mode<synchronous>, transform_indices = @transform_4, window_bounds = array<i64: 1, 512>}, {pipeline_mode = #tpu.pipeline_mode<synchronous>, transform_indices = @transform_5, window_bounds = array<i64: 512, 384>}, {pipeline_mode = #tpu.pipeline_mode<synchronous>, transform_indices = @transform_6, window_bounds = array<i64: 1, 384>}, {pipeline_mode = #tpu.pipeline_mode<synchronous>, transform_indices = @transform_7, window_bounds = array<i64: 128, 384>}, {pipeline_mode = #tpu.pipeline_mode<synchronous>, transform_indices = @transform_8, window_bounds = array<i64: 1, 384>}, {pipeline_mode = #tpu.pipeline_mode<synchronous>, transform_indices = @transform_9, window_bounds = array<i64: 128, 256>}, {pipeline_mode = #tpu.pipeline_mode<synchronous>, transform_indices = @transform_10, window_bounds = array<i64: 512, 256>}, {pipeline_mode = #tpu.pipeline_mode<synchronous>, transform_indices = @transform_11, window_bounds = array<i64: 1, 256>}, {pipeline_mode = #tpu.pipeline_mode<synchronous>, transform_indices = @transform_12, window_bounds = array<i64: 256, 128>}, {pipeline_mode = #tpu.pipeline_mode<synchronous>, transform_indices = @transform_13, window_bounds = array<i64: 1, 128>}, {transform_indices = @transform_14, window_bounds = array<i64: 16, 128>}]} {
    %c0_i32 = arith.constant 0 : i32
    %0 = arith.cmpi eq, %arg1, %c0_i32 : i32
    %1 = arith.extui %0 : i1 to i32
    %c0_i32_0 = arith.constant 0 : i32
    %2 = arith.cmpi ne, %1, %c0_i32_0 : i32
    scf.if %2 {
      %cst_18 = arith.constant 0.000000e+00 : f32
      %29 = vector.broadcast %cst_18 : f32 to vector<16x512xf32>
      %c0_19 = arith.constant 0 : index
      %c0_20 = arith.constant 0 : index
      %30 = vector.load %arg17[%c0_19, %c0_20] : memref<16x512xf32, #tpu.memory_space<vmem>>, vector<16x512xf32>
      tpu.vector_store %arg17[%c0_19, %c0_20], %29 {strides = array<i32>} : memref<16x512xf32, #tpu.memory_space<vmem>>, vector<16x512xf32>,
    } else {
    }
    %c0 = arith.constant 0 : index
    %c0_1 = arith.constant 0 : index
    %3 = vector.load %arg4[%c0, %c0_1] : memref<16x256xbf16, #tpu.memory_space<vmem>>, vector<16x256xbf16>
    %c0_2 = arith.constant 0 : index
    %c0_3 = arith.constant 0 : index
    %4 = vector.load %arg5[%c0_2, %c0_3] : memref<256x512xbf16, #tpu.memory_space<vmem>>, vector<256x512xbf16>
    %cst = arith.constant dense<0.000000e+00> : vector<16x512xf32>
    %5 = tpu.matmul %3, %4, %cst {dimension_numbers = #tpu.dot_dimension_numbers<[1], [0], [0], [1], [0, 0, 1, 1], [], []>} : vector<16x256xbf16>, vector<256x512xbf16>, vector<16x512xf32> -> vector<16x512xf32>
    %c0_4 = arith.constant 0 : index
    %c0_5 = arith.constant 0 : index
    %6 = vector.load %arg6[%c0_4, %c0_5] : memref<1x512xf32, #tpu.memory_space<vmem>>, vector<1x512xf32>
    %7 = vector.broadcast %6 : vector<1x512xf32> to vector<16x512xf32>
    %8 = arith.addf %5, %7 : vector<16x512xf32>
    %cst_6 = arith.constant 0.000000e+00 : f32
    %9 = vector.broadcast %cst_6 : f32 to vector<16x512xf32>
    %10 = arith.maximumf %8, %9 : vector<16x512xf32>
    %c0_7 = arith.constant 0 : index
    %c0_8 = arith.constant 0 : index
    %11 = vector.load %arg17[%c0_7, %c0_8] : memref<16x512xf32, #tpu.memory_space<vmem>>, vector<16x512xf32>
    %c0_9 = arith.constant 0 : index
    %12 = arith.index_cast %arg1 : i32 to index
    %13 = memref.load %arg2[%c0_9, %12] : memref<1x7xf32, #tpu.memory_space<smem>>
    %14 = vector.broadcast %13 : f32 to vector<16x512xf32>
    %15 = arith.mulf %14, %10 : vector<16x512xf32>
    %16 = arith.addf %11, %15 : vector<16x512xf32>
    %c0_10 = arith.constant 0 : index
    %c0_11 = arith.constant 0 : index
    %17 = vector.load %arg17[%c0_10, %c0_11] : memref<16x512xf32, #tpu.memory_space<vmem>>, vector<16x512xf32>
    tpu.vector_store %arg17[%c0_10, %c0_11], %16 {strides = array<i32>} : memref<16x512xf32, #tpu.memory_space<vmem>>, vector<16x512xf32>,
    %18 = arith.truncf %10 : vector<16x512xf32> to vector<16x512xbf16>
    %c0_12 = arith.constant 0 : index
    %c0_13 = arith.constant 0 : index
    %19 = vector.load %arg7[%c0_12, %c0_13] : memref<512x384xbf16, #tpu.memory_space<vmem>>, vector<512x384xbf16>
    %cst_14 = arith.constant dense<0.000000e+00> : vector<16x384xf32>
    %20 = tpu.matmul %18, %19, %cst_14 {dimension_numbers = #tpu.dot_dimension_numbers<[1], [0], [0], [1], [0, 0, 1, 1], [], []>} : vector<16x512xbf16>, vector<512x384xbf16>, vector<16x384xf32> -> vector<16x384xf32>
    %21 = arith.truncf %20 : vector<16x384xf32> to vector<16x384xbf16>
    %22 = arith.index_cast %arg1 : i32 to index
    %c0_15 = arith.constant 0 : index
    %c0_16 = arith.constant 0 : index
    %23 = vector.load %arg18[%22, %c0_15, %c0_16] : memref<7x16x384xbf16, #tpu.memory_space<vmem>>, vector<1x16x384xbf16>
    %24 = vector.shape_cast %23 : vector<1x16x384xbf16> to vector<16x384xbf16>
    %25 = vector.shape_cast %21 : vector<16x384xbf16> to vector<1x16x384xbf16>
    tpu.vector_store %arg18[%22, %c0_15, %c0_16], %25 {strides = array<i32>} : memref<7x16x384xbf16, #tpu.memory_space<vmem>>, vector<1x16x384xbf16>,
    %c6_i32 = arith.constant 6 : i32
    %26 = arith.cmpi eq, %arg1, %c6_i32 : i32
    %27 = arith.extui %26 : i1 to i32
    %c0_i32_17 = arith.constant 0 : i32
    %28 = arith.cmpi ne, %27, %c0_i32_17 : i32
    scf.if %28 {
      %c0_18 = arith.constant 0 : index
      %c0_19 = arith.constant 0 : index
      %29 = vector.load %arg17[%c0_18, %c0_19] : memref<16x512xf32, #tpu.memory_space<vmem>>, vector<16x512xf32>
      %c0_20 = arith.constant 0 : index
      %c0_21 = arith.constant 0 : index
      %30 = memref.load %arg3[%c0_20, %c0_21] : memref<1x1xf32, #tpu.memory_space<smem>>
      %31 = vector.broadcast %30 : f32 to vector<16x512xf32>
      %32 = arith.addf %29, %31 : vector<16x512xf32>
      %cst_22 = arith.constant 0.000000e+00 : f32
      %33 = vector.broadcast %cst_22 : f32 to vector<16x128xf32>
      %c0_23 = arith.constant 0 : index
      %c0_24 = arith.constant 0 : index
      %c0_25 = arith.constant 0 : index
      %34 = vector.load %arg18[%c0_23, %c0_24, %c0_25] : memref<7x16x384xbf16, #tpu.memory_space<vmem>>, vector<1x16x384xbf16>
      %35 = vector.shape_cast %34 : vector<1x16x384xbf16> to vector<16x384xbf16>
      %36 = arith.extf %35 : vector<16x384xbf16> to vector<16x384xf32>
      %c0_26 = arith.constant 0 : index
      %c0_27 = arith.constant 0 : index
      %37 = vector.load %arg8[%c0_26, %c0_27] : memref<1x384xf32, #tpu.memory_space<vmem>>, vector<1x384xf32>
      %38 = vector.broadcast %37 : vector<1x384xf32> to vector<16x384xf32>
      %39 = arith.addf %36, %38 : vector<16x384xf32>
      %40 = arith.truncf %33 : vector<16x128xf32> to vector<16x128xbf16>
      %c0_28 = arith.constant 0 : index
      %c0_29 = arith.constant 0 : index
      %41 = vector.load %arg9[%c0_28, %c0_29] : memref<128x384xbf16, #tpu.memory_space<vmem>>, vector<128x384xbf16>
      %cst_30 = arith.constant dense<0.000000e+00> : vector<16x384xf32>
      %42 = tpu.matmul %40, %41, %cst_30 {dimension_numbers = #tpu.dot_dimension_numbers<[1], [0], [0], [1], [0, 0, 1, 1], [], []>} : vector<16x128xbf16>, vector<128x384xbf16>, vector<16x384xf32> -> vector<16x384xf32>
      %c0_31 = arith.constant 0 : index
      %c0_32 = arith.constant 0 : index
      %43 = vector.load %arg10[%c0_31, %c0_32] : memref<1x384xf32, #tpu.memory_space<vmem>>, vector<1x384xf32>
      %44 = vector.broadcast %43 : vector<1x384xf32> to vector<16x384xf32>
      %45 = arith.addf %42, %44 : vector<16x384xf32>
      %46 = vector.extract_strided_slice %39 {offsets = [0, 0], sizes = [16, 128], strides = [1, 1]} : vector<16x384xf32> to vector<16x128xf32>
      %47 = vector.extract_strided_slice %45 {offsets = [0, 0], sizes = [16, 128], strides = [1, 1]} : vector<16x384xf32> to vector<16x128xf32>
      %48 = arith.addf %46, %47 : vector<16x128xf32>
      %49 = arith.negf %48 : vector<16x128xf32>
      %50 = math.exp %49 : vector<16x128xf32>
      %cst_33 = arith.constant 1.000000e+00 : f32
      %51 = vector.broadcast %cst_33 : f32 to vector<16x128xf32>
      %52 = arith.addf %51, %50 : vector<16x128xf32>
      %53 = arith.divf %51, %52 : vector<16x128xf32>
      %54 = vector.extract_strided_slice %39 {offsets = [0, 128], sizes = [16, 128], strides = [1, 1]} : vector<16x384xf32> to vector<16x128xf32>
      %55 = vector.extract_strided_slice %45 {offsets = [0, 128], sizes = [16, 128], strides = [1, 1]} : vector<16x384xf32> to vector<16x128xf32>
      %56 = arith.addf %54, %55 : vector<16x128xf32>
      %57 = arith.negf %56 : vector<16x128xf32>
      %58 = math.exp %57 : vector<16x128xf32>
      %cst_34 = arith.constant 1.000000e+00 : f32
      %59 = vector.broadcast %cst_34 : f32 to vector<16x128xf32>
      %60 = arith.addf %59, %58 : vector<16x128xf32>
      %61 = arith.divf %59, %60 : vector<16x128xf32>
      %62 = vector.extract_strided_slice %39 {offsets = [0, 256], sizes = [16, 128], strides = [1, 1]} : vector<16x384xf32> to vector<16x128xf32>
      %63 = vector.extract_strided_slice %45 {offsets = [0, 256], sizes = [16, 128], strides = [1, 1]} : vector<16x384xf32> to vector<16x128xf32>
      %64 = arith.mulf %53, %63 : vector<16x128xf32>
      %65 = arith.addf %62, %64 : vector<16x128xf32>
      %66 = math.tanh %65 : vector<16x128xf32>
      %cst_35 = arith.constant 1.000000e+00 : f32
      %67 = vector.broadcast %cst_35 : f32 to vector<16x128xf32>
      %68 = arith.subf %67, %61 : vector<16x128xf32>
      %69 = arith.mulf %68, %66 : vector<16x128xf32>
      %70 = arith.mulf %61, %33 : vector<16x128xf32>
      %71 = arith.addf %69, %70 : vector<16x128xf32>
      %c1 = arith.constant 1 : index
      %c0_36 = arith.constant 0 : index
      %c0_37 = arith.constant 0 : index
      %72 = vector.load %arg18[%c1, %c0_36, %c0_37] : memref<7x16x384xbf16, #tpu.memory_space<vmem>>, vector<1x16x384xbf16>
      %73 = vector.shape_cast %72 : vector<1x16x384xbf16> to vector<16x384xbf16>
      %74 = arith.extf %73 : vector<16x384xbf16> to vector<16x384xf32>
      %c0_38 = arith.constant 0 : index
      %c0_39 = arith.constant 0 : index
      %75 = vector.load %arg8[%c0_38, %c0_39] : memref<1x384xf32, #tpu.memory_space<vmem>>, vector<1x384xf32>
      %76 = vector.broadcast %75 : vector<1x384xf32> to vector<16x384xf32>
      %77 = arith.addf %74, %76 : vector<16x384xf32>
      %78 = arith.truncf %71 : vector<16x128xf32> to vector<16x128xbf16>
      %c0_40 = arith.constant 0 : index
      %c0_41 = arith.constant 0 : index
      %79 = vector.load %arg9[%c0_40, %c0_41] : memref<128x384xbf16, #tpu.memory_space<vmem>>, vector<128x384xbf16>
      %cst_42 = arith.constant dense<0.000000e+00> : vector<16x384xf32>
      %80 = tpu.matmul %78, %79, %cst_42 {dimension_numbers = #tpu.dot_dimension_numbers<[1], [0], [0], [1], [0, 0, 1, 1], [], []>} : vector<16x128xbf16>, vector<128x384xbf16>, vector<16x384xf32> -> vector<16x384xf32>
      %c0_43 = arith.constant 0 : index
      %c0_44 = arith.constant 0 : index
      %81 = vector.load %arg10[%c0_43, %c0_44] : memref<1x384xf32, #tpu.memory_space<vmem>>, vector<1x384xf32>
      %82 = vector.broadcast %81 : vector<1x384xf32> to vector<16x384xf32>
      %83 = arith.addf %80, %82 : vector<16x384xf32>
      %84 = vector.extract_strided_slice %77 {offsets = [0, 0], sizes = [16, 128], strides = [1, 1]} : vector<16x384xf32> to vector<16x128xf32>
      %85 = vector.extract_strided_slice %83 {offsets = [0, 0], sizes = [16, 128], strides = [1, 1]} : vector<16x384xf32> to vector<16x128xf32>
      %86 = arith.addf %84, %85 : vector<16x128xf32>
      %87 = arith.negf %86 : vector<16x128xf32>
      %88 = math.exp %87 : vector<16x128xf32>
      %cst_45 = arith.constant 1.000000e+00 : f32
      %89 = vector.broadcast %cst_45 : f32 to vector<16x128xf32>
      %90 = arith.addf %89, %88 : vector<16x128xf32>
      %91 = arith.divf %89, %90 : vector<16x128xf32>
      %92 = vector.extract_strided_slice %77 {offsets = [0, 128], sizes = [16, 128], strides = [1, 1]} : vector<16x384xf32> to vector<16x128xf32>
      %93 = vector.extract_strided_slice %83 {offsets = [0, 128], sizes = [16, 128], strides = [1, 1]} : vector<16x384xf32> to vector<16x128xf32>
      %94 = arith.addf %92, %93 : vector<16x128xf32>
      %95 = arith.negf %94 : vector<16x128xf32>
      %96 = math.exp %95 : vector<16x128xf32>
      %cst_46 = arith.constant 1.000000e+00 : f32
      %97 = vector.broadcast %cst_46 : f32 to vector<16x128xf32>
      %98 = arith.addf %97, %96 : vector<16x128xf32>
      %99 = arith.divf %97, %98 : vector<16x128xf32>
      %100 = vector.extract_strided_slice %77 {offsets = [0, 256], sizes = [16, 128], strides = [1, 1]} : vector<16x384xf32> to vector<16x128xf32>
      %101 = vector.extract_strided_slice %83 {offsets = [0, 256], sizes = [16, 128], strides = [1, 1]} : vector<16x384xf32> to vector<16x128xf32>
      %102 = arith.mulf %91, %101 : vector<16x128xf32>
      %103 = arith.addf %100, %102 : vector<16x128xf32>
      %104 = math.tanh %103 : vector<16x128xf32>
      %cst_47 = arith.constant 1.000000e+00 : f32
      %105 = vector.broadcast %cst_47 : f32 to vector<16x128xf32>
      %106 = arith.subf %105, %99 : vector<16x128xf32>
      %107 = arith.mulf %106, %104 : vector<16x128xf32>
      %108 = arith.mulf %99, %71 : vector<16x128xf32>
      %109 = arith.addf %107, %108 : vector<16x128xf32>
      %c2 = arith.constant 2 : index
      %c0_48 = arith.constant 0 : index
      %c0_49 = arith.constant 0 : index
      %110 = vector.load %arg18[%c2, %c0_48, %c0_49] : memref<7x16x384xbf16, #tpu.memory_space<vmem>>, vector<1x16x384xbf16>
      %111 = vector.shape_cast %110 : vector<1x16x384xbf16> to vector<16x384xbf16>
      %112 = arith.extf %111 : vector<16x384xbf16> to vector<16x384xf32>
      %c0_50 = arith.constant 0 : index
      %c0_51 = arith.constant 0 : index
      %113 = vector.load %arg8[%c0_50, %c0_51] : memref<1x384xf32, #tpu.memory_space<vmem>>, vector<1x384xf32>
      %114 = vector.broadcast %113 : vector<1x384xf32> to vector<16x384xf32>
      %115 = arith.addf %112, %114 : vector<16x384xf32>
      %116 = arith.truncf %109 : vector<16x128xf32> to vector<16x128xbf16>
      %c0_52 = arith.constant 0 : index
      %c0_53 = arith.constant 0 : index
      %117 = vector.load %arg9[%c0_52, %c0_53] : memref<128x384xbf16, #tpu.memory_space<vmem>>, vector<128x384xbf16>
      %cst_54 = arith.constant dense<0.000000e+00> : vector<16x384xf32>
      %118 = tpu.matmul %116, %117, %cst_54 {dimension_numbers = #tpu.dot_dimension_numbers<[1], [0], [0], [1], [0, 0, 1, 1], [], []>} : vector<16x128xbf16>, vector<128x384xbf16>, vector<16x384xf32> -> vector<16x384xf32>
      %c0_55 = arith.constant 0 : index
      %c0_56 = arith.constant 0 : index
      %119 = vector.load %arg10[%c0_55, %c0_56] : memref<1x384xf32, #tpu.memory_space<vmem>>, vector<1x384xf32>
      %120 = vector.broadcast %119 : vector<1x384xf32> to vector<16x384xf32>
      %121 = arith.addf %118, %120 : vector<16x384xf32>
      %122 = vector.extract_strided_slice %115 {offsets = [0, 0], sizes = [16, 128], strides = [1, 1]} : vector<16x384xf32> to vector<16x128xf32>
      %123 = vector.extract_strided_slice %121 {offsets = [0, 0], sizes = [16, 128], strides = [1, 1]} : vector<16x384xf32> to vector<16x128xf32>
      %124 = arith.addf %122, %123 : vector<16x128xf32>
      %125 = arith.negf %124 : vector<16x128xf32>
      %126 = math.exp %125 : vector<16x128xf32>
      %cst_57 = arith.constant 1.000000e+00 : f32
      %127 = vector.broadcast %cst_57 : f32 to vector<16x128xf32>
      %128 = arith.addf %127, %126 : vector<16x128xf32>
      %129 = arith.divf %127, %128 : vector<16x128xf32>
      %130 = vector.extract_strided_slice %115 {offsets = [0, 128], sizes = [16, 128], strides = [1, 1]} : vector<16x384xf32> to vector<16x128xf32>
      %131 = vector.extract_strided_slice %121 {offsets = [0, 128], sizes = [16, 128], strides = [1, 1]} : vector<16x384xf32> to vector<16x128xf32>
      %132 = arith.addf %130, %131 : vector<16x128xf32>
      %133 = arith.negf %132 : vector<16x128xf32>
      %134 = math.exp %133 : vector<16x128xf32>
      %cst_58 = arith.constant 1.000000e+00 : f32
      %135 = vector.broadcast %cst_58 : f32 to vector<16x128xf32>
      %136 = arith.addf %135, %134 : vector<16x128xf32>
      %137 = arith.divf %135, %136 : vector<16x128xf32>
      %138 = vector.extract_strided_slice %115 {offsets = [0, 256], sizes = [16, 128], strides = [1, 1]} : vector<16x384xf32> to vector<16x128xf32>
      %139 = vector.extract_strided_slice %121 {offsets = [0, 256], sizes = [16, 128], strides = [1, 1]} : vector<16x384xf32> to vector<16x128xf32>
      %140 = arith.mulf %129, %139 : vector<16x128xf32>
      %141 = arith.addf %138, %140 : vector<16x128xf32>
      %142 = math.tanh %141 : vector<16x128xf32>
      %cst_59 = arith.constant 1.000000e+00 : f32
      %143 = vector.broadcast %cst_59 : f32 to vector<16x128xf32>
      %144 = arith.subf %143, %137 : vector<16x128xf32>
      %145 = arith.mulf %144, %142 : vector<16x128xf32>
      %146 = arith.mulf %137, %109 : vector<16x128xf32>
      %147 = arith.addf %145, %146 : vector<16x128xf32>
      %c3 = arith.constant 3 : index
      %c0_60 = arith.constant 0 : index
      %c0_61 = arith.constant 0 : index
      %148 = vector.load %arg18[%c3, %c0_60, %c0_61] : memref<7x16x384xbf16, #tpu.memory_space<vmem>>, vector<1x16x384xbf16>
      %149 = vector.shape_cast %148 : vector<1x16x384xbf16> to vector<16x384xbf16>
      %150 = arith.extf %149 : vector<16x384xbf16> to vector<16x384xf32>
      %c0_62 = arith.constant 0 : index
      %c0_63 = arith.constant 0 : index
      %151 = vector.load %arg8[%c0_62, %c0_63] : memref<1x384xf32, #tpu.memory_space<vmem>>, vector<1x384xf32>
      %152 = vector.broadcast %151 : vector<1x384xf32> to vector<16x384xf32>
      %153 = arith.addf %150, %152 : vector<16x384xf32>
      %154 = arith.truncf %147 : vector<16x128xf32> to vector<16x128xbf16>
      %c0_64 = arith.constant 0 : index
      %c0_65 = arith.constant 0 : index
      %155 = vector.load %arg9[%c0_64, %c0_65] : memref<128x384xbf16, #tpu.memory_space<vmem>>, vector<128x384xbf16>
      %cst_66 = arith.constant dense<0.000000e+00> : vector<16x384xf32>
      %156 = tpu.matmul %154, %155, %cst_66 {dimension_numbers = #tpu.dot_dimension_numbers<[1], [0], [0], [1], [0, 0, 1, 1], [], []>} : vector<16x128xbf16>, vector<128x384xbf16>, vector<16x384xf32> -> vector<16x384xf32>
      %c0_67 = arith.constant 0 : index
      %c0_68 = arith.constant 0 : index
      %157 = vector.load %arg10[%c0_67, %c0_68] : memref<1x384xf32, #tpu.memory_space<vmem>>, vector<1x384xf32>
      %158 = vector.broadcast %157 : vector<1x384xf32> to vector<16x384xf32>
      %159 = arith.addf %156, %158 : vector<16x384xf32>
      %160 = vector.extract_strided_slice %153 {offsets = [0, 0], sizes = [16, 128], strides = [1, 1]} : vector<16x384xf32> to vector<16x128xf32>
      %161 = vector.extract_strided_slice %159 {offsets = [0, 0], sizes = [16, 128], strides = [1, 1]} : vector<16x384xf32> to vector<16x128xf32>
      %162 = arith.addf %160, %161 : vector<16x128xf32>
      %163 = arith.negf %162 : vector<16x128xf32>
      %164 = math.exp %163 : vector<16x128xf32>
      %cst_69 = arith.constant 1.000000e+00 : f32
      %165 = vector.broadcast %cst_69 : f32 to vector<16x128xf32>
      %166 = arith.addf %165, %164 : vector<16x128xf32>
      %167 = arith.divf %165, %166 : vector<16x128xf32>
      %168 = vector.extract_strided_slice %153 {offsets = [0, 128], sizes = [16, 128], strides = [1, 1]} : vector<16x384xf32> to vector<16x128xf32>
      %169 = vector.extract_strided_slice %159 {offsets = [0, 128], sizes = [16, 128], strides = [1, 1]} : vector<16x384xf32> to vector<16x128xf32>
      %170 = arith.addf %168, %169 : vector<16x128xf32>
      %171 = arith.negf %170 : vector<16x128xf32>
      %172 = math.exp %171 : vector<16x128xf32>
      %cst_70 = arith.constant 1.000000e+00 : f32
      %173 = vector.broadcast %cst_70 : f32 to vector<16x128xf32>
      %174 = arith.addf %173, %172 : vector<16x128xf32>
      %175 = arith.divf %173, %174 : vector<16x128xf32>
      %176 = vector.extract_strided_slice %153 {offsets = [0, 256], sizes = [16, 128], strides = [1, 1]} : vector<16x384xf32> to vector<16x128xf32>
      %177 = vector.extract_strided_slice %159 {offsets = [0, 256], sizes = [16, 128], strides = [1, 1]} : vector<16x384xf32> to vector<16x128xf32>
      %178 = arith.mulf %167, %177 : vector<16x128xf32>
      %179 = arith.addf %176, %178 : vector<16x128xf32>
      %180 = math.tanh %179 : vector<16x128xf32>
      %cst_71 = arith.constant 1.000000e+00 : f32
      %181 = vector.broadcast %cst_71 : f32 to vector<16x128xf32>
      %182 = arith.subf %181, %175 : vector<16x128xf32>
      %183 = arith.mulf %182, %180 : vector<16x128xf32>
      %184 = arith.mulf %175, %147 : vector<16x128xf32>
      %185 = arith.addf %183, %184 : vector<16x128xf32>
      %c4 = arith.constant 4 : index
      %c0_72 = arith.constant 0 : index
      %c0_73 = arith.constant 0 : index
      %186 = vector.load %arg18[%c4, %c0_72, %c0_73] : memref<7x16x384xbf16, #tpu.memory_space<vmem>>, vector<1x16x384xbf16>
      %187 = vector.shape_cast %186 : vector<1x16x384xbf16> to vector<16x384xbf16>
      %188 = arith.extf %187 : vector<16x384xbf16> to vector<16x384xf32>
      %c0_74 = arith.constant 0 : index
      %c0_75 = arith.constant 0 : index
      %189 = vector.load %arg8[%c0_74, %c0_75] : memref<1x384xf32, #tpu.memory_space<vmem>>, vector<1x384xf32>
      %190 = vector.broadcast %189 : vector<1x384xf32> to vector<16x384xf32>
      %191 = arith.addf %188, %190 : vector<16x384xf32>
      %192 = arith.truncf %185 : vector<16x128xf32> to vector<16x128xbf16>
      %c0_76 = arith.constant 0 : index
      %c0_77 = arith.constant 0 : index
      %193 = vector.load %arg9[%c0_76, %c0_77] : memref<128x384xbf16, #tpu.memory_space<vmem>>, vector<128x384xbf16>
      %cst_78 = arith.constant dense<0.000000e+00> : vector<16x384xf32>
      %194 = tpu.matmul %192, %193, %cst_78 {dimension_numbers = #tpu.dot_dimension_numbers<[1], [0], [0], [1], [0, 0, 1, 1], [], []>} : vector<16x128xbf16>, vector<128x384xbf16>, vector<16x384xf32> -> vector<16x384xf32>
      %c0_79 = arith.constant 0 : index
      %c0_80 = arith.constant 0 : index
      %195 = vector.load %arg10[%c0_79, %c0_80] : memref<1x384xf32, #tpu.memory_space<vmem>>, vector<1x384xf32>
      %196 = vector.broadcast %195 : vector<1x384xf32> to vector<16x384xf32>
      %197 = arith.addf %194, %196 : vector<16x384xf32>
      %198 = vector.extract_strided_slice %191 {offsets = [0, 0], sizes = [16, 128], strides = [1, 1]} : vector<16x384xf32> to vector<16x128xf32>
      %199 = vector.extract_strided_slice %197 {offsets = [0, 0], sizes = [16, 128], strides = [1, 1]} : vector<16x384xf32> to vector<16x128xf32>
      %200 = arith.addf %198, %199 : vector<16x128xf32>
      %201 = arith.negf %200 : vector<16x128xf32>
      %202 = math.exp %201 : vector<16x128xf32>
      %cst_81 = arith.constant 1.000000e+00 : f32
      %203 = vector.broadcast %cst_81 : f32 to vector<16x128xf32>
      %204 = arith.addf %203, %202 : vector<16x128xf32>
      %205 = arith.divf %203, %204 : vector<16x128xf32>
      %206 = vector.extract_strided_slice %191 {offsets = [0, 128], sizes = [16, 128], strides = [1, 1]} : vector<16x384xf32> to vector<16x128xf32>
      %207 = vector.extract_strided_slice %197 {offsets = [0, 128], sizes = [16, 128], strides = [1, 1]} : vector<16x384xf32> to vector<16x128xf32>
      %208 = arith.addf %206, %207 : vector<16x128xf32>
      %209 = arith.negf %208 : vector<16x128xf32>
      %210 = math.exp %209 : vector<16x128xf32>
      %cst_82 = arith.constant 1.000000e+00 : f32
      %211 = vector.broadcast %cst_82 : f32 to vector<16x128xf32>
      %212 = arith.addf %211, %210 : vector<16x128xf32>
      %213 = arith.divf %211, %212 : vector<16x128xf32>
      %214 = vector.extract_strided_slice %191 {offsets = [0, 256], sizes = [16, 128], strides = [1, 1]} : vector<16x384xf32> to vector<16x128xf32>
      %215 = vector.extract_strided_slice %197 {offsets = [0, 256], sizes = [16, 128], strides = [1, 1]} : vector<16x384xf32> to vector<16x128xf32>
      %216 = arith.mulf %205, %215 : vector<16x128xf32>
      %217 = arith.addf %214, %216 : vector<16x128xf32>
      %218 = math.tanh %217 : vector<16x128xf32>
      %cst_83 = arith.constant 1.000000e+00 : f32
      %219 = vector.broadcast %cst_83 : f32 to vector<16x128xf32>
      %220 = arith.subf %219, %213 : vector<16x128xf32>
      %221 = arith.mulf %220, %218 : vector<16x128xf32>
      %222 = arith.mulf %213, %185 : vector<16x128xf32>
      %223 = arith.addf %221, %222 : vector<16x128xf32>
      %c5 = arith.constant 5 : index
      %c0_84 = arith.constant 0 : index
      %c0_85 = arith.constant 0 : index
      %224 = vector.load %arg18[%c5, %c0_84, %c0_85] : memref<7x16x384xbf16, #tpu.memory_space<vmem>>, vector<1x16x384xbf16>
      %225 = vector.shape_cast %224 : vector<1x16x384xbf16> to vector<16x384xbf16>
      %226 = arith.extf %225 : vector<16x384xbf16> to vector<16x384xf32>
      %c0_86 = arith.constant 0 : index
      %c0_87 = arith.constant 0 : index
      %227 = vector.load %arg8[%c0_86, %c0_87] : memref<1x384xf32, #tpu.memory_space<vmem>>, vector<1x384xf32>
      %228 = vector.broadcast %227 : vector<1x384xf32> to vector<16x384xf32>
      %229 = arith.addf %226, %228 : vector<16x384xf32>
      %230 = arith.truncf %223 : vector<16x128xf32> to vector<16x128xbf16>
      %c0_88 = arith.constant 0 : index
      %c0_89 = arith.constant 0 : index
      %231 = vector.load %arg9[%c0_88, %c0_89] : memref<128x384xbf16, #tpu.memory_space<vmem>>, vector<128x384xbf16>
      %cst_90 = arith.constant dense<0.000000e+00> : vector<16x384xf32>
      %232 = tpu.matmul %230, %231, %cst_90 {dimension_numbers = #tpu.dot_dimension_numbers<[1], [0], [0], [1], [0, 0, 1, 1], [], []>} : vector<16x128xbf16>, vector<128x384xbf16>, vector<16x384xf32> -> vector<16x384xf32>
      %c0_91 = arith.constant 0 : index
      %c0_92 = arith.constant 0 : index
      %233 = vector.load %arg10[%c0_91, %c0_92] : memref<1x384xf32, #tpu.memory_space<vmem>>, vector<1x384xf32>
      %234 = vector.broadcast %233 : vector<1x384xf32> to vector<16x384xf32>
      %235 = arith.addf %232, %234 : vector<16x384xf32>
      %236 = vector.extract_strided_slice %229 {offsets = [0, 0], sizes = [16, 128], strides = [1, 1]} : vector<16x384xf32> to vector<16x128xf32>
      %237 = vector.extract_strided_slice %235 {offsets = [0, 0], sizes = [16, 128], strides = [1, 1]} : vector<16x384xf32> to vector<16x128xf32>
      %238 = arith.addf %236, %237 : vector<16x128xf32>
      %239 = arith.negf %238 : vector<16x128xf32>
      %240 = math.exp %239 : vector<16x128xf32>
      %cst_93 = arith.constant 1.000000e+00 : f32
      %241 = vector.broadcast %cst_93 : f32 to vector<16x128xf32>
      %242 = arith.addf %241, %240 : vector<16x128xf32>
      %243 = arith.divf %241, %242 : vector<16x128xf32>
      %244 = vector.extract_strided_slice %229 {offsets = [0, 128], sizes = [16, 128], strides = [1, 1]} : vector<16x384xf32> to vector<16x128xf32>
      %245 = vector.extract_strided_slice %235 {offsets = [0, 128], sizes = [16, 128], strides = [1, 1]} : vector<16x384xf32> to vector<16x128xf32>
      %246 = arith.addf %244, %245 : vector<16x128xf32>
      %247 = arith.negf %246 : vector<16x128xf32>
      %248 = math.exp %247 : vector<16x128xf32>
      %cst_94 = arith.constant 1.000000e+00 : f32
      %249 = vector.broadcast %cst_94 : f32 to vector<16x128xf32>
      %250 = arith.addf %249, %248 : vector<16x128xf32>
      %251 = arith.divf %249, %250 : vector<16x128xf32>
      %252 = vector.extract_strided_slice %229 {offsets = [0, 256], sizes = [16, 128], strides = [1, 1]} : vector<16x384xf32> to vector<16x128xf32>
      %253 = vector.extract_strided_slice %235 {offsets = [0, 256], sizes = [16, 128], strides = [1, 1]} : vector<16x384xf32> to vector<16x128xf32>
      %254 = arith.mulf %243, %253 : vector<16x128xf32>
      %255 = arith.addf %252, %254 : vector<16x128xf32>
      %256 = math.tanh %255 : vector<16x128xf32>
      %cst_95 = arith.constant 1.000000e+00 : f32
      %257 = vector.broadcast %cst_95 : f32 to vector<16x128xf32>
      %258 = arith.subf %257, %251 : vector<16x128xf32>
      %259 = arith.mulf %258, %256 : vector<16x128xf32>
      %260 = arith.mulf %251, %223 : vector<16x128xf32>
      %261 = arith.addf %259, %260 : vector<16x128xf32>
      %c6 = arith.constant 6 : index
      %c0_96 = arith.constant 0 : index
      %c0_97 = arith.constant 0 : index
      %262 = vector.load %arg18[%c6, %c0_96, %c0_97] : memref<7x16x384xbf16, #tpu.memory_space<vmem>>, vector<1x16x384xbf16>
      %263 = vector.shape_cast %262 : vector<1x16x384xbf16> to vector<16x384xbf16>
      %264 = arith.extf %263 : vector<16x384xbf16> to vector<16x384xf32>
      %c0_98 = arith.constant 0 : index
      %c0_99 = arith.constant 0 : index
      %265 = vector.load %arg8[%c0_98, %c0_99] : memref<1x384xf32, #tpu.memory_space<vmem>>, vector<1x384xf32>
      %266 = vector.broadcast %265 : vector<1x384xf32> to vector<16x384xf32>
      %267 = arith.addf %264, %266 : vector<16x384xf32>
      %268 = arith.truncf %261 : vector<16x128xf32> to vector<16x128xbf16>
      %c0_100 = arith.constant 0 : index
      %c0_101 = arith.constant 0 : index
      %269 = vector.load %arg9[%c0_100, %c0_101] : memref<128x384xbf16, #tpu.memory_space<vmem>>, vector<128x384xbf16>
      %cst_102 = arith.constant dense<0.000000e+00> : vector<16x384xf32>
      %270 = tpu.matmul %268, %269, %cst_102 {dimension_numbers = #tpu.dot_dimension_numbers<[1], [0], [0], [1], [0, 0, 1, 1], [], []>} : vector<16x128xbf16>, vector<128x384xbf16>, vector<16x384xf32> -> vector<16x384xf32>
      %c0_103 = arith.constant 0 : index
      %c0_104 = arith.constant 0 : index
      %271 = vector.load %arg10[%c0_103, %c0_104] : memref<1x384xf32, #tpu.memory_space<vmem>>, vector<1x384xf32>
      %272 = vector.broadcast %271 : vector<1x384xf32> to vector<16x384xf32>
      %273 = arith.addf %270, %272 : vector<16x384xf32>
      %274 = vector.extract_strided_slice %267 {offsets = [0, 0], sizes = [16, 128], strides = [1, 1]} : vector<16x384xf32> to vector<16x128xf32>
      %275 = vector.extract_strided_slice %273 {offsets = [0, 0], sizes = [16, 128], strides = [1, 1]} : vector<16x384xf32> to vector<16x128xf32>
      %276 = arith.addf %274, %275 : vector<16x128xf32>
      %277 = arith.negf %276 : vector<16x128xf32>
      %278 = math.exp %277 : vector<16x128xf32>
      %cst_105 = arith.constant 1.000000e+00 : f32
      %279 = vector.broadcast %cst_105 : f32 to vector<16x128xf32>
      %280 = arith.addf %279, %278 : vector<16x128xf32>
      %281 = arith.divf %279, %280 : vector<16x128xf32>
      %282 = vector.extract_strided_slice %267 {offsets = [0, 128], sizes = [16, 128], strides = [1, 1]} : vector<16x384xf32> to vector<16x128xf32>
      %283 = vector.extract_strided_slice %273 {offsets = [0, 128], sizes = [16, 128], strides = [1, 1]} : vector<16x384xf32> to vector<16x128xf32>
      %284 = arith.addf %282, %283 : vector<16x128xf32>
      %285 = arith.negf %284 : vector<16x128xf32>
      %286 = math.exp %285 : vector<16x128xf32>
      %cst_106 = arith.constant 1.000000e+00 : f32
      %287 = vector.broadcast %cst_106 : f32 to vector<16x128xf32>
      %288 = arith.addf %287, %286 : vector<16x128xf32>
      %289 = arith.divf %287, %288 : vector<16x128xf32>
      %290 = vector.extract_strided_slice %267 {offsets = [0, 256], sizes = [16, 128], strides = [1, 1]} : vector<16x384xf32> to vector<16x128xf32>
      %291 = vector.extract_strided_slice %273 {offsets = [0, 256], sizes = [16, 128], strides = [1, 1]} : vector<16x384xf32> to vector<16x128xf32>
      %292 = arith.mulf %281, %291 : vector<16x128xf32>
      %293 = arith.addf %290, %292 : vector<16x128xf32>
      %294 = math.tanh %293 : vector<16x128xf32>
      %cst_107 = arith.constant 1.000000e+00 : f32
      %295 = vector.broadcast %cst_107 : f32 to vector<16x128xf32>
      %296 = arith.subf %295, %289 : vector<16x128xf32>
      %297 = arith.mulf %296, %294 : vector<16x128xf32>
      %298 = arith.mulf %289, %261 : vector<16x128xf32>
      %299 = arith.addf %297, %298 : vector<16x128xf32>
      %300 = arith.truncf %299 : vector<16x128xf32> to vector<16x128xbf16>
      %c0_108 = arith.constant 0 : index
      %c0_109 = arith.constant 0 : index
      %301 = vector.load %arg11[%c0_108, %c0_109] : memref<128x256xbf16, #tpu.memory_space<vmem>>, vector<128x256xbf16>
      %cst_110 = arith.constant dense<0.000000e+00> : vector<16x256xf32>
      %302 = tpu.matmul %300, %301, %cst_110 {dimension_numbers = #tpu.dot_dimension_numbers<[1], [0], [0], [1], [0, 0, 1, 1], [], []>} : vector<16x128xbf16>, vector<128x256xbf16>, vector<16x256xf32> -> vector<16x256xf32>
      %303 = arith.truncf %32 : vector<16x512xf32> to vector<16x512xbf16>
      %c0_111 = arith.constant 0 : index
      %c0_112 = arith.constant 0 : index
      %304 = vector.load %arg12[%c0_111, %c0_112] : memref<512x256xbf16, #tpu.memory_space<vmem>>, vector<512x256xbf16>
      %cst_113 = arith.constant dense<0.000000e+00> : vector<16x256xf32>
      %305 = tpu.matmul %303, %304, %cst_113 {dimension_numbers = #tpu.dot_dimension_numbers<[1], [0], [0], [1], [0, 0, 1, 1], [], []>} : vector<16x512xbf16>, vector<512x256xbf16>, vector<16x256xf32> -> vector<16x256xf32>
      %306 = arith.addf %302, %305 : vector<16x256xf32>
      %c0_114 = arith.constant 0 : index
      %c0_115 = arith.constant 0 : index
      %307 = vector.load %arg13[%c0_114, %c0_115] : memref<1x256xf32, #tpu.memory_space<vmem>>, vector<1x256xf32>
      %308 = vector.broadcast %307 : vector<1x256xf32> to vector<16x256xf32>
      %309 = arith.addf %306, %308 : vector<16x256xf32>
      %310 = arith.truncf %309 : vector<16x256xf32> to vector<16x256xbf16>
      %c0_116 = arith.constant 0 : index
      %c0_117 = arith.constant 0 : index
      %311 = vector.load %arg14[%c0_116, %c0_117] : memref<256x128xbf16, #tpu.memory_space<vmem>>, vector<256x128xbf16>
      %cst_118 = arith.constant dense<0.000000e+00> : vector<16x128xf32>
      %312 = tpu.matmul %310, %311, %cst_118 {dimension_numbers = #tpu.dot_dimension_numbers<[1], [0], [0], [1], [0, 0, 1, 1], [], []>} : vector<16x256xbf16>, vector<256x128xbf16>, vector<16x128xf32> -> vector<16x128xf32>
      %c0_119 = arith.constant 0 : index
      %c0_120 = arith.constant 0 : index
      %313 = vector.load %arg15[%c0_119, %c0_120] : memref<1x128xf32, #tpu.memory_space<vmem>>, vector<1x128xf32>
      %314 = vector.broadcast %313 : vector<1x128xf32> to vector<16x128xf32>
      %315 = arith.addf %312, %314 : vector<16x128xf32>
      %c0_121 = arith.constant 0 : index
      %c0_122 = arith.constant 0 : index
      %316 = vector.load %arg16[%c0_121, %c0_122] : memref<16x128xf32, #tpu.memory_space<vmem>>, vector<16x128xf32>
      tpu.vector_store %arg16[%c0_121, %c0_122], %315 {strides = array<i32>} : memref<16x128xf32, #tpu.memory_space<vmem>>, vector<16x128xf32>,
    } else {
    }
    return
  }
  func.func @transform_0(%arg0: i32, %arg1: i32) -> (i32, i32) {
    %c0_i32 = arith.constant 0 : i32
    %c0_i32_0 = arith.constant 0 : i32
    %c0_i32_1 = arith.constant 0 : i32
    return %c0_i32, %c0_i32_0 : i32, i32
  }
  func.func @transform_1(%arg0: i32, %arg1: i32) -> (i32, i32) {
    %c0_i32 = arith.constant 0 : i32
    %c0_i32_0 = arith.constant 0 : i32
    %c0_i32_1 = arith.constant 0 : i32
    return %c0_i32, %c0_i32_0 : i32, i32
  }
  func.func @transform_2(%arg0: i32, %arg1: i32) -> (i32, i32) {
    %c0_i32 = arith.constant 0 : i32
    return %arg0, %arg1 : i32, i32
  }
  func.func @transform_3(%arg0: i32, %arg1: i32) -> (i32, i32) {
    %c0_i32 = arith.constant 0 : i32
    %c0_i32_0 = arith.constant 0 : i32
    %c0_i32_1 = arith.constant 0 : i32
    return %c0_i32, %c0_i32_0 : i32, i32
  }
  func.func @transform_4(%arg0: i32, %arg1: i32) -> (i32, i32) {
    %c0_i32 = arith.constant 0 : i32
    %c0_i32_0 = arith.constant 0 : i32
    %c0_i32_1 = arith.constant 0 : i32
    return %c0_i32, %c0_i32_0 : i32, i32
  }
  func.func @transform_5(%arg0: i32, %arg1: i32) -> (i32, i32) {
    %c0_i32 = arith.constant 0 : i32
    %c0_i32_0 = arith.constant 0 : i32
    %c0_i32_1 = arith.constant 0 : i32
    return %c0_i32, %c0_i32_0 : i32, i32
  }
  func.func @transform_6(%arg0: i32, %arg1: i32) -> (i32, i32) {
    %c0_i32 = arith.constant 0 : i32
    %c0_i32_0 = arith.constant 0 : i32
    %c0_i32_1 = arith.constant 0 : i32
    return %c0_i32, %c0_i32_0 : i32, i32
  }
  func.func @transform_7(%arg0: i32, %arg1: i32) -> (i32, i32) {
    %c0_i32 = arith.constant 0 : i32
    %c0_i32_0 = arith.constant 0 : i32
    %c0_i32_1 = arith.constant 0 : i32
    return %c0_i32, %c0_i32_0 : i32, i32
  }
  func.func @transform_8(%arg0: i32, %arg1: i32) -> (i32, i32) {
    %c0_i32 = arith.constant 0 : i32
    %c0_i32_0 = arith.constant 0 : i32
    %c0_i32_1 = arith.constant 0 : i32
    return %c0_i32, %c0_i32_0 : i32, i32
  }
  func.func @transform_9(%arg0: i32, %arg1: i32) -> (i32, i32) {
    %c0_i32 = arith.constant 0 : i32
    %c0_i32_0 = arith.constant 0 : i32
    %c0_i32_1 = arith.constant 0 : i32
    return %c0_i32, %c0_i32_0 : i32, i32
  }
  func.func @transform_10(%arg0: i32, %arg1: i32) -> (i32, i32) {
    %c0_i32 = arith.constant 0 : i32
    %c0_i32_0 = arith.constant 0 : i32
    %c0_i32_1 = arith.constant 0 : i32
    return %c0_i32, %c0_i32_0 : i32, i32
  }
  func.func @transform_11(%arg0: i32, %arg1: i32) -> (i32, i32) {
    %c0_i32 = arith.constant 0 : i32
    %c0_i32_0 = arith.constant 0 : i32
    %c0_i32_1 = arith.constant 0 : i32
    return %c0_i32, %c0_i32_0 : i32, i32
  }
  func.func @transform_12(%arg0: i32, %arg1: i32) -> (i32, i32) {
    %c0_i32 = arith.constant 0 : i32
    %c0_i32_0 = arith.constant 0 : i32
    %c0_i32_1 = arith.constant 0 : i32
    return %c0_i32, %c0_i32_0 : i32, i32
  }
  func.func @transform_13(%arg0: i32, %arg1: i32) -> (i32, i32) {
    %c0_i32 = arith.constant 0 : i32
    %c0_i32_0 = arith.constant 0 : i32
    %c0_i32_1 = arith.constant 0 : i32
    return %c0_i32, %c0_i32_0 : i32, i32
  }
  func.func @transform_14(%arg0: i32, %arg1: i32) -> (i32, i32) {
    %c0_i32 = arith.constant 0 : i32
    %c0_i32_0 = arith.constant 0 : i32
    return %arg0, %c0_i32 : i32, i32
  }
}

module attributes {stable_mosaic.version = 11 : i64} {
  func.func @_ltsm_conv_kernel(%arg0: i32, %arg1: i32, %arg2: memref<1x7xf32, #tpu.memory_space<smem>>, %arg3: memref<1x1xf32, #tpu.memory_space<smem>>, %arg4: memref<16x256xbf16, #tpu.memory_space<vmem>>, %arg5: memref<256x512xbf16, #tpu.memory_space<vmem>>, %arg6: memref<1x512xf32, #tpu.memory_space<vmem>>, %arg7: memref<512x384xbf16, #tpu.memory_space<vmem>>, %arg8: memref<1x384xf32, #tpu.memory_space<vmem>>, %arg9: memref<128x384xbf16, #tpu.memory_space<vmem>>, %arg10: memref<1x384xf32, #tpu.memory_space<vmem>>, %arg11: memref<128x256xbf16, #tpu.memory_space<vmem>>, %arg12: memref<512x256xbf16, #tpu.memory_space<vmem>>, %arg13: memref<1x256xf32, #tpu.memory_space<vmem>>, %arg14: memref<256x128xbf16, #tpu.memory_space<vmem>>, %arg15: memref<1x128xf32, #tpu.memory_space<vmem>>, %arg16: memref<16x128xf32, #tpu.memory_space<vmem>>, %arg17: memref<16x512xf32, #tpu.memory_space<vmem>>, %arg18: memref<7x16x384xbf16, #tpu.memory_space<vmem>>) attributes {dimension_semantics = [#tpu.dimension_semantics<parallel>, #tpu.dimension_semantics<arbitrary>], iteration_bounds = array<i64: 1, 7>, scalar_prefetch = 0 : i64, scratch_operands = 2 : i64, tpu.core_type = #tpu.core_type<tc>, window_params = [{transform_indices = @transform_0, window_bounds = array<i64: 1, 7>}, {transform_indices = @transform_1, window_bounds = array<i64: 1, 1>}, {transform_indices = @transform_2, window_bounds = array<i64: 16, 256>}, {pipeline_mode = #tpu.pipeline_mode<synchronous>, transform_indices = @transform_3, window_bounds = array<i64: 256, 512>}, {pipeline_mode = #tpu.pipeline_mode<synchronous>, transform_indices = @transform_4, window_bounds = array<i64: 1, 512>}, {pipeline_mode = #tpu.pipeline_mode<synchronous>, transform_indices = @transform_5, window_bounds = array<i64: 512, 384>}, {pipeline_mode = #tpu.pipeline_mode<synchronous>, transform_indices = @transform_6, window_bounds = array<i64: 1, 384>}, {pipeline_mode = #tpu.pipeline_mode<synchronous>, transform_indices = @transform_7, window_bounds = array<i64: 128, 384>}, {pipeline_mode = #tpu.pipeline_mode<synchronous>, transform_indices = @transform_8, window_bounds = array<i64: 1, 384>}, {pipeline_mode = #tpu.pipeline_mode<synchronous>, transform_indices = @transform_9, window_bounds = array<i64: 128, 256>}, {pipeline_mode = #tpu.pipeline_mode<synchronous>, transform_indices = @transform_10, window_bounds = array<i64: 512, 256>}, {pipeline_mode = #tpu.pipeline_mode<synchronous>, transform_indices = @transform_11, window_bounds = array<i64: 1, 256>}, {pipeline_mode = #tpu.pipeline_mode<synchronous>, transform_indices = @transform_12, window_bounds = array<i64: 256, 128>}, {pipeline_mode = #tpu.pipeline_mode<synchronous>, transform_indices = @transform_13, window_bounds = array<i64: 1, 128>}, {transform_indices = @transform_14, window_bounds = array<i64: 16, 128>}]} {
    %c0_i32 = arith.constant 0 : i32
    %0 = arith.cmpi eq, %arg1, %c0_i32 : i32
    %1 = arith.extui %0 : i1 to i32
    %c0_i32_0 = arith.constant 0 : i32
    %2 = arith.cmpi ne, %1, %c0_i32_0 : i32
    scf.if %2 {
      %cst_18 = arith.constant 0.000000e+00 : f32
      %29 = vector.broadcast %cst_18 : f32 to vector<16x512xf32>
      %c0_19 = arith.constant 0 : index
      %c0_20 = arith.constant 0 : index
      %30 = vector.load %arg17[%c0_19, %c0_20] : memref<16x512xf32, #tpu.memory_space<vmem>>, vector<16x512xf32>
      tpu.vector_store %arg17[%c0_19, %c0_20], %29 {strides = array<i32>} : memref<16x512xf32, #tpu.memory_space<vmem>>, vector<16x512xf32>,
    } else {
    }
    %c0 = arith.constant 0 : index
    %c0_1 = arith.constant 0 : index
    %3 = vector.load %arg4[%c0, %c0_1] : memref<16x256xbf16, #tpu.memory_space<vmem>>, vector<16x256xbf16>
    %c0_2 = arith.constant 0 : index
    %c0_3 = arith.constant 0 : index
    %4 = vector.load %arg5[%c0_2, %c0_3] : memref<256x512xbf16, #tpu.memory_space<vmem>>, vector<256x512xbf16>
    %cst = arith.constant dense<0.000000e+00> : vector<16x512xf32>
    %5 = tpu.matmul %3, %4, %cst {dimension_numbers = #tpu.dot_dimension_numbers<[1], [0], [0], [1], [0, 0, 1, 1], [], []>} : vector<16x256xbf16>, vector<256x512xbf16>, vector<16x512xf32> -> vector<16x512xf32>
    %c0_4 = arith.constant 0 : index
    %c0_5 = arith.constant 0 : index
    %6 = vector.load %arg6[%c0_4, %c0_5] : memref<1x512xf32, #tpu.memory_space<vmem>>, vector<1x512xf32>
    %7 = vector.broadcast %6 : vector<1x512xf32> to vector<16x512xf32>
    %8 = arith.addf %5, %7 : vector<16x512xf32>
    %cst_6 = arith.constant 0.000000e+00 : f32
    %9 = vector.broadcast %cst_6 : f32 to vector<16x512xf32>
    %10 = arith.maximumf %8, %9 : vector<16x512xf32>
    %c0_7 = arith.constant 0 : index
    %c0_8 = arith.constant 0 : index
    %11 = vector.load %arg17[%c0_7, %c0_8] : memref<16x512xf32, #tpu.memory_space<vmem>>, vector<16x512xf32>
    %c0_9 = arith.constant 0 : index
    %12 = arith.index_cast %arg1 : i32 to index
    %13 = memref.load %arg2[%c0_9, %12] : memref<1x7xf32, #tpu.memory_space<smem>>
    %14 = vector.broadcast %13 : f32 to vector<16x512xf32>
    %15 = arith.mulf %14, %10 : vector<16x512xf32>
    %16 = arith.addf %11, %15 : vector<16x512xf32>
    %c0_10 = arith.constant 0 : index
    %c0_11 = arith.constant 0 : index
    %17 = vector.load %arg17[%c0_10, %c0_11] : memref<16x512xf32, #tpu.memory_space<vmem>>, vector<16x512xf32>
    tpu.vector_store %arg17[%c0_10, %c0_11], %16 {strides = array<i32>} : memref<16x512xf32, #tpu.memory_space<vmem>>, vector<16x512xf32>,
    %18 = arith.truncf %10 : vector<16x512xf32> to vector<16x512xbf16>
    %c0_12 = arith.constant 0 : index
    %c0_13 = arith.constant 0 : index
    %19 = vector.load %arg7[%c0_12, %c0_13] : memref<512x384xbf16, #tpu.memory_space<vmem>>, vector<512x384xbf16>
    %cst_14 = arith.constant dense<0.000000e+00> : vector<16x384xf32>
    %20 = tpu.matmul %18, %19, %cst_14 {dimension_numbers = #tpu.dot_dimension_numbers<[1], [0], [0], [1], [0, 0, 1, 1], [], []>} : vector<16x512xbf16>, vector<512x384xbf16>, vector<16x384xf32> -> vector<16x384xf32>
    %21 = arith.truncf %20 : vector<16x384xf32> to vector<16x384xbf16>
    %22 = arith.index_cast %arg1 : i32 to index
    %c0_15 = arith.constant 0 : index
    %c0_16 = arith.constant 0 : index
    %23 = vector.load %arg18[%22, %c0_15, %c0_16] : memref<7x16x384xbf16, #tpu.memory_space<vmem>>, vector<1x16x384xbf16>
    %24 = vector.shape_cast %23 : vector<1x16x384xbf16> to vector<16x384xbf16>
    %25 = vector.shape_cast %21 : vector<16x384xbf16> to vector<1x16x384xbf16>
    tpu.vector_store %arg18[%22, %c0_15, %c0_16], %25 {strides = array<i32>} : memref<7x16x384xbf16, #tpu.memory_space<vmem>>, vector<1x16x384xbf16>,
    %c6_i32 = arith.constant 6 : i32
    %26 = arith.cmpi eq, %arg1, %c6_i32 : i32
    %27 = arith.extui %26 : i1 to i32
    %c0_i32_17 = arith.constant 0 : i32
    %28 = arith.cmpi ne, %27, %c0_i32_17 : i32
    scf.if %28 {
      %c0_18 = arith.constant 0 : index
      %c0_19 = arith.constant 0 : index
      %29 = vector.load %arg17[%c0_18, %c0_19] : memref<16x512xf32, #tpu.memory_space<vmem>>, vector<16x512xf32>
      %c0_20 = arith.constant 0 : index
      %c0_21 = arith.constant 0 : index
      %30 = memref.load %arg3[%c0_20, %c0_21] : memref<1x1xf32, #tpu.memory_space<smem>>
      %31 = vector.broadcast %30 : f32 to vector<16x512xf32>
      %32 = arith.addf %29, %31 : vector<16x512xf32>
      %cst_22 = arith.constant 0.000000e+00 : f32
      %33 = vector.broadcast %cst_22 : f32 to vector<16x128xf32>
      %c0_23 = arith.constant 0 : index
      %c0_24 = arith.constant 0 : index
      %c0_25 = arith.constant 0 : index
      %34 = vector.load %arg18[%c0_23, %c0_24, %c0_25] : memref<7x16x384xbf16, #tpu.memory_space<vmem>>, vector<1x16x384xbf16>
      %35 = vector.shape_cast %34 : vector<1x16x384xbf16> to vector<16x384xbf16>
      %36 = arith.extf %35 : vector<16x384xbf16> to vector<16x384xf32>
      %c0_26 = arith.constant 0 : index
      %c0_27 = arith.constant 0 : index
      %37 = vector.load %arg8[%c0_26, %c0_27] : memref<1x384xf32, #tpu.memory_space<vmem>>, vector<1x384xf32>
      %38 = vector.broadcast %37 : vector<1x384xf32> to vector<16x384xf32>
      %39 = arith.addf %36, %38 : vector<16x384xf32>
      %40 = arith.truncf %33 : vector<16x128xf32> to vector<16x128xbf16>
      %c0_28 = arith.constant 0 : index
      %c0_29 = arith.constant 0 : index
      %41 = vector.load %arg9[%c0_28, %c0_29] : memref<128x384xbf16, #tpu.memory_space<vmem>>, vector<128x384xbf16>
      %cst_30 = arith.constant dense<0.000000e+00> : vector<16x384xf32>
      %42 = tpu.matmul %40, %41, %cst_30 {dimension_numbers = #tpu.dot_dimension_numbers<[1], [0], [0], [1], [0, 0, 1, 1], [], []>} : vector<16x128xbf16>, vector<128x384xbf16>, vector<16x384xf32> -> vector<16x384xf32>
      %c0_31 = arith.constant 0 : index
      %c0_32 = arith.constant 0 : index
      %43 = vector.load %arg10[%c0_31, %c0_32] : memref<1x384xf32, #tpu.memory_space<vmem>>, vector<1x384xf32>
      %44 = vector.broadcast %43 : vector<1x384xf32> to vector<16x384xf32>
      %45 = arith.addf %42, %44 : vector<16x384xf32>
      %46 = vector.extract_strided_slice %39 {offsets = [0, 0], sizes = [16, 128], strides = [1, 1]} : vector<16x384xf32> to vector<16x128xf32>
      %47 = vector.extract_strided_slice %45 {offsets = [0, 0], sizes = [16, 128], strides = [1, 1]} : vector<16x384xf32> to vector<16x128xf32>
      %48 = arith.addf %46, %47 : vector<16x128xf32>
      %49 = arith.negf %48 : vector<16x128xf32>
      %50 = math.exp %49 : vector<16x128xf32>
      %cst_33 = arith.constant 1.000000e+00 : f32
      %51 = vector.broadcast %cst_33 : f32 to vector<16x128xf32>
      %52 = arith.addf %51, %50 : vector<16x128xf32>
      %53 = arith.divf %51, %52 : vector<16x128xf32>
      %54 = vector.extract_strided_slice %39 {offsets = [0, 128], sizes = [16, 128], strides = [1, 1]} : vector<16x384xf32> to vector<16x128xf32>
      %55 = vector.extract_strided_slice %45 {offsets = [0, 128], sizes = [16, 128], strides = [1, 1]} : vector<16x384xf32> to vector<16x128xf32>
      %56 = arith.addf %54, %55 : vector<16x128xf32>
      %57 = arith.negf %56 : vector<16x128xf32>
      %58 = math.exp %57 : vector<16x128xf32>
      %cst_34 = arith.constant 1.000000e+00 : f32
      %59 = vector.broadcast %cst_34 : f32 to vector<16x128xf32>
      %60 = arith.addf %59, %58 : vector<16x128xf32>
      %61 = arith.divf %59, %60 : vector<16x128xf32>
      %62 = vector.extract_strided_slice %39 {offsets = [0, 256], sizes = [16, 128], strides = [1, 1]} : vector<16x384xf32> to vector<16x128xf32>
      %63 = vector.extract_strided_slice %45 {offsets = [0, 256], sizes = [16, 128], strides = [1, 1]} : vector<16x384xf32> to vector<16x128xf32>
      %64 = arith.mulf %53, %63 : vector<16x128xf32>
      %65 = arith.addf %62, %64 : vector<16x128xf32>
      %66 = math.tanh %65 : vector<16x128xf32>
      %cst_35 = arith.constant 1.000000e+00 : f32
      %67 = vector.broadcast %cst_35 : f32 to vector<16x128xf32>
      %68 = arith.subf %67, %61 : vector<16x128xf32>
      %69 = arith.mulf %68, %66 : vector<16x128xf32>
      %70 = arith.mulf %61, %33 : vector<16x128xf32>
      %71 = arith.addf %69, %70 : vector<16x128xf32>
      %c1 = arith.constant 1 : index
      %c0_36 = arith.constant 0 : index
      %c0_37 = arith.constant 0 : index
      %72 = vector.load %arg18[%c1, %c0_36, %c0_37] : memref<7x16x384xbf16, #tpu.memory_space<vmem>>, vector<1x16x384xbf16>
      %73 = vector.shape_cast %72 : vector<1x16x384xbf16> to vector<16x384xbf16>
      %74 = arith.extf %73 : vector<16x384xbf16> to vector<16x384xf32>
      %c0_38 = arith.constant 0 : index
      %c0_39 = arith.constant 0 : index
      %75 = vector.load %arg8[%c0_38, %c0_39] : memref<1x384xf32, #tpu.memory_space<vmem>>, vector<1x384xf32>
      %76 = vector.broadcast %75 : vector<1x384xf32> to vector<16x384xf32>
      %77 = arith.addf %74, %76 : vector<16x384xf32>
      %78 = arith.truncf %71 : vector<16x128xf32> to vector<16x128xbf16>
      %c0_40 = arith.constant 0 : index
      %c0_41 = arith.constant 0 : index
      %79 = vector.load %arg9[%c0_40, %c0_41] : memref<128x384xbf16, #tpu.memory_space<vmem>>, vector<128x384xbf16>
      %cst_42 = arith.constant dense<0.000000e+00> : vector<16x384xf32>
      %80 = tpu.matmul %78, %79, %cst_42 {dimension_numbers = #tpu.dot_dimension_numbers<[1], [0], [0], [1], [0, 0, 1, 1], [], []>} : vector<16x128xbf16>, vector<128x384xbf16>, vector<16x384xf32> -> vector<16x384xf32>
      %c0_43 = arith.constant 0 : index
      %c0_44 = arith.constant 0 : index
      %81 = vector.load %arg10[%c0_43, %c0_44] : memref<1x384xf32, #tpu.memory_space<vmem>>, vector<1x384xf32>
      %82 = vector.broadcast %81 : vector<1x384xf32> to vector<16x384xf32>
      %83 = arith.addf %80, %82 : vector<16x384xf32>
      %84 = vector.extract_strided_slice %77 {offsets = [0, 0], sizes = [16, 128], strides = [1, 1]} : vector<16x384xf32> to vector<16x128xf32>
      %85 = vector.extract_strided_slice %83 {offsets = [0, 0], sizes = [16, 128], strides = [1, 1]} : vector<16x384xf32> to vector<16x128xf32>
      %86 = arith.addf %84, %85 : vector<16x128xf32>
      %87 = arith.negf %86 : vector<16x128xf32>
      %88 = math.exp %87 : vector<16x128xf32>
      %cst_45 = arith.constant 1.000000e+00 : f32
      %89 = vector.broadcast %cst_45 : f32 to vector<16x128xf32>
      %90 = arith.addf %89, %88 : vector<16x128xf32>
      %91 = arith.divf %89, %90 : vector<16x128xf32>
      %92 = vector.extract_strided_slice %77 {offsets = [0, 128], sizes = [16, 128], strides = [1, 1]} : vector<16x384xf32> to vector<16x128xf32>
      %93 = vector.extract_strided_slice %83 {offsets = [0, 128], sizes = [16, 128], strides = [1, 1]} : vector<16x384xf32> to vector<16x128xf32>
      %94 = arith.addf %92, %93 : vector<16x128xf32>
      %95 = arith.negf %94 : vector<16x128xf32>
      %96 = math.exp %95 : vector<16x128xf32>
      %cst_46 = arith.constant 1.000000e+00 : f32
      %97 = vector.broadcast %cst_46 : f32 to vector<16x128xf32>
      %98 = arith.addf %97, %96 : vector<16x128xf32>
      %99 = arith.divf %97, %98 : vector<16x128xf32>
      %100 = vector.extract_strided_slice %77 {offsets = [0, 256], sizes = [16, 128], strides = [1, 1]} : vector<16x384xf32> to vector<16x128xf32>
      %101 = vector.extract_strided_slice %83 {offsets = [0, 256], sizes = [16, 128], strides = [1, 1]} : vector<16x384xf32> to vector<16x128xf32>
      %102 = arith.mulf %91, %101 : vector<16x128xf32>
      %103 = arith.addf %100, %102 : vector<16x128xf32>
      %104 = math.tanh %103 : vector<16x128xf32>
      %cst_47 = arith.constant 1.000000e+00 : f32
      %105 = vector.broadcast %cst_47 : f32 to vector<16x128xf32>
      %106 = arith.subf %105, %99 : vector<16x128xf32>
      %107 = arith.mulf %106, %104 : vector<16x128xf32>
      %108 = arith.mulf %99, %71 : vector<16x128xf32>
      %109 = arith.addf %107, %108 : vector<16x128xf32>
      %c2 = arith.constant 2 : index
      %c0_48 = arith.constant 0 : index
      %c0_49 = arith.constant 0 : index
      %110 = vector.load %arg18[%c2, %c0_48, %c0_49] : memref<7x16x384xbf16, #tpu.memory_space<vmem>>, vector<1x16x384xbf16>
      %111 = vector.shape_cast %110 : vector<1x16x384xbf16> to vector<16x384xbf16>
      %112 = arith.extf %111 : vector<16x384xbf16> to vector<16x384xf32>
      %c0_50 = arith.constant 0 : index
      %c0_51 = arith.constant 0 : index
      %113 = vector.load %arg8[%c0_50, %c0_51] : memref<1x384xf32, #tpu.memory_space<vmem>>, vector<1x384xf32>
      %114 = vector.broadcast %113 : vector<1x384xf32> to vector<16x384xf32>
      %115 = arith.addf %112, %114 : vector<16x384xf32>
      %116 = arith.truncf %109 : vector<16x128xf32> to vector<16x128xbf16>
      %c0_52 = arith.constant 0 : index
      %c0_53 = arith.constant 0 : index
      %117 = vector.load %arg9[%c0_52, %c0_53] : memref<128x384xbf16, #tpu.memory_space<vmem>>, vector<128x384xbf16>
      %cst_54 = arith.constant dense<0.000000e+00> : vector<16x384xf32>
      %118 = tpu.matmul %116, %117, %cst_54 {dimension_numbers = #tpu.dot_dimension_numbers<[1], [0], [0], [1], [0, 0, 1, 1], [], []>} : vector<16x128xbf16>, vector<128x384xbf16>, vector<16x384xf32> -> vector<16x384xf32>
      %c0_55 = arith.constant 0 : index
      %c0_56 = arith.constant 0 : index
      %119 = vector.load %arg10[%c0_55, %c0_56] : memref<1x384xf32, #tpu.memory_space<vmem>>, vector<1x384xf32>
      %120 = vector.broadcast %119 : vector<1x384xf32> to vector<16x384xf32>
      %121 = arith.addf %118, %120 : vector<16x384xf32>
      %122 = vector.extract_strided_slice %115 {offsets = [0, 0], sizes = [16, 128], strides = [1, 1]} : vector<16x384xf32> to vector<16x128xf32>
      %123 = vector.extract_strided_slice %121 {offsets = [0, 0], sizes = [16, 128], strides = [1, 1]} : vector<16x384xf32> to vector<16x128xf32>
      %124 = arith.addf %122, %123 : vector<16x128xf32>
      %125 = arith.negf %124 : vector<16x128xf32>
      %126 = math.exp %125 : vector<16x128xf32>
      %cst_57 = arith.constant 1.000000e+00 : f32
      %127 = vector.broadcast %cst_57 : f32 to vector<16x128xf32>
      %128 = arith.addf %127, %126 : vector<16x128xf32>
      %129 = arith.divf %127, %128 : vector<16x128xf32>
      %130 = vector.extract_strided_slice %115 {offsets = [0, 128], sizes = [16, 128], strides = [1, 1]} : vector<16x384xf32> to vector<16x128xf32>
      %131 = vector.extract_strided_slice %121 {offsets = [0, 128], sizes = [16, 128], strides = [1, 1]} : vector<16x384xf32> to vector<16x128xf32>
      %132 = arith.addf %130, %131 : vector<16x128xf32>
      %133 = arith.negf %132 : vector<16x128xf32>
      %134 = math.exp %133 : vector<16x128xf32>
      %cst_58 = arith.constant 1.000000e+00 : f32
      %135 = vector.broadcast %cst_58 : f32 to vector<16x128xf32>
      %136 = arith.addf %135, %134 : vector<16x128xf32>
      %137 = arith.divf %135, %136 : vector<16x128xf32>
      %138 = vector.extract_strided_slice %115 {offsets = [0, 256], sizes = [16, 128], strides = [1, 1]} : vector<16x384xf32> to vector<16x128xf32>
      %139 = vector.extract_strided_slice %121 {offsets = [0, 256], sizes = [16, 128], strides = [1, 1]} : vector<16x384xf32> to vector<16x128xf32>
      %140 = arith.mulf %129, %139 : vector<16x128xf32>
      %141 = arith.addf %138, %140 : vector<16x128xf32>
      %142 = math.tanh %141 : vector<16x128xf32>
      %cst_59 = arith.constant 1.000000e+00 : f32
      %143 = vector.broadcast %cst_59 : f32 to vector<16x128xf32>
      %144 = arith.subf %143, %137 : vector<16x128xf32>
      %145 = arith.mulf %144, %142 : vector<16x128xf32>
      %146 = arith.mulf %137, %109 : vector<16x128xf32>
      %147 = arith.addf %145, %146 : vector<16x128xf32>
      %c3 = arith.constant 3 : index
      %c0_60 = arith.constant 0 : index
      %c0_61 = arith.constant 0 : index
      %148 = vector.load %arg18[%c3, %c0_60, %c0_61] : memref<7x16x384xbf16, #tpu.memory_space<vmem>>, vector<1x16x384xbf16>
      %149 = vector.shape_cast %148 : vector<1x16x384xbf16> to vector<16x384xbf16>
      %150 = arith.extf %149 : vector<16x384xbf16> to vector<16x384xf32>
      %c0_62 = arith.constant 0 : index
      %c0_63 = arith.constant 0 : index
      %151 = vector.load %arg8[%c0_62, %c0_63] : memref<1x384xf32, #tpu.memory_space<vmem>>, vector<1x384xf32>
      %152 = vector.broadcast %151 : vector<1x384xf32> to vector<16x384xf32>
      %153 = arith.addf %150, %152 : vector<16x384xf32>
      %154 = arith.truncf %147 : vector<16x128xf32> to vector<16x128xbf16>
      %c0_64 = arith.constant 0 : index
      %c0_65 = arith.constant 0 : index
      %155 = vector.load %arg9[%c0_64, %c0_65] : memref<128x384xbf16, #tpu.memory_space<vmem>>, vector<128x384xbf16>
      %cst_66 = arith.constant dense<0.000000e+00> : vector<16x384xf32>
      %156 = tpu.matmul %154, %155, %cst_66 {dimension_numbers = #tpu.dot_dimension_numbers<[1], [0], [0], [1], [0, 0, 1, 1], [], []>} : vector<16x128xbf16>, vector<128x384xbf16>, vector<16x384xf32> -> vector<16x384xf32>
      %c0_67 = arith.constant 0 : index
      %c0_68 = arith.constant 0 : index
      %157 = vector.load %arg10[%c0_67, %c0_68] : memref<1x384xf32, #tpu.memory_space<vmem>>, vector<1x384xf32>
      %158 = vector.broadcast %157 : vector<1x384xf32> to vector<16x384xf32>
      %159 = arith.addf %156, %158 : vector<16x384xf32>
      %160 = vector.extract_strided_slice %153 {offsets = [0, 0], sizes = [16, 128], strides = [1, 1]} : vector<16x384xf32> to vector<16x128xf32>
      %161 = vector.extract_strided_slice %159 {offsets = [0, 0], sizes = [16, 128], strides = [1, 1]} : vector<16x384xf32> to vector<16x128xf32>
      %162 = arith.addf %160, %161 : vector<16x128xf32>
      %163 = arith.negf %162 : vector<16x128xf32>
      %164 = math.exp %163 : vector<16x128xf32>
      %cst_69 = arith.constant 1.000000e+00 : f32
      %165 = vector.broadcast %cst_69 : f32 to vector<16x128xf32>
      %166 = arith.addf %165, %164 : vector<16x128xf32>
      %167 = arith.divf %165, %166 : vector<16x128xf32>
      %168 = vector.extract_strided_slice %153 {offsets = [0, 128], sizes = [16, 128], strides = [1, 1]} : vector<16x384xf32> to vector<16x128xf32>
      %169 = vector.extract_strided_slice %159 {offsets = [0, 128], sizes = [16, 128], strides = [1, 1]} : vector<16x384xf32> to vector<16x128xf32>
      %170 = arith.addf %168, %169 : vector<16x128xf32>
      %171 = arith.negf %170 : vector<16x128xf32>
      %172 = math.exp %171 : vector<16x128xf32>
      %cst_70 = arith.constant 1.000000e+00 : f32
      %173 = vector.broadcast %cst_70 : f32 to vector<16x128xf32>
      %174 = arith.addf %173, %172 : vector<16x128xf32>
      %175 = arith.divf %173, %174 : vector<16x128xf32>
      %176 = vector.extract_strided_slice %153 {offsets = [0, 256], sizes = [16, 128], strides = [1, 1]} : vector<16x384xf32> to vector<16x128xf32>
      %177 = vector.extract_strided_slice %159 {offsets = [0, 256], sizes = [16, 128], strides = [1, 1]} : vector<16x384xf32> to vector<16x128xf32>
      %178 = arith.mulf %167, %177 : vector<16x128xf32>
      %179 = arith.addf %176, %178 : vector<16x128xf32>
      %180 = math.tanh %179 : vector<16x128xf32>
      %cst_71 = arith.constant 1.000000e+00 : f32
      %181 = vector.broadcast %cst_71 : f32 to vector<16x128xf32>
      %182 = arith.subf %181, %175 : vector<16x128xf32>
      %183 = arith.mulf %182, %180 : vector<16x128xf32>
      %184 = arith.mulf %175, %147 : vector<16x128xf32>
      %185 = arith.addf %183, %184 : vector<16x128xf32>
      %c4 = arith.constant 4 : index
      %c0_72 = arith.constant 0 : index
      %c0_73 = arith.constant 0 : index
      %186 = vector.load %arg18[%c4, %c0_72, %c0_73] : memref<7x16x384xbf16, #tpu.memory_space<vmem>>, vector<1x16x384xbf16>
      %187 = vector.shape_cast %186 : vector<1x16x384xbf16> to vector<16x384xbf16>
      %188 = arith.extf %187 : vector<16x384xbf16> to vector<16x384xf32>
      %c0_74 = arith.constant 0 : index
      %c0_75 = arith.constant 0 : index
      %189 = vector.load %arg8[%c0_74, %c0_75] : memref<1x384xf32, #tpu.memory_space<vmem>>, vector<1x384xf32>
      %190 = vector.broadcast %189 : vector<1x384xf32> to vector<16x384xf32>
      %191 = arith.addf %188, %190 : vector<16x384xf32>
      %192 = arith.truncf %185 : vector<16x128xf32> to vector<16x128xbf16>
      %c0_76 = arith.constant 0 : index
      %c0_77 = arith.constant 0 : index
      %193 = vector.load %arg9[%c0_76, %c0_77] : memref<128x384xbf16, #tpu.memory_space<vmem>>, vector<128x384xbf16>
      %cst_78 = arith.constant dense<0.000000e+00> : vector<16x384xf32>
      %194 = tpu.matmul %192, %193, %cst_78 {dimension_numbers = #tpu.dot_dimension_numbers<[1], [0], [0], [1], [0, 0, 1, 1], [], []>} : vector<16x128xbf16>, vector<128x384xbf16>, vector<16x384xf32> -> vector<16x384xf32>
      %c0_79 = arith.constant 0 : index
      %c0_80 = arith.constant 0 : index
      %195 = vector.load %arg10[%c0_79, %c0_80] : memref<1x384xf32, #tpu.memory_space<vmem>>, vector<1x384xf32>
      %196 = vector.broadcast %195 : vector<1x384xf32> to vector<16x384xf32>
      %197 = arith.addf %194, %196 : vector<16x384xf32>
      %198 = vector.extract_strided_slice %191 {offsets = [0, 0], sizes = [16, 128], strides = [1, 1]} : vector<16x384xf32> to vector<16x128xf32>
      %199 = vector.extract_strided_slice %197 {offsets = [0, 0], sizes = [16, 128], strides = [1, 1]} : vector<16x384xf32> to vector<16x128xf32>
      %200 = arith.addf %198, %199 : vector<16x128xf32>
      %201 = arith.negf %200 : vector<16x128xf32>
      %202 = math.exp %201 : vector<16x128xf32>
      %cst_81 = arith.constant 1.000000e+00 : f32
      %203 = vector.broadcast %cst_81 : f32 to vector<16x128xf32>
      %204 = arith.addf %203, %202 : vector<16x128xf32>
      %205 = arith.divf %203, %204 : vector<16x128xf32>
      %206 = vector.extract_strided_slice %191 {offsets = [0, 128], sizes = [16, 128], strides = [1, 1]} : vector<16x384xf32> to vector<16x128xf32>
      %207 = vector.extract_strided_slice %197 {offsets = [0, 128], sizes = [16, 128], strides = [1, 1]} : vector<16x384xf32> to vector<16x128xf32>
      %208 = arith.addf %206, %207 : vector<16x128xf32>
      %209 = arith.negf %208 : vector<16x128xf32>
      %210 = math.exp %209 : vector<16x128xf32>
      %cst_82 = arith.constant 1.000000e+00 : f32
      %211 = vector.broadcast %cst_82 : f32 to vector<16x128xf32>
      %212 = arith.addf %211, %210 : vector<16x128xf32>
      %213 = arith.divf %211, %212 : vector<16x128xf32>
      %214 = vector.extract_strided_slice %191 {offsets = [0, 256], sizes = [16, 128], strides = [1, 1]} : vector<16x384xf32> to vector<16x128xf32>
      %215 = vector.extract_strided_slice %197 {offsets = [0, 256], sizes = [16, 128], strides = [1, 1]} : vector<16x384xf32> to vector<16x128xf32>
      %216 = arith.mulf %205, %215 : vector<16x128xf32>
      %217 = arith.addf %214, %216 : vector<16x128xf32>
      %218 = math.tanh %217 : vector<16x128xf32>
      %cst_83 = arith.constant 1.000000e+00 : f32
      %219 = vector.broadcast %cst_83 : f32 to vector<16x128xf32>
      %220 = arith.subf %219, %213 : vector<16x128xf32>
      %221 = arith.mulf %220, %218 : vector<16x128xf32>
      %222 = arith.mulf %213, %185 : vector<16x128xf32>
      %223 = arith.addf %221, %222 : vector<16x128xf32>
      %c5 = arith.constant 5 : index
      %c0_84 = arith.constant 0 : index
      %c0_85 = arith.constant 0 : index
      %224 = vector.load %arg18[%c5, %c0_84, %c0_85] : memref<7x16x384xbf16, #tpu.memory_space<vmem>>, vector<1x16x384xbf16>
      %225 = vector.shape_cast %224 : vector<1x16x384xbf16> to vector<16x384xbf16>
      %226 = arith.extf %225 : vector<16x384xbf16> to vector<16x384xf32>
      %c0_86 = arith.constant 0 : index
      %c0_87 = arith.constant 0 : index
      %227 = vector.load %arg8[%c0_86, %c0_87] : memref<1x384xf32, #tpu.memory_space<vmem>>, vector<1x384xf32>
      %228 = vector.broadcast %227 : vector<1x384xf32> to vector<16x384xf32>
      %229 = arith.addf %226, %228 : vector<16x384xf32>
      %230 = arith.truncf %223 : vector<16x128xf32> to vector<16x128xbf16>
      %c0_88 = arith.constant 0 : index
      %c0_89 = arith.constant 0 : index
      %231 = vector.load %arg9[%c0_88, %c0_89] : memref<128x384xbf16, #tpu.memory_space<vmem>>, vector<128x384xbf16>
      %cst_90 = arith.constant dense<0.000000e+00> : vector<16x384xf32>
      %232 = tpu.matmul %230, %231, %cst_90 {dimension_numbers = #tpu.dot_dimension_numbers<[1], [0], [0], [1], [0, 0, 1, 1], [], []>} : vector<16x128xbf16>, vector<128x384xbf16>, vector<16x384xf32> -> vector<16x384xf32>
      %c0_91 = arith.constant 0 : index
      %c0_92 = arith.constant 0 : index
      %233 = vector.load %arg10[%c0_91, %c0_92] : memref<1x384xf32, #tpu.memory_space<vmem>>, vector<1x384xf32>
      %234 = vector.broadcast %233 : vector<1x384xf32> to vector<16x384xf32>
      %235 = arith.addf %232, %234 : vector<16x384xf32>
      %236 = vector.extract_strided_slice %229 {offsets = [0, 0], sizes = [16, 128], strides = [1, 1]} : vector<16x384xf32> to vector<16x128xf32>
      %237 = vector.extract_strided_slice %235 {offsets = [0, 0], sizes = [16, 128], strides = [1, 1]} : vector<16x384xf32> to vector<16x128xf32>
      %238 = arith.addf %236, %237 : vector<16x128xf32>
      %239 = arith.negf %238 : vector<16x128xf32>
      %240 = math.exp %239 : vector<16x128xf32>
      %cst_93 = arith.constant 1.000000e+00 : f32
      %241 = vector.broadcast %cst_93 : f32 to vector<16x128xf32>
      %242 = arith.addf %241, %240 : vector<16x128xf32>
      %243 = arith.divf %241, %242 : vector<16x128xf32>
      %244 = vector.extract_strided_slice %229 {offsets = [0, 128], sizes = [16, 128], strides = [1, 1]} : vector<16x384xf32> to vector<16x128xf32>
      %245 = vector.extract_strided_slice %235 {offsets = [0, 128], sizes = [16, 128], strides = [1, 1]} : vector<16x384xf32> to vector<16x128xf32>
      %246 = arith.addf %244, %245 : vector<16x128xf32>
      %247 = arith.negf %246 : vector<16x128xf32>
      %248 = math.exp %247 : vector<16x128xf32>
      %cst_94 = arith.constant 1.000000e+00 : f32
      %249 = vector.broadcast %cst_94 : f32 to vector<16x128xf32>
      %250 = arith.addf %249, %248 : vector<16x128xf32>
      %251 = arith.divf %249, %250 : vector<16x128xf32>
      %252 = vector.extract_strided_slice %229 {offsets = [0, 256], sizes = [16, 128], strides = [1, 1]} : vector<16x384xf32> to vector<16x128xf32>
      %253 = vector.extract_strided_slice %235 {offsets = [0, 256], sizes = [16, 128], strides = [1, 1]} : vector<16x384xf32> to vector<16x128xf32>
      %254 = arith.mulf %243, %253 : vector<16x128xf32>
      %255 = arith.addf %252, %254 : vector<16x128xf32>
      %256 = math.tanh %255 : vector<16x128xf32>
      %cst_95 = arith.constant 1.000000e+00 : f32
      %257 = vector.broadcast %cst_95 : f32 to vector<16x128xf32>
      %258 = arith.subf %257, %251 : vector<16x128xf32>
      %259 = arith.mulf %258, %256 : vector<16x128xf32>
      %260 = arith.mulf %251, %223 : vector<16x128xf32>
      %261 = arith.addf %259, %260 : vector<16x128xf32>
      %c6 = arith.constant 6 : index
      %c0_96 = arith.constant 0 : index
      %c0_97 = arith.constant 0 : index
      %262 = vector.load %arg18[%c6, %c0_96, %c0_97] : memref<7x16x384xbf16, #tpu.memory_space<vmem>>, vector<1x16x384xbf16>
      %263 = vector.shape_cast %262 : vector<1x16x384xbf16> to vector<16x384xbf16>
      %264 = arith.extf %263 : vector<16x384xbf16> to vector<16x384xf32>
      %c0_98 = arith.constant 0 : index
      %c0_99 = arith.constant 0 : index
      %265 = vector.load %arg8[%c0_98, %c0_99] : memref<1x384xf32, #tpu.memory_space<vmem>>, vector<1x384xf32>
      %266 = vector.broadcast %265 : vector<1x384xf32> to vector<16x384xf32>
      %267 = arith.addf %264, %266 : vector<16x384xf32>
      %268 = arith.truncf %261 : vector<16x128xf32> to vector<16x128xbf16>
      %c0_100 = arith.constant 0 : index
      %c0_101 = arith.constant 0 : index
      %269 = vector.load %arg9[%c0_100, %c0_101] : memref<128x384xbf16, #tpu.memory_space<vmem>>, vector<128x384xbf16>
      %cst_102 = arith.constant dense<0.000000e+00> : vector<16x384xf32>
      %270 = tpu.matmul %268, %269, %cst_102 {dimension_numbers = #tpu.dot_dimension_numbers<[1], [0], [0], [1], [0, 0, 1, 1], [], []>} : vector<16x128xbf16>, vector<128x384xbf16>, vector<16x384xf32> -> vector<16x384xf32>
      %c0_103 = arith.constant 0 : index
      %c0_104 = arith.constant 0 : index
      %271 = vector.load %arg10[%c0_103, %c0_104] : memref<1x384xf32, #tpu.memory_space<vmem>>, vector<1x384xf32>
      %272 = vector.broadcast %271 : vector<1x384xf32> to vector<16x384xf32>
      %273 = arith.addf %270, %272 : vector<16x384xf32>
      %274 = vector.extract_strided_slice %267 {offsets = [0, 0], sizes = [16, 128], strides = [1, 1]} : vector<16x384xf32> to vector<16x128xf32>
      %275 = vector.extract_strided_slice %273 {offsets = [0, 0], sizes = [16, 128], strides = [1, 1]} : vector<16x384xf32> to vector<16x128xf32>
      %276 = arith.addf %274, %275 : vector<16x128xf32>
      %277 = arith.negf %276 : vector<16x128xf32>
      %278 = math.exp %277 : vector<16x128xf32>
      %cst_105 = arith.constant 1.000000e+00 : f32
      %279 = vector.broadcast %cst_105 : f32 to vector<16x128xf32>
      %280 = arith.addf %279, %278 : vector<16x128xf32>
      %281 = arith.divf %279, %280 : vector<16x128xf32>
      %282 = vector.extract_strided_slice %267 {offsets = [0, 128], sizes = [16, 128], strides = [1, 1]} : vector<16x384xf32> to vector<16x128xf32>
      %283 = vector.extract_strided_slice %273 {offsets = [0, 128], sizes = [16, 128], strides = [1, 1]} : vector<16x384xf32> to vector<16x128xf32>
      %284 = arith.addf %282, %283 : vector<16x128xf32>
      %285 = arith.negf %284 : vector<16x128xf32>
      %286 = math.exp %285 : vector<16x128xf32>
      %cst_106 = arith.constant 1.000000e+00 : f32
      %287 = vector.broadcast %cst_106 : f32 to vector<16x128xf32>
      %288 = arith.addf %287, %286 : vector<16x128xf32>
      %289 = arith.divf %287, %288 : vector<16x128xf32>
      %290 = vector.extract_strided_slice %267 {offsets = [0, 256], sizes = [16, 128], strides = [1, 1]} : vector<16x384xf32> to vector<16x128xf32>
      %291 = vector.extract_strided_slice %273 {offsets = [0, 256], sizes = [16, 128], strides = [1, 1]} : vector<16x384xf32> to vector<16x128xf32>
      %292 = arith.mulf %281, %291 : vector<16x128xf32>
      %293 = arith.addf %290, %292 : vector<16x128xf32>
      %294 = math.tanh %293 : vector<16x128xf32>
      %cst_107 = arith.constant 1.000000e+00 : f32
      %295 = vector.broadcast %cst_107 : f32 to vector<16x128xf32>
      %296 = arith.subf %295, %289 : vector<16x128xf32>
      %297 = arith.mulf %296, %294 : vector<16x128xf32>
      %298 = arith.mulf %289, %261 : vector<16x128xf32>
      %299 = arith.addf %297, %298 : vector<16x128xf32>
      %300 = arith.truncf %299 : vector<16x128xf32> to vector<16x128xbf16>
      %c0_108 = arith.constant 0 : index
      %c0_109 = arith.constant 0 : index
      %301 = vector.load %arg11[%c0_108, %c0_109] : memref<128x256xbf16, #tpu.memory_space<vmem>>, vector<128x256xbf16>
      %cst_110 = arith.constant dense<0.000000e+00> : vector<16x256xf32>
      %302 = tpu.matmul %300, %301, %cst_110 {dimension_numbers = #tpu.dot_dimension_numbers<[1], [0], [0], [1], [0, 0, 1, 1], [], []>} : vector<16x128xbf16>, vector<128x256xbf16>, vector<16x256xf32> -> vector<16x256xf32>
      %303 = arith.truncf %32 : vector<16x512xf32> to vector<16x512xbf16>
      %c0_111 = arith.constant 0 : index
      %c0_112 = arith.constant 0 : index
      %304 = vector.load %arg12[%c0_111, %c0_112] : memref<512x256xbf16, #tpu.memory_space<vmem>>, vector<512x256xbf16>
      %cst_113 = arith.constant dense<0.000000e+00> : vector<16x256xf32>
      %305 = tpu.matmul %303, %304, %cst_113 {dimension_numbers = #tpu.dot_dimension_numbers<[1], [0], [0], [1], [0, 0, 1, 1], [], []>} : vector<16x512xbf16>, vector<512x256xbf16>, vector<16x256xf32> -> vector<16x256xf32>
      %306 = arith.addf %302, %305 : vector<16x256xf32>
      %c0_114 = arith.constant 0 : index
      %c0_115 = arith.constant 0 : index
      %307 = vector.load %arg13[%c0_114, %c0_115] : memref<1x256xf32, #tpu.memory_space<vmem>>, vector<1x256xf32>
      %308 = vector.broadcast %307 : vector<1x256xf32> to vector<16x256xf32>
      %309 = arith.addf %306, %308 : vector<16x256xf32>
      %310 = arith.truncf %309 : vector<16x256xf32> to vector<16x256xbf16>
      %c0_116 = arith.constant 0 : index
      %c0_117 = arith.constant 0 : index
      %311 = vector.load %arg14[%c0_116, %c0_117] : memref<256x128xbf16, #tpu.memory_space<vmem>>, vector<256x128xbf16>
      %cst_118 = arith.constant dense<0.000000e+00> : vector<16x128xf32>
      %312 = tpu.matmul %310, %311, %cst_118 {dimension_numbers = #tpu.dot_dimension_numbers<[1], [0], [0], [1], [0, 0, 1, 1], [], []>} : vector<16x256xbf16>, vector<256x128xbf16>, vector<16x128xf32> -> vector<16x128xf32>
      %c0_119 = arith.constant 0 : index
      %c0_120 = arith.constant 0 : index
      %313 = vector.load %arg15[%c0_119, %c0_120] : memref<1x128xf32, #tpu.memory_space<vmem>>, vector<1x128xf32>
      %314 = vector.broadcast %313 : vector<1x128xf32> to vector<16x128xf32>
      %315 = arith.addf %312, %314 : vector<16x128xf32>
      %c0_121 = arith.constant 0 : index
      %c0_122 = arith.constant 0 : index
      %316 = vector.load %arg16[%c0_121, %c0_122] : memref<16x128xf32, #tpu.memory_space<vmem>>, vector<16x128xf32>
      tpu.vector_store %arg16[%c0_121, %c0_122], %315 {strides = array<i32>} : memref<16x128xf32, #tpu.memory_space<vmem>>, vector<16x128xf32>,
    } else {
    }
    return
  }
  func.func @transform_0(%arg0: i32, %arg1: i32) -> (i32, i32) {
    %c0_i32 = arith.constant 0 : i32
    %c0_i32_0 = arith.constant 0 : i32
    %c0_i32_1 = arith.constant 0 : i32
    return %c0_i32, %c0_i32_0 : i32, i32
  }
  func.func @transform_1(%arg0: i32, %arg1: i32) -> (i32, i32) {
    %c0_i32 = arith.constant 0 : i32
    %c0_i32_0 = arith.constant 0 : i32
    %c0_i32_1 = arith.constant 0 : i32
    return %c0_i32, %c0_i32_0 : i32, i32
  }
  func.func @transform_2(%arg0: i32, %arg1: i32) -> (i32, i32) {
    %c0_i32 = arith.constant 0 : i32
    return %arg0, %arg1 : i32, i32
  }
  func.func @transform_3(%arg0: i32, %arg1: i32) -> (i32, i32) {
    %c0_i32 = arith.constant 0 : i32
    %c0_i32_0 = arith.constant 0 : i32
    %c0_i32_1 = arith.constant 0 : i32
    return %c0_i32, %c0_i32_0 : i32, i32
  }
  func.func @transform_4(%arg0: i32, %arg1: i32) -> (i32, i32) {
    %c0_i32 = arith.constant 0 : i32
    %c0_i32_0 = arith.constant 0 : i32
    %c0_i32_1 = arith.constant 0 : i32
    return %c0_i32, %c0_i32_0 : i32, i32
  }
  func.func @transform_5(%arg0: i32, %arg1: i32) -> (i32, i32) {
    %c0_i32 = arith.constant 0 : i32
    %c0_i32_0 = arith.constant 0 : i32
    %c0_i32_1 = arith.constant 0 : i32
    return %c0_i32, %c0_i32_0 : i32, i32
  }
  func.func @transform_6(%arg0: i32, %arg1: i32) -> (i32, i32) {
    %c0_i32 = arith.constant 0 : i32
    %c0_i32_0 = arith.constant 0 : i32
    %c0_i32_1 = arith.constant 0 : i32
    return %c0_i32, %c0_i32_0 : i32, i32
  }
  func.func @transform_7(%arg0: i32, %arg1: i32) -> (i32, i32) {
    %c0_i32 = arith.constant 0 : i32
    %c0_i32_0 = arith.constant 0 : i32
    %c0_i32_1 = arith.constant 0 : i32
    return %c0_i32, %c0_i32_0 : i32, i32
  }
  func.func @transform_8(%arg0: i32, %arg1: i32) -> (i32, i32) {
    %c0_i32 = arith.constant 0 : i32
    %c0_i32_0 = arith.constant 0 : i32
    %c0_i32_1 = arith.constant 0 : i32
    return %c0_i32, %c0_i32_0 : i32, i32
  }
  func.func @transform_9(%arg0: i32, %arg1: i32) -> (i32, i32) {
    %c0_i32 = arith.constant 0 : i32
    %c0_i32_0 = arith.constant 0 : i32
    %c0_i32_1 = arith.constant 0 : i32
    return %c0_i32, %c0_i32_0 : i32, i32
  }
  func.func @transform_10(%arg0: i32, %arg1: i32) -> (i32, i32) {
    %c0_i32 = arith.constant 0 : i32
    %c0_i32_0 = arith.constant 0 : i32
    %c0_i32_1 = arith.constant 0 : i32
    return %c0_i32, %c0_i32_0 : i32, i32
  }
  func.func @transform_11(%arg0: i32, %arg1: i32) -> (i32, i32) {
    %c0_i32 = arith.constant 0 : i32
    %c0_i32_0 = arith.constant 0 : i32
    %c0_i32_1 = arith.constant 0 : i32
    return %c0_i32, %c0_i32_0 : i32, i32
  }
  func.func @transform_12(%arg0: i32, %arg1: i32) -> (i32, i32) {
    %c0_i32 = arith.constant 0 : i32
    %c0_i32_0 = arith.constant 0 : i32
    %c0_i32_1 = arith.constant 0 : i32
    return %c0_i32, %c0_i32_0 : i32, i32
  }
  func.func @transform_13(%arg0: i32, %arg1: i32) -> (i32, i32) {
    %c0_i32 = arith.constant 0 : i32
    %c0_i32_0 = arith.constant 0 : i32
    %c0_i32_1 = arith.constant 0 : i32
    return %c0_i32, %c0_i32_0 : i32, i32
  }
  func.func @transform_14(%arg0: i32, %arg1: i32) -> (i32, i32) {
    %c0_i32 = arith.constant 0 : i32
    %c0_i32_0 = arith.constant 0 : i32
    return %arg0, %c0_i32 : i32, i32
  }
}

</mosaic_0001>

<llo_original>
// kernel: ltsm_conv_forward.1
$region0: #{ltsm_conv_forward.1}
  #allocation0 [shape = 'u32[]', space=smem, size = 0x4, offset = 0x4, fixed_abs, tag = 'smem constant byte address 0x4 - core index']
  #allocation1 [shape = 'u32[144,128]{1,0:T(1,128)}', space=vmem, size = 0x12000, scoped, tag = 'internal scratch']
  #allocation2 [shape = 'f32[16,512]{1,0:T(8,128)}', space=vmem, size = 0x8000, scoped, tag = 'scratch operand']
  #allocation3 [shape = 'bf16[7,16,384]{2,1,0:T(16,128)(2,1)}', space=vmem, size = 0x15000, scoped, tag = 'scratch operand']
  #allocation4 [shape = 'f32[1,1]{1,0:T(1,128)S(6)}', space=smem, size = 0x200, scoped, tag = 'scoped memory for ltsm_conv_forward.1']
  %s0 = inlined_call_operand.vmem [shape: f32[1,7], index: 0, kind: input, shape index: {}]
  %s1 = inlined_call_operand.<no memory space> [shape: f32[1,1], index: 1, kind: input, shape index: {}]
  %s2 = inlined_call_operand.vmem [shape: bf16[16,1792], index: 2, kind: input, shape index: {}]
  %s3 = inlined_call_operand.vmem [shape: bf16[256,512], index: 3, kind: input, shape index: {}]
  %s4 = inlined_call_operand.vmem [shape: f32[1,512], index: 4, kind: input, shape index: {}]
  %s5 = inlined_call_operand.vmem [shape: bf16[512,384], index: 5, kind: input, shape index: {}]
  %s6 = inlined_call_operand.vmem [shape: f32[1,384], index: 6, kind: input, shape index: {}]
  %s7 = inlined_call_operand.vmem [shape: bf16[128,384], index: 7, kind: input, shape index: {}]
  %s8 = inlined_call_operand.vmem [shape: f32[1,384], index: 8, kind: input, shape index: {}]
  %s9 = inlined_call_operand.vmem [shape: bf16[128,256], index: 9, kind: input, shape index: {}]
  %s10 = inlined_call_operand.vmem [shape: bf16[512,256], index: 10, kind: input, shape index: {}]
  %s11 = inlined_call_operand.vmem [shape: f32[1,256], index: 11, kind: input, shape index: {}]
  %s12 = inlined_call_operand.vmem [shape: bf16[256,128], index: 12, kind: input, shape index: {}]
  %s13 = inlined_call_operand.vmem [shape: f32[1,128], index: 13, kind: input, shape index: {}]
  %s14 = inlined_call_operand.vmem [shape: f32[16,128], index: 14, kind: output, shape index: {}]
  %s15 = sld [smem:[#allocation0]]
  $region139: #{ltsm_conv_forward.1} parent=0
    _
  %s17 = ssub.s32 1, %s15
  %s18 = scalar_select 0, %s17, %s15
  %19 = sst [smem:[#allocation4]] %s1
  $region1: #{ltsm_conv_forward.1} parent=0
    #allocation5 [shape = 'u8[512]{0}', space=smem, size = 0x200, scoped, tag = 'input window, operand 0, single buffered']
    #allocation6 [shape = 's32[2]{0}', space=sflag, size = 0x8, scoped, tag = 'scoped memory for ltsm_conv_forward.1']
    #allocation7 [shape = 'u8[16384]{0}', space=vmem, size = 0x4000, scoped, tag = 'input window, operand 2']
    %20 = vsyncpa [#allocation6], 0
    loop: start=0, step=1, limit=9
    $region2: #{ltsm_conv_forward.1} parent=1 // loop_pre_header
      _
    $region3: #{ltsm_conv_forward.1} parent=1 // loop_header
      %s22 = sphi 0, %s26
      %p23 = scmp.ge.s32.totalorder %s22, 9
      %s29 = sphi 0, %s41
      %s30 = sphi 0, %s37
      %s31 = sphi 0, %s29
      %s32 = sphi 0, %s30
      %s33 = sphi 0, %s31
      %s34 = sphi 0, %s32
      %s42 = sphi 0, %s42
      %s44 = sphi 0, %s42
      %s45 = sphi 0, %s44
      %s59 = sphi 0, %s45
      %s63 = sphi 0, %s63
      %s65 = sphi 0, %s63
      %s66 = sphi 0, %s65
      %s80 = sphi 0, %s66
      %s88 = sphi 0, %s90
      %s91 = sphi 0, %s88
      %s92 = sphi 0, %s91
      %s108 = sphi 0, %s92
      %s112 = sphi 0, %s112
      %s114 = sphi 0, %s112
      %s115 = sphi 0, %s114
      %s129 = sphi 0, %s115
      %s133 = sphi 0, %s133
      %s135 = sphi 0, %s133
      %s136 = sphi 0, %s135
      %s150 = sphi 0, %s136
      %s154 = sphi 0, %s154
      %s156 = sphi 0, %s154
      %s157 = sphi 0, %s156
      %s171 = sphi 0, %s157
      %s175 = sphi 0, %s175
      %s177 = sphi 0, %s175
      %s178 = sphi 0, %s177
      %s192 = sphi 0, %s178
      %s196 = sphi 0, %s196
      %s198 = sphi 0, %s196
      %s199 = sphi 0, %s198
      %s213 = sphi 0, %s199
      %s217 = sphi 0, %s217
      %s219 = sphi 0, %s217
      %s220 = sphi 0, %s219
      %s234 = sphi 0, %s220
      %s238 = sphi 0, %s238
      %s240 = sphi 0, %s238
      %s241 = sphi 0, %s240
      %s255 = sphi 0, %s241
      %s259 = sphi 0, %s259
      %s261 = sphi 0, %s259
      %s262 = sphi 0, %s261
      %s276 = sphi 0, %s262
      %s280 = sphi 0, %s280
      %s282 = sphi 0, %s280
      %s283 = sphi 0, %s282
      %s297 = sphi 0, %s283
      %s301 = sphi 0, %s301
      %s303 = sphi 0, %s301
      %s304 = sphi 0, %s303
      %s318 = sphi 0, %s304
      %s322 = sphi 0, %s322
      %s324 = sphi 0, %s322
      %s325 = sphi 0, %s324
      %s339 = sphi 0, %s325
      %s345 = sphi 0, %s347
      %s348 = sphi 0, %s345
      %s349 = sphi 0, %s348
      %s365 = sphi 0, %s349
    $region4: #{ltsm_conv_forward.1} parent=1 // loop_header_branch
      %25 = sbr.rel (%p23) target = $region8
    $region5: #{ltsm_conv_forward.1} parent=1 // loop_body
      %s27 = ssub.s32 %s22, 1
      %s28 = ssub.s32 %s22, 2
      %s35 = sadd.s32 1, %s30
      %p36 = scmp.ge.s32.totalorder %s35, 7
      %s37 = scalar_select %p36, 0, %s35
      %s38 = sadd.s32 1, %s29
      %s39 = scalar_select %p36, %s38, %s29
      %p40 = scmp.ge.s32.totalorder %s39, 1
      %s41 = scalar_select %p40, 0, %s39
      %s43 = sadd.s32 %s42, 1
      %p46 = scmp.eq.s32.totalorder %s22, 6
      %p47 = scmp.ne.s32.totalorder %s42, %s44
      %p48 = scmp.eq.s32.totalorder %s22, 0
      %p49 = por %p47, %p48
      %p50 = scmp.ne.s32.totalorder %s42, %s44
      %p51 = scmp.eq.s32.totalorder %s27, 6
      %p52 = por %p50, %p51
      %p53 = scmp.ne.s32.totalorder %s44, %s45
      %p54 = scmp.eq.s32.totalorder %s27, 0
      %p55 = por %p53, %p54
      %p56 = scmp.ne.s32.totalorder %s44, %s45
      %p57 = scmp.eq.s32.totalorder %s28, 6
      %p58 = por %p56, %p57
      %p60 = scmp.ne.s32.totalorder %s45, %s59
      %p61 = scmp.eq.s32.totalorder %s28, 0
      %p62 = por %p60, %p61
      %s64 = sadd.s32 %s63, 1
      %p67 = scmp.eq.s32.totalorder %s22, 6
      %p68 = scmp.ne.s32.totalorder %s63, %s65
      %p69 = scmp.eq.s32.totalorder %s22, 0
      %p70 = por %p68, %p69
      %p71 = scmp.ne.s32.totalorder %s63, %s65
      %p72 = scmp.eq.s32.totalorder %s27, 6
      %p73 = por %p71, %p72
      %p74 = scmp.ne.s32.totalorder %s65, %s66
      %p75 = scmp.eq.s32.totalorder %s27, 0
      %p76 = por %p74, %p75
      %p77 = scmp.ne.s32.totalorder %s65, %s66
      %p78 = scmp.eq.s32.totalorder %s28, 6
      %p79 = por %p77, %p78
      %p81 = scmp.ne.s32.totalorder %s66, %s80
      %p82 = scmp.eq.s32.totalorder %s28, 0
      %p83 = por %p81, %p82
      %s84 = ssub.s32 %s29, %s41
      %s85 = ssub.s32 %s30, %s37
      %s86 = sor.u32 %s84, %s85
      %p87 = scmp.eq.s32.totalorder %s86, 0
      %s89 = sadd.s32 %s88, 1
      %s90 = scalar_select %p87, %s88, %s89
      %p93 = pneg %p87
      %p94 = scmp.eq.s32.totalorder %s22, 6
      %p95 = por %p93, %p94
      %p96 = scmp.ne.s32.totalorder %s88, %s91
      %p97 = scmp.eq.s32.totalorder %s22, 0
      %p98 = por %p96, %p97
      %p99 = scmp.ne.s32.totalorder %s88, %s91
      %p100 = scmp.eq.s32.totalorder %s27, 6
      %p101 = por %p99, %p100
      %p102 = scmp.ne.s32.totalorder %s91, %s92
      %p103 = scmp.eq.s32.totalorder %s27, 0
      %p104 = por %p102, %p103
      %p105 = scmp.ne.s32.totalorder %s91, %s92
      %p106 = scmp.eq.s32.totalorder %s28, 6
      %p107 = por %p105, %p106
      %p109 = scmp.ne.s32.totalorder %s92, %s108
      %p110 = scmp.eq.s32.totalorder %s28, 0
      %p111 = por %p109, %p110
      %s113 = sadd.s32 %s112, 1
      %p116 = scmp.eq.s32.totalorder %s22, 6
      %p117 = scmp.ne.s32.totalorder %s112, %s114
      %p118 = scmp.eq.s32.totalorder %s22, 0
      %p119 = por %p117, %p118
      %p120 = scmp.ne.s32.totalorder %s112, %s114
      %p121 = scmp.eq.s32.totalorder %s27, 6
      %p122 = por %p120, %p121
      %p123 = scmp.ne.s32.totalorder %s114, %s115
      %p124 = scmp.eq.s32.totalorder %s27, 0
      %p125 = por %p123, %p124
      %p126 = scmp.ne.s32.totalorder %s114, %s115
      %p127 = scmp.eq.s32.totalorder %s28, 6
      %p128 = por %p126, %p127
      %p130 = scmp.ne.s32.totalorder %s115, %s129
      %p131 = scmp.eq.s32.totalorder %s28, 0
      %p132 = por %p130, %p131
      %s134 = sadd.s32 %s133, 1
      %p137 = scmp.eq.s32.totalorder %s22, 6
      %p138 = scmp.ne.s32.totalorder %s133, %s135
      %p139 = scmp.eq.s32.totalorder %s22, 0
      %p140 = por %p138, %p139
      %p141 = scmp.ne.s32.totalorder %s133, %s135
      %p142 = scmp.eq.s32.totalorder %s27, 6
      %p143 = por %p141, %p142
      %p144 = scmp.ne.s32.totalorder %s135, %s136
      %p145 = scmp.eq.s32.totalorder %s27, 0
      %p146 = por %p144, %p145
      %p147 = scmp.ne.s32.totalorder %s135, %s136
      %p148 = scmp.eq.s32.totalorder %s28, 6
      %p149 = por %p147, %p148
      %p151 = scmp.ne.s32.totalorder %s136, %s150
      %p152 = scmp.eq.s32.totalorder %s28, 0
      %p153 = por %p151, %p152
      %s155 = sadd.s32 %s154, 1
      %p158 = scmp.eq.s32.totalorder %s22, 6
      %p159 = scmp.ne.s32.totalorder %s154, %s156
      %p160 = scmp.eq.s32.totalorder %s22, 0
      %p161 = por %p159, %p160
      %p162 = scmp.ne.s32.totalorder %s154, %s156
      %p163 = scmp.eq.s32.totalorder %s27, 6
      %p164 = por %p162, %p163
      %p165 = scmp.ne.s32.totalorder %s156, %s157
      %p166 = scmp.eq.s32.totalorder %s27, 0
      %p167 = por %p165, %p166
      %p168 = scmp.ne.s32.totalorder %s156, %s157
      %p169 = scmp.eq.s32.totalorder %s28, 6
      %p170 = por %p168, %p169
      %p172 = scmp.ne.s32.totalorder %s157, %s171
      %p173 = scmp.eq.s32.totalorder %s28, 0
      %p174 = por %p172, %p173
      %s176 = sadd.s32 %s175, 1
      %p179 = scmp.eq.s32.totalorder %s22, 6
      %p180 = scmp.ne.s32.totalorder %s175, %s177
      %p181 = scmp.eq.s32.totalorder %s22, 0
      %p182 = por %p180, %p181
      %p183 = scmp.ne.s32.totalorder %s175, %s177
      %p184 = scmp.eq.s32.totalorder %s27, 6
      %p185 = por %p183, %p184
      %p186 = scmp.ne.s32.totalorder %s177, %s178
      %p187 = scmp.eq.s32.totalorder %s27, 0
      %p188 = por %p186, %p187
      %p189 = scmp.ne.s32.totalorder %s177, %s178
      %p190 = scmp.eq.s32.totalorder %s28, 6
      %p191 = por %p189, %p190
      %p193 = scmp.ne.s32.totalorder %s178, %s192
      %p194 = scmp.eq.s32.totalorder %s28, 0
      %p195 = por %p193, %p194
      %s197 = sadd.s32 %s196, 1
      %p200 = scmp.eq.s32.totalorder %s22, 6
      %p201 = scmp.ne.s32.totalorder %s196, %s198
      %p202 = scmp.eq.s32.totalorder %s22, 0
      %p203 = por %p201, %p202
      %p204 = scmp.ne.s32.totalorder %s196, %s198
      %p205 = scmp.eq.s32.totalorder %s27, 6
      %p206 = por %p204, %p205
      %p207 = scmp.ne.s32.totalorder %s198, %s199
      %p208 = scmp.eq.s32.totalorder %s27, 0
      %p209 = por %p207, %p208
      %p210 = scmp.ne.s32.totalorder %s198, %s199
      %p211 = scmp.eq.s32.totalorder %s28, 6
      %p212 = por %p210, %p211
      %p214 = scmp.ne.s32.totalorder %s199, %s213
      %p215 = scmp.eq.s32.totalorder %s28, 0
      %p216 = por %p214, %p215
      %s218 = sadd.s32 %s217, 1
      %p221 = scmp.eq.s32.totalorder %s22, 6
      %p222 = scmp.ne.s32.totalorder %s217, %s219
      %p223 = scmp.eq.s32.totalorder %s22, 0
      %p224 = por %p222, %p223
      %p225 = scmp.ne.s32.totalorder %s217, %s219
      %p226 = scmp.eq.s32.totalorder %s27, 6
      %p227 = por %p225, %p226
      %p228 = scmp.ne.s32.totalorder %s219, %s220
      %p229 = scmp.eq.s32.totalorder %s27, 0
      %p230 = por %p228, %p229
      %p231 = scmp.ne.s32.totalorder %s219, %s220
      %p232 = scmp.eq.s32.totalorder %s28, 6
      %p233 = por %p231, %p232
      %p235 = scmp.ne.s32.totalorder %s220, %s234
      %p236 = scmp.eq.s32.totalorder %s28, 0
      %p237 = por %p235, %p236
      %s239 = sadd.s32 %s238, 1
      %p242 = scmp.eq.s32.totalorder %s22, 6
      %p243 = scmp.ne.s32.totalorder %s238, %s240
      %p244 = scmp.eq.s32.totalorder %s22, 0
      %p245 = por %p243, %p244
      %p246 = scmp.ne.s32.totalorder %s238, %s240
      %p247 = scmp.eq.s32.totalorder %s27, 6
      %p248 = por %p246, %p247
      %p249 = scmp.ne.s32.totalorder %s240, %s241
      %p250 = scmp.eq.s32.totalorder %s27, 0
      %p251 = por %p249, %p250
      %p252 = scmp.ne.s32.totalorder %s240, %s241
      %p253 = scmp.eq.s32.totalorder %s28, 6
      %p254 = por %p252, %p253
      %p256 = scmp.ne.s32.totalorder %s241, %s255
      %p257 = scmp.eq.s32.totalorder %s28, 0
      %p258 = por %p256, %p257
      %s260 = sadd.s32 %s259, 1
      %p263 = scmp.eq.s32.totalorder %s22, 6
      %p264 = scmp.ne.s32.totalorder %s259, %s261
      %p265 = scmp.eq.s32.totalorder %s22, 0
      %p266 = por %p264, %p265
      %p267 = scmp.ne.s32.totalorder %s259, %s261
      %p268 = scmp.eq.s32.totalorder %s27, 6
      %p269 = por %p267, %p268
      %p270 = scmp.ne.s32.totalorder %s261, %s262
      %p271 = scmp.eq.s32.totalorder %s27, 0
      %p272 = por %p270, %p271
      %p273 = scmp.ne.s32.totalorder %s261, %s262
      %p274 = scmp.eq.s32.totalorder %s28, 6
      %p275 = por %p273, %p274
      %p277 = scmp.ne.s32.totalorder %s262, %s276
      %p278 = scmp.eq.s32.totalorder %s28, 0
      %p279 = por %p277, %p278
      %s281 = sadd.s32 %s280, 1
      %p284 = scmp.eq.s32.totalorder %s22, 6
      %p285 = scmp.ne.s32.totalorder %s280, %s282
      %p286 = scmp.eq.s32.totalorder %s22, 0
      %p287 = por %p285, %p286
      %p288 = scmp.ne.s32.totalorder %s280, %s282
      %p289 = scmp.eq.s32.totalorder %s27, 6
      %p290 = por %p288, %p289
      %p291 = scmp.ne.s32.totalorder %s282, %s283
      %p292 = scmp.eq.s32.totalorder %s27, 0
      %p293 = por %p291, %p292
      %p294 = scmp.ne.s32.totalorder %s282, %s283
      %p295 = scmp.eq.s32.totalorder %s28, 6
      %p296 = por %p294, %p295
      %p298 = scmp.ne.s32.totalorder %s283, %s297
      %p299 = scmp.eq.s32.totalorder %s28, 0
      %p300 = por %p298, %p299
      %s302 = sadd.s32 %s301, 1
      %p305 = scmp.eq.s32.totalorder %s22, 6
      %p306 = scmp.ne.s32.totalorder %s301, %s303
      %p307 = scmp.eq.s32.totalorder %s22, 0
      %p308 = por %p306, %p307
      %p309 = scmp.ne.s32.totalorder %s301, %s303
      %p310 = scmp.eq.s32.totalorder %s27, 6
      %p311 = por %p309, %p310
      %p312 = scmp.ne.s32.totalorder %s303, %s304
      %p313 = scmp.eq.s32.totalorder %s27, 0
      %p314 = por %p312, %p313
      %p315 = scmp.ne.s32.totalorder %s303, %s304
      %p316 = scmp.eq.s32.totalorder %s28, 6
      %p317 = por %p315, %p316
      %p319 = scmp.ne.s32.totalorder %s304, %s318
      %p320 = scmp.eq.s32.totalorder %s28, 0
      %p321 = por %p319, %p320
      %s323 = sadd.s32 %s322, 1
      %p326 = scmp.eq.s32.totalorder %s22, 6
      %p327 = scmp.ne.s32.totalorder %s322, %s324
      %p328 = scmp.eq.s32.totalorder %s22, 0
      %p329 = por %p327, %p328
      %p330 = scmp.ne.s32.totalorder %s322, %s324
      %p331 = scmp.eq.s32.totalorder %s27, 6
      %p332 = por %p330, %p331
      %p333 = scmp.ne.s32.totalorder %s324, %s325
      %p334 = scmp.eq.s32.totalorder %s27, 0
      %p335 = por %p333, %p334
      %p336 = scmp.ne.s32.totalorder %s324, %s325
      %p337 = scmp.eq.s32.totalorder %s28, 6
      %p338 = por %p336, %p337
      %p340 = scmp.ne.s32.totalorder %s325, %s339
      %p341 = scmp.eq.s32.totalorder %s28, 0
      %p342 = por %p340, %p341
      %s343 = ssub.s32 %s29, %s41
      %p344 = scmp.eq.s32.totalorder %s343, 0
      %s346 = sadd.s32 %s345, 1
      %s347 = scalar_select %p344, %s345, %s346
      %p350 = pneg %p344
      %p351 = scmp.eq.s32.totalorder %s22, 6
      %p352 = por %p350, %p351
      %p353 = scmp.ne.s32.totalorder %s345, %s348
      %p354 = scmp.eq.s32.totalorder %s22, 0
      %p355 = por %p353, %p354
      %p356 = scmp.ne.s32.totalorder %s345, %s348
      %p357 = scmp.eq.s32.totalorder %s27, 6
      %p358 = por %p356, %p357
      %p359 = scmp.ne.s32.totalorder %s348, %s349
      %p360 = scmp.eq.s32.totalorder %s27, 0
      %p361 = por %p359, %p360
      %p362 = scmp.ne.s32.totalorder %s348, %s349
      %p363 = scmp.eq.s32.totalorder %s28, 6
      %p364 = por %p362, %p363
      %p366 = scmp.ne.s32.totalorder %s349, %s365
      %p367 = scmp.eq.s32.totalorder %s28, 0
      %p368 = por %p366, %p367
      %p369 = scmp.le.s32.totalorder 1, %s22
      %p370 = scmp.lt.s32.totalorder %s22, 8
      %p371 = pnand %p369, %p370
      %p372 = pneg %p371
      // Predicated region
      $region9: #{ltsm_conv_forward.1} parent=5 // pred_check
        _
      $region10: #{ltsm_conv_forward.1} parent=5 // pred_check_branch
        %374 = sbr.rel (%p371) target = $region12
      $region11: #{ltsm_conv_forward.1} parent=5 // pred_region
        %s375 = ssub.s32 %s22, 1
        // Predicated region
        $region13: #{ltsm_conv_forward.1} parent=11 // pred_check
          %p376 = pneg %p55
        $region14: #{ltsm_conv_forward.1} parent=11 // pred_check_branch
          %378 = sbr.rel (%p376) target = $region16
        $region15: #{ltsm_conv_forward.1} parent=11 // pred_region
          %s380 = ssub.s32 16, 16
          %381 = vsyncadd [#allocation6], %s380
          %s383 = sshll.u32 %s0, 4
          %s384 = int_to_ptr.vmem [resolvable:$true] %s383
          %386 = dma.vmem_to_smem %s384, 16, [#allocation5], [#allocation6]
        $region16: #{ltsm_conv_forward.1} parent=11 // pred_fallthru
          _
        // Predicated region
        $region17: #{ltsm_conv_forward.1} parent=11 // pred_check
          %p387 = pneg %p76
        $region18: #{ltsm_conv_forward.1} parent=11 // pred_check_branch
          %389 = sbr.rel (%p387) target = $region20
        $region19: #{ltsm_conv_forward.1} parent=11 // pred_region
          _
        $region20: #{ltsm_conv_forward.1} parent=11 // pred_fallthru
          _
        // Predicated region
        $region21: #{ltsm_conv_forward.1} parent=11 // pred_check
          %p390 = pneg %p125
        $region22: #{ltsm_conv_forward.1} parent=11 // pred_check_branch
          %392 = sbr.rel (%p390) target = $region24
        $region23: #{ltsm_conv_forward.1} parent=11 // pred_region
          _
        $region24: #{ltsm_conv_forward.1} parent=11 // pred_fallthru
          _
        // Predicated region
        $region25: #{ltsm_conv_forward.1} parent=11 // pred_check
          %p393 = pneg %p146
        $region26: #{ltsm_conv_forward.1} parent=11 // pred_check_branch
          %395 = sbr.rel (%p393) target = $region28
        $region27: #{ltsm_conv_forward.1} parent=11 // pred_region
          _
        $region28: #{ltsm_conv_forward.1} parent=11 // pred_fallthru
          _
        // Predicated region
        $region29: #{ltsm_conv_forward.1} parent=11 // pred_check
          %p396 = pneg %p167
        $region30: #{ltsm_conv_forward.1} parent=11 // pred_check_branch
          %398 = sbr.rel (%p396) target = $region32
        $region31: #{ltsm_conv_forward.1} parent=11 // pred_region
          _
        $region32: #{ltsm_conv_forward.1} parent=11 // pred_fallthru
          _
        // Predicated region
        $region33: #{ltsm_conv_forward.1} parent=11 // pred_check
          %p399 = pneg %p188
        $region34: #{ltsm_conv_forward.1} parent=11 // pred_check_branch
          %401 = sbr.rel (%p399) target = $region36
        $region35: #{ltsm_conv_forward.1} parent=11 // pred_region
          _
        $region36: #{ltsm_conv_forward.1} parent=11 // pred_fallthru
          _
        // Predicated region
        $region37: #{ltsm_conv_forward.1} parent=11 // pred_check
          %p402 = pneg %p209
        $region38: #{ltsm_conv_forward.1} parent=11 // pred_check_branch
          %404 = sbr.rel (%p402) target = $region40
        $region39: #{ltsm_conv_forward.1} parent=11 // pred_region
          _
        $region40: #{ltsm_conv_forward.1} parent=11 // pred_fallthru
          _
        // Predicated region
        $region41: #{ltsm_conv_forward.1} parent=11 // pred_check
          %p405 = pneg %p230
        $region42: #{ltsm_conv_forward.1} parent=11 // pred_check_branch
          %407 = sbr.rel (%p405) target = $region44
        $region43: #{ltsm_conv_forward.1} parent=11 // pred_region
          _
        $region44: #{ltsm_conv_forward.1} parent=11 // pred_fallthru
          _
        // Predicated region
        $region45: #{ltsm_conv_forward.1} parent=11 // pred_check
          %p408 = pneg %p251
        $region46: #{ltsm_conv_forward.1} parent=11 // pred_check_branch
          %410 = sbr.rel (%p408) target = $region48
        $region47: #{ltsm_conv_forward.1} parent=11 // pred_region
          _
        $region48: #{ltsm_conv_forward.1} parent=11 // pred_fallthru
          _
        // Predicated region
        $region49: #{ltsm_conv_forward.1} parent=11 // pred_check
          %p411 = pneg %p272
        $region50: #{ltsm_conv_forward.1} parent=11 // pred_check_branch
          %413 = sbr.rel (%p411) target = $region52
        $region51: #{ltsm_conv_forward.1} parent=11 // pred_region
          _
        $region52: #{ltsm_conv_forward.1} parent=11 // pred_fallthru
          _
        // Predicated region
        $region53: #{ltsm_conv_forward.1} parent=11 // pred_check
          %p414 = pneg %p293
        $region54: #{ltsm_conv_forward.1} parent=11 // pred_check_branch
          %416 = sbr.rel (%p414) target = $region56
        $region55: #{ltsm_conv_forward.1} parent=11 // pred_region
          _
        $region56: #{ltsm_conv_forward.1} parent=11 // pred_fallthru
          _
        // Predicated region
        $region57: #{ltsm_conv_forward.1} parent=11 // pred_check
          %p417 = pneg %p314
        $region58: #{ltsm_conv_forward.1} parent=11 // pred_check_branch
          %419 = sbr.rel (%p417) target = $region60
        $region59: #{ltsm_conv_forward.1} parent=11 // pred_region
          _
        $region60: #{ltsm_conv_forward.1} parent=11 // pred_fallthru
          _
        // Predicated region
        $region61: #{ltsm_conv_forward.1} parent=11 // pred_check
          %p420 = pneg %p335
        $region62: #{ltsm_conv_forward.1} parent=11 // pred_check_branch
          %422 = sbr.rel (%p420) target = $region64
        $region63: #{ltsm_conv_forward.1} parent=11 // pred_region
          _
        $region64: #{ltsm_conv_forward.1} parent=11 // pred_fallthru
          _
      $region12: #{ltsm_conv_forward.1} parent=5 // pred_fallthru
        _
      %p423 = scmp.lt.s32.totalorder %s22, 7
      // Predicated region
      $region65: #{ltsm_conv_forward.1} parent=5 // pred_check
        %p424 = pneg %p423
      $region66: #{ltsm_conv_forward.1} parent=5 // pred_check_branch
        %426 = sbr.rel (%p424) target = $region68
      $region67: #{ltsm_conv_forward.1} parent=5 // pred_region
        // Predicated region
        $region69: #{ltsm_conv_forward.1} parent=67 // pred_check
          %p427 = pneg %p98
        $region70: #{ltsm_conv_forward.1} parent=67 // pred_check_branch
          %429 = sbr.rel (%p427) target = $region72
        $region71: #{ltsm_conv_forward.1} parent=67 // pred_region
          %s430 = sand.u32 %s88, 1
          %s431 = sand.u32 %s88, 1
          %s432 = smul.addr %s431, 16
          %s433 = scalar_lea.vmem [#allocation7], %s432
          %s434 = smul.u32 2, %s29
          %s435 = smul.u32 2, %s30
          %s436 = smul.addr %s434, 14
          %s437 = sadd.s32 %s435, %s436
          %s438 = smul.addr %s437, 4
          %s439 = scalar_lea.vmem %s2, %s438
          // Predicated region
          $region73: #{ltsm_conv_forward.1} parent=71 // pred_check
            _
          $region74: #{ltsm_conv_forward.1} parent=71 // pred_check_branch
            %441 = sbr.rel (0) target = $region76
          $region75: #{ltsm_conv_forward.1} parent=71 // pred_region
            // Predicated region
            $region77: #{ltsm_conv_forward.1} parent=75 // pred_check
              _
            $region78: #{ltsm_conv_forward.1} parent=75 // pred_check_branch
              %443 = sbr.rel (0) target = $region80
            $region79: #{ltsm_conv_forward.1} parent=75 // pred_region
              // Predicated region
              $region92: #{ltsm_conv_forward.1} parent=79 // pred_check
                _
              $region93: #{ltsm_conv_forward.1} parent=79 // pred_check_branch
                %460 = sbr.rel (0) target = $region95
              $region94: #{ltsm_conv_forward.1} parent=79 // pred_region
                loop: start=0, step=1, limit=1
                $region96: #{ltsm_conv_forward.1} parent=94 // loop_pre_header
                  _
                $region97: #{ltsm_conv_forward.1} parent=94 // loop_header
                  %s462 = sphi 0, %s466
                  %p463 = scmp.ge.s32.totalorder %s462, 1
                  %s467 = sphi %s439, %s439
                  %s468 = sphi %s433, %s433
                $region98: #{ltsm_conv_forward.1} parent=94 // loop_header_branch
                  %465 = sbr.rel (%p463) target = $region102
                $region99: #{ltsm_conv_forward.1} parent=94 // loop_body
                  %v469 = vld [vmem:[%s467] sm:$0xff]
                  %470 = vst [vmem:[%s468] sm:$0xff] %v469
                  %v471 = vld [vmem:[%s467 + $0x38] sm:$0xff]
                  %472 = vst [vmem:[%s468 + $0x8] sm:$0xff] %v471
                $region100: #{ltsm_conv_forward.1} parent=94 // loop_footer
                  %s466 = sadd.s32 1, %s462
                $region101: #{ltsm_conv_forward.1} parent=94 // loop_footer_branch
                  %461 = sbr.rel target = $region97
                $region102: #{ltsm_conv_forward.1} parent=94 // loop_exit
                  _
              $region95: #{ltsm_conv_forward.1} parent=79 // pred_fallthru
                _
              // Predicated region
              $region103: #{ltsm_conv_forward.1} parent=79 // pred_check
                _
              $region104: #{ltsm_conv_forward.1} parent=79 // pred_check_branch
                %474 = sbr.rel target = $region106
              $region105: #{ltsm_conv_forward.1} parent=79 // pred_region
                _
              $region106: #{ltsm_conv_forward.1} parent=79 // pred_fallthru
                _
            $region80: #{ltsm_conv_forward.1} parent=75 // pred_fallthru
              _
            // Predicated region
            $region81: #{ltsm_conv_forward.1} parent=75 // pred_check
              _
            $region82: #{ltsm_conv_forward.1} parent=75 // pred_check_branch
              %445 = sbr.rel target = $region84
            $region83: #{ltsm_conv_forward.1} parent=75 // pred_region
              loop: start=0, step=1, limit=1
              $region85: #{ltsm_conv_forward.1} parent=83 // loop_pre_header
                _
              $region86: #{ltsm_conv_forward.1} parent=83 // loop_header
                %s448 = sphi 0, %s452
                %p449 = scmp.ge.s32.totalorder %s448, 1
                %s453 = sphi %s439, %s439
                %s454 = sphi %s433, %s433
              $region87: #{ltsm_conv_forward.1} parent=83 // loop_header_branch
                %451 = sbr.rel (%p449) target = $region91
              $region88: #{ltsm_conv_forward.1} parent=83 // loop_body
                %v455 = vld [vmem:[%s453] sm:$0xff]
                %456 = vst [vmem:[%s454] sm:$0xff] %v455
                %v457 = vld [vmem:[%s453 + $0x38] sm:$0xff]
                %458 = vst [vmem:[%s454 + $0x8] sm:$0xff] %v457
              $region89: #{ltsm_conv_forward.1} parent=83 // loop_footer
                %s452 = sadd.s32 1, %s448
              $region90: #{ltsm_conv_forward.1} parent=83 // loop_footer_branch
                %447 = sbr.rel target = $region86
              $region91: #{ltsm_conv_forward.1} parent=83 // loop_exit
                _
            $region84: #{ltsm_conv_forward.1} parent=75 // pred_fallthru
              _
          $region76: #{ltsm_conv_forward.1} parent=71 // pred_fallthru
            _
          %475 = vnop
        $region72: #{ltsm_conv_forward.1} parent=67 // pred_fallthru
          _
      $region68: #{ltsm_conv_forward.1} parent=5 // pred_fallthru
        _
      %p476 = scmp.le.s32.totalorder 1, %s22
      %p477 = scmp.lt.s32.totalorder %s22, 8
      %p478 = pnand %p476, %p477
      %p479 = pneg %p478
      // Predicated region
      $region107: #{ltsm_conv_forward.1} parent=5 // pred_check
        _
      $region108: #{ltsm_conv_forward.1} parent=5 // pred_check_branch
        %481 = sbr.rel (%p478) target = $region110
      $region109: #{ltsm_conv_forward.1} parent=5 // pred_region
        %s482 = ssub.s32 %s22, 1
        // Predicated region
        $region111: #{ltsm_conv_forward.1} parent=109 // pred_check
          %p483 = pneg %p55
        $region112: #{ltsm_conv_forward.1} parent=109 // pred_check_branch
          %485 = sbr.rel (%p483) target = $region114
        $region113: #{ltsm_conv_forward.1} parent=109 // pred_region
          %486 = dma.done [#allocation6], 16
        $region114: #{ltsm_conv_forward.1} parent=109 // pred_fallthru
          _
        %s487 = sand.u32 %s91, 1
        %s488 = sand.u32 %s91, 1
        %s489 = smul.addr %s488, 16
        %s490 = scalar_lea.vmem [#allocation7], %s489
        // Predicated region
        $region115: #{ltsm_conv_forward.1} parent=109 // pred_check
          %p491 = pneg %p104
        $region116: #{ltsm_conv_forward.1} parent=109 // pred_check_branch
          %493 = sbr.rel (%p491) target = $region118
        $region117: #{ltsm_conv_forward.1} parent=109 // pred_region
          _
        $region118: #{ltsm_conv_forward.1} parent=109 // pred_fallthru
          _
        %494 = sfence
        %p495 = pneg %p55
        %p496 = pneg %p52
        %p497 = pneg %p76
        %p498 = pneg %p73
        %s499 = sand.u32 %s91, 1
        %s500 = sand.u32 %s91, 1
        %s501 = smul.addr %s500, 16
        %s502 = scalar_lea.vmem [#allocation7], %s501
        %p503 = pneg %p104
        %p504 = pneg %p101
        %p505 = pneg %p125
        %p506 = pneg %p122
        %p507 = pneg %p146
        %p508 = pneg %p143
        %p509 = pneg %p167
        %p510 = pneg %p164
        %p511 = pneg %p188
        %p512 = pneg %p185
        %p513 = pneg %p209
        %p514 = pneg %p206
        %p515 = pneg %p230
        %p516 = pneg %p227
        %p517 = pneg %p251
        %p518 = pneg %p248
        %p519 = pneg %p272
        %p520 = pneg %p269
        %p521 = pneg %p293
        %p522 = pneg %p290
        %p523 = pneg %p314
        %p524 = pneg %p311
        %p525 = pneg %p335
        %p526 = pneg %p332
        %p527 = pneg %p361
        %p528 = pneg %p358
        %s529 = smul.u32 2, %s31
        %p530 = scmp.lt.s32.totalorder %s529, 1
        %s531 = scalar_select %p530, %s529, 1
        %s532 = smul.addr %s531, 8
        %s533 = scalar_lea.vmem %s14, %s532
        %s534 = smul.u32 2, %s31
        %s535 = smul.u32 2, %s32
        %s536 = smul.u32 2, %s31
        %p537 = scmp.lt.s32.totalorder %s536, 1
        %s538 = scalar_select %p537, %s536, 1
        %s539 = smul.addr %s538, 8
        %s540 = scalar_lea.vmem %s14, %s539
        %s541 = smul.u32 2, %s31
        %p543 = scmp.eq.s32.totalorder %s32, 0
        // Predicated region
        $region119: #{ltsm_conv_forward.1} parent=109 // pred_check
          %p544 = pneg %p543
        $region120: #{ltsm_conv_forward.1} parent=109 // pred_check_branch
          %546 = sbr.rel (%p544) target = $region122
        $region121: #{ltsm_conv_forward.1} parent=109 // pred_region
          %547 = vst [vmem:[#allocation2] sm:$0xff] 0.0
          %548 = vst [vmem:[#allocation2 + $0x8] sm:$0xff] 0.0
          %549 = vst [vmem:[#allocation2 + $0x10] sm:$0xff] 0.0
          %550 = vst [vmem:[#allocation2 + $0x18] sm:$0xff] 0.0
          %551 = vst [vmem:[#allocation2 + $0x20] sm:$0xff] 0.0
          %552 = vst [vmem:[#allocation2 + $0x28] sm:$0xff] 0.0
          %553 = vst [vmem:[#allocation2 + $0x30] sm:$0xff] 0.0
          %554 = vst [vmem:[#allocation2 + $0x38] sm:$0xff] 0.0
        $region122: #{ltsm_conv_forward.1} parent=109 // pred_fallthru
          _
        %v555 = vld [vmem:[%s490] sm:$0xff]
        %v556 = vld [vmem:[%s490 + $0x8] sm:$0xff]
        %v557 = vld [vmem:[%s3] sm:$0xff]
        %v558 = vld [vmem:[%s3 + $0x8] sm:$0xff]
        %v559 = vld [vmem:[%s3 + $0x10] sm:$0xff]
        %v560 = vld [vmem:[%s3 + $0x18] sm:$0xff]
        %v561 = vld [vmem:[%s3 + $0x20] sm:$0xff]
        %v562 = vld [vmem:[%s3 + $0x28] sm:$0xff]
        %v563 = vld [vmem:[%s3 + $0x30] sm:$0xff]
        %v564 = vld [vmem:[%s3 + $0x38] sm:$0xff]
        %v565 = vld [vmem:[%s3 + $0x40] sm:$0xff]
        %v566 = vld [vmem:[%s3 + $0x48] sm:$0xff]
        %v567 = vld [vmem:[%s3 + $0x50] sm:$0xff]
        %v568 = vld [vmem:[%s3 + $0x58] sm:$0xff]
        %v569 = vld [vmem:[%s3 + $0x60] sm:$0xff]
        %v570 = vld [vmem:[%s3 + $0x68] sm:$0xff]
        %v571 = vld [vmem:[%s3 + $0x70] sm:$0xff]
        %v572 = vld [vmem:[%s3 + $0x78] sm:$0xff]
        %v573 = vld [vmem:[%s3 + $0x80] sm:$0xff]
        %v574 = vld [vmem:[%s3 + $0x88] sm:$0xff]
        %v575 = vld [vmem:[%s3 + $0x90] sm:$0xff]
        %v576 = vld [vmem:[%s3 + $0x98] sm:$0xff]
        %v577 = vld [vmem:[%s3 + $0xa0] sm:$0xff]
        %v578 = vld [vmem:[%s3 + $0xa8] sm:$0xff]
        %v579 = vld [vmem:[%s3 + $0xb0] sm:$0xff]
        %v580 = vld [vmem:[%s3 + $0xb8] sm:$0xff]
        %v581 = vld [vmem:[%s3 + $0xc0] sm:$0xff]
        %v582 = vld [vmem:[%s3 + $0xc8] sm:$0xff]
        %v583 = vld [vmem:[%s3 + $0xd0] sm:$0xff]
        %v584 = vld [vmem:[%s3 + $0xd8] sm:$0xff]
        %v585 = vld [vmem:[%s3 + $0xe0] sm:$0xff]
        %v586 = vld [vmem:[%s3 + $0xe8] sm:$0xff]
        %v587 = vld [vmem:[%s3 + $0xf0] sm:$0xff]
        %v588 = vld [vmem:[%s3 + $0xf8] sm:$0xff]
        %v589 = vld [vmem:[%s3 + $0x100] sm:$0xff]
        %v590 = vld [vmem:[%s3 + $0x108] sm:$0xff]
        %v591 = vld [vmem:[%s3 + $0x110] sm:$0xff]
        %v592 = vld [vmem:[%s3 + $0x118] sm:$0xff]
        %v593 = vld [vmem:[%s3 + $0x120] sm:$0xff]
        %v594 = vld [vmem:[%s3 + $0x128] sm:$0xff]
        %v595 = vld [vmem:[%s3 + $0x130] sm:$0xff]
        %v596 = vld [vmem:[%s3 + $0x138] sm:$0xff]
        %v597 = vld [vmem:[%s3 + $0x140] sm:$0xff]
        %v598 = vld [vmem:[%s3 + $0x148] sm:$0xff]
        %v599 = vld [vmem:[%s3 + $0x150] sm:$0xff]
        %v600 = vld [vmem:[%s3 + $0x158] sm:$0xff]
        %v601 = vld [vmem:[%s3 + $0x160] sm:$0xff]
        %v602 = vld [vmem:[%s3 + $0x168] sm:$0xff]
        %v603 = vld [vmem:[%s3 + $0x170] sm:$0xff]
        %v604 = vld [vmem:[%s3 + $0x178] sm:$0xff]
        %v605 = vld [vmem:[%s3 + $0x180] sm:$0xff]
        %v606 = vld [vmem:[%s3 + $0x188] sm:$0xff]
        %v607 = vld [vmem:[%s3 + $0x190] sm:$0xff]
        %v608 = vld [vmem:[%s3 + $0x198] sm:$0xff]
        %v609 = vld [vmem:[%s3 + $0x1a0] sm:$0xff]
        %v610 = vld [vmem:[%s3 + $0x1a8] sm:$0xff]
        %v611 = vld [vmem:[%s3 + $0x1b0] sm:$0xff]
        %v612 = vld [vmem:[%s3 + $0x1b8] sm:$0xff]
        %v613 = vld [vmem:[%s3 + $0x1c0] sm:$0xff]
        %v614 = vld [vmem:[%s3 + $0x1c8] sm:$0xff]
        %v615 = vld [vmem:[%s3 + $0x1d0] sm:$0xff]
        %v616 = vld [vmem:[%s3 + $0x1d8] sm:$0xff]
        %v617 = vld [vmem:[%s3 + $0x1e0] sm:$0xff]
        %v618 = vld [vmem:[%s3 + $0x1e8] sm:$0xff]
        %v619 = vld [vmem:[%s3 + $0x1f0] sm:$0xff]
        %v620 = vld [vmem:[%s3 + $0x1f8] sm:$0xff]
        %v621 = vld [vmem:[%s4] sm:$0xf]
        %v623 = vlaneseq
        %v624 = vshrl.u32 %v623, 7
        %v625 = vsub.s32 0, %v624
        %v626 = vrot.slane %v621, %v625
        %v627 = vlaneseq
        %v628 = vshrl.u32 %v627, 7
        %v629 = vsub.s32 1, %v628
        %v630 = vrot.slane %v621, %v629
        %v631 = vlaneseq
        %v632 = vshrl.u32 %v631, 7
        %v633 = vsub.s32 2, %v632
        %v634 = vrot.slane %v621, %v633
        %v635 = vlaneseq
        %v636 = vshrl.u32 %v635, 7
        %v637 = vsub.s32 3, %v636
        %v638 = vrot.slane %v621, %v637
        %v645 = vunpack.c.l.b16 %v555
        %v646 = vunpack.c.h.b16 %v555
        %v647 = vunpack.c.l.b16 %v556
        %v648 = vunpack.c.h.b16 %v556
        %v649 = vpack.c.b16 %v647, %v645
        %v650 = vpack.c.b16 %v648, %v646
        %v717 = vunpack.c.l.b16 %v557
        %v718 = vunpack.c.h.b16 %v557
        %v719 = vunpack.c.l.b16 %v558
        %v720 = vunpack.c.h.b16 %v558
        %v721 = vunpack.c.l.b16 %v559
        %v722 = vunpack.c.h.b16 %v559
        %v723 = vunpack.c.l.b16 %v560
        %v724 = vunpack.c.h.b16 %v560
        %v725 = vunpack.c.l.b16 %v561
        %v726 = vunpack.c.h.b16 %v561
        %v727 = vunpack.c.l.b16 %v562
        %v728 = vunpack.c.h.b16 %v562
        %v729 = vunpack.c.l.b16 %v563
        %v730 = vunpack.c.h.b16 %v563
        %v731 = vunpack.c.l.b16 %v564
        %v732 = vunpack.c.h.b16 %v564
        %v733 = vunpack.c.l.b16 %v565
        %v734 = vunpack.c.h.b16 %v565
        %v735 = vunpack.c.l.b16 %v566
        %v736 = vunpack.c.h.b16 %v566
        %v737 = vunpack.c.l.b16 %v567
        %v738 = vunpack.c.h.b16 %v567
        %v739 = vunpack.c.l.b16 %v568
        %v740 = vunpack.c.h.b16 %v568
        %v741 = vunpack.c.l.b16 %v569
        %v742 = vunpack.c.h.b16 %v569
        %v743 = vunpack.c.l.b16 %v570
        %v744 = vunpack.c.h.b16 %v570
        %v745 = vunpack.c.l.b16 %v571
        %v746 = vunpack.c.h.b16 %v571
        %v747 = vunpack.c.l.b16 %v572
        %v748 = vunpack.c.h.b16 %v572
        %v749 = vunpack.c.l.b16 %v573
        %v750 = vunpack.c.h.b16 %v573
        %v751 = vunpack.c.l.b16 %v574
        %v752 = vunpack.c.h.b16 %v574
        %v753 = vunpack.c.l.b16 %v575
        %v754 = vunpack.c.h.b16 %v575
        %v755 = vunpack.c.l.b16 %v576
        %v756 = vunpack.c.h.b16 %v576
        %v757 = vunpack.c.l.b16 %v577
        %v758 = vunpack.c.h.b16 %v577
        %v759 = vunpack.c.l.b16 %v578
        %v760 = vunpack.c.h.b16 %v578
        %v761 = vunpack.c.l.b16 %v579
        %v762 = vunpack.c.h.b16 %v579
        %v763 = vunpack.c.l.b16 %v580
        %v764 = vunpack.c.h.b16 %v580
        %v765 = vunpack.c.l.b16 %v581
        %v766 = vunpack.c.h.b16 %v581
        %v767 = vunpack.c.l.b16 %v582
        %v768 = vunpack.c.h.b16 %v582
        %v769 = vunpack.c.l.b16 %v583
        %v770 = vunpack.c.h.b16 %v583
        %v771 = vunpack.c.l.b16 %v584
        %v772 = vunpack.c.h.b16 %v584
        %v773 = vunpack.c.l.b16 %v585
        %v774 = vunpack.c.h.b16 %v585
        %v775 = vunpack.c.l.b16 %v586
        %v776 = vunpack.c.h.b16 %v586
        %v777 = vunpack.c.l.b16 %v587
        %v778 = vunpack.c.h.b16 %v587
        %v779 = vunpack.c.l.b16 %v588
        %v780 = vunpack.c.h.b16 %v588
        %v781 = vunpack.c.l.b16 %v589
        %v782 = vunpack.c.h.b16 %v589
        %v783 = vunpack.c.l.b16 %v590
        %v784 = vunpack.c.h.b16 %v590
        %v785 = vunpack.c.l.b16 %v591
        %v786 = vunpack.c.h.b16 %v591
        %v787 = vunpack.c.l.b16 %v592
        %v788 = vunpack.c.h.b16 %v592
        %v789 = vunpack.c.l.b16 %v593
        %v790 = vunpack.c.h.b16 %v593
        %v791 = vunpack.c.l.b16 %v594
        %v792 = vunpack.c.h.b16 %v594
        %v793 = vunpack.c.l.b16 %v595
        %v794 = vunpack.c.h.b16 %v595
        %v795 = vunpack.c.l.b16 %v596
        %v796 = vunpack.c.h.b16 %v596
        %v797 = vunpack.c.l.b16 %v597
        %v798 = vunpack.c.h.b16 %v597
        %v799 = vunpack.c.l.b16 %v598
        %v800 = vunpack.c.h.b16 %v598
        %v801 = vunpack.c.l.b16 %v599
        %v802 = vunpack.c.h.b16 %v599
        %v803 = vunpack.c.l.b16 %v600
        %v804 = vunpack.c.h.b16 %v600
        %v805 = vunpack.c.l.b16 %v601
        %v806 = vunpack.c.h.b16 %v601
        %v807 = vunpack.c.l.b16 %v602
        %v808 = vunpack.c.h.b16 %v602
        %v809 = vunpack.c.l.b16 %v603
        %v810 = vunpack.c.h.b16 %v603
        %v811 = vunpack.c.l.b16 %v604
        %v812 = vunpack.c.h.b16 %v604
        %v813 = vunpack.c.l.b16 %v605
        %v814 = vunpack.c.h.b16 %v605
        %v815 = vunpack.c.l.b16 %v606
        %v816 = vunpack.c.h.b16 %v606
        %v817 = vunpack.c.l.b16 %v607
        %v818 = vunpack.c.h.b16 %v607
        %v819 = vunpack.c.l.b16 %v608
        %v820 = vunpack.c.h.b16 %v608
        %v821 = vunpack.c.l.b16 %v609
        %v822 = vunpack.c.h.b16 %v609
        %v823 = vunpack.c.l.b16 %v610
        %v824 = vunpack.c.h.b16 %v610
        %v825 = vunpack.c.l.b16 %v611
        %v826 = vunpack.c.h.b16 %v611
        %v827 = vunpack.c.l.b16 %v612
        %v828 = vunpack.c.h.b16 %v612
        %v829 = vunpack.c.l.b16 %v613
        %v830 = vunpack.c.h.b16 %v613
        %v831 = vunpack.c.l.b16 %v614
        %v832 = vunpack.c.h.b16 %v614
        %v833 = vunpack.c.l.b16 %v615
        %v834 = vunpack.c.h.b16 %v615
        %v835 = vunpack.c.l.b16 %v616
        %v836 = vunpack.c.h.b16 %v616
        %v837 = vunpack.c.l.b16 %v617
        %v838 = vunpack.c.h.b16 %v617
        %v839 = vunpack.c.l.b16 %v618
        %v840 = vunpack.c.h.b16 %v618
        %v841 = vunpack.c.l.b16 %v619
        %v842 = vunpack.c.h.b16 %v619
        %v843 = vunpack.c.l.b16 %v620
        %v844 = vunpack.c.h.b16 %v620
        %v845 = vpack.c.b16 %v721, %v717
        %v846 = vpack.c.b16 %v722, %v718
        %v847 = vpack.c.b16 %v723, %v719
        %v848 = vpack.c.b16 %v724, %v720
        %v849 = vpack.c.b16 %v729, %v725
        %v850 = vpack.c.b16 %v730, %v726
        %v851 = vpack.c.b16 %v731, %v727
        %v852 = vpack.c.b16 %v732, %v728
        %v853 = vpack.c.b16 %v737, %v733
        %v854 = vpack.c.b16 %v738, %v734
        %v855 = vpack.c.b16 %v739, %v735
        %v856 = vpack.c.b16 %v740, %v736
        %v857 = vpack.c.b16 %v745, %v741
        %v858 = vpack.c.b16 %v746, %v742
        %v859 = vpack.c.b16 %v747, %v743
        %v860 = vpack.c.b16 %v748, %v744
        %v861 = vpack.c.b16 %v753, %v749
        %v862 = vpack.c.b16 %v754, %v750
        %v863 = vpack.c.b16 %v755, %v751
        %v864 = vpack.c.b16 %v756, %v752
        %v865 = vpack.c.b16 %v761, %v757
        %v866 = vpack.c.b16 %v762, %v758
        %v867 = vpack.c.b16 %v763, %v759
        %v868 = vpack.c.b16 %v764, %v760
        %v869 = vpack.c.b16 %v769, %v765
        %v870 = vpack.c.b16 %v770, %v766
        %v871 = vpack.c.b16 %v771, %v767
        %v872 = vpack.c.b16 %v772, %v768
        %v873 = vpack.c.b16 %v777, %v773
        %v874 = vpack.c.b16 %v778, %v774
        %v875 = vpack.c.b16 %v779, %v775
        %v876 = vpack.c.b16 %v780, %v776
        %v877 = vpack.c.b16 %v785, %v781
        %v878 = vpack.c.b16 %v786, %v782
        %v879 = vpack.c.b16 %v787, %v783
        %v880 = vpack.c.b16 %v788, %v784
        %v881 = vpack.c.b16 %v793, %v789
        %v882 = vpack.c.b16 %v794, %v790
        %v883 = vpack.c.b16 %v795, %v791
        %v884 = vpack.c.b16 %v796, %v792
        %v885 = vpack.c.b16 %v801, %v797
        %v886 = vpack.c.b16 %v802, %v798
        %v887 = vpack.c.b16 %v803, %v799
        %v888 = vpack.c.b16 %v804, %v800
        %v889 = vpack.c.b16 %v809, %v805
        %v890 = vpack.c.b16 %v810, %v806
        %v891 = vpack.c.b16 %v811, %v807
        %v892 = vpack.c.b16 %v812, %v808
        %v893 = vpack.c.b16 %v817, %v813
        %v894 = vpack.c.b16 %v818, %v814
        %v895 = vpack.c.b16 %v819, %v815
        %v896 = vpack.c.b16 %v820, %v816
        %v897 = vpack.c.b16 %v825, %v821
        %v898 = vpack.c.b16 %v826, %v822
        %v899 = vpack.c.b16 %v827, %v823
        %v900 = vpack.c.b16 %v828, %v824
        %v901 = vpack.c.b16 %v833, %v829
        %v902 = vpack.c.b16 %v834, %v830
        %v903 = vpack.c.b16 %v835, %v831
        %v904 = vpack.c.b16 %v836, %v832
        %v905 = vpack.c.b16 %v841, %v837
        %v906 = vpack.c.b16 %v842, %v838
        %v907 = vpack.c.b16 %v843, %v839
        %v908 = vpack.c.b16 %v844, %v840
        %973 = vmatprep.subr.bf16.mxu0 %v846
        %974 = vmatpush1.bf16.msra.mxu0 %v845
        %975 = vmatprep.subr.bf16.mxu0 %v850
        %976 = vmatpush1.bf16.msra.mxu0 %v849
        %977 = vmatprep.subr.bf16.mxu0 %v854
        %978 = vmatpush1.bf16.msra.mxu0 %v853
        %979 = vmatprep.subr.bf16.mxu0 %v858
        %980 = vmatpush1.bf16.msra.mxu0 %v857
        %981 = vmatprep.subr.bf16.mxu0 %v862
        %982 = vmatpush1.bf16.msra.mxu0 %v861
        %983 = vmatprep.subr.bf16.mxu0 %v866
        %984 = vmatpush1.bf16.msra.mxu0 %v865
        %985 = vmatprep.subr.bf16.mxu0 %v870
        %986 = vmatpush1.bf16.msra.mxu0 %v869
        %987 = vmatprep.subr.bf16.mxu0 %v874
        %988 = vmatpush1.bf16.msra.mxu0 %v873
        %989 = vmatprep.subr.bf16.mxu0 %v878
        %990 = vmatpush1.bf16.msra.mxu0 %v877
        %991 = vmatprep.subr.bf16.mxu0 %v882
        %992 = vmatpush1.bf16.msra.mxu0 %v881
        %993 = vmatprep.subr.bf16.mxu0 %v886
        %994 = vmatpush1.bf16.msra.mxu0 %v885
        %995 = vmatprep.subr.bf16.mxu0 %v890
        %996 = vmatpush1.bf16.msra.mxu0 %v889
        %997 = vmatprep.subr.bf16.mxu0 %v894
        %998 = vmatpush1.bf16.msra.mxu0 %v893
        %999 = vmatprep.subr.bf16.mxu0 %v898
        %1000 = vmatpush1.bf16.msra.mxu0 %v897
        %1001 = vmatprep.subr.bf16.mxu0 %v902
        %1002 = vmatpush1.bf16.msra.mxu0 %v901
        %1003 = vmatprep.subr.bf16.mxu0 %v906
        %1004 = vmatpush1.bf16.msra.mxu0 %v905
        %1005 = vmatprep.mubr.bf16.mxu0 %v650
        %1006 = vmatmul.mubr.bf16.gmra.mrb[0].mxu0 %v649
        %v1007 = vpop.f32.mrb[0].mxu0
        %v1008 = vadd.f32 %v626, %v1007
        %v1009 = vpop.f32.mrb[0].mxu0
        %v1010 = vadd.f32 %v630, %v1009
        %v1011 = vpop.f32.mrb[0].mxu0
        %v1012 = vadd.f32 %v626, %v1011
        %v1013 = vpop.f32.mrb[0].mxu0
        %v1014 = vadd.f32 %v630, %v1013
        %1015 = vdwg.mxu0
        %1016 = vmatprep.subr.bf16.mxu0 %v848
        %1017 = vmatpush1.bf16.msra.mxu0 %v847
        %1018 = vmatprep.subr.bf16.mxu0 %v852
        %1019 = vmatpush1.bf16.msra.mxu0 %v851
        %1020 = vmatprep.subr.bf16.mxu0 %v856
        %1021 = vmatpush1.bf16.msra.mxu0 %v855
        %1022 = vmatprep.subr.bf16.mxu0 %v860
        %1023 = vmatpush1.bf16.msra.mxu0 %v859
        %1024 = vmatprep.subr.bf16.mxu0 %v864
        %1025 = vmatpush1.bf16.msra.mxu0 %v863
        %1026 = vmatprep.subr.bf16.mxu0 %v868
        %1027 = vmatpush1.bf16.msra.mxu0 %v867
        %1028 = vmatprep.subr.bf16.mxu0 %v872
        %1029 = vmatpush1.bf16.msra.mxu0 %v871
        %1030 = vmatprep.subr.bf16.mxu0 %v876
        %1031 = vmatpush1.bf16.msra.mxu0 %v875
        %1032 = vmatprep.subr.bf16.mxu0 %v880
        %1033 = vmatpush1.bf16.msra.mxu0 %v879
        %1034 = vmatprep.subr.bf16.mxu0 %v884
        %1035 = vmatpush1.bf16.msra.mxu0 %v883
        %1036 = vmatprep.subr.bf16.mxu0 %v888
        %1037 = vmatpush1.bf16.msra.mxu0 %v887
        %1038 = vmatprep.subr.bf16.mxu0 %v892
        %1039 = vmatpush1.bf16.msra.mxu0 %v891
        %1040 = vmatprep.subr.bf16.mxu0 %v896
        %1041 = vmatpush1.bf16.msra.mxu0 %v895
        %1042 = vmatprep.subr.bf16.mxu0 %v900
        %1043 = vmatpush1.bf16.msra.mxu0 %v899
        %1044 = vmatprep.subr.bf16.mxu0 %v904
        %1045 = vmatpush1.bf16.msra.mxu0 %v903
        %1046 = vmatprep.subr.bf16.mxu0 %v908
        %1047 = vmatpush1.bf16.msra.mxu0 %v907
        %1048 = vmatprep.mubr.bf16.mxu0 %v650
        %1049 = vmatmul.mubr.bf16.gmra.mrb[0].mxu0 %v649
        %v1050 = vpop.f32.mrb[0].mxu0
        %v1051 = vadd.f32 %v634, %v1050
        %v1052 = vpop.f32.mrb[0].mxu0
        %v1053 = vadd.f32 %v638, %v1052
        %v1054 = vpop.f32.mrb[0].mxu0
        %v1055 = vadd.f32 %v634, %v1054
        %v1056 = vpop.f32.mrb[0].mxu0
        %v1057 = vadd.f32 %v638, %v1056
        %1058 = vdwg.mxu0
        %v1059 = vmax.f32 %v1008, 0.0
        %v1060 = vmax.f32 %v1010, 0.0
        %v1061 = vmax.f32 %v1051, 0.0
        %v1062 = vmax.f32 %v1053, 0.0
        %v1063 = vmax.f32 %v1012, 0.0
        %v1064 = vmax.f32 %v1014, 0.0
        %v1065 = vmax.f32 %v1055, 0.0
        %v1066 = vmax.f32 %v1057, 0.0
        %v1067 = vld [vmem:[#allocation2] sm:$0xff]
        %v1068 = vld [vmem:[#allocation2 + $0x8] sm:$0xff]
        %v1069 = vld [vmem:[#allocation2 + $0x10] sm:$0xff]
        %v1070 = vld [vmem:[#allocation2 + $0x18] sm:$0xff]
        %v1071 = vld [vmem:[#allocation2 + $0x20] sm:$0xff]
        %v1072 = vld [vmem:[#allocation2 + $0x28] sm:$0xff]
        %v1073 = vld [vmem:[#allocation2 + $0x30] sm:$0xff]
        %v1074 = vld [vmem:[#allocation2 + $0x38] sm:$0xff]
        %s1075 = sld [smem:[#allocation5 + %s32]]
        %v1076 = vstv %s1075
        %v1077 = vmul.f32 %v1076, %v1059
        %v1078 = vmul.f32 %v1076, %v1060
        %v1079 = vmul.f32 %v1076, %v1061
        %v1080 = vmul.f32 %v1076, %v1062
        %v1081 = vmul.f32 %v1076, %v1063
        %v1082 = vmul.f32 %v1076, %v1064
        %v1083 = vmul.f32 %v1076, %v1065
        %v1084 = vmul.f32 %v1076, %v1066
        %v1085 = vadd.f32 %v1067, %v1077
        %v1086 = vadd.f32 %v1068, %v1078
        %v1087 = vadd.f32 %v1069, %v1079
        %v1088 = vadd.f32 %v1070, %v1080
        %v1089 = vadd.f32 %v1071, %v1081
        %v1090 = vadd.f32 %v1072, %v1082
        %v1091 = vadd.f32 %v1073, %v1083
        %v1092 = vadd.f32 %v1074, %v1084
        %1093 = vst [vmem:[#allocation2] sm:$0xff] %v1085
        %1094 = vst [vmem:[#allocation2 + $0x8] sm:$0xff] %v1086
        %1095 = vst [vmem:[#allocation2 + $0x10] sm:$0xff] %v1087
        %1096 = vst [vmem:[#allocation2 + $0x18] sm:$0xff] %v1088
        %1097 = vst [vmem:[#allocation2 + $0x20] sm:$0xff] %v1089
        %1098 = vst [vmem:[#allocation2 + $0x28] sm:$0xff] %v1090
        %1099 = vst [vmem:[#allocation2 + $0x30] sm:$0xff] %v1091
        %1100 = vst [vmem:[#allocation2 + $0x38] sm:$0xff] %v1092
        %v1101 = vpack.c.bf16 %v1063, %v1059
        %v1102 = vpack.c.bf16 %v1064, %v1060
        %v1103 = vpack.c.bf16 %v1065, %v1061
        %v1104 = vpack.c.bf16 %v1066, %v1062
        %v1105 = vld [vmem:[%s5] sm:$0xff]
        %v1106 = vld [vmem:[%s5 + $0x8] sm:$0xf]
        %v1107 = vld [vmem:[%s5 + $0xc] sm:$0xff]
        %v1108 = vld [vmem:[%s5 + $0x14] sm:$0xf]
        %v1109 = vld [vmem:[%s5 + $0x18] sm:$0xff]
        %v1110 = vld [vmem:[%s5 + $0x20] sm:$0xf]
        %v1111 = vld [vmem:[%s5 + $0x24] sm:$0xff]
        %v1112 = vld [vmem:[%s5 + $0x2c] sm:$0xf]
        %v1113 = vld [vmem:[%s5 + $0x30] sm:$0xff]
        %v1114 = vld [vmem:[%s5 + $0x38] sm:$0xf]
        %v1115 = vld [vmem:[%s5 + $0x3c] sm:$0xff]
        %v1116 = vld [vmem:[%s5 + $0x44] sm:$0xf]
        %v1117 = vld [vmem:[%s5 + $0x48] sm:$0xff]
        %v1118 = vld [vmem:[%s5 + $0x50] sm:$0xf]
        %v1119 = vld [vmem:[%s5 + $0x54] sm:$0xff]
        %v1120 = vld [vmem:[%s5 + $0x5c] sm:$0xf]
        %v1121 = vld [vmem:[%s5 + $0x60] sm:$0xff]
        %v1122 = vld [vmem:[%s5 + $0x68] sm:$0xf]
        %v1123 = vld [vmem:[%s5 + $0x6c] sm:$0xff]
        %v1124 = vld [vmem:[%s5 + $0x74] sm:$0xf]
        %v1125 = vld [vmem:[%s5 + $0x78] sm:$0xff]
        %v1126 = vld [vmem:[%s5 + $0x80] sm:$0xf]
        %v1127 = vld [vmem:[%s5 + $0x84] sm:$0xff]
        %v1128 = vld [vmem:[%s5 + $0x8c] sm:$0xf]
        %v1129 = vld [vmem:[%s5 + $0x90] sm:$0xff]
        %v1130 = vld [vmem:[%s5 + $0x98] sm:$0xf]
        %v1131 = vld [vmem:[%s5 + $0x9c] sm:$0xff]
        %v1132 = vld [vmem:[%s5 + $0xa4] sm:$0xf]
        %v1133 = vld [vmem:[%s5 + $0xa8] sm:$0xff]
        %v1134 = vld [vmem:[%s5 + $0xb0] sm:$0xf]
        %v1135 = vld [vmem:[%s5 + $0xb4] sm:$0xff]
        %v1136 = vld [vmem:[%s5 + $0xbc] sm:$0xf]
        %v1137 = vld [vmem:[%s5 + $0xc0] sm:$0xff]
        %v1138 = vld [vmem:[%s5 + $0xc8] sm:$0xf]
        %v1139 = vld [vmem:[%s5 + $0xcc] sm:$0xff]
        %v1140 = vld [vmem:[%s5 + $0xd4] sm:$0xf]
        %v1141 = vld [vmem:[%s5 + $0xd8] sm:$0xff]
        %v1142 = vld [vmem:[%s5 + $0xe0] sm:$0xf]
        %v1143 = vld [vmem:[%s5 + $0xe4] sm:$0xff]
        %v1144 = vld [vmem:[%s5 + $0xec] sm:$0xf]
        %v1145 = vld [vmem:[%s5 + $0xf0] sm:$0xff]
        %v1146 = vld [vmem:[%s5 + $0xf8] sm:$0xf]
        %v1147 = vld [vmem:[%s5 + $0xfc] sm:$0xff]
        %v1148 = vld [vmem:[%s5 + $0x104] sm:$0xf]
        %v1149 = vld [vmem:[%s5 + $0x108] sm:$0xff]
        %v1150 = vld [vmem:[%s5 + $0x110] sm:$0xf]
        %v1151 = vld [vmem:[%s5 + $0x114] sm:$0xff]
        %v1152 = vld [vmem:[%s5 + $0x11c] sm:$0xf]
        %v1153 = vld [vmem:[%s5 + $0x120] sm:$0xff]
        %v1154 = vld [vmem:[%s5 + $0x128] sm:$0xf]
        %v1155 = vld [vmem:[%s5 + $0x12c] sm:$0xff]
        %v1156 = vld [vmem:[%s5 + $0x134] sm:$0xf]
        %v1157 = vld [vmem:[%s5 + $0x138] sm:$0xff]
        %v1158 = vld [vmem:[%s5 + $0x140] sm:$0xf]
        %v1159 = vld [vmem:[%s5 + $0x144] sm:$0xff]
        %v1160 = vld [vmem:[%s5 + $0x14c] sm:$0xf]
        %v1161 = vld [vmem:[%s5 + $0x150] sm:$0xff]
        %v1162 = vld [vmem:[%s5 + $0x158] sm:$0xf]
        %v1163 = vld [vmem:[%s5 + $0x15c] sm:$0xff]
        %v1164 = vld [vmem:[%s5 + $0x164] sm:$0xf]
        %v1165 = vld [vmem:[%s5 + $0x168] sm:$0xff]
        %v1166 = vld [vmem:[%s5 + $0x170] sm:$0xf]
        %v1167 = vld [vmem:[%s5 + $0x174] sm:$0xff]
        %v1168 = vld [vmem:[%s5 + $0x17c] sm:$0xf]
        %v1169 = vld [vmem:[%s5 + $0x180] sm:$0xff]
        %v1170 = vld [vmem:[%s5 + $0x188] sm:$0xf]
        %v1171 = vld [vmem:[%s5 + $0x18c] sm:$0xff]
        %v1172 = vld [vmem:[%s5 + $0x194] sm:$0xf]
        %v1173 = vld [vmem:[%s5 + $0x198] sm:$0xff]
        %v1174 = vld [vmem:[%s5 + $0x1a0] sm:$0xf]
        %v1175 = vld [vmem:[%s5 + $0x1a4] sm:$0xff]
        %v1176 = vld [vmem:[%s5 + $0x1ac] sm:$0xf]
        %v1177 = vld [vmem:[%s5 + $0x1b0] sm:$0xff]
        %v1178 = vld [vmem:[%s5 + $0x1b8] sm:$0xf]
        %v1179 = vld [vmem:[%s5 + $0x1bc] sm:$0xff]
        %v1180 = vld [vmem:[%s5 + $0x1c4] sm:$0xf]
        %v1181 = vld [vmem:[%s5 + $0x1c8] sm:$0xff]
        %v1182 = vld [vmem:[%s5 + $0x1d0] sm:$0xf]
        %v1183 = vld [vmem:[%s5 + $0x1d4] sm:$0xff]
        %v1184 = vld [vmem:[%s5 + $0x1dc] sm:$0xf]
        %v1185 = vld [vmem:[%s5 + $0x1e0] sm:$0xff]
        %v1186 = vld [vmem:[%s5 + $0x1e8] sm:$0xf]
        %v1187 = vld [vmem:[%s5 + $0x1ec] sm:$0xff]
        %v1188 = vld [vmem:[%s5 + $0x1f4] sm:$0xf]
        %v1189 = vld [vmem:[%s5 + $0x1f8] sm:$0xff]
        %v1190 = vld [vmem:[%s5 + $0x200] sm:$0xf]
        %v1191 = vld [vmem:[%s5 + $0x204] sm:$0xff]
        %v1192 = vld [vmem:[%s5 + $0x20c] sm:$0xf]
        %v1193 = vld [vmem:[%s5 + $0x210] sm:$0xff]
        %v1194 = vld [vmem:[%s5 + $0x218] sm:$0xf]
        %v1195 = vld [vmem:[%s5 + $0x21c] sm:$0xff]
        %v1196 = vld [vmem:[%s5 + $0x224] sm:$0xf]
        %v1197 = vld [vmem:[%s5 + $0x228] sm:$0xff]
        %v1198 = vld [vmem:[%s5 + $0x230] sm:$0xf]
        %v1199 = vld [vmem:[%s5 + $0x234] sm:$0xff]
        %v1200 = vld [vmem:[%s5 + $0x23c] sm:$0xf]
        %v1201 = vld [vmem:[%s5 + $0x240] sm:$0xff]
        %v1202 = vld [vmem:[%s5 + $0x248] sm:$0xf]
        %v1203 = vld [vmem:[%s5 + $0x24c] sm:$0xff]
        %v1204 = vld [vmem:[%s5 + $0x254] sm:$0xf]
        %v1205 = vld [vmem:[%s5 + $0x258] sm:$0xff]
        %v1206 = vld [vmem:[%s5 + $0x260] sm:$0xf]
        %v1207 = vld [vmem:[%s5 + $0x264] sm:$0xff]
        %v1208 = vld [vmem:[%s5 + $0x26c] sm:$0xf]
        %v1209 = vld [vmem:[%s5 + $0x270] sm:$0xff]
        %v1210 = vld [vmem:[%s5 + $0x278] sm:$0xf]
        %v1211 = vld [vmem:[%s5 + $0x27c] sm:$0xff]
        %v1212 = vld [vmem:[%s5 + $0x284] sm:$0xf]
        %v1213 = vld [vmem:[%s5 + $0x288] sm:$0xff]
        %v1214 = vld [vmem:[%s5 + $0x290] sm:$0xf]
        %v1215 = vld [vmem:[%s5 + $0x294] sm:$0xff]
        %v1216 = vld [vmem:[%s5 + $0x29c] sm:$0xf]
        %v1217 = vld [vmem:[%s5 + $0x2a0] sm:$0xff]
        %v1218 = vld [vmem:[%s5 + $0x2a8] sm:$0xf]
        %v1219 = vld [vmem:[%s5 + $0x2ac] sm:$0xff]
        %v1220 = vld [vmem:[%s5 + $0x2b4] sm:$0xf]
        %v1221 = vld [vmem:[%s5 + $0x2b8] sm:$0xff]
        %v1222 = vld [vmem:[%s5 + $0x2c0] sm:$0xf]
        %v1223 = vld [vmem:[%s5 + $0x2c4] sm:$0xff]
        %v1224 = vld [vmem:[%s5 + $0x2cc] sm:$0xf]
        %v1225 = vld [vmem:[%s5 + $0x2d0] sm:$0xff]
        %v1226 = vld [vmem:[%s5 + $0x2d8] sm:$0xf]
        %v1227 = vld [vmem:[%s5 + $0x2dc] sm:$0xff]
        %v1228 = vld [vmem:[%s5 + $0x2e4] sm:$0xf]
        %v1229 = vld [vmem:[%s5 + $0x2e8] sm:$0xff]
        %v1230 = vld [vmem:[%s5 + $0x2f0] sm:$0xf]
        %v1231 = vld [vmem:[%s5 + $0x2f4] sm:$0xff]
        %v1232 = vld [vmem:[%s5 + $0x2fc] sm:$0xf]
        %v1361 = vunpack.c.l.b16 %v1105
        %v1362 = vunpack.c.h.b16 %v1105
        %v1363 = vunpack.c.l.b16 %v1106
        %v1364 = vunpack.c.l.b16 %v1107
        %v1365 = vunpack.c.h.b16 %v1107
        %v1366 = vunpack.c.l.b16 %v1108
        %v1367 = vunpack.c.l.b16 %v1109
        %v1368 = vunpack.c.h.b16 %v1109
        %v1369 = vunpack.c.l.b16 %v1110
        %v1370 = vunpack.c.l.b16 %v1111
        %v1371 = vunpack.c.h.b16 %v1111
        %v1372 = vunpack.c.l.b16 %v1112
        %v1373 = vunpack.c.l.b16 %v1113
        %v1374 = vunpack.c.h.b16 %v1113
        %v1375 = vunpack.c.l.b16 %v1114
        %v1376 = vunpack.c.l.b16 %v1115
        %v1377 = vunpack.c.h.b16 %v1115
        %v1378 = vunpack.c.l.b16 %v1116
        %v1379 = vunpack.c.l.b16 %v1117
        %v1380 = vunpack.c.h.b16 %v1117
        %v1381 = vunpack.c.l.b16 %v1118
        %v1382 = vunpack.c.l.b16 %v1119
        %v1383 = vunpack.c.h.b16 %v1119
        %v1384 = vunpack.c.l.b16 %v1120
        %v1385 = vunpack.c.l.b16 %v1121
        %v1386 = vunpack.c.h.b16 %v1121
        %v1387 = vunpack.c.l.b16 %v1122
        %v1388 = vunpack.c.l.b16 %v1123
        %v1389 = vunpack.c.h.b16 %v1123
        %v1390 = vunpack.c.l.b16 %v1124
        %v1391 = vunpack.c.l.b16 %v1125
        %v1392 = vunpack.c.h.b16 %v1125
        %v1393 = vunpack.c.l.b16 %v1126
        %v1394 = vunpack.c.l.b16 %v1127
        %v1395 = vunpack.c.h.b16 %v1127
        %v1396 = vunpack.c.l.b16 %v1128
        %v1397 = vunpack.c.l.b16 %v1129
        %v1398 = vunpack.c.h.b16 %v1129
        %v1399 = vunpack.c.l.b16 %v1130
        %v1400 = vunpack.c.l.b16 %v1131
        %v1401 = vunpack.c.h.b16 %v1131
        %v1402 = vunpack.c.l.b16 %v1132
        %v1403 = vunpack.c.l.b16 %v1133
        %v1404 = vunpack.c.h.b16 %v1133
        %v1405 = vunpack.c.l.b16 %v1134
        %v1406 = vunpack.c.l.b16 %v1135
        %v1407 = vunpack.c.h.b16 %v1135
        %v1408 = vunpack.c.l.b16 %v1136
        %v1409 = vunpack.c.l.b16 %v1137
        %v1410 = vunpack.c.h.b16 %v1137
        %v1411 = vunpack.c.l.b16 %v1138
        %v1412 = vunpack.c.l.b16 %v1139
        %v1413 = vunpack.c.h.b16 %v1139
        %v1414 = vunpack.c.l.b16 %v1140
        %v1415 = vunpack.c.l.b16 %v1141
        %v1416 = vunpack.c.h.b16 %v1141
        %v1417 = vunpack.c.l.b16 %v1142
        %v1418 = vunpack.c.l.b16 %v1143
        %v1419 = vunpack.c.h.b16 %v1143
        %v1420 = vunpack.c.l.b16 %v1144
        %v1421 = vunpack.c.l.b16 %v1145
        %v1422 = vunpack.c.h.b16 %v1145
        %v1423 = vunpack.c.l.b16 %v1146
        %v1424 = vunpack.c.l.b16 %v1147
        %v1425 = vunpack.c.h.b16 %v1147
        %v1426 = vunpack.c.l.b16 %v1148
        %v1427 = vunpack.c.l.b16 %v1149
        %v1428 = vunpack.c.h.b16 %v1149
        %v1429 = vunpack.c.l.b16 %v1150
        %v1430 = vunpack.c.l.b16 %v1151
        %v1431 = vunpack.c.h.b16 %v1151
        %v1432 = vunpack.c.l.b16 %v1152
        %v1433 = vunpack.c.l.b16 %v1153
        %v1434 = vunpack.c.h.b16 %v1153
        %v1435 = vunpack.c.l.b16 %v1154
        %v1436 = vunpack.c.l.b16 %v1155
        %v1437 = vunpack.c.h.b16 %v1155
        %v1438 = vunpack.c.l.b16 %v1156
        %v1439 = vunpack.c.l.b16 %v1157
        %v1440 = vunpack.c.h.b16 %v1157
        %v1441 = vunpack.c.l.b16 %v1158
        %v1442 = vunpack.c.l.b16 %v1159
        %v1443 = vunpack.c.h.b16 %v1159
        %v1444 = vunpack.c.l.b16 %v1160
        %v1445 = vunpack.c.l.b16 %v1161
        %v1446 = vunpack.c.h.b16 %v1161
        %v1447 = vunpack.c.l.b16 %v1162
        %v1448 = vunpack.c.l.b16 %v1163
        %v1449 = vunpack.c.h.b16 %v1163
        %v1450 = vunpack.c.l.b16 %v1164
        %v1451 = vunpack.c.l.b16 %v1165
        %v1452 = vunpack.c.h.b16 %v1165
        %v1453 = vunpack.c.l.b16 %v1166
        %v1454 = vunpack.c.l.b16 %v1167
        %v1455 = vunpack.c.h.b16 %v1167
        %v1456 = vunpack.c.l.b16 %v1168
        %v1457 = vunpack.c.l.b16 %v1169
        %v1458 = vunpack.c.h.b16 %v1169
        %v1459 = vunpack.c.l.b16 %v1170
        %v1460 = vunpack.c.l.b16 %v1171
        %v1461 = vunpack.c.h.b16 %v1171
        %v1462 = vunpack.c.l.b16 %v1172
        %v1463 = vunpack.c.l.b16 %v1173
        %v1464 = vunpack.c.h.b16 %v1173
        %v1465 = vunpack.c.l.b16 %v1174
        %v1466 = vunpack.c.l.b16 %v1175
        %v1467 = vunpack.c.h.b16 %v1175
        %v1468 = vunpack.c.l.b16 %v1176
        %v1469 = vunpack.c.l.b16 %v1177
        %v1470 = vunpack.c.h.b16 %v1177
        %v1471 = vunpack.c.l.b16 %v1178
        %v1472 = vunpack.c.l.b16 %v1179
        %v1473 = vunpack.c.h.b16 %v1179
        %v1474 = vunpack.c.l.b16 %v1180
        %v1475 = vunpack.c.l.b16 %v1181
        %v1476 = vunpack.c.h.b16 %v1181
        %v1477 = vunpack.c.l.b16 %v1182
        %v1478 = vunpack.c.l.b16 %v1183
        %v1479 = vunpack.c.h.b16 %v1183
        %v1480 = vunpack.c.l.b16 %v1184
        %v1481 = vunpack.c.l.b16 %v1185
        %v1482 = vunpack.c.h.b16 %v1185
        %v1483 = vunpack.c.l.b16 %v1186
        %v1484 = vunpack.c.l.b16 %v1187
        %v1485 = vunpack.c.h.b16 %v1187
        %v1486 = vunpack.c.l.b16 %v1188
        %v1487 = vunpack.c.l.b16 %v1189
        %v1488 = vunpack.c.h.b16 %v1189
        %v1489 = vunpack.c.l.b16 %v1190
        %v1490 = vunpack.c.l.b16 %v1191
        %v1491 = vunpack.c.h.b16 %v1191
        %v1492 = vunpack.c.l.b16 %v1192
        %v1493 = vunpack.c.l.b16 %v1193
        %v1494 = vunpack.c.h.b16 %v1193
        %v1495 = vunpack.c.l.b16 %v1194
        %v1496 = vunpack.c.l.b16 %v1195
        %v1497 = vunpack.c.h.b16 %v1195
        %v1498 = vunpack.c.l.b16 %v1196
        %v1499 = vunpack.c.l.b16 %v1197
        %v1500 = vunpack.c.h.b16 %v1197
        %v1501 = vunpack.c.l.b16 %v1198
        %v1502 = vunpack.c.l.b16 %v1199
        %v1503 = vunpack.c.h.b16 %v1199
        %v1504 = vunpack.c.l.b16 %v1200
        %v1505 = vunpack.c.l.b16 %v1201
        %v1506 = vunpack.c.h.b16 %v1201
        %v1507 = vunpack.c.l.b16 %v1202
        %v1508 = vunpack.c.l.b16 %v1203
        %v1509 = vunpack.c.h.b16 %v1203
        %v1510 = vunpack.c.l.b16 %v1204
        %v1511 = vunpack.c.l.b16 %v1205
        %v1512 = vunpack.c.h.b16 %v1205
        %v1513 = vunpack.c.l.b16 %v1206
        %v1514 = vunpack.c.l.b16 %v1207
        %v1515 = vunpack.c.h.b16 %v1207
        %v1516 = vunpack.c.l.b16 %v1208
        %v1517 = vunpack.c.l.b16 %v1209
        %v1518 = vunpack.c.h.b16 %v1209
        %v1519 = vunpack.c.l.b16 %v1210
        %v1520 = vunpack.c.l.b16 %v1211
        %v1521 = vunpack.c.h.b16 %v1211
        %v1522 = vunpack.c.l.b16 %v1212
        %v1523 = vunpack.c.l.b16 %v1213
        %v1524 = vunpack.c.h.b16 %v1213
        %v1525 = vunpack.c.l.b16 %v1214
        %v1526 = vunpack.c.l.b16 %v1215
        %v1527 = vunpack.c.h.b16 %v1215
        %v1528 = vunpack.c.l.b16 %v1216
        %v1529 = vunpack.c.l.b16 %v1217
        %v1530 = vunpack.c.h.b16 %v1217
        %v1531 = vunpack.c.l.b16 %v1218
        %v1532 = vunpack.c.l.b16 %v1219
        %v1533 = vunpack.c.h.b16 %v1219
        %v1534 = vunpack.c.l.b16 %v1220
        %v1535 = vunpack.c.l.b16 %v1221
        %v1536 = vunpack.c.h.b16 %v1221
        %v1537 = vunpack.c.l.b16 %v1222
        %v1538 = vunpack.c.l.b16 %v1223
        %v1539 = vunpack.c.h.b16 %v1223
        %v1540 = vunpack.c.l.b16 %v1224
        %v1541 = vunpack.c.l.b16 %v1225
        %v1542 = vunpack.c.h.b16 %v1225
        %v1543 = vunpack.c.l.b16 %v1226
        %v1544 = vunpack.c.l.b16 %v1227
        %v1545 = vunpack.c.h.b16 %v1227
        %v1546 = vunpack.c.l.b16 %v1228
        %v1547 = vunpack.c.l.b16 %v1229
        %v1548 = vunpack.c.h.b16 %v1229
        %v1549 = vunpack.c.l.b16 %v1230
        %v1550 = vunpack.c.l.b16 %v1231
        %v1551 = vunpack.c.h.b16 %v1231
        %v1552 = vunpack.c.l.b16 %v1232
        %v1553 = vpack.c.b16 %v1364, %v1361
        %v1554 = vpack.c.b16 %v1365, %v1362
        %v1555 = vpack.c.b16 %v1366, %v1363
        %v1556 = vpack.c.b16 %v1370, %v1367
        %v1557 = vpack.c.b16 %v1371, %v1368
        %v1558 = vpack.c.b16 %v1372, %v1369
        %v1559 = vpack.c.b16 %v1376, %v1373
        %v1560 = vpack.c.b16 %v1377, %v1374
        %v1561 = vpack.c.b16 %v1378, %v1375
        %v1562 = vpack.c.b16 %v1382, %v1379
        %v1563 = vpack.c.b16 %v1383, %v1380
        %v1564 = vpack.c.b16 %v1384, %v1381
        %v1565 = vpack.c.b16 %v1388, %v1385
        %v1566 = vpack.c.b16 %v1389, %v1386
        %v1567 = vpack.c.b16 %v1390, %v1387
        %v1568 = vpack.c.b16 %v1394, %v1391
        %v1569 = vpack.c.b16 %v1395, %v1392
        %v1570 = vpack.c.b16 %v1396, %v1393
        %v1571 = vpack.c.b16 %v1400, %v1397
        %v1572 = vpack.c.b16 %v1401, %v1398
        %v1573 = vpack.c.b16 %v1402, %v1399
        %v1574 = vpack.c.b16 %v1406, %v1403
        %v1575 = vpack.c.b16 %v1407, %v1404
        %v1576 = vpack.c.b16 %v1408, %v1405
        %v1577 = vpack.c.b16 %v1412, %v1409
        %v1578 = vpack.c.b16 %v1413, %v1410
        %v1579 = vpack.c.b16 %v1414, %v1411
        %v1580 = vpack.c.b16 %v1418, %v1415
        %v1581 = vpack.c.b16 %v1419, %v1416
        %v1582 = vpack.c.b16 %v1420, %v1417
        %v1583 = vpack.c.b16 %v1424, %v1421
        %v1584 = vpack.c.b16 %v1425, %v1422
        %v1585 = vpack.c.b16 %v1426, %v1423
        %v1586 = vpack.c.b16 %v1430, %v1427
        %v1587 = vpack.c.b16 %v1431, %v1428
        %v1588 = vpack.c.b16 %v1432, %v1429
        %v1589 = vpack.c.b16 %v1436, %v1433
        %v1590 = vpack.c.b16 %v1437, %v1434
        %v1591 = vpack.c.b16 %v1438, %v1435
        %v1592 = vpack.c.b16 %v1442, %v1439
        %v1593 = vpack.c.b16 %v1443, %v1440
        %v1594 = vpack.c.b16 %v1444, %v1441
        %v1595 = vpack.c.b16 %v1448, %v1445
        %v1596 = vpack.c.b16 %v1449, %v1446
        %v1597 = vpack.c.b16 %v1450, %v1447
        %v1598 = vpack.c.b16 %v1454, %v1451
        %v1599 = vpack.c.b16 %v1455, %v1452
        %v1600 = vpack.c.b16 %v1456, %v1453
        %v1601 = vpack.c.b16 %v1460, %v1457
        %v1602 = vpack.c.b16 %v1461, %v1458
        %v1603 = vpack.c.b16 %v1462, %v1459
        %v1604 = vpack.c.b16 %v1466, %v1463
        %v1605 = vpack.c.b16 %v1467, %v1464
        %v1606 = vpack.c.b16 %v1468, %v1465
        %v1607 = vpack.c.b16 %v1472, %v1469
        %v1608 = vpack.c.b16 %v1473, %v1470
        %v1609 = vpack.c.b16 %v1474, %v1471
        %v1610 = vpack.c.b16 %v1478, %v1475
        %v1611 = vpack.c.b16 %v1479, %v1476
        %v1612 = vpack.c.b16 %v1480, %v1477
        %v1613 = vpack.c.b16 %v1484, %v1481
        %v1614 = vpack.c.b16 %v1485, %v1482
        %v1615 = vpack.c.b16 %v1486, %v1483
        %v1616 = vpack.c.b16 %v1490, %v1487
        %v1617 = vpack.c.b16 %v1491, %v1488
        %v1618 = vpack.c.b16 %v1492, %v1489
        %v1619 = vpack.c.b16 %v1496, %v1493
        %v1620 = vpack.c.b16 %v1497, %v1494
        %v1621 = vpack.c.b16 %v1498, %v1495
        %v1622 = vpack.c.b16 %v1502, %v1499
        %v1623 = vpack.c.b16 %v1503, %v1500
        %v1624 = vpack.c.b16 %v1504, %v1501
        %v1625 = vpack.c.b16 %v1508, %v1505
        %v1626 = vpack.c.b16 %v1509, %v1506
        %v1627 = vpack.c.b16 %v1510, %v1507
        %v1628 = vpack.c.b16 %v1514, %v1511
        %v1629 = vpack.c.b16 %v1515, %v1512
        %v1630 = vpack.c.b16 %v1516, %v1513
        %v1631 = vpack.c.b16 %v1520, %v1517
        %v1632 = vpack.c.b16 %v1521, %v1518
        %v1633 = vpack.c.b16 %v1522, %v1519
        %v1634 = vpack.c.b16 %v1526, %v1523
        %v1635 = vpack.c.b16 %v1527, %v1524
        %v1636 = vpack.c.b16 %v1528, %v1525
        %v1637 = vpack.c.b16 %v1532, %v1529
        %v1638 = vpack.c.b16 %v1533, %v1530
        %v1639 = vpack.c.b16 %v1534, %v1531
        %v1640 = vpack.c.b16 %v1538, %v1535
        %v1641 = vpack.c.b16 %v1539, %v1536
        %v1642 = vpack.c.b16 %v1540, %v1537
        %v1643 = vpack.c.b16 %v1544, %v1541
        %v1644 = vpack.c.b16 %v1545, %v1542
        %v1645 = vpack.c.b16 %v1546, %v1543
        %v1646 = vpack.c.b16 %v1550, %v1547
        %v1647 = vpack.c.b16 %v1551, %v1548
        %v1648 = vpack.c.b16 %v1552, %v1549
        %1745 = vmatprep.subr.bf16.mxu0 %v1554
        %1746 = vmatpush1.bf16.msra.mxu0 %v1553
        %1747 = vmatprep.subr.bf16.mxu0 %v1557
        %1748 = vmatpush1.bf16.msra.mxu0 %v1556
        %1749 = vmatprep.subr.bf16.mxu0 %v1560
        %1750 = vmatpush1.bf16.msra.mxu0 %v1559
        %1751 = vmatprep.subr.bf16.mxu0 %v1563
        %1752 = vmatpush1.bf16.msra.mxu0 %v1562
        %1753 = vmatprep.subr.bf16.mxu0 %v1566
        %1754 = vmatpush1.bf16.msra.mxu0 %v1565
        %1755 = vmatprep.subr.bf16.mxu0 %v1569
        %1756 = vmatpush1.bf16.msra.mxu0 %v1568
        %1757 = vmatprep.subr.bf16.mxu0 %v1572
        %1758 = vmatpush1.bf16.msra.mxu0 %v1571
        %1759 = vmatprep.subr.bf16.mxu0 %v1575
        %1760 = vmatpush1.bf16.msra.mxu0 %v1574
        %1761 = vmatprep.subr.bf16.mxu0 %v1578
        %1762 = vmatpush1.bf16.msra.mxu0 %v1577
        %1763 = vmatprep.subr.bf16.mxu0 %v1581
        %1764 = vmatpush1.bf16.msra.mxu0 %v1580
        %1765 = vmatprep.subr.bf16.mxu0 %v1584
        %1766 = vmatpush1.bf16.msra.mxu0 %v1583
        %1767 = vmatprep.subr.bf16.mxu0 %v1587
        %1768 = vmatpush1.bf16.msra.mxu0 %v1586
        %1769 = vmatprep.subr.bf16.mxu0 %v1590
        %1770 = vmatpush1.bf16.msra.mxu0 %v1589
        %1771 = vmatprep.subr.bf16.mxu0 %v1593
        %1772 = vmatpush1.bf16.msra.mxu0 %v1592
        %1773 = vmatprep.subr.bf16.mxu0 %v1596
        %1774 = vmatpush1.bf16.msra.mxu0 %v1595
        %1775 = vmatprep.subr.bf16.mxu0 %v1599
        %1776 = vmatpush1.bf16.msra.mxu0 %v1598
        %1777 = vmatprep.mubr.bf16.mxu0 %v1102
        %1778 = vmatmul.mubr.bf16.gmra.mrb[0].mxu0 %v1101
        %v1779 = vpop.f32.mrb[0].mxu0
        %v1780 = vadd.f32 0.0, %v1779
        %v1781 = vpop.f32.mrb[0].mxu0
        %v1782 = vadd.f32 0.0, %v1781
        %v1783 = vpop.f32.mrb[0].mxu0
        %v1784 = vadd.f32 0.0, %v1783
        %v1785 = vpop.f32.mrb[0].mxu0
        %v1786 = vadd.f32 0.0, %v1785
        %1787 = vdwg.mxu0
        %1788 = vmatprep.subr.bf16.mxu0 %v1602
        %1789 = vmatpush1.bf16.msra.mxu0 %v1601
        %1790 = vmatprep.subr.bf16.mxu0 %v1605
        %1791 = vmatpush1.bf16.msra.mxu0 %v1604
        %1792 = vmatprep.subr.bf16.mxu0 %v1608
        %1793 = vmatpush1.bf16.msra.mxu0 %v1607
        %1794 = vmatprep.subr.bf16.mxu0 %v1611
        %1795 = vmatpush1.bf16.msra.mxu0 %v1610
        %1796 = vmatprep.subr.bf16.mxu0 %v1614
        %1797 = vmatpush1.bf16.msra.mxu0 %v1613
        %1798 = vmatprep.subr.bf16.mxu0 %v1617
        %1799 = vmatpush1.bf16.msra.mxu0 %v1616
        %1800 = vmatprep.subr.bf16.mxu0 %v1620
        %1801 = vmatpush1.bf16.msra.mxu0 %v1619
        %1802 = vmatprep.subr.bf16.mxu0 %v1623
        %1803 = vmatpush1.bf16.msra.mxu0 %v1622
        %1804 = vmatprep.subr.bf16.mxu0 %v1626
        %1805 = vmatpush1.bf16.msra.mxu0 %v1625
        %1806 = vmatprep.subr.bf16.mxu0 %v1629
        %1807 = vmatpush1.bf16.msra.mxu0 %v1628
        %1808 = vmatprep.subr.bf16.mxu0 %v1632
        %1809 = vmatpush1.bf16.msra.mxu0 %v1631
        %1810 = vmatprep.subr.bf16.mxu0 %v1635
        %1811 = vmatpush1.bf16.msra.mxu0 %v1634
        %1812 = vmatprep.subr.bf16.mxu0 %v1638
        %1813 = vmatpush1.bf16.msra.mxu0 %v1637
        %1814 = vmatprep.subr.bf16.mxu0 %v1641
        %1815 = vmatpush1.bf16.msra.mxu0 %v1640
        %1816 = vmatprep.subr.bf16.mxu0 %v1644
        %1817 = vmatpush1.bf16.msra.mxu0 %v1643
        %1818 = vmatprep.subr.bf16.mxu0 %v1647
        %1819 = vmatpush1.bf16.msra.mxu0 %v1646
        %1820 = vmatprep.mubr.bf16.mxu0 %v1104
        %1821 = vmatmul.mubr.bf16.gmra.mrb[0].mxu0 %v1103
        %v1822 = vpop.f32.mrb[0].mxu0
        %v1823 = vadd.f32 %v1780, %v1822
        %v1824 = vpop.f32.mrb[0].mxu0
        %v1825 = vadd.f32 %v1782, %v1824
        %v1826 = vpop.f32.mrb[0].mxu0
        %v1827 = vadd.f32 %v1784, %v1826
        %v1828 = vpop.f32.mrb[0].mxu0
        %v1829 = vadd.f32 %v1786, %v1828
        %1830 = vdwg.mxu0
        %1831 = vmatprep.subr.bf16.mxu0 0
        %1832 = vmatpush1.bf16.msra.mxu0 %v1555
        %1833 = vmatprep.subr.bf16.mxu0 0
        %1834 = vmatpush1.bf16.msra.mxu0 %v1558
        %1835 = vmatprep.subr.bf16.mxu0 0
        %1836 = vmatpush1.bf16.msra.mxu0 %v1561
        %1837 = vmatprep.subr.bf16.mxu0 0
        %1838 = vmatpush1.bf16.msra.mxu0 %v1564
        %1839 = vmatprep.subr.bf16.mxu0 0
        %1840 = vmatpush1.bf16.msra.mxu0 %v1567
        %1841 = vmatprep.subr.bf16.mxu0 0
        %1842 = vmatpush1.bf16.msra.mxu0 %v1570
        %1843 = vmatprep.subr.bf16.mxu0 0
        %1844 = vmatpush1.bf16.msra.mxu0 %v1573
        %1845 = vmatprep.subr.bf16.mxu0 0
        %1846 = vmatpush1.bf16.msra.mxu0 %v1576
        %1847 = vmatprep.subr.bf16.mxu0 0
        %1848 = vmatpush1.bf16.msra.mxu0 %v1579
        %1849 = vmatprep.subr.bf16.mxu0 0
        %1850 = vmatpush1.bf16.msra.mxu0 %v1582
        %1851 = vmatprep.subr.bf16.mxu0 0
        %1852 = vmatpush1.bf16.msra.mxu0 %v1585
        %1853 = vmatprep.subr.bf16.mxu0 0
        %1854 = vmatpush1.bf16.msra.mxu0 %v1588
        %1855 = vmatprep.subr.bf16.mxu0 0
        %1856 = vmatpush1.bf16.msra.mxu0 %v1591
        %1857 = vmatprep.subr.bf16.mxu0 0
        %1858 = vmatpush1.bf16.msra.mxu0 %v1594
        %1859 = vmatprep.subr.bf16.mxu0 0
        %1860 = vmatpush1.bf16.msra.mxu0 %v1597
        %1861 = vmatprep.subr.bf16.mxu0 0
        %1862 = vmatpush1.bf16.msra.mxu0 %v1600
        %1863 = vmatprep.mubr.bf16.mxu0 %v1102
        %1864 = vmatmul.mubr.bf16.gmra.mrb[0].mxu0 %v1101
        %v1865 = vpop.f32.mrb[0].mxu0
        %v1866 = vadd.f32 0.0, %v1865
        %v1867 = vpop.f32.mrb[0].mxu0
        %v1868 = vpop.f32.mrb[0].mxu0
        %v1869 = vadd.f32 0.0, %v1868
        %v1870 = vpop.f32.mrb[0].mxu0
        %1871 = vdwg.mxu0
        %1872 = vmatprep.subr.bf16.mxu0 0
        %1873 = vmatpush1.bf16.msra.mxu0 %v1603
        %1874 = vmatprep.subr.bf16.mxu0 0
        %1875 = vmatpush1.bf16.msra.mxu0 %v1606
        %1876 = vmatprep.subr.bf16.mxu0 0
        %1877 = vmatpush1.bf16.msra.mxu0 %v1609
        %1878 = vmatprep.subr.bf16.mxu0 0
        %1879 = vmatpush1.bf16.msra.mxu0 %v1612
        %1880 = vmatprep.subr.bf16.mxu0 0
        %1881 = vmatpush1.bf16.msra.mxu0 %v1615
        %1882 = vmatprep.subr.bf16.mxu0 0
        %1883 = vmatpush1.bf16.msra.mxu0 %v1618
        %1884 = vmatprep.subr.bf16.mxu0 0
        %1885 = vmatpush1.bf16.msra.mxu0 %v1621
        %1886 = vmatprep.subr.bf16.mxu0 0
        %1887 = vmatpush1.bf16.msra.mxu0 %v1624
        %1888 = vmatprep.subr.bf16.mxu0 0
        %1889 = vmatpush1.bf16.msra.mxu0 %v1627
        %1890 = vmatprep.subr.bf16.mxu0 0
        %1891 = vmatpush1.bf16.msra.mxu0 %v1630
        %1892 = vmatprep.subr.bf16.mxu0 0
        %1893 = vmatpush1.bf16.msra.mxu0 %v1633
        %1894 = vmatprep.subr.bf16.mxu0 0
        %1895 = vmatpush1.bf16.msra.mxu0 %v1636
        %1896 = vmatprep.subr.bf16.mxu0 0
        %1897 = vmatpush1.bf16.msra.mxu0 %v1639
        %1898 = vmatprep.subr.bf16.mxu0 0
        %1899 = vmatpush1.bf16.msra.mxu0 %v1642
        %1900 = vmatprep.subr.bf16.mxu0 0
        %1901 = vmatpush1.bf16.msra.mxu0 %v1645
        %1902 = vmatprep.subr.bf16.mxu0 0
        %1903 = vmatpush1.bf16.msra.mxu0 %v1648
        %1904 = vmatprep.mubr.bf16.mxu0 %v1104
        %1905 = vmatmul.mubr.bf16.gmra.mrb[0].mxu0 %v1103
        %v1906 = vpop.f32.mrb[0].mxu0
        %v1907 = vadd.f32 %v1866, %v1906
        %v1908 = vpop.f32.mrb[0].mxu0
        %v1909 = vpop.f32.mrb[0].mxu0
        %v1910 = vadd.f32 %v1869, %v1909
        %v1911 = vpop.f32.mrb[0].mxu0
        %1912 = vdwg.mxu0
        %v1913 = vpack.c.bf16 %v1827, %v1823
        %v1914 = vpack.c.bf16 %v1829, %v1825
        %v1915 = vpack.c.bf16 %v1910, %v1907
        %s1916 = smul.u32 %s32, 3
        %s1917 = smul.addr %s1916, 8
        %s1918 = scalar_lea.vmem [#allocation3], %s1917
        %1919 = vst [vmem:[%s1918] sm:$0xff] %v1913
        %1920 = vst [vmem:[%s1918 + $0x8] sm:$0xff] %v1914
        %1921 = vst [vmem:[%s1918 + $0x10] sm:$0xff] %v1915
        %p1922 = scmp.eq.s32.totalorder %s32, 6
        // Predicated region
        $region123: #{ltsm_conv_forward.1} parent=109 // pred_check
          %p1923 = pneg %p1922
        $region124: #{ltsm_conv_forward.1} parent=109 // pred_check_branch
          %1925 = sbr.rel (%p1923) target = $region126
        $region125: #{ltsm_conv_forward.1} parent=109 // pred_region
          %v1926 = vld [vmem:[#allocation2] sm:$0xff]
          %v1927 = vld [vmem:[#allocation2 + $0x8] sm:$0xff]
          %v1928 = vld [vmem:[#allocation2 + $0x10] sm:$0xff]
          %v1929 = vld [vmem:[#allocation2 + $0x18] sm:$0xff]
          %v1930 = vld [vmem:[#allocation2 + $0x20] sm:$0xff]
          %v1931 = vld [vmem:[#allocation2 + $0x28] sm:$0xff]
          %v1932 = vld [vmem:[#allocation2 + $0x30] sm:$0xff]
          %v1933 = vld [vmem:[#allocation2 + $0x38] sm:$0xff]
          %s1934 = sld [smem:[#allocation4]]
          %v1935 = vstv %s1934
          %v1936 = vadd.f32 %v1926, %v1935
          %v1937 = vadd.f32 %v1927, %v1935
          %v1938 = vadd.f32 %v1928, %v1935
          %v1939 = vadd.f32 %v1929, %v1935
          %v1940 = vadd.f32 %v1930, %v1935
          %v1941 = vadd.f32 %v1931, %v1935
          %v1942 = vadd.f32 %v1932, %v1935
          %v1943 = vadd.f32 %v1933, %v1935
          %v1944 = vld [vmem:[#allocation3] sm:$0xff]
          %v1945 = vld [vmem:[#allocation3 + $0x8] sm:$0xff]
          %v1946 = vld [vmem:[#allocation3 + $0x10] sm:$0xff]
          %v1947 = vunpack.c.l.bf16 %v1944
          %v1948 = vunpack.c.l.bf16 %v1945
          %v1949 = vunpack.c.l.bf16 %v1946
          %v1950 = vunpack.c.h.bf16 %v1944
          %v1951 = vunpack.c.h.bf16 %v1945
          %v1952 = vunpack.c.h.bf16 %v1946
          %v1953 = vld [vmem:[%s6] sm:$0x7]
          %v1955 = vlaneseq
          %v1956 = vshrl.u32 %v1955, 7
          %v1957 = vsub.s32 0, %v1956
          %v1958 = vrot.slane %v1953, %v1957
          %v1959 = vlaneseq
          %v1960 = vshrl.u32 %v1959, 7
          %v1961 = vsub.s32 1, %v1960
          %v1962 = vrot.slane %v1953, %v1961
          %v1963 = vlaneseq
          %v1964 = vshrl.u32 %v1963, 7
          %v1965 = vsub.s32 2, %v1964
          %v1966 = vrot.slane %v1953, %v1965
          %v1970 = vadd.f32 %v1947, %v1958
          %v1971 = vadd.f32 %v1948, %v1962
          %v1972 = vadd.f32 %v1949, %v1966
          %v1973 = vadd.f32 %v1950, %v1958
          %v1974 = vadd.f32 %v1951, %v1962
          %v1975 = vadd.f32 %v1952, %v1966
          %v1976 = vld [vmem:[%s7] sm:$0xff]
          %v1977 = vld [vmem:[%s7 + $0x8] sm:$0xf]
          %v1978 = vld [vmem:[%s7 + $0xc] sm:$0xff]
          %v1979 = vld [vmem:[%s7 + $0x14] sm:$0xf]
          %v1980 = vld [vmem:[%s7 + $0x18] sm:$0xff]
          %v1981 = vld [vmem:[%s7 + $0x20] sm:$0xf]
          %v1982 = vld [vmem:[%s7 + $0x24] sm:$0xff]
          %v1983 = vld [vmem:[%s7 + $0x2c] sm:$0xf]
          %v1984 = vld [vmem:[%s7 + $0x30] sm:$0xff]
          %v1985 = vld [vmem:[%s7 + $0x38] sm:$0xf]
          %v1986 = vld [vmem:[%s7 + $0x3c] sm:$0xff]
          %v1987 = vld [vmem:[%s7 + $0x44] sm:$0xf]
          %v1988 = vld [vmem:[%s7 + $0x48] sm:$0xff]
          %v1989 = vld [vmem:[%s7 + $0x50] sm:$0xf]
          %v1990 = vld [vmem:[%s7 + $0x54] sm:$0xff]
          %v1991 = vld [vmem:[%s7 + $0x5c] sm:$0xf]
          %v1992 = vld [vmem:[%s7 + $0x60] sm:$0xff]
          %v1993 = vld [vmem:[%s7 + $0x68] sm:$0xf]
          %v1994 = vld [vmem:[%s7 + $0x6c] sm:$0xff]
          %v1995 = vld [vmem:[%s7 + $0x74] sm:$0xf]
          %v1996 = vld [vmem:[%s7 + $0x78] sm:$0xff]
          %v1997 = vld [vmem:[%s7 + $0x80] sm:$0xf]
          %v1998 = vld [vmem:[%s7 + $0x84] sm:$0xff]
          %v1999 = vld [vmem:[%s7 + $0x8c] sm:$0xf]
          %v2000 = vld [vmem:[%s7 + $0x90] sm:$0xff]
          %v2001 = vld [vmem:[%s7 + $0x98] sm:$0xf]
          %v2002 = vld [vmem:[%s7 + $0x9c] sm:$0xff]
          %v2003 = vld [vmem:[%s7 + $0xa4] sm:$0xf]
          %v2004 = vld [vmem:[%s7 + $0xa8] sm:$0xff]
          %v2005 = vld [vmem:[%s7 + $0xb0] sm:$0xf]
          %v2006 = vld [vmem:[%s7 + $0xb4] sm:$0xff]
          %v2007 = vld [vmem:[%s7 + $0xbc] sm:$0xf]
          %v2008 = vld [vmem:[%s8] sm:$0x7]
          %v2010 = vlaneseq
          %v2011 = vshrl.u32 %v2010, 7
          %v2012 = vsub.s32 0, %v2011
          %v2013 = vrot.slane %v2008, %v2012
          %v2014 = vlaneseq
          %v2015 = vshrl.u32 %v2014, 7
          %v2016 = vsub.s32 1, %v2015
          %v2017 = vrot.slane %v2008, %v2016
          %v2018 = vlaneseq
          %v2019 = vshrl.u32 %v2018, 7
          %v2020 = vsub.s32 2, %v2019
          %v2021 = vrot.slane %v2008, %v2020
          %v2057 = vunpack.c.l.b16 %v1976
          %v2058 = vunpack.c.h.b16 %v1976
          %v2059 = vunpack.c.l.b16 %v1977
          %v2060 = vunpack.c.l.b16 %v1978
          %v2061 = vunpack.c.h.b16 %v1978
          %v2062 = vunpack.c.l.b16 %v1979
          %v2063 = vunpack.c.l.b16 %v1980
          %v2064 = vunpack.c.h.b16 %v1980
          %v2065 = vunpack.c.l.b16 %v1981
          %v2066 = vunpack.c.l.b16 %v1982
          %v2067 = vunpack.c.h.b16 %v1982
          %v2068 = vunpack.c.l.b16 %v1983
          %v2069 = vunpack.c.l.b16 %v1984
          %v2070 = vunpack.c.h.b16 %v1984
          %v2071 = vunpack.c.l.b16 %v1985
          %v2072 = vunpack.c.l.b16 %v1986
          %v2073 = vunpack.c.h.b16 %v1986
          %v2074 = vunpack.c.l.b16 %v1987
          %v2075 = vunpack.c.l.b16 %v1988
          %v2076 = vunpack.c.h.b16 %v1988
          %v2077 = vunpack.c.l.b16 %v1989
          %v2078 = vunpack.c.l.b16 %v1990
          %v2079 = vunpack.c.h.b16 %v1990
          %v2080 = vunpack.c.l.b16 %v1991
          %v2081 = vunpack.c.l.b16 %v1992
          %v2082 = vunpack.c.h.b16 %v1992
          %v2083 = vunpack.c.l.b16 %v1993
          %v2084 = vunpack.c.l.b16 %v1994
          %v2085 = vunpack.c.h.b16 %v1994
          %v2086 = vunpack.c.l.b16 %v1995
          %v2087 = vunpack.c.l.b16 %v1996
          %v2088 = vunpack.c.h.b16 %v1996
          %v2089 = vunpack.c.l.b16 %v1997
          %v2090 = vunpack.c.l.b16 %v1998
          %v2091 = vunpack.c.h.b16 %v1998
          %v2092 = vunpack.c.l.b16 %v1999
          %v2093 = vunpack.c.l.b16 %v2000
          %v2094 = vunpack.c.h.b16 %v2000
          %v2095 = vunpack.c.l.b16 %v2001
          %v2096 = vunpack.c.l.b16 %v2002
          %v2097 = vunpack.c.h.b16 %v2002
          %v2098 = vunpack.c.l.b16 %v2003
          %v2099 = vunpack.c.l.b16 %v2004
          %v2100 = vunpack.c.h.b16 %v2004
          %v2101 = vunpack.c.l.b16 %v2005
          %v2102 = vunpack.c.l.b16 %v2006
          %v2103 = vunpack.c.h.b16 %v2006
          %v2104 = vunpack.c.l.b16 %v2007
          %v2105 = vpack.c.b16 %v2060, %v2057
          %v2106 = vpack.c.b16 %v2061, %v2058
          %v2107 = vpack.c.b16 %v2062, %v2059
          %v2108 = vpack.c.b16 %v2066, %v2063
          %v2109 = vpack.c.b16 %v2067, %v2064
          %v2110 = vpack.c.b16 %v2068, %v2065
          %v2111 = vpack.c.b16 %v2072, %v2069
          %v2112 = vpack.c.b16 %v2073, %v2070
          %v2113 = vpack.c.b16 %v2074, %v2071
          %v2114 = vpack.c.b16 %v2078, %v2075
          %v2115 = vpack.c.b16 %v2079, %v2076
          %v2116 = vpack.c.b16 %v2080, %v2077
          %v2117 = vpack.c.b16 %v2084, %v2081
          %v2118 = vpack.c.b16 %v2085, %v2082
          %v2119 = vpack.c.b16 %v2086, %v2083
          %v2120 = vpack.c.b16 %v2090, %v2087
          %v2121 = vpack.c.b16 %v2091, %v2088
          %v2122 = vpack.c.b16 %v2092, %v2089
          %v2123 = vpack.c.b16 %v2096, %v2093
          %v2124 = vpack.c.b16 %v2097, %v2094
          %v2125 = vpack.c.b16 %v2098, %v2095
          %v2126 = vpack.c.b16 %v2102, %v2099
          %v2127 = vpack.c.b16 %v2103, %v2100
          %v2128 = vpack.c.b16 %v2104, %v2101
          %2153 = vmatprep.subr.bf16.mxu0 %v2106
          %2154 = vmatpush1.bf16.msra.mxu0 %v2105
          %2155 = vmatprep.subr.bf16.mxu0 %v2109
          %2156 = vmatpush1.bf16.msra.mxu0 %v2108
          %2157 = vmatprep.subr.bf16.mxu0 %v2112
          %2158 = vmatpush1.bf16.msra.mxu0 %v2111
          %2159 = vmatprep.subr.bf16.mxu0 %v2115
          %2160 = vmatpush1.bf16.msra.mxu0 %v2114
          %2161 = vmatprep.subr.bf16.mxu0 %v2118
          %2162 = vmatpush1.bf16.msra.mxu0 %v2117
          %2163 = vmatprep.subr.bf16.mxu0 %v2121
          %2164 = vmatpush1.bf16.msra.mxu0 %v2120
          %2165 = vmatprep.subr.bf16.mxu0 %v2124
          %2166 = vmatpush1.bf16.msra.mxu0 %v2123
          %2167 = vmatprep.subr.bf16.mxu0 %v2127
          %2168 = vmatpush1.bf16.msra.mxu0 %v2126
          %2169 = vmatprep.subr.bf16.mxu0 0
          %2170 = vmatpush1.bf16.msra.mxu0 0
          %2171 = vmatprep.subr.bf16.mxu0 0
          %2172 = vmatpush1.bf16.msra.mxu0 0
          %2173 = vmatprep.subr.bf16.mxu0 0
          %2174 = vmatpush1.bf16.msra.mxu0 0
          %2175 = vmatprep.subr.bf16.mxu0 0
          %2176 = vmatpush1.bf16.msra.mxu0 0
          %2177 = vmatprep.subr.bf16.mxu0 0
          %2178 = vmatpush1.bf16.msra.mxu0 0
          %2179 = vmatprep.subr.bf16.mxu0 0
          %2180 = vmatpush1.bf16.msra.mxu0 0
          %2181 = vmatprep.subr.bf16.mxu0 0
          %2182 = vmatpush1.bf16.msra.mxu0 0
          %2183 = vmatprep.subr.bf16.mxu0 0
          %2184 = vmatpush1.bf16.msra.mxu0 0
          %2185 = vmatprep.mubr.bf16.mxu0 0
          %2186 = vmatmul.mubr.bf16.gmra.mrb[0].mxu0 0
          %v2187 = vpop.f32.mrb[0].mxu0
          %v2188 = vadd.f32 %v2013, %v2187
          %v2189 = vpop.f32.mrb[0].mxu0
          %v2190 = vadd.f32 %v2017, %v2189
          %v2191 = vpop.f32.mrb[0].mxu0
          %v2192 = vadd.f32 %v2013, %v2191
          %v2193 = vpop.f32.mrb[0].mxu0
          %v2194 = vadd.f32 %v2017, %v2193
          %2195 = vdwg.mxu0
          %2196 = vmatprep.subr.bf16.mxu0 0
          %2197 = vmatpush1.bf16.msra.mxu0 %v2107
          %2198 = vmatprep.subr.bf16.mxu0 0
          %2199 = vmatpush1.bf16.msra.mxu0 %v2110
          %2200 = vmatprep.subr.bf16.mxu0 0
          %2201 = vmatpush1.bf16.msra.mxu0 %v2113
          %2202 = vmatprep.subr.bf16.mxu0 0
          %2203 = vmatpush1.bf16.msra.mxu0 %v2116
          %2204 = vmatprep.subr.bf16.mxu0 0
          %2205 = vmatpush1.bf16.msra.mxu0 %v2119
          %2206 = vmatprep.subr.bf16.mxu0 0
          %2207 = vmatpush1.bf16.msra.mxu0 %v2122
          %2208 = vmatprep.subr.bf16.mxu0 0
          %2209 = vmatpush1.bf16.msra.mxu0 %v2125
          %2210 = vmatprep.subr.bf16.mxu0 0
          %2211 = vmatpush1.bf16.msra.mxu0 %v2128
          %2212 = vmatprep.subr.bf16.mxu0 0
          %2213 = vmatpush1.bf16.msra.mxu0 0
          %2214 = vmatprep.subr.bf16.mxu0 0
          %2215 = vmatpush1.bf16.msra.mxu0 0
          %2216 = vmatprep.subr.bf16.mxu0 0
          %2217 = vmatpush1.bf16.msra.mxu0 0
          %2218 = vmatprep.subr.bf16.mxu0 0
          %2219 = vmatpush1.bf16.msra.mxu0 0
          %2220 = vmatprep.subr.bf16.mxu0 0
          %2221 = vmatpush1.bf16.msra.mxu0 0
          %2222 = vmatprep.subr.bf16.mxu0 0
          %2223 = vmatpush1.bf16.msra.mxu0 0
          %2224 = vmatprep.subr.bf16.mxu0 0
          %2225 = vmatpush1.bf16.msra.mxu0 0
          %2226 = vmatprep.subr.bf16.mxu0 0
          %2227 = vmatpush1.bf16.msra.mxu0 0
          %2228 = vmatprep.mubr.bf16.mxu0 0
          %2229 = vmatmul.mubr.bf16.gmra.mrb[0].mxu0 0
          %v2230 = vpop.f32.mrb[0].mxu0
          %v2231 = vadd.f32 %v2021, %v2230
          %v2232 = vpop.f32.mrb[0].mxu0
          %v2233 = vpop.f32.mrb[0].mxu0
          %v2234 = vadd.f32 %v2021, %v2233
          %v2235 = vpop.f32.mrb[0].mxu0
          %2236 = vdwg.mxu0
          %v2237 = vadd.f32 %v1970, %v2188
          %v2238 = vadd.f32 %v1973, %v2192
          %v2239 = vxor.u32 %v2237, 2147483648
          %v2240 = vxor.u32 %v2238, 2147483648
          %v2241 = vmul.f32 %v2239, 1.442695
          %v2242 = vpow.pop %v2241
          %v2243 = vmul.f32 %v2240, 1.442695
          %v2244 = vpow.pop %v2243
          %v2245 = vadd.f32 %v2242, 1.0
          %v2246 = vadd.f32 %v2244, 1.0
          %v2247 = vrcp.pop %v2245
          %v2248 = vmul.f32 1.0, %v2247
          %v2249 = vrcp.pop %v2246
          %v2250 = vmul.f32 1.0, %v2249
          %v2251 = vadd.f32 %v1971, %v2190
          %v2252 = vadd.f32 %v1974, %v2194
          %v2253 = vxor.u32 %v2251, 2147483648
          %v2254 = vxor.u32 %v2252, 2147483648
          %v2255 = vmul.f32 %v2253, 1.442695
          %v2256 = vpow.pop %v2255
          %v2257 = vmul.f32 %v2254, 1.442695
          %v2258 = vpow.pop %v2257
          %v2259 = vadd.f32 %v2256, 1.0
          %v2260 = vadd.f32 %v2258, 1.0
          %v2261 = vrcp.pop %v2259
          %v2262 = vmul.f32 1.0, %v2261
          %v2263 = vrcp.pop %v2260
          %v2264 = vmul.f32 1.0, %v2263
          %v2265 = vmul.f32 %v2248, %v2231
          %v2266 = vmul.f32 %v2250, %v2234
          %v2267 = vadd.f32 %v1972, %v2265
          %v2268 = vadd.f32 %v1975, %v2266
          %v2269 = vtanh.pop %v2267
          %v2270 = vtanh.pop %v2268
          %v2271 = vsub.f32 1.0, %v2262
          %v2272 = vsub.f32 1.0, %v2264
          %v2273 = vmul.f32 %v2271, %v2269
          %v2274 = vmul.f32 %v2272, %v2270
          %v2275 = vmul.f32 %v2262, 0.0
          %v2276 = vmul.f32 %v2264, 0.0
          %v2277 = vadd.f32 %v2273, %v2275
          %v2278 = vadd.f32 %v2274, %v2276
          %s2279 = scalar_lea.vmem [#allocation3], 24
          %v2280 = vld [vmem:[%s2279] sm:$0xff]
          %v2281 = vld [vmem:[%s2279 + $0x8] sm:$0xff]
          %v2282 = vld [vmem:[%s2279 + $0x10] sm:$0xff]
          %v2283 = vunpack.c.l.bf16 %v2280
          %v2284 = vunpack.c.l.bf16 %v2281
          %v2285 = vunpack.c.l.bf16 %v2282
          %v2286 = vunpack.c.h.bf16 %v2280
          %v2287 = vunpack.c.h.bf16 %v2281
          %v2288 = vunpack.c.h.bf16 %v2282
          %v2289 = vadd.f32 %v2283, %v1958
          %v2290 = vadd.f32 %v2284, %v1962
          %v2291 = vadd.f32 %v2285, %v1966
          %v2292 = vadd.f32 %v2286, %v1958
          %v2293 = vadd.f32 %v2287, %v1962
          %v2294 = vadd.f32 %v2288, %v1966
          %v2295 = vpack.c.bf16 %v2278, %v2277
          %2296 = vmatprep.subr.bf16.mxu0 %v2106
          %2297 = vmatpush1.bf16.msra.mxu0 %v2105
          %2298 = vmatprep.subr.bf16.mxu0 %v2109
          %2299 = vmatpush1.bf16.msra.mxu0 %v2108
          %2300 = vmatprep.subr.bf16.mxu0 %v2112
          %2301 = vmatpush1.bf16.msra.mxu0 %v2111
          %2302 = vmatprep.subr.bf16.mxu0 %v2115
          %2303 = vmatpush1.bf16.msra.mxu0 %v2114
          %2304 = vmatprep.subr.bf16.mxu0 %v2118
          %2305 = vmatpush1.bf16.msra.mxu0 %v2117
          %2306 = vmatprep.subr.bf16.mxu0 %v2121
          %2307 = vmatpush1.bf16.msra.mxu0 %v2120
          %2308 = vmatprep.subr.bf16.mxu0 %v2124
          %2309 = vmatpush1.bf16.msra.mxu0 %v2123
          %2310 = vmatprep.subr.bf16.mxu0 %v2127
          %2311 = vmatpush1.bf16.msra.mxu0 %v2126
          %2312 = vmatprep.subr.bf16.mxu0 0
          %2313 = vmatpush1.bf16.msra.mxu0 0
          %2314 = vmatprep.subr.bf16.mxu0 0
          %2315 = vmatpush1.bf16.msra.mxu0 0
          %2316 = vmatprep.subr.bf16.mxu0 0
          %2317 = vmatpush1.bf16.msra.mxu0 0
          %2318 = vmatprep.subr.bf16.mxu0 0
          %2319 = vmatpush1.bf16.msra.mxu0 0
          %2320 = vmatprep.subr.bf16.mxu0 0
          %2321 = vmatpush1.bf16.msra.mxu0 0
          %2322 = vmatprep.subr.bf16.mxu0 0
          %2323 = vmatpush1.bf16.msra.mxu0 0
          %2324 = vmatprep.subr.bf16.mxu0 0
          %2325 = vmatpush1.bf16.msra.mxu0 0
          %2326 = vmatprep.subr.bf16.mxu0 0
          %2327 = vmatpush1.bf16.msra.mxu0 0
          %2328 = vmatprep.mubr.bf16.mxu0 0
          %2329 = vmatmul.mubr.bf16.gmra.mrb[0].mxu0 %v2295
          %v2330 = vpop.f32.mrb[0].mxu0
          %v2331 = vadd.f32 %v2013, %v2330
          %v2332 = vpop.f32.mrb[0].mxu0
          %v2333 = vadd.f32 %v2017, %v2332
          %v2334 = vpop.f32.mrb[0].mxu0
          %v2335 = vadd.f32 %v2013, %v2334
          %v2336 = vpop.f32.mrb[0].mxu0
          %v2337 = vadd.f32 %v2017, %v2336
          %2338 = vdwg.mxu0
          %2339 = vmatprep.subr.bf16.mxu0 0
          %2340 = vmatpush1.bf16.msra.mxu0 %v2107
          %2341 = vmatprep.subr.bf16.mxu0 0
          %2342 = vmatpush1.bf16.msra.mxu0 %v2110
          %2343 = vmatprep.subr.bf16.mxu0 0
          %2344 = vmatpush1.bf16.msra.mxu0 %v2113
          %2345 = vmatprep.subr.bf16.mxu0 0
          %2346 = vmatpush1.bf16.msra.mxu0 %v2116
          %2347 = vmatprep.subr.bf16.mxu0 0
          %2348 = vmatpush1.bf16.msra.mxu0 %v2119
          %2349 = vmatprep.subr.bf16.mxu0 0
          %2350 = vmatpush1.bf16.msra.mxu0 %v2122
          %2351 = vmatprep.subr.bf16.mxu0 0
          %2352 = vmatpush1.bf16.msra.mxu0 %v2125
          %2353 = vmatprep.subr.bf16.mxu0 0
          %2354 = vmatpush1.bf16.msra.mxu0 %v2128
          %2355 = vmatprep.subr.bf16.mxu0 0
          %2356 = vmatpush1.bf16.msra.mxu0 0
          %2357 = vmatprep.subr.bf16.mxu0 0
          %2358 = vmatpush1.bf16.msra.mxu0 0
          %2359 = vmatprep.subr.bf16.mxu0 0
          %2360 = vmatpush1.bf16.msra.mxu0 0
          %2361 = vmatprep.subr.bf16.mxu0 0
          %2362 = vmatpush1.bf16.msra.mxu0 0
          %2363 = vmatprep.subr.bf16.mxu0 0
          %2364 = vmatpush1.bf16.msra.mxu0 0
          %2365 = vmatprep.subr.bf16.mxu0 0
          %2366 = vmatpush1.bf16.msra.mxu0 0
          %2367 = vmatprep.subr.bf16.mxu0 0
          %2368 = vmatpush1.bf16.msra.mxu0 0
          %2369 = vmatprep.subr.bf16.mxu0 0
          %2370 = vmatpush1.bf16.msra.mxu0 0
          %2371 = vmatprep.mubr.bf16.mxu0 0
          %2372 = vmatmul.mubr.bf16.gmra.mrb[0].mxu0 %v2295
          %v2373 = vpop.f32.mrb[0].mxu0
          %v2374 = vadd.f32 %v2021, %v2373
          %v2375 = vpop.f32.mrb[0].mxu0
          %v2376 = vpop.f32.mrb[0].mxu0
          %v2377 = vadd.f32 %v2021, %v2376
          %v2378 = vpop.f32.mrb[0].mxu0
          %2379 = vdwg.mxu0
          %v2380 = vadd.f32 %v2289, %v2331
          %v2381 = vadd.f32 %v2292, %v2335
          %v2382 = vxor.u32 %v2380, 2147483648
          %v2383 = vxor.u32 %v2381, 2147483648
          %v2384 = vmul.f32 %v2382, 1.442695
          %v2385 = vpow.pop %v2384
          %v2386 = vmul.f32 %v2383, 1.442695
          %v2387 = vpow.pop %v2386
          %v2388 = vadd.f32 %v2385, 1.0
          %v2389 = vadd.f32 %v2387, 1.0
          %v2390 = vrcp.pop %v2388
          %v2391 = vmul.f32 1.0, %v2390
          %v2392 = vrcp.pop %v2389
          %v2393 = vmul.f32 1.0, %v2392
          %v2394 = vadd.f32 %v2290, %v2333
          %v2395 = vadd.f32 %v2293, %v2337
          %v2396 = vxor.u32 %v2394, 2147483648
          %v2397 = vxor.u32 %v2395, 2147483648
          %v2398 = vmul.f32 %v2396, 1.442695
          %v2399 = vpow.pop %v2398
          %v2400 = vmul.f32 %v2397, 1.442695
          %v2401 = vpow.pop %v2400
          %v2402 = vadd.f32 %v2399, 1.0
          %v2403 = vadd.f32 %v2401, 1.0
          %v2404 = vrcp.pop %v2402
          %v2405 = vmul.f32 1.0, %v2404
          %v2406 = vrcp.pop %v2403
          %v2407 = vmul.f32 1.0, %v2406
          %v2408 = vmul.f32 %v2391, %v2374
          %v2409 = vmul.f32 %v2393, %v2377
          %v2410 = vadd.f32 %v2291, %v2408
          %v2411 = vadd.f32 %v2294, %v2409
          %v2412 = vtanh.pop %v2410
          %v2413 = vtanh.pop %v2411
          %v2414 = vsub.f32 1.0, %v2405
          %v2415 = vsub.f32 1.0, %v2407
          %v2416 = vmul.f32 %v2414, %v2412
          %v2417 = vmul.f32 %v2415, %v2413
          %v2418 = vmul.f32 %v2405, %v2277
          %v2419 = vmul.f32 %v2407, %v2278
          %v2420 = vadd.f32 %v2416, %v2418
          %v2421 = vadd.f32 %v2417, %v2419
          %s2422 = scalar_lea.vmem [#allocation3], 48
          %v2423 = vld [vmem:[%s2422] sm:$0xff]
          %v2424 = vld [vmem:[%s2422 + $0x8] sm:$0xff]
          %v2425 = vld [vmem:[%s2422 + $0x10] sm:$0xff]
          %v2426 = vunpack.c.l.bf16 %v2423
          %v2427 = vunpack.c.l.bf16 %v2424
          %v2428 = vunpack.c.l.bf16 %v2425
          %v2429 = vunpack.c.h.bf16 %v2423
          %v2430 = vunpack.c.h.bf16 %v2424
          %v2431 = vunpack.c.h.bf16 %v2425
          %v2432 = vadd.f32 %v2426, %v1958
          %v2433 = vadd.f32 %v2427, %v1962
          %v2434 = vadd.f32 %v2428, %v1966
          %v2435 = vadd.f32 %v2429, %v1958
          %v2436 = vadd.f32 %v2430, %v1962
          %v2437 = vadd.f32 %v2431, %v1966
          %v2438 = vpack.c.bf16 %v2421, %v2420
          %2439 = vmatprep.subr.bf16.mxu0 %v2106
          %2440 = vmatpush1.bf16.msra.mxu0 %v2105
          %2441 = vmatprep.subr.bf16.mxu0 %v2109
          %2442 = vmatpush1.bf16.msra.mxu0 %v2108
          %2443 = vmatprep.subr.bf16.mxu0 %v2112
          %2444 = vmatpush1.bf16.msra.mxu0 %v2111
          %2445 = vmatprep.subr.bf16.mxu0 %v2115
          %2446 = vmatpush1.bf16.msra.mxu0 %v2114
          %2447 = vmatprep.subr.bf16.mxu0 %v2118
          %2448 = vmatpush1.bf16.msra.mxu0 %v2117
          %2449 = vmatprep.subr.bf16.mxu0 %v2121
          %2450 = vmatpush1.bf16.msra.mxu0 %v2120
          %2451 = vmatprep.subr.bf16.mxu0 %v2124
          %2452 = vmatpush1.bf16.msra.mxu0 %v2123
          %2453 = vmatprep.subr.bf16.mxu0 %v2127
          %2454 = vmatpush1.bf16.msra.mxu0 %v2126
          %2455 = vmatprep.subr.bf16.mxu0 0
          %2456 = vmatpush1.bf16.msra.mxu0 0
          %2457 = vmatprep.subr.bf16.mxu0 0
          %2458 = vmatpush1.bf16.msra.mxu0 0
          %2459 = vmatprep.subr.bf16.mxu0 0
          %2460 = vmatpush1.bf16.msra.mxu0 0
          %2461 = vmatprep.subr.bf16.mxu0 0
          %2462 = vmatpush1.bf16.msra.mxu0 0
          %2463 = vmatprep.subr.bf16.mxu0 0
          %2464 = vmatpush1.bf16.msra.mxu0 0
          %2465 = vmatprep.subr.bf16.mxu0 0
          %2466 = vmatpush1.bf16.msra.mxu0 0
          %2467 = vmatprep.subr.bf16.mxu0 0
          %2468 = vmatpush1.bf16.msra.mxu0 0
          %2469 = vmatprep.subr.bf16.mxu0 0
          %2470 = vmatpush1.bf16.msra.mxu0 0
          %2471 = vmatprep.mubr.bf16.mxu0 0
          %2472 = vmatmul.mubr.bf16.gmra.mrb[0].mxu0 %v2438
          %v2473 = vpop.f32.mrb[0].mxu0
          %v2474 = vadd.f32 %v2013, %v2473
          %v2475 = vpop.f32.mrb[0].mxu0
          %v2476 = vadd.f32 %v2017, %v2475
          %v2477 = vpop.f32.mrb[0].mxu0
          %v2478 = vadd.f32 %v2013, %v2477
          %v2479 = vpop.f32.mrb[0].mxu0
          %v2480 = vadd.f32 %v2017, %v2479
          %2481 = vdwg.mxu0
          %2482 = vmatprep.subr.bf16.mxu0 0
          %2483 = vmatpush1.bf16.msra.mxu0 %v2107
          %2484 = vmatprep.subr.bf16.mxu0 0
          %2485 = vmatpush1.bf16.msra.mxu0 %v2110
          %2486 = vmatprep.subr.bf16.mxu0 0
          %2487 = vmatpush1.bf16.msra.mxu0 %v2113
          %2488 = vmatprep.subr.bf16.mxu0 0
          %2489 = vmatpush1.bf16.msra.mxu0 %v2116
          %2490 = vmatprep.subr.bf16.mxu0 0
          %2491 = vmatpush1.bf16.msra.mxu0 %v2119
          %2492 = vmatprep.subr.bf16.mxu0 0
          %2493 = vmatpush1.bf16.msra.mxu0 %v2122
          %2494 = vmatprep.subr.bf16.mxu0 0
          %2495 = vmatpush1.bf16.msra.mxu0 %v2125
          %2496 = vmatprep.subr.bf16.mxu0 0
          %2497 = vmatpush1.bf16.msra.mxu0 %v2128
          %2498 = vmatprep.subr.bf16.mxu0 0
          %2499 = vmatpush1.bf16.msra.mxu0 0
          %2500 = vmatprep.subr.bf16.mxu0 0
          %2501 = vmatpush1.bf16.msra.mxu0 0
          %2502 = vmatprep.subr.bf16.mxu0 0
          %2503 = vmatpush1.bf16.msra.mxu0 0
          %2504 = vmatprep.subr.bf16.mxu0 0
          %2505 = vmatpush1.bf16.msra.mxu0 0
          %2506 = vmatprep.subr.bf16.mxu0 0
          %2507 = vmatpush1.bf16.msra.mxu0 0
          %2508 = vmatprep.subr.bf16.mxu0 0
          %2509 = vmatpush1.bf16.msra.mxu0 0
          %2510 = vmatprep.subr.bf16.mxu0 0
          %2511 = vmatpush1.bf16.msra.mxu0 0
          %2512 = vmatprep.subr.bf16.mxu0 0
          %2513 = vmatpush1.bf16.msra.mxu0 0
          %2514 = vmatprep.mubr.bf16.mxu0 0
          %2515 = vmatmul.mubr.bf16.gmra.mrb[0].mxu0 %v2438
          %v2516 = vpop.f32.mrb[0].mxu0
          %v2517 = vadd.f32 %v2021, %v2516
          %v2518 = vpop.f32.mrb[0].mxu0
          %v2519 = vpop.f32.mrb[0].mxu0
          %v2520 = vadd.f32 %v2021, %v2519
          %v2521 = vpop.f32.mrb[0].mxu0
          %2522 = vdwg.mxu0
          %v2523 = vadd.f32 %v2432, %v2474
          %v2524 = vadd.f32 %v2435, %v2478
          %v2525 = vxor.u32 %v2523, 2147483648
          %v2526 = vxor.u32 %v2524, 2147483648
          %v2527 = vmul.f32 %v2525, 1.442695
          %v2528 = vpow.pop %v2527
          %v2529 = vmul.f32 %v2526, 1.442695
          %v2530 = vpow.pop %v2529
          %v2531 = vadd.f32 %v2528, 1.0
          %v2532 = vadd.f32 %v2530, 1.0
          %v2533 = vrcp.pop %v2531
          %v2534 = vmul.f32 1.0, %v2533
          %v2535 = vrcp.pop %v2532
          %v2536 = vmul.f32 1.0, %v2535
          %v2537 = vadd.f32 %v2433, %v2476
          %v2538 = vadd.f32 %v2436, %v2480
          %v2539 = vxor.u32 %v2537, 2147483648
          %v2540 = vxor.u32 %v2538, 2147483648
          %v2541 = vmul.f32 %v2539, 1.442695
          %v2542 = vpow.pop %v2541
          %v2543 = vmul.f32 %v2540, 1.442695
          %v2544 = vpow.pop %v2543
          %v2545 = vadd.f32 %v2542, 1.0
          %v2546 = vadd.f32 %v2544, 1.0
          %v2547 = vrcp.pop %v2545
          %v2548 = vmul.f32 1.0, %v2547
          %v2549 = vrcp.pop %v2546
          %v2550 = vmul.f32 1.0, %v2549
          %v2551 = vmul.f32 %v2534, %v2517
          %v2552 = vmul.f32 %v2536, %v2520
          %v2553 = vadd.f32 %v2434, %v2551
          %v2554 = vadd.f32 %v2437, %v2552
          %v2555 = vtanh.pop %v2553
          %v2556 = vtanh.pop %v2554
          %v2557 = vsub.f32 1.0, %v2548
          %v2558 = vsub.f32 1.0, %v2550
          %v2559 = vmul.f32 %v2557, %v2555
          %v2560 = vmul.f32 %v2558, %v2556
          %v2561 = vmul.f32 %v2548, %v2420
          %v2562 = vmul.f32 %v2550, %v2421
          %v2563 = vadd.f32 %v2559, %v2561
          %v2564 = vadd.f32 %v2560, %v2562
          %s2565 = scalar_lea.vmem [#allocation3], 72
          %v2566 = vld [vmem:[%s2565] sm:$0xff]
          %v2567 = vld [vmem:[%s2565 + $0x8] sm:$0xff]
          %v2568 = vld [vmem:[%s2565 + $0x10] sm:$0xff]
          %v2569 = vunpack.c.l.bf16 %v2566
          %v2570 = vunpack.c.l.bf16 %v2567
          %v2571 = vunpack.c.l.bf16 %v2568
          %v2572 = vunpack.c.h.bf16 %v2566
          %v2573 = vunpack.c.h.bf16 %v2567
          %v2574 = vunpack.c.h.bf16 %v2568
          %v2575 = vadd.f32 %v2569, %v1958
          %v2576 = vadd.f32 %v2570, %v1962
          %v2577 = vadd.f32 %v2571, %v1966
          %v2578 = vadd.f32 %v2572, %v1958
          %v2579 = vadd.f32 %v2573, %v1962
          %v2580 = vadd.f32 %v2574, %v1966
          %v2581 = vpack.c.bf16 %v2564, %v2563
          %2582 = vmatprep.subr.bf16.mxu0 %v2106
          %2583 = vmatpush1.bf16.msra.mxu0 %v2105
          %2584 = vmatprep.subr.bf16.mxu0 %v2109
          %2585 = vmatpush1.bf16.msra.mxu0 %v2108
          %2586 = vmatprep.subr.bf16.mxu0 %v2112
          %2587 = vmatpush1.bf16.msra.mxu0 %v2111
          %2588 = vmatprep.subr.bf16.mxu0 %v2115
          %2589 = vmatpush1.bf16.msra.mxu0 %v2114
          %2590 = vmatprep.subr.bf16.mxu0 %v2118
          %2591 = vmatpush1.bf16.msra.mxu0 %v2117
          %2592 = vmatprep.subr.bf16.mxu0 %v2121
          %2593 = vmatpush1.bf16.msra.mxu0 %v2120
          %2594 = vmatprep.subr.bf16.mxu0 %v2124
          %2595 = vmatpush1.bf16.msra.mxu0 %v2123
          %2596 = vmatprep.subr.bf16.mxu0 %v2127
          %2597 = vmatpush1.bf16.msra.mxu0 %v2126
          %2598 = vmatprep.subr.bf16.mxu0 0
          %2599 = vmatpush1.bf16.msra.mxu0 0
          %2600 = vmatprep.subr.bf16.mxu0 0
          %2601 = vmatpush1.bf16.msra.mxu0 0
          %2602 = vmatprep.subr.bf16.mxu0 0
          %2603 = vmatpush1.bf16.msra.mxu0 0
          %2604 = vmatprep.subr.bf16.mxu0 0
          %2605 = vmatpush1.bf16.msra.mxu0 0
          %2606 = vmatprep.subr.bf16.mxu0 0
          %2607 = vmatpush1.bf16.msra.mxu0 0
          %2608 = vmatprep.subr.bf16.mxu0 0
          %2609 = vmatpush1.bf16.msra.mxu0 0
          %2610 = vmatprep.subr.bf16.mxu0 0
          %2611 = vmatpush1.bf16.msra.mxu0 0
          %2612 = vmatprep.subr.bf16.mxu0 0
          %2613 = vmatpush1.bf16.msra.mxu0 0
          %2614 = vmatprep.mubr.bf16.mxu0 0
          %2615 = vmatmul.mubr.bf16.gmra.mrb[0].mxu0 %v2581
          %v2616 = vpop.f32.mrb[0].mxu0
          %v2617 = vadd.f32 %v2013, %v2616
          %v2618 = vpop.f32.mrb[0].mxu0
          %v2619 = vadd.f32 %v2017, %v2618
          %v2620 = vpop.f32.mrb[0].mxu0
          %v2621 = vadd.f32 %v2013, %v2620
          %v2622 = vpop.f32.mrb[0].mxu0
          %v2623 = vadd.f32 %v2017, %v2622
          %2624 = vdwg.mxu0
          %2625 = vmatprep.subr.bf16.mxu0 0
          %2626 = vmatpush1.bf16.msra.mxu0 %v2107
          %2627 = vmatprep.subr.bf16.mxu0 0
          %2628 = vmatpush1.bf16.msra.mxu0 %v2110
          %2629 = vmatprep.subr.bf16.mxu0 0
          %2630 = vmatpush1.bf16.msra.mxu0 %v2113
          %2631 = vmatprep.subr.bf16.mxu0 0
          %2632 = vmatpush1.bf16.msra.mxu0 %v2116
          %2633 = vmatprep.subr.bf16.mxu0 0
          %2634 = vmatpush1.bf16.msra.mxu0 %v2119
          %2635 = vmatprep.subr.bf16.mxu0 0
          %2636 = vmatpush1.bf16.msra.mxu0 %v2122
          %2637 = vmatprep.subr.bf16.mxu0 0
          %2638 = vmatpush1.bf16.msra.mxu0 %v2125
          %2639 = vmatprep.subr.bf16.mxu0 0
          %2640 = vmatpush1.bf16.msra.mxu0 %v2128
          %2641 = vmatprep.subr.bf16.mxu0 0
          %2642 = vmatpush1.bf16.msra.mxu0 0
          %2643 = vmatprep.subr.bf16.mxu0 0
          %2644 = vmatpush1.bf16.msra.mxu0 0
          %2645 = vmatprep.subr.bf16.mxu0 0
          %2646 = vmatpush1.bf16.msra.mxu0 0
          %2647 = vmatprep.subr.bf16.mxu0 0
          %2648 = vmatpush1.bf16.msra.mxu0 0
          %2649 = vmatprep.subr.bf16.mxu0 0
          %2650 = vmatpush1.bf16.msra.mxu0 0
          %2651 = vmatprep.subr.bf16.mxu0 0
          %2652 = vmatpush1.bf16.msra.mxu0 0
          %2653 = vmatprep.subr.bf16.mxu0 0
          %2654 = vmatpush1.bf16.msra.mxu0 0
          %2655 = vmatprep.subr.bf16.mxu0 0
          %2656 = vmatpush1.bf16.msra.mxu0 0
          %2657 = vmatprep.mubr.bf16.mxu0 0
          %2658 = vmatmul.mubr.bf16.gmra.mrb[0].mxu0 %v2581
          %v2659 = vpop.f32.mrb[0].mxu0
          %v2660 = vadd.f32 %v2021, %v2659
          %v2661 = vpop.f32.mrb[0].mxu0
          %v2662 = vpop.f32.mrb[0].mxu0
          %v2663 = vadd.f32 %v2021, %v2662
          %v2664 = vpop.f32.mrb[0].mxu0
          %2665 = vdwg.mxu0
          %v2666 = vadd.f32 %v2575, %v2617
          %v2667 = vadd.f32 %v2578, %v2621
          %v2668 = vxor.u32 %v2666, 2147483648
          %v2669 = vxor.u32 %v2667, 2147483648
          %v2670 = vmul.f32 %v2668, 1.442695
          %v2671 = vpow.pop %v2670
          %v2672 = vmul.f32 %v2669, 1.442695
          %v2673 = vpow.pop %v2672
          %v2674 = vadd.f32 %v2671, 1.0
          %v2675 = vadd.f32 %v2673, 1.0
          %v2676 = vrcp.pop %v2674
          %v2677 = vmul.f32 1.0, %v2676
          %v2678 = vrcp.pop %v2675
          %v2679 = vmul.f32 1.0, %v2678
          %v2680 = vadd.f32 %v2576, %v2619
          %v2681 = vadd.f32 %v2579, %v2623
          %v2682 = vxor.u32 %v2680, 2147483648
          %v2683 = vxor.u32 %v2681, 2147483648
          %v2684 = vmul.f32 %v2682, 1.442695
          %v2685 = vpow.pop %v2684
          %v2686 = vmul.f32 %v2683, 1.442695
          %v2687 = vpow.pop %v2686
          %v2688 = vadd.f32 %v2685, 1.0
          %v2689 = vadd.f32 %v2687, 1.0
          %v2690 = vrcp.pop %v2688
          %v2691 = vmul.f32 1.0, %v2690
          %v2692 = vrcp.pop %v2689
          %v2693 = vmul.f32 1.0, %v2692
          %v2694 = vmul.f32 %v2677, %v2660
          %v2695 = vmul.f32 %v2679, %v2663
          %v2696 = vadd.f32 %v2577, %v2694
          %v2697 = vadd.f32 %v2580, %v2695
          %v2698 = vtanh.pop %v2696
          %v2699 = vtanh.pop %v2697
          %v2700 = vsub.f32 1.0, %v2691
          %v2701 = vsub.f32 1.0, %v2693
          %v2702 = vmul.f32 %v2700, %v2698
          %v2703 = vmul.f32 %v2701, %v2699
          %v2704 = vmul.f32 %v2691, %v2563
          %v2705 = vmul.f32 %v2693, %v2564
          %v2706 = vadd.f32 %v2702, %v2704
          %v2707 = vadd.f32 %v2703, %v2705
          %s2708 = scalar_lea.vmem [#allocation3], 96
          %v2709 = vld [vmem:[%s2708] sm:$0xff]
          %v2710 = vld [vmem:[%s2708 + $0x8] sm:$0xff]
          %v2711 = vld [vmem:[%s2708 + $0x10] sm:$0xff]
          %v2712 = vunpack.c.l.bf16 %v2709
          %v2713 = vunpack.c.l.bf16 %v2710
          %v2714 = vunpack.c.l.bf16 %v2711
          %v2715 = vunpack.c.h.bf16 %v2709
          %v2716 = vunpack.c.h.bf16 %v2710
          %v2717 = vunpack.c.h.bf16 %v2711
          %v2718 = vadd.f32 %v2712, %v1958
          %v2719 = vadd.f32 %v2713, %v1962
          %v2720 = vadd.f32 %v2714, %v1966
          %v2721 = vadd.f32 %v2715, %v1958
          %v2722 = vadd.f32 %v2716, %v1962
          %v2723 = vadd.f32 %v2717, %v1966
          %v2724 = vpack.c.bf16 %v2707, %v2706
          %2725 = vmatprep.subr.bf16.mxu0 %v2106
          %2726 = vmatpush1.bf16.msra.mxu0 %v2105
          %2727 = vmatprep.subr.bf16.mxu0 %v2109
          %2728 = vmatpush1.bf16.msra.mxu0 %v2108
          %2729 = vmatprep.subr.bf16.mxu0 %v2112
          %2730 = vmatpush1.bf16.msra.mxu0 %v2111
          %2731 = vmatprep.subr.bf16.mxu0 %v2115
          %2732 = vmatpush1.bf16.msra.mxu0 %v2114
          %2733 = vmatprep.subr.bf16.mxu0 %v2118
          %2734 = vmatpush1.bf16.msra.mxu0 %v2117
          %2735 = vmatprep.subr.bf16.mxu0 %v2121
          %2736 = vmatpush1.bf16.msra.mxu0 %v2120
          %2737 = vmatprep.subr.bf16.mxu0 %v2124
          %2738 = vmatpush1.bf16.msra.mxu0 %v2123
          %2739 = vmatprep.subr.bf16.mxu0 %v2127
          %2740 = vmatpush1.bf16.msra.mxu0 %v2126
          %2741 = vmatprep.subr.bf16.mxu0 0
          %2742 = vmatpush1.bf16.msra.mxu0 0
          %2743 = vmatprep.subr.bf16.mxu0 0
          %2744 = vmatpush1.bf16.msra.mxu0 0
          %2745 = vmatprep.subr.bf16.mxu0 0
          %2746 = vmatpush1.bf16.msra.mxu0 0
          %2747 = vmatprep.subr.bf16.mxu0 0
          %2748 = vmatpush1.bf16.msra.mxu0 0
          %2749 = vmatprep.subr.bf16.mxu0 0
          %2750 = vmatpush1.bf16.msra.mxu0 0
          %2751 = vmatprep.subr.bf16.mxu0 0
          %2752 = vmatpush1.bf16.msra.mxu0 0
          %2753 = vmatprep.subr.bf16.mxu0 0
          %2754 = vmatpush1.bf16.msra.mxu0 0
          %2755 = vmatprep.subr.bf16.mxu0 0
          %2756 = vmatpush1.bf16.msra.mxu0 0
          %2757 = vmatprep.mubr.bf16.mxu0 0
          %2758 = vmatmul.mubr.bf16.gmra.mrb[0].mxu0 %v2724
          %v2759 = vpop.f32.mrb[0].mxu0
          %v2760 = vadd.f32 %v2013, %v2759
          %v2761 = vpop.f32.mrb[0].mxu0
          %v2762 = vadd.f32 %v2017, %v2761
          %v2763 = vpop.f32.mrb[0].mxu0
          %v2764 = vadd.f32 %v2013, %v2763
          %v2765 = vpop.f32.mrb[0].mxu0
          %v2766 = vadd.f32 %v2017, %v2765
          %2767 = vdwg.mxu0
          %2768 = vmatprep.subr.bf16.mxu0 0
          %2769 = vmatpush1.bf16.msra.mxu0 %v2107
          %2770 = vmatprep.subr.bf16.mxu0 0
          %2771 = vmatpush1.bf16.msra.mxu0 %v2110
          %2772 = vmatprep.subr.bf16.mxu0 0
          %2773 = vmatpush1.bf16.msra.mxu0 %v2113
          %2774 = vmatprep.subr.bf16.mxu0 0
          %2775 = vmatpush1.bf16.msra.mxu0 %v2116
          %2776 = vmatprep.subr.bf16.mxu0 0
          %2777 = vmatpush1.bf16.msra.mxu0 %v2119
          %2778 = vmatprep.subr.bf16.mxu0 0
          %2779 = vmatpush1.bf16.msra.mxu0 %v2122
          %2780 = vmatprep.subr.bf16.mxu0 0
          %2781 = vmatpush1.bf16.msra.mxu0 %v2125
          %2782 = vmatprep.subr.bf16.mxu0 0
          %2783 = vmatpush1.bf16.msra.mxu0 %v2128
          %2784 = vmatprep.subr.bf16.mxu0 0
          %2785 = vmatpush1.bf16.msra.mxu0 0
          %2786 = vmatprep.subr.bf16.mxu0 0
          %2787 = vmatpush1.bf16.msra.mxu0 0
          %2788 = vmatprep.subr.bf16.mxu0 0
          %2789 = vmatpush1.bf16.msra.mxu0 0
          %2790 = vmatprep.subr.bf16.mxu0 0
          %2791 = vmatpush1.bf16.msra.mxu0 0
          %2792 = vmatprep.subr.bf16.mxu0 0
          %2793 = vmatpush1.bf16.msra.mxu0 0
          %2794 = vmatprep.subr.bf16.mxu0 0
          %2795 = vmatpush1.bf16.msra.mxu0 0
          %2796 = vmatprep.subr.bf16.mxu0 0
          %2797 = vmatpush1.bf16.msra.mxu0 0
          %2798 = vmatprep.subr.bf16.mxu0 0
          %2799 = vmatpush1.bf16.msra.mxu0 0
          %2800 = vmatprep.mubr.bf16.mxu0 0
          %2801 = vmatmul.mubr.bf16.gmra.mrb[0].mxu0 %v2724
          %v2802 = vpop.f32.mrb[0].mxu0
          %v2803 = vadd.f32 %v2021, %v2802
          %v2804 = vpop.f32.mrb[0].mxu0
          %v2805 = vpop.f32.mrb[0].mxu0
          %v2806 = vadd.f32 %v2021, %v2805
          %v2807 = vpop.f32.mrb[0].mxu0
          %2808 = vdwg.mxu0
          %v2809 = vadd.f32 %v2718, %v2760
          %v2810 = vadd.f32 %v2721, %v2764
          %v2811 = vxor.u32 %v2809, 2147483648
          %v2812 = vxor.u32 %v2810, 2147483648
          %v2813 = vmul.f32 %v2811, 1.442695
          %v2814 = vpow.pop %v2813
          %v2815 = vmul.f32 %v2812, 1.442695
          %v2816 = vpow.pop %v2815
          %v2817 = vadd.f32 %v2814, 1.0
          %v2818 = vadd.f32 %v2816, 1.0
          %v2819 = vrcp.pop %v2817
          %v2820 = vmul.f32 1.0, %v2819
          %v2821 = vrcp.pop %v2818
          %v2822 = vmul.f32 1.0, %v2821
          %v2823 = vadd.f32 %v2719, %v2762
          %v2824 = vadd.f32 %v2722, %v2766
          %v2825 = vxor.u32 %v2823, 2147483648
          %v2826 = vxor.u32 %v2824, 2147483648
          %v2827 = vmul.f32 %v2825, 1.442695
          %v2828 = vpow.pop %v2827
          %v2829 = vmul.f32 %v2826, 1.442695
          %v2830 = vpow.pop %v2829
          %v2831 = vadd.f32 %v2828, 1.0
          %v2832 = vadd.f32 %v2830, 1.0
          %v2833 = vrcp.pop %v2831
          %v2834 = vmul.f32 1.0, %v2833
          %v2835 = vrcp.pop %v2832
          %v2836 = vmul.f32 1.0, %v2835
          %v2837 = vmul.f32 %v2820, %v2803
          %v2838 = vmul.f32 %v2822, %v2806
          %v2839 = vadd.f32 %v2720, %v2837
          %v2840 = vadd.f32 %v2723, %v2838
          %v2841 = vtanh.pop %v2839
          %v2842 = vtanh.pop %v2840
          %v2843 = vsub.f32 1.0, %v2834
          %v2844 = vsub.f32 1.0, %v2836
          %v2845 = vmul.f32 %v2843, %v2841
          %v2846 = vmul.f32 %v2844, %v2842
          %v2847 = vmul.f32 %v2834, %v2706
          %v2848 = vmul.f32 %v2836, %v2707
          %v2849 = vadd.f32 %v2845, %v2847
          %v2850 = vadd.f32 %v2846, %v2848
          %s2851 = scalar_lea.vmem [#allocation3], 120
          %v2852 = vld [vmem:[%s2851] sm:$0xff]
          %v2853 = vld [vmem:[%s2851 + $0x8] sm:$0xff]
          %v2854 = vld [vmem:[%s2851 + $0x10] sm:$0xff]
          %v2855 = vunpack.c.l.bf16 %v2852
          %v2856 = vunpack.c.l.bf16 %v2853
          %v2857 = vunpack.c.l.bf16 %v2854
          %v2858 = vunpack.c.h.bf16 %v2852
          %v2859 = vunpack.c.h.bf16 %v2853
          %v2860 = vunpack.c.h.bf16 %v2854
          %v2861 = vadd.f32 %v2855, %v1958
          %v2862 = vadd.f32 %v2856, %v1962
          %v2863 = vadd.f32 %v2857, %v1966
          %v2864 = vadd.f32 %v2858, %v1958
          %v2865 = vadd.f32 %v2859, %v1962
          %v2866 = vadd.f32 %v2860, %v1966
          %v2867 = vpack.c.bf16 %v2850, %v2849
          %2868 = vmatprep.subr.bf16.mxu0 %v2106
          %2869 = vmatpush1.bf16.msra.mxu0 %v2105
          %2870 = vmatprep.subr.bf16.mxu0 %v2109
          %2871 = vmatpush1.bf16.msra.mxu0 %v2108
          %2872 = vmatprep.subr.bf16.mxu0 %v2112
          %2873 = vmatpush1.bf16.msra.mxu0 %v2111
          %2874 = vmatprep.subr.bf16.mxu0 %v2115
          %2875 = vmatpush1.bf16.msra.mxu0 %v2114
          %2876 = vmatprep.subr.bf16.mxu0 %v2118
          %2877 = vmatpush1.bf16.msra.mxu0 %v2117
          %2878 = vmatprep.subr.bf16.mxu0 %v2121
          %2879 = vmatpush1.bf16.msra.mxu0 %v2120
          %2880 = vmatprep.subr.bf16.mxu0 %v2124
          %2881 = vmatpush1.bf16.msra.mxu0 %v2123
          %2882 = vmatprep.subr.bf16.mxu0 %v2127
          %2883 = vmatpush1.bf16.msra.mxu0 %v2126
          %2884 = vmatprep.subr.bf16.mxu0 0
          %2885 = vmatpush1.bf16.msra.mxu0 0
          %2886 = vmatprep.subr.bf16.mxu0 0
          %2887 = vmatpush1.bf16.msra.mxu0 0
          %2888 = vmatprep.subr.bf16.mxu0 0
          %2889 = vmatpush1.bf16.msra.mxu0 0
          %2890 = vmatprep.subr.bf16.mxu0 0
          %2891 = vmatpush1.bf16.msra.mxu0 0
          %2892 = vmatprep.subr.bf16.mxu0 0
          %2893 = vmatpush1.bf16.msra.mxu0 0
          %2894 = vmatprep.subr.bf16.mxu0 0
          %2895 = vmatpush1.bf16.msra.mxu0 0
          %2896 = vmatprep.subr.bf16.mxu0 0
          %2897 = vmatpush1.bf16.msra.mxu0 0
          %2898 = vmatprep.subr.bf16.mxu0 0
          %2899 = vmatpush1.bf16.msra.mxu0 0
          %2900 = vmatprep.mubr.bf16.mxu0 0
          %2901 = vmatmul.mubr.bf16.gmra.mrb[0].mxu0 %v2867
          %v2902 = vpop.f32.mrb[0].mxu0
          %v2903 = vadd.f32 %v2013, %v2902
          %v2904 = vpop.f32.mrb[0].mxu0
          %v2905 = vadd.f32 %v2017, %v2904
          %v2906 = vpop.f32.mrb[0].mxu0
          %v2907 = vadd.f32 %v2013, %v2906
          %v2908 = vpop.f32.mrb[0].mxu0
          %v2909 = vadd.f32 %v2017, %v2908
          %2910 = vdwg.mxu0
          %2911 = vmatprep.subr.bf16.mxu0 0
          %2912 = vmatpush1.bf16.msra.mxu0 %v2107
          %2913 = vmatprep.subr.bf16.mxu0 0
          %2914 = vmatpush1.bf16.msra.mxu0 %v2110
          %2915 = vmatprep.subr.bf16.mxu0 0
          %2916 = vmatpush1.bf16.msra.mxu0 %v2113
          %2917 = vmatprep.subr.bf16.mxu0 0
          %2918 = vmatpush1.bf16.msra.mxu0 %v2116
          %2919 = vmatprep.subr.bf16.mxu0 0
          %2920 = vmatpush1.bf16.msra.mxu0 %v2119
          %2921 = vmatprep.subr.bf16.mxu0 0
          %2922 = vmatpush1.bf16.msra.mxu0 %v2122
          %2923 = vmatprep.subr.bf16.mxu0 0
          %2924 = vmatpush1.bf16.msra.mxu0 %v2125
          %2925 = vmatprep.subr.bf16.mxu0 0
          %2926 = vmatpush1.bf16.msra.mxu0 %v2128
          %2927 = vmatprep.subr.bf16.mxu0 0
          %2928 = vmatpush1.bf16.msra.mxu0 0
          %2929 = vmatprep.subr.bf16.mxu0 0
          %2930 = vmatpush1.bf16.msra.mxu0 0
          %2931 = vmatprep.subr.bf16.mxu0 0
          %2932 = vmatpush1.bf16.msra.mxu0 0
          %2933 = vmatprep.subr.bf16.mxu0 0
          %2934 = vmatpush1.bf16.msra.mxu0 0
          %2935 = vmatprep.subr.bf16.mxu0 0
          %2936 = vmatpush1.bf16.msra.mxu0 0
          %2937 = vmatprep.subr.bf16.mxu0 0
          %2938 = vmatpush1.bf16.msra.mxu0 0
          %2939 = vmatprep.subr.bf16.mxu0 0
          %2940 = vmatpush1.bf16.msra.mxu0 0
          %2941 = vmatprep.subr.bf16.mxu0 0
          %2942 = vmatpush1.bf16.msra.mxu0 0
          %2943 = vmatprep.mubr.bf16.mxu0 0
          %2944 = vmatmul.mubr.bf16.gmra.mrb[0].mxu0 %v2867
          %v2945 = vpop.f32.mrb[0].mxu0
          %v2946 = vadd.f32 %v2021, %v2945
          %v2947 = vpop.f32.mrb[0].mxu0
          %v2948 = vpop.f32.mrb[0].mxu0
          %v2949 = vadd.f32 %v2021, %v2948
          %v2950 = vpop.f32.mrb[0].mxu0
          %2951 = vdwg.mxu0
          %v2952 = vadd.f32 %v2861, %v2903
          %v2953 = vadd.f32 %v2864, %v2907
          %v2954 = vxor.u32 %v2952, 2147483648
          %v2955 = vxor.u32 %v2953, 2147483648
          %v2956 = vmul.f32 %v2954, 1.442695
          %v2957 = vpow.pop %v2956
          %v2958 = vmul.f32 %v2955, 1.442695
          %v2959 = vpow.pop %v2958
          %v2960 = vadd.f32 %v2957, 1.0
          %v2961 = vadd.f32 %v2959, 1.0
          %v2962 = vrcp.pop %v2960
          %v2963 = vmul.f32 1.0, %v2962
          %v2964 = vrcp.pop %v2961
          %v2965 = vmul.f32 1.0, %v2964
          %v2966 = vadd.f32 %v2862, %v2905
          %v2967 = vadd.f32 %v2865, %v2909
          %v2968 = vxor.u32 %v2966, 2147483648
          %v2969 = vxor.u32 %v2967, 2147483648
          %v2970 = vmul.f32 %v2968, 1.442695
          %v2971 = vpow.pop %v2970
          %v2972 = vmul.f32 %v2969, 1.442695
          %v2973 = vpow.pop %v2972
          %v2974 = vadd.f32 %v2971, 1.0
          %v2975 = vadd.f32 %v2973, 1.0
          %v2976 = vrcp.pop %v2974
          %v2977 = vmul.f32 1.0, %v2976
          %v2978 = vrcp.pop %v2975
          %v2979 = vmul.f32 1.0, %v2978
          %v2980 = vmul.f32 %v2963, %v2946
          %v2981 = vmul.f32 %v2965, %v2949
          %v2982 = vadd.f32 %v2863, %v2980
          %v2983 = vadd.f32 %v2866, %v2981
          %v2984 = vtanh.pop %v2982
          %v2985 = vtanh.pop %v2983
          %v2986 = vsub.f32 1.0, %v2977
          %v2987 = vsub.f32 1.0, %v2979
          %v2988 = vmul.f32 %v2986, %v2984
          %v2989 = vmul.f32 %v2987, %v2985
          %v2990 = vmul.f32 %v2977, %v2849
          %v2991 = vmul.f32 %v2979, %v2850
          %v2992 = vadd.f32 %v2988, %v2990
          %v2993 = vadd.f32 %v2989, %v2991
          %s2994 = scalar_lea.vmem [#allocation3], 144
          %v2995 = vld [vmem:[%s2994] sm:$0xff]
          %v2996 = vld [vmem:[%s2994 + $0x8] sm:$0xff]
          %v2997 = vld [vmem:[%s2994 + $0x10] sm:$0xff]
          %v2998 = vunpack.c.l.bf16 %v2995
          %v2999 = vunpack.c.l.bf16 %v2996
          %v3000 = vunpack.c.l.bf16 %v2997
          %v3001 = vunpack.c.h.bf16 %v2995
          %v3002 = vunpack.c.h.bf16 %v2996
          %v3003 = vunpack.c.h.bf16 %v2997
          %v3004 = vadd.f32 %v2998, %v1958
          %v3005 = vadd.f32 %v2999, %v1962
          %v3006 = vadd.f32 %v3000, %v1966
          %v3007 = vadd.f32 %v3001, %v1958
          %v3008 = vadd.f32 %v3002, %v1962
          %v3009 = vadd.f32 %v3003, %v1966
          %v3010 = vpack.c.bf16 %v2993, %v2992
          %3011 = vmatprep.subr.bf16.mxu0 %v2106
          %3012 = vmatpush1.bf16.msra.mxu0 %v2105
          %3013 = vmatprep.subr.bf16.mxu0 %v2109
          %3014 = vmatpush1.bf16.msra.mxu0 %v2108
          %3015 = vmatprep.subr.bf16.mxu0 %v2112
          %3016 = vmatpush1.bf16.msra.mxu0 %v2111
          %3017 = vmatprep.subr.bf16.mxu0 %v2115
          %3018 = vmatpush1.bf16.msra.mxu0 %v2114
          %3019 = vmatprep.subr.bf16.mxu0 %v2118
          %3020 = vmatpush1.bf16.msra.mxu0 %v2117
          %3021 = vmatprep.subr.bf16.mxu0 %v2121
          %3022 = vmatpush1.bf16.msra.mxu0 %v2120
          %3023 = vmatprep.subr.bf16.mxu0 %v2124
          %3024 = vmatpush1.bf16.msra.mxu0 %v2123
          %3025 = vmatprep.subr.bf16.mxu0 %v2127
          %3026 = vmatpush1.bf16.msra.mxu0 %v2126
          %3027 = vmatprep.subr.bf16.mxu0 0
          %3028 = vmatpush1.bf16.msra.mxu0 0
          %3029 = vmatprep.subr.bf16.mxu0 0
          %3030 = vmatpush1.bf16.msra.mxu0 0
          %3031 = vmatprep.subr.bf16.mxu0 0
          %3032 = vmatpush1.bf16.msra.mxu0 0
          %3033 = vmatprep.subr.bf16.mxu0 0
          %3034 = vmatpush1.bf16.msra.mxu0 0
          %3035 = vmatprep.subr.bf16.mxu0 0
          %3036 = vmatpush1.bf16.msra.mxu0 0
          %3037 = vmatprep.subr.bf16.mxu0 0
          %3038 = vmatpush1.bf16.msra.mxu0 0
          %3039 = vmatprep.subr.bf16.mxu0 0
          %3040 = vmatpush1.bf16.msra.mxu0 0
          %3041 = vmatprep.subr.bf16.mxu0 0
          %3042 = vmatpush1.bf16.msra.mxu0 0
          %3043 = vmatprep.mubr.bf16.mxu0 0
          %3044 = vmatmul.mubr.bf16.gmra.mrb[0].mxu0 %v3010
          %v3045 = vpop.f32.mrb[0].mxu0
          %v3046 = vadd.f32 %v2013, %v3045
          %v3047 = vpop.f32.mrb[0].mxu0
          %v3048 = vadd.f32 %v2017, %v3047
          %v3049 = vpop.f32.mrb[0].mxu0
          %v3050 = vadd.f32 %v2013, %v3049
          %v3051 = vpop.f32.mrb[0].mxu0
          %v3052 = vadd.f32 %v2017, %v3051
          %3053 = vdwg.mxu0
          %3054 = vmatprep.subr.bf16.mxu0 0
          %3055 = vmatpush1.bf16.msra.mxu0 %v2107
          %3056 = vmatprep.subr.bf16.mxu0 0
          %3057 = vmatpush1.bf16.msra.mxu0 %v2110
          %3058 = vmatprep.subr.bf16.mxu0 0
          %3059 = vmatpush1.bf16.msra.mxu0 %v2113
          %3060 = vmatprep.subr.bf16.mxu0 0
          %3061 = vmatpush1.bf16.msra.mxu0 %v2116
          %3062 = vmatprep.subr.bf16.mxu0 0
          %3063 = vmatpush1.bf16.msra.mxu0 %v2119
          %3064 = vmatprep.subr.bf16.mxu0 0
          %3065 = vmatpush1.bf16.msra.mxu0 %v2122
          %3066 = vmatprep.subr.bf16.mxu0 0
          %3067 = vmatpush1.bf16.msra.mxu0 %v2125
          %3068 = vmatprep.subr.bf16.mxu0 0
          %3069 = vmatpush1.bf16.msra.mxu0 %v2128
          %3070 = vmatprep.subr.bf16.mxu0 0
          %3071 = vmatpush1.bf16.msra.mxu0 0
          %3072 = vmatprep.subr.bf16.mxu0 0
          %3073 = vmatpush1.bf16.msra.mxu0 0
          %3074 = vmatprep.subr.bf16.mxu0 0
          %3075 = vmatpush1.bf16.msra.mxu0 0
          %3076 = vmatprep.subr.bf16.mxu0 0
          %3077 = vmatpush1.bf16.msra.mxu0 0
          %3078 = vmatprep.subr.bf16.mxu0 0
          %3079 = vmatpush1.bf16.msra.mxu0 0
          %3080 = vmatprep.subr.bf16.mxu0 0
          %3081 = vmatpush1.bf16.msra.mxu0 0
          %3082 = vmatprep.subr.bf16.mxu0 0
          %3083 = vmatpush1.bf16.msra.mxu0 0
          %3084 = vmatprep.subr.bf16.mxu0 0
          %3085 = vmatpush1.bf16.msra.mxu0 0
          %3086 = vmatprep.mubr.bf16.mxu0 0
          %3087 = vmatmul.mubr.bf16.gmra.mrb[0].mxu0 %v3010
          %v3088 = vpop.f32.mrb[0].mxu0
          %v3089 = vadd.f32 %v2021, %v3088
          %v3090 = vpop.f32.mrb[0].mxu0
          %v3091 = vpop.f32.mrb[0].mxu0
          %v3092 = vadd.f32 %v2021, %v3091
          %v3093 = vpop.f32.mrb[0].mxu0
          %3094 = vdwg.mxu0
          %v3095 = vadd.f32 %v3004, %v3046
          %v3096 = vadd.f32 %v3007, %v3050
          %v3097 = vxor.u32 %v3095, 2147483648
          %v3098 = vxor.u32 %v3096, 2147483648
          %v3099 = vmul.f32 %v3097, 1.442695
          %v3100 = vpow.pop %v3099
          %v3101 = vmul.f32 %v3098, 1.442695
          %v3102 = vpow.pop %v3101
          %v3103 = vadd.f32 %v3100, 1.0
          %v3104 = vadd.f32 %v3102, 1.0
          %v3105 = vrcp.pop %v3103
          %v3106 = vmul.f32 1.0, %v3105
          %v3107 = vrcp.pop %v3104
          %v3108 = vmul.f32 1.0, %v3107
          %v3109 = vadd.f32 %v3005, %v3048
          %v3110 = vadd.f32 %v3008, %v3052
          %v3111 = vxor.u32 %v3109, 2147483648
          %v3112 = vxor.u32 %v3110, 2147483648
          %v3113 = vmul.f32 %v3111, 1.442695
          %v3114 = vpow.pop %v3113
          %v3115 = vmul.f32 %v3112, 1.442695
          %v3116 = vpow.pop %v3115
          %v3117 = vadd.f32 %v3114, 1.0
          %v3118 = vadd.f32 %v3116, 1.0
          %v3119 = vrcp.pop %v3117
          %v3120 = vmul.f32 1.0, %v3119
          %v3121 = vrcp.pop %v3118
          %v3122 = vmul.f32 1.0, %v3121
          %v3123 = vmul.f32 %v3106, %v3089
          %v3124 = vmul.f32 %v3108, %v3092
          %v3125 = vadd.f32 %v3006, %v3123
          %v3126 = vadd.f32 %v3009, %v3124
          %v3127 = vtanh.pop %v3125
          %v3128 = vtanh.pop %v3126
          %v3129 = vsub.f32 1.0, %v3120
          %v3130 = vsub.f32 1.0, %v3122
          %v3131 = vmul.f32 %v3129, %v3127
          %v3132 = vmul.f32 %v3130, %v3128
          %v3133 = vmul.f32 %v3120, %v2992
          %v3134 = vmul.f32 %v3122, %v2993
          %v3135 = vadd.f32 %v3131, %v3133
          %v3136 = vadd.f32 %v3132, %v3134
          %v3137 = vpack.c.bf16 %v3136, %v3135
          %v3138 = vld [vmem:[%s9] sm:$0xff]
          %v3139 = vld [vmem:[%s9 + $0x8] sm:$0xff]
          %v3140 = vld [vmem:[%s9 + $0x10] sm:$0xff]
          %v3141 = vld [vmem:[%s9 + $0x18] sm:$0xff]
          %v3142 = vld [vmem:[%s9 + $0x20] sm:$0xff]
          %v3143 = vld [vmem:[%s9 + $0x28] sm:$0xff]
          %v3144 = vld [vmem:[%s9 + $0x30] sm:$0xff]
          %v3145 = vld [vmem:[%s9 + $0x38] sm:$0xff]
          %v3146 = vld [vmem:[%s9 + $0x40] sm:$0xff]
          %v3147 = vld [vmem:[%s9 + $0x48] sm:$0xff]
          %v3148 = vld [vmem:[%s9 + $0x50] sm:$0xff]
          %v3149 = vld [vmem:[%s9 + $0x58] sm:$0xff]
          %v3150 = vld [vmem:[%s9 + $0x60] sm:$0xff]
          %v3151 = vld [vmem:[%s9 + $0x68] sm:$0xff]
          %v3152 = vld [vmem:[%s9 + $0x70] sm:$0xff]
          %v3153 = vld [vmem:[%s9 + $0x78] sm:$0xff]
          %v3154 = vpack.c.bf16 %v1940, %v1936
          %v3155 = vpack.c.bf16 %v1941, %v1937
          %v3156 = vpack.c.bf16 %v1942, %v1938
          %v3157 = vpack.c.bf16 %v1943, %v1939
          %v3158 = vld [vmem:[%s10] sm:$0xff]
          %v3159 = vld [vmem:[%s10 + $0x8] sm:$0xff]
          %v3160 = vld [vmem:[%s10 + $0x10] sm:$0xff]
          %v3161 = vld [vmem:[%s10 + $0x18] sm:$0xff]
          %v3162 = vld [vmem:[%s10 + $0x20] sm:$0xff]
          %v3163 = vld [vmem:[%s10 + $0x28] sm:$0xff]
          %v3164 = vld [vmem:[%s10 + $0x30] sm:$0xff]
          %v3165 = vld [vmem:[%s10 + $0x38] sm:$0xff]
          %v3166 = vld [vmem:[%s10 + $0x40] sm:$0xff]
          %v3167 = vld [vmem:[%s10 + $0x48] sm:$0xff]
          %v3168 = vld [vmem:[%s10 + $0x50] sm:$0xff]
          %v3169 = vld [vmem:[%s10 + $0x58] sm:$0xff]
          %v3170 = vld [vmem:[%s10 + $0x60] sm:$0xff]
          %v3171 = vld [vmem:[%s10 + $0x68] sm:$0xff]
          %v3172 = vld [vmem:[%s10 + $0x70] sm:$0xff]
          %v3173 = vld [vmem:[%s10 + $0x78] sm:$0xff]
          %v3174 = vld [vmem:[%s10 + $0x80] sm:$0xff]
          %v3175 = vld [vmem:[%s10 + $0x88] sm:$0xff]
          %v3176 = vld [vmem:[%s10 + $0x90] sm:$0xff]
          %v3177 = vld [vmem:[%s10 + $0x98] sm:$0xff]
          %v3178 = vld [vmem:[%s10 + $0xa0] sm:$0xff]
          %v3179 = vld [vmem:[%s10 + $0xa8] sm:$0xff]
          %v3180 = vld [vmem:[%s10 + $0xb0] sm:$0xff]
          %v3181 = vld [vmem:[%s10 + $0xb8] sm:$0xff]
          %v3182 = vld [vmem:[%s10 + $0xc0] sm:$0xff]
          %v3183 = vld [vmem:[%s10 + $0xc8] sm:$0xff]
          %v3184 = vld [vmem:[%s10 + $0xd0] sm:$0xff]
          %v3185 = vld [vmem:[%s10 + $0xd8] sm:$0xff]
          %v3186 = vld [vmem:[%s10 + $0xe0] sm:$0xff]
          %v3187 = vld [vmem:[%s10 + $0xe8] sm:$0xff]
          %v3188 = vld [vmem:[%s10 + $0xf0] sm:$0xff]
          %v3189 = vld [vmem:[%s10 + $0xf8] sm:$0xff]
          %v3190 = vld [vmem:[%s10 + $0x100] sm:$0xff]
          %v3191 = vld [vmem:[%s10 + $0x108] sm:$0xff]
          %v3192 = vld [vmem:[%s10 + $0x110] sm:$0xff]
          %v3193 = vld [vmem:[%s10 + $0x118] sm:$0xff]
          %v3194 = vld [vmem:[%s10 + $0x120] sm:$0xff]
          %v3195 = vld [vmem:[%s10 + $0x128] sm:$0xff]
          %v3196 = vld [vmem:[%s10 + $0x130] sm:$0xff]
          %v3197 = vld [vmem:[%s10 + $0x138] sm:$0xff]
          %v3198 = vld [vmem:[%s10 + $0x140] sm:$0xff]
          %v3199 = vld [vmem:[%s10 + $0x148] sm:$0xff]
          %v3200 = vld [vmem:[%s10 + $0x150] sm:$0xff]
          %v3201 = vld [vmem:[%s10 + $0x158] sm:$0xff]
          %v3202 = vld [vmem:[%s10 + $0x160] sm:$0xff]
          %v3203 = vld [vmem:[%s10 + $0x168] sm:$0xff]
          %v3204 = vld [vmem:[%s10 + $0x170] sm:$0xff]
          %v3205 = vld [vmem:[%s10 + $0x178] sm:$0xff]
          %v3206 = vld [vmem:[%s10 + $0x180] sm:$0xff]
          %v3207 = vld [vmem:[%s10 + $0x188] sm:$0xff]
          %v3208 = vld [vmem:[%s10 + $0x190] sm:$0xff]
          %v3209 = vld [vmem:[%s10 + $0x198] sm:$0xff]
          %v3210 = vld [vmem:[%s10 + $0x1a0] sm:$0xff]
          %v3211 = vld [vmem:[%s10 + $0x1a8] sm:$0xff]
          %v3212 = vld [vmem:[%s10 + $0x1b0] sm:$0xff]
          %v3213 = vld [vmem:[%s10 + $0x1b8] sm:$0xff]
          %v3214 = vld [vmem:[%s10 + $0x1c0] sm:$0xff]
          %v3215 = vld [vmem:[%s10 + $0x1c8] sm:$0xff]
          %v3216 = vld [vmem:[%s10 + $0x1d0] sm:$0xff]
          %v3217 = vld [vmem:[%s10 + $0x1d8] sm:$0xff]
          %v3218 = vld [vmem:[%s10 + $0x1e0] sm:$0xff]
          %v3219 = vld [vmem:[%s10 + $0x1e8] sm:$0xff]
          %v3220 = vld [vmem:[%s10 + $0x1f0] sm:$0xff]
          %v3221 = vld [vmem:[%s10 + $0x1f8] sm:$0xff]
          %v3286 = vunpack.c.l.b16 %v3158
          %v3287 = vunpack.c.h.b16 %v3158
          %v3288 = vunpack.c.l.b16 %v3159
          %v3289 = vunpack.c.h.b16 %v3159
          %v3290 = vunpack.c.l.b16 %v3160
          %v3291 = vunpack.c.h.b16 %v3160
          %v3292 = vunpack.c.l.b16 %v3161
          %v3293 = vunpack.c.h.b16 %v3161
          %v3294 = vunpack.c.l.b16 %v3162
          %v3295 = vunpack.c.h.b16 %v3162
          %v3296 = vunpack.c.l.b16 %v3163
          %v3297 = vunpack.c.h.b16 %v3163
          %v3298 = vunpack.c.l.b16 %v3164
          %v3299 = vunpack.c.h.b16 %v3164
          %v3300 = vunpack.c.l.b16 %v3165
          %v3301 = vunpack.c.h.b16 %v3165
          %v3302 = vunpack.c.l.b16 %v3166
          %v3303 = vunpack.c.h.b16 %v3166
          %v3304 = vunpack.c.l.b16 %v3167
          %v3305 = vunpack.c.h.b16 %v3167
          %v3306 = vunpack.c.l.b16 %v3168
          %v3307 = vunpack.c.h.b16 %v3168
          %v3308 = vunpack.c.l.b16 %v3169
          %v3309 = vunpack.c.h.b16 %v3169
          %v3310 = vunpack.c.l.b16 %v3170
          %v3311 = vunpack.c.h.b16 %v3170
          %v3312 = vunpack.c.l.b16 %v3171
          %v3313 = vunpack.c.h.b16 %v3171
          %v3314 = vunpack.c.l.b16 %v3172
          %v3315 = vunpack.c.h.b16 %v3172
          %v3316 = vunpack.c.l.b16 %v3173
          %v3317 = vunpack.c.h.b16 %v3173
          %v3318 = vunpack.c.l.b16 %v3174
          %v3319 = vunpack.c.h.b16 %v3174
          %v3320 = vunpack.c.l.b16 %v3175
          %v3321 = vunpack.c.h.b16 %v3175
          %v3322 = vunpack.c.l.b16 %v3176
          %v3323 = vunpack.c.h.b16 %v3176
          %v3324 = vunpack.c.l.b16 %v3177
          %v3325 = vunpack.c.h.b16 %v3177
          %v3326 = vunpack.c.l.b16 %v3178
          %v3327 = vunpack.c.h.b16 %v3178
          %v3328 = vunpack.c.l.b16 %v3179
          %v3329 = vunpack.c.h.b16 %v3179
          %v3330 = vunpack.c.l.b16 %v3180
          %v3331 = vunpack.c.h.b16 %v3180
          %v3332 = vunpack.c.l.b16 %v3181
          %v3333 = vunpack.c.h.b16 %v3181
          %v3334 = vunpack.c.l.b16 %v3182
          %v3335 = vunpack.c.h.b16 %v3182
          %v3336 = vunpack.c.l.b16 %v3183
          %v3337 = vunpack.c.h.b16 %v3183
          %v3338 = vunpack.c.l.b16 %v3184
          %v3339 = vunpack.c.h.b16 %v3184
          %v3340 = vunpack.c.l.b16 %v3185
          %v3341 = vunpack.c.h.b16 %v3185
          %v3342 = vunpack.c.l.b16 %v3186
          %v3343 = vunpack.c.h.b16 %v3186
          %v3344 = vunpack.c.l.b16 %v3187
          %v3345 = vunpack.c.h.b16 %v3187
          %v3346 = vunpack.c.l.b16 %v3188
          %v3347 = vunpack.c.h.b16 %v3188
          %v3348 = vunpack.c.l.b16 %v3189
          %v3349 = vunpack.c.h.b16 %v3189
          %v3350 = vunpack.c.l.b16 %v3190
          %v3351 = vunpack.c.h.b16 %v3190
          %v3352 = vunpack.c.l.b16 %v3191
          %v3353 = vunpack.c.h.b16 %v3191
          %v3354 = vunpack.c.l.b16 %v3192
          %v3355 = vunpack.c.h.b16 %v3192
          %v3356 = vunpack.c.l.b16 %v3193
          %v3357 = vunpack.c.h.b16 %v3193
          %v3358 = vunpack.c.l.b16 %v3194
          %v3359 = vunpack.c.h.b16 %v3194
          %v3360 = vunpack.c.l.b16 %v3195
          %v3361 = vunpack.c.h.b16 %v3195
          %v3362 = vunpack.c.l.b16 %v3196
          %v3363 = vunpack.c.h.b16 %v3196
          %v3364 = vunpack.c.l.b16 %v3197
          %v3365 = vunpack.c.h.b16 %v3197
          %v3366 = vunpack.c.l.b16 %v3198
          %v3367 = vunpack.c.h.b16 %v3198
          %v3368 = vunpack.c.l.b16 %v3199
          %v3369 = vunpack.c.h.b16 %v3199
          %v3370 = vunpack.c.l.b16 %v3200
          %v3371 = vunpack.c.h.b16 %v3200
          %v3372 = vunpack.c.l.b16 %v3201
          %v3373 = vunpack.c.h.b16 %v3201
          %v3374 = vunpack.c.l.b16 %v3202
          %v3375 = vunpack.c.h.b16 %v3202
          %v3376 = vunpack.c.l.b16 %v3203
          %v3377 = vunpack.c.h.b16 %v3203
          %v3378 = vunpack.c.l.b16 %v3204
          %v3379 = vunpack.c.h.b16 %v3204
          %v3380 = vunpack.c.l.b16 %v3205
          %v3381 = vunpack.c.h.b16 %v3205
          %v3382 = vunpack.c.l.b16 %v3206
          %v3383 = vunpack.c.h.b16 %v3206
          %v3384 = vunpack.c.l.b16 %v3207
          %v3385 = vunpack.c.h.b16 %v3207
          %v3386 = vunpack.c.l.b16 %v3208
          %v3387 = vunpack.c.h.b16 %v3208
          %v3388 = vunpack.c.l.b16 %v3209
          %v3389 = vunpack.c.h.b16 %v3209
          %v3390 = vunpack.c.l.b16 %v3210
          %v3391 = vunpack.c.h.b16 %v3210
          %v3392 = vunpack.c.l.b16 %v3211
          %v3393 = vunpack.c.h.b16 %v3211
          %v3394 = vunpack.c.l.b16 %v3212
          %v3395 = vunpack.c.h.b16 %v3212
          %v3396 = vunpack.c.l.b16 %v3213
          %v3397 = vunpack.c.h.b16 %v3213
          %v3398 = vunpack.c.l.b16 %v3214
          %v3399 = vunpack.c.h.b16 %v3214
          %v3400 = vunpack.c.l.b16 %v3215
          %v3401 = vunpack.c.h.b16 %v3215
          %v3402 = vunpack.c.l.b16 %v3216
          %v3403 = vunpack.c.h.b16 %v3216
          %v3404 = vunpack.c.l.b16 %v3217
          %v3405 = vunpack.c.h.b16 %v3217
          %v3406 = vunpack.c.l.b16 %v3218
          %v3407 = vunpack.c.h.b16 %v3218
          %v3408 = vunpack.c.l.b16 %v3219
          %v3409 = vunpack.c.h.b16 %v3219
          %v3410 = vunpack.c.l.b16 %v3220
          %v3411 = vunpack.c.h.b16 %v3220
          %v3412 = vunpack.c.l.b16 %v3221
          %v3413 = vunpack.c.h.b16 %v3221
          %v3414 = vpack.c.b16 %v3288, %v3286
          %v3415 = vpack.c.b16 %v3289, %v3287
          %v3416 = vpack.c.b16 %v3292, %v3290
          %v3417 = vpack.c.b16 %v3293, %v3291
          %v3418 = vpack.c.b16 %v3296, %v3294
          %v3419 = vpack.c.b16 %v3297, %v3295
          %v3420 = vpack.c.b16 %v3300, %v3298
          %v3421 = vpack.c.b16 %v3301, %v3299
          %v3422 = vpack.c.b16 %v3304, %v3302
          %v3423 = vpack.c.b16 %v3305, %v3303
          %v3424 = vpack.c.b16 %v3308, %v3306
          %v3425 = vpack.c.b16 %v3309, %v3307
          %v3426 = vpack.c.b16 %v3312, %v3310
          %v3427 = vpack.c.b16 %v3313, %v3311
          %v3428 = vpack.c.b16 %v3316, %v3314
          %v3429 = vpack.c.b16 %v3317, %v3315
          %v3430 = vpack.c.b16 %v3320, %v3318
          %v3431 = vpack.c.b16 %v3321, %v3319
          %v3432 = vpack.c.b16 %v3324, %v3322
          %v3433 = vpack.c.b16 %v3325, %v3323
          %v3434 = vpack.c.b16 %v3328, %v3326
          %v3435 = vpack.c.b16 %v3329, %v3327
          %v3436 = vpack.c.b16 %v3332, %v3330
          %v3437 = vpack.c.b16 %v3333, %v3331
          %v3438 = vpack.c.b16 %v3336, %v3334
          %v3439 = vpack.c.b16 %v3337, %v3335
          %v3440 = vpack.c.b16 %v3340, %v3338
          %v3441 = vpack.c.b16 %v3341, %v3339
          %v3442 = vpack.c.b16 %v3344, %v3342
          %v3443 = vpack.c.b16 %v3345, %v3343
          %v3444 = vpack.c.b16 %v3348, %v3346
          %v3445 = vpack.c.b16 %v3349, %v3347
          %v3446 = vpack.c.b16 %v3352, %v3350
          %v3447 = vpack.c.b16 %v3353, %v3351
          %v3448 = vpack.c.b16 %v3356, %v3354
          %v3449 = vpack.c.b16 %v3357, %v3355
          %v3450 = vpack.c.b16 %v3360, %v3358
          %v3451 = vpack.c.b16 %v3361, %v3359
          %v3452 = vpack.c.b16 %v3364, %v3362
          %v3453 = vpack.c.b16 %v3365, %v3363
          %v3454 = vpack.c.b16 %v3368, %v3366
          %v3455 = vpack.c.b16 %v3369, %v3367
          %v3456 = vpack.c.b16 %v3372, %v3370
          %v3457 = vpack.c.b16 %v3373, %v3371
          %v3458 = vpack.c.b16 %v3376, %v3374
          %v3459 = vpack.c.b16 %v3377, %v3375
          %v3460 = vpack.c.b16 %v3380, %v3378
          %v3461 = vpack.c.b16 %v3381, %v3379
          %v3462 = vpack.c.b16 %v3384, %v3382
          %v3463 = vpack.c.b16 %v3385, %v3383
          %v3464 = vpack.c.b16 %v3388, %v3386
          %v3465 = vpack.c.b16 %v3389, %v3387
          %v3466 = vpack.c.b16 %v3392, %v3390
          %v3467 = vpack.c.b16 %v3393, %v3391
          %v3468 = vpack.c.b16 %v3396, %v3394
          %v3469 = vpack.c.b16 %v3397, %v3395
          %v3470 = vpack.c.b16 %v3400, %v3398
          %v3471 = vpack.c.b16 %v3401, %v3399
          %v3472 = vpack.c.b16 %v3404, %v3402
          %v3473 = vpack.c.b16 %v3405, %v3403
          %v3474 = vpack.c.b16 %v3408, %v3406
          %v3475 = vpack.c.b16 %v3409, %v3407
          %v3476 = vpack.c.b16 %v3412, %v3410
          %v3477 = vpack.c.b16 %v3413, %v3411
          %3542 = vmatprep.subr.bf16.mxu0 %v3415
          %3543 = vmatpush1.bf16.msra.mxu0 %v3414
          %3544 = vmatprep.subr.bf16.mxu0 %v3417
          %3545 = vmatpush1.bf16.msra.mxu0 %v3416
          %3546 = vmatprep.subr.bf16.mxu0 %v3419
          %3547 = vmatpush1.bf16.msra.mxu0 %v3418
          %3548 = vmatprep.subr.bf16.mxu0 %v3421
          %3549 = vmatpush1.bf16.msra.mxu0 %v3420
          %3550 = vmatprep.subr.bf16.mxu0 %v3423
          %3551 = vmatpush1.bf16.msra.mxu0 %v3422
          %3552 = vmatprep.subr.bf16.mxu0 %v3425
          %3553 = vmatpush1.bf16.msra.mxu0 %v3424
          %3554 = vmatprep.subr.bf16.mxu0 %v3427
          %3555 = vmatpush1.bf16.msra.mxu0 %v3426
          %3556 = vmatprep.subr.bf16.mxu0 %v3429
          %3557 = vmatpush1.bf16.msra.mxu0 %v3428
          %3558 = vmatprep.subr.bf16.mxu0 %v3431
          %3559 = vmatpush1.bf16.msra.mxu0 %v3430
          %3560 = vmatprep.subr.bf16.mxu0 %v3433
          %3561 = vmatpush1.bf16.msra.mxu0 %v3432
          %3562 = vmatprep.subr.bf16.mxu0 %v3435
          %3563 = vmatpush1.bf16.msra.mxu0 %v3434
          %3564 = vmatprep.subr.bf16.mxu0 %v3437
          %3565 = vmatpush1.bf16.msra.mxu0 %v3436
          %3566 = vmatprep.subr.bf16.mxu0 %v3439
          %3567 = vmatpush1.bf16.msra.mxu0 %v3438
          %3568 = vmatprep.subr.bf16.mxu0 %v3441
          %3569 = vmatpush1.bf16.msra.mxu0 %v3440
          %3570 = vmatprep.subr.bf16.mxu0 %v3443
          %3571 = vmatpush1.bf16.msra.mxu0 %v3442
          %3572 = vmatprep.subr.bf16.mxu0 %v3445
          %3573 = vmatpush1.bf16.msra.mxu0 %v3444
          %3574 = vmatprep.mubr.bf16.mxu0 %v3155
          %3575 = vmatmul.mubr.bf16.gmra.mrb[0].mxu0 %v3154
          %v3576 = vpop.f32.mrb[0].mxu0
          %v3577 = vadd.f32 0.0, %v3576
          %v3578 = vpop.f32.mrb[0].mxu0
          %v3579 = vadd.f32 0.0, %v3578
          %v3580 = vpop.f32.mrb[0].mxu0
          %v3581 = vadd.f32 0.0, %v3580
          %v3582 = vpop.f32.mrb[0].mxu0
          %v3583 = vadd.f32 0.0, %v3582
          %3584 = vdwg.mxu0
          %3585 = vmatprep.subr.bf16.mxu0 %v3447
          %3586 = vmatpush1.bf16.msra.mxu0 %v3446
          %3587 = vmatprep.subr.bf16.mxu0 %v3449
          %3588 = vmatpush1.bf16.msra.mxu0 %v3448
          %3589 = vmatprep.subr.bf16.mxu0 %v3451
          %3590 = vmatpush1.bf16.msra.mxu0 %v3450
          %3591 = vmatprep.subr.bf16.mxu0 %v3453
          %3592 = vmatpush1.bf16.msra.mxu0 %v3452
          %3593 = vmatprep.subr.bf16.mxu0 %v3455
          %3594 = vmatpush1.bf16.msra.mxu0 %v3454
          %3595 = vmatprep.subr.bf16.mxu0 %v3457
          %3596 = vmatpush1.bf16.msra.mxu0 %v3456
          %3597 = vmatprep.subr.bf16.mxu0 %v3459
          %3598 = vmatpush1.bf16.msra.mxu0 %v3458
          %3599 = vmatprep.subr.bf16.mxu0 %v3461
          %3600 = vmatpush1.bf16.msra.mxu0 %v3460
          %3601 = vmatprep.subr.bf16.mxu0 %v3463
          %3602 = vmatpush1.bf16.msra.mxu0 %v3462
          %3603 = vmatprep.subr.bf16.mxu0 %v3465
          %3604 = vmatpush1.bf16.msra.mxu0 %v3464
          %3605 = vmatprep.subr.bf16.mxu0 %v3467
          %3606 = vmatpush1.bf16.msra.mxu0 %v3466
          %3607 = vmatprep.subr.bf16.mxu0 %v3469
          %3608 = vmatpush1.bf16.msra.mxu0 %v3468
          %3609 = vmatprep.subr.bf16.mxu0 %v3471
          %3610 = vmatpush1.bf16.msra.mxu0 %v3470
          %3611 = vmatprep.subr.bf16.mxu0 %v3473
          %3612 = vmatpush1.bf16.msra.mxu0 %v3472
          %3613 = vmatprep.subr.bf16.mxu0 %v3475
          %3614 = vmatpush1.bf16.msra.mxu0 %v3474
          %3615 = vmatprep.subr.bf16.mxu0 %v3477
          %3616 = vmatpush1.bf16.msra.mxu0 %v3476
          %3617 = vmatprep.mubr.bf16.mxu0 %v3157
          %3618 = vmatmul.mubr.bf16.gmra.mrb[0].mxu0 %v3156
          %v3619 = vpop.f32.mrb[0].mxu0
          %v3620 = vadd.f32 %v3577, %v3619
          %v3621 = vpop.f32.mrb[0].mxu0
          %v3622 = vadd.f32 %v3579, %v3621
          %v3623 = vpop.f32.mrb[0].mxu0
          %v3624 = vadd.f32 %v3581, %v3623
          %v3625 = vpop.f32.mrb[0].mxu0
          %v3626 = vadd.f32 %v3583, %v3625
          %3627 = vdwg.mxu0
          %v3644 = vunpack.c.l.b16 %v3138
          %v3645 = vunpack.c.h.b16 %v3138
          %v3646 = vunpack.c.l.b16 %v3139
          %v3647 = vunpack.c.h.b16 %v3139
          %v3648 = vunpack.c.l.b16 %v3140
          %v3649 = vunpack.c.h.b16 %v3140
          %v3650 = vunpack.c.l.b16 %v3141
          %v3651 = vunpack.c.h.b16 %v3141
          %v3652 = vunpack.c.l.b16 %v3142
          %v3653 = vunpack.c.h.b16 %v3142
          %v3654 = vunpack.c.l.b16 %v3143
          %v3655 = vunpack.c.h.b16 %v3143
          %v3656 = vunpack.c.l.b16 %v3144
          %v3657 = vunpack.c.h.b16 %v3144
          %v3658 = vunpack.c.l.b16 %v3145
          %v3659 = vunpack.c.h.b16 %v3145
          %v3660 = vunpack.c.l.b16 %v3146
          %v3661 = vunpack.c.h.b16 %v3146
          %v3662 = vunpack.c.l.b16 %v3147
          %v3663 = vunpack.c.h.b16 %v3147
          %v3664 = vunpack.c.l.b16 %v3148
          %v3665 = vunpack.c.h.b16 %v3148
          %v3666 = vunpack.c.l.b16 %v3149
          %v3667 = vunpack.c.h.b16 %v3149
          %v3668 = vunpack.c.l.b16 %v3150
          %v3669 = vunpack.c.h.b16 %v3150
          %v3670 = vunpack.c.l.b16 %v3151
          %v3671 = vunpack.c.h.b16 %v3151
          %v3672 = vunpack.c.l.b16 %v3152
          %v3673 = vunpack.c.h.b16 %v3152
          %v3674 = vunpack.c.l.b16 %v3153
          %v3675 = vunpack.c.h.b16 %v3153
          %v3676 = vpack.c.b16 %v3646, %v3644
          %v3677 = vpack.c.b16 %v3647, %v3645
          %v3678 = vpack.c.b16 %v3650, %v3648
          %v3679 = vpack.c.b16 %v3651, %v3649
          %v3680 = vpack.c.b16 %v3654, %v3652
          %v3681 = vpack.c.b16 %v3655, %v3653
          %v3682 = vpack.c.b16 %v3658, %v3656
          %v3683 = vpack.c.b16 %v3659, %v3657
          %v3684 = vpack.c.b16 %v3662, %v3660
          %v3685 = vpack.c.b16 %v3663, %v3661
          %v3686 = vpack.c.b16 %v3666, %v3664
          %v3687 = vpack.c.b16 %v3667, %v3665
          %v3688 = vpack.c.b16 %v3670, %v3668
          %v3689 = vpack.c.b16 %v3671, %v3669
          %v3690 = vpack.c.b16 %v3674, %v3672
          %v3691 = vpack.c.b16 %v3675, %v3673
          %3708 = vmatprep.subr.bf16.mxu0 %v3677
          %3709 = vmatpush1.bf16.msra.mxu0 %v3676
          %3710 = vmatprep.subr.bf16.mxu0 %v3679
          %3711 = vmatpush1.bf16.msra.mxu0 %v3678
          %3712 = vmatprep.subr.bf16.mxu0 %v3681
          %3713 = vmatpush1.bf16.msra.mxu0 %v3680
          %3714 = vmatprep.subr.bf16.mxu0 %v3683
          %3715 = vmatpush1.bf16.msra.mxu0 %v3682
          %3716 = vmatprep.subr.bf16.mxu0 %v3685
          %3717 = vmatpush1.bf16.msra.mxu0 %v3684
          %3718 = vmatprep.subr.bf16.mxu0 %v3687
          %3719 = vmatpush1.bf16.msra.mxu0 %v3686
          %3720 = vmatprep.subr.bf16.mxu0 %v3689
          %3721 = vmatpush1.bf16.msra.mxu0 %v3688
          %3722 = vmatprep.subr.bf16.mxu0 %v3691
          %3723 = vmatpush1.bf16.msra.mxu0 %v3690
          %3724 = vmatprep.subr.bf16.mxu0 0
          %3725 = vmatpush1.bf16.msra.mxu0 0
          %3726 = vmatprep.subr.bf16.mxu0 0
          %3727 = vmatpush1.bf16.msra.mxu0 0
          %3728 = vmatprep.subr.bf16.mxu0 0
          %3729 = vmatpush1.bf16.msra.mxu0 0
          %3730 = vmatprep.subr.bf16.mxu0 0
          %3731 = vmatpush1.bf16.msra.mxu0 0
          %3732 = vmatprep.subr.bf16.mxu0 0
          %3733 = vmatpush1.bf16.msra.mxu0 0
          %3734 = vmatprep.subr.bf16.mxu0 0
          %3735 = vmatpush1.bf16.msra.mxu0 0
          %3736 = vmatprep.subr.bf16.mxu0 0
          %3737 = vmatpush1.bf16.msra.mxu0 0
          %3738 = vmatprep.subr.bf16.mxu0 0
          %3739 = vmatpush1.bf16.msra.mxu0 0
          %3740 = vmatprep.mubr.bf16.mxu0 0
          %3741 = vmatmul.mubr.bf16.gmra.mrb[0].mxu0 %v3137
          %v3742 = vpop.f32.mrb[0].mxu0
          %v3743 = vadd.f32 %v3620, %v3742
          %v3744 = vpop.f32.mrb[0].mxu0
          %v3745 = vadd.f32 %v3622, %v3744
          %v3746 = vpop.f32.mrb[0].mxu0
          %v3747 = vadd.f32 %v3624, %v3746
          %v3748 = vpop.f32.mrb[0].mxu0
          %v3749 = vadd.f32 %v3626, %v3748
          %3750 = vdwg.mxu0
          %v3751 = vld [vmem:[%s11] sm:$0x3]
          %v3753 = vlaneseq
          %v3754 = vshrl.u32 %v3753, 7
          %v3755 = vsub.s32 0, %v3754
          %v3756 = vrot.slane %v3751, %v3755
          %v3757 = vlaneseq
          %v3758 = vshrl.u32 %v3757, 7
          %v3759 = vsub.s32 1, %v3758
          %v3760 = vrot.slane %v3751, %v3759
          %v3763 = vadd.f32 %v3743, %v3756
          %v3764 = vadd.f32 %v3745, %v3760
          %v3765 = vadd.f32 %v3747, %v3756
          %v3766 = vadd.f32 %v3749, %v3760
          %v3767 = vpack.c.bf16 %v3765, %v3763
          %v3768 = vpack.c.bf16 %v3766, %v3764
          %v3769 = vld [vmem:[%s12] sm:$0xf]
          %v3770 = vld [vmem:[%s12 + $0x4] sm:$0xf]
          %v3771 = vld [vmem:[%s12 + $0x8] sm:$0xf]
          %v3772 = vld [vmem:[%s12 + $0xc] sm:$0xf]
          %v3773 = vld [vmem:[%s12 + $0x10] sm:$0xf]
          %v3774 = vld [vmem:[%s12 + $0x14] sm:$0xf]
          %v3775 = vld [vmem:[%s12 + $0x18] sm:$0xf]
          %v3776 = vld [vmem:[%s12 + $0x1c] sm:$0xf]
          %v3777 = vld [vmem:[%s12 + $0x20] sm:$0xf]
          %v3778 = vld [vmem:[%s12 + $0x24] sm:$0xf]
          %v3779 = vld [vmem:[%s12 + $0x28] sm:$0xf]
          %v3780 = vld [vmem:[%s12 + $0x2c] sm:$0xf]
          %v3781 = vld [vmem:[%s12 + $0x30] sm:$0xf]
          %v3782 = vld [vmem:[%s12 + $0x34] sm:$0xf]
          %v3783 = vld [vmem:[%s12 + $0x38] sm:$0xf]
          %v3784 = vld [vmem:[%s12 + $0x3c] sm:$0xf]
          %v3785 = vld [vmem:[%s12 + $0x40] sm:$0xf]
          %v3786 = vld [vmem:[%s12 + $0x44] sm:$0xf]
          %v3787 = vld [vmem:[%s12 + $0x48] sm:$0xf]
          %v3788 = vld [vmem:[%s12 + $0x4c] sm:$0xf]
          %v3789 = vld [vmem:[%s12 + $0x50] sm:$0xf]
          %v3790 = vld [vmem:[%s12 + $0x54] sm:$0xf]
          %v3791 = vld [vmem:[%s12 + $0x58] sm:$0xf]
          %v3792 = vld [vmem:[%s12 + $0x5c] sm:$0xf]
          %v3793 = vld [vmem:[%s12 + $0x60] sm:$0xf]
          %v3794 = vld [vmem:[%s12 + $0x64] sm:$0xf]
          %v3795 = vld [vmem:[%s12 + $0x68] sm:$0xf]
          %v3796 = vld [vmem:[%s12 + $0x6c] sm:$0xf]
          %v3797 = vld [vmem:[%s12 + $0x70] sm:$0xf]
          %v3798 = vld [vmem:[%s12 + $0x74] sm:$0xf]
          %v3799 = vld [vmem:[%s12 + $0x78] sm:$0xf]
          %v3800 = vld [vmem:[%s12 + $0x7c] sm:$0xf]
          %v3801 = vld [vmem:[%s13] sm:$0x1]
          %v3803 = vlaneseq
          %v3804 = vshrl.u32 %v3803, 7
          %v3805 = vsub.s32 0, %v3804
          %v3806 = vrot.slane %v3801, %v3805
          %v3840 = vunpack.c.l.b16 %v3769
          %v3841 = vunpack.c.l.b16 %v3770
          %v3842 = vunpack.c.l.b16 %v3771
          %v3843 = vunpack.c.l.b16 %v3772
          %v3844 = vunpack.c.l.b16 %v3773
          %v3845 = vunpack.c.l.b16 %v3774
          %v3846 = vunpack.c.l.b16 %v3775
          %v3847 = vunpack.c.l.b16 %v3776
          %v3848 = vunpack.c.l.b16 %v3777
          %v3849 = vunpack.c.l.b16 %v3778
          %v3850 = vunpack.c.l.b16 %v3779
          %v3851 = vunpack.c.l.b16 %v3780
          %v3852 = vunpack.c.l.b16 %v3781
          %v3853 = vunpack.c.l.b16 %v3782
          %v3854 = vunpack.c.l.b16 %v3783
          %v3855 = vunpack.c.l.b16 %v3784
          %v3856 = vunpack.c.l.b16 %v3785
          %v3857 = vunpack.c.l.b16 %v3786
          %v3858 = vunpack.c.l.b16 %v3787
          %v3859 = vunpack.c.l.b16 %v3788
          %v3860 = vunpack.c.l.b16 %v3789
          %v3861 = vunpack.c.l.b16 %v3790
          %v3862 = vunpack.c.l.b16 %v3791
          %v3863 = vunpack.c.l.b16 %v3792
          %v3864 = vunpack.c.l.b16 %v3793
          %v3865 = vunpack.c.l.b16 %v3794
          %v3866 = vunpack.c.l.b16 %v3795
          %v3867 = vunpack.c.l.b16 %v3796
          %v3868 = vunpack.c.l.b16 %v3797
          %v3869 = vunpack.c.l.b16 %v3798
          %v3870 = vunpack.c.l.b16 %v3799
          %v3871 = vunpack.c.l.b16 %v3800
          %v3872 = vpack.c.b16 %v3841, %v3840
          %v3873 = vpack.c.b16 %v3843, %v3842
          %v3874 = vpack.c.b16 %v3845, %v3844
          %v3875 = vpack.c.b16 %v3847, %v3846
          %v3876 = vpack.c.b16 %v3849, %v3848
          %v3877 = vpack.c.b16 %v3851, %v3850
          %v3878 = vpack.c.b16 %v3853, %v3852
          %v3879 = vpack.c.b16 %v3855, %v3854
          %v3880 = vpack.c.b16 %v3857, %v3856
          %v3881 = vpack.c.b16 %v3859, %v3858
          %v3882 = vpack.c.b16 %v3861, %v3860
          %v3883 = vpack.c.b16 %v3863, %v3862
          %v3884 = vpack.c.b16 %v3865, %v3864
          %v3885 = vpack.c.b16 %v3867, %v3866
          %v3886 = vpack.c.b16 %v3869, %v3868
          %v3887 = vpack.c.b16 %v3871, %v3870
          %3904 = vmatprep.subr.bf16.mxu0 0
          %3905 = vmatpush1.bf16.msra.mxu0 %v3872
          %3906 = vmatprep.subr.bf16.mxu0 0
          %3907 = vmatpush1.bf16.msra.mxu0 %v3873
          %3908 = vmatprep.subr.bf16.mxu0 0
          %3909 = vmatpush1.bf16.msra.mxu0 %v3874
          %3910 = vmatprep.subr.bf16.mxu0 0
          %3911 = vmatpush1.bf16.msra.mxu0 %v3875
          %3912 = vmatprep.subr.bf16.mxu0 0
          %3913 = vmatpush1.bf16.msra.mxu0 %v3876
          %3914 = vmatprep.subr.bf16.mxu0 0
          %3915 = vmatpush1.bf16.msra.mxu0 %v3877
          %3916 = vmatprep.subr.bf16.mxu0 0
          %3917 = vmatpush1.bf16.msra.mxu0 %v3878
          %3918 = vmatprep.subr.bf16.mxu0 0
          %3919 = vmatpush1.bf16.msra.mxu0 %v3879
          %3920 = vmatprep.subr.bf16.mxu0 0
          %3921 = vmatpush1.bf16.msra.mxu0 %v3880
          %3922 = vmatprep.subr.bf16.mxu0 0
          %3923 = vmatpush1.bf16.msra.mxu0 %v3881
          %3924 = vmatprep.subr.bf16.mxu0 0
          %3925 = vmatpush1.bf16.msra.mxu0 %v3882
          %3926 = vmatprep.subr.bf16.mxu0 0
          %3927 = vmatpush1.bf16.msra.mxu0 %v3883
          %3928 = vmatprep.subr.bf16.mxu0 0
          %3929 = vmatpush1.bf16.msra.mxu0 %v3884
          %3930 = vmatprep.subr.bf16.mxu0 0
          %3931 = vmatpush1.bf16.msra.mxu0 %v3885
          %3932 = vmatprep.subr.bf16.mxu0 0
          %3933 = vmatpush1.bf16.msra.mxu0 %v3886
          %3934 = vmatprep.subr.bf16.mxu0 0
          %3935 = vmatpush1.bf16.msra.mxu0 %v3887
          %3936 = vmatprep.mubr.bf16.mxu0 %v3768
          %3937 = vmatmul.mubr.bf16.gmra.mrb[0].mxu0 %v3767
          %v3938 = vpop.f32.mrb[0].mxu0
          %v3939 = vadd.f32 %v3806, %v3938
          %v3940 = vpop.f32.mrb[0].mxu0
          %v3941 = vpop.f32.mrb[0].mxu0
          %v3942 = vadd.f32 %v3806, %v3941
          %v3943 = vpop.f32.mrb[0].mxu0
          %3944 = vdwg.mxu0
          %3945 = vst [vmem:[%s540] sm:$0xff] %v3939
          %3946 = vst [vmem:[%s540 + $0x8] sm:$0xff] %v3942
        $region126: #{ltsm_conv_forward.1} parent=109 // pred_fallthru
          _
        %s3947 = smul.u32 2, %s31
        %p3948 = scmp.lt.s32.totalorder %s3947, 1
        %s3949 = scalar_select %p3948, %s3947, 1
        %s3950 = smul.addr %s3949, 8
        %s3951 = scalar_lea.vmem %s14, %s3950
        // Predicated region
        $region127: #{ltsm_conv_forward.1} parent=109 // pred_check
          %p3952 = pneg %p358
        $region128: #{ltsm_conv_forward.1} parent=109 // pred_check_branch
          %3954 = sbr.rel (%p3952) target = $region130
        $region129: #{ltsm_conv_forward.1} parent=109 // pred_region
          %s3955 = smul.u32 2, %s31
        $region130: #{ltsm_conv_forward.1} parent=109 // pred_fallthru
          _
        // Predicated region
        $region131: #{ltsm_conv_forward.1} parent=109 // pred_check
          %p3956 = pneg %p358
        $region132: #{ltsm_conv_forward.1} parent=109 // pred_check_branch
          %3958 = sbr.rel (%p3956) target = $region134
        $region133: #{ltsm_conv_forward.1} parent=109 // pred_region
          %s3959 = smul.u32 2, %s31
          %p3960 = scmp.lt.s32.totalorder %s3959, 1
          %s3961 = scalar_select %p3960, %s3959, 1
          %s3962 = smul.addr %s3961, 8
          %s3963 = scalar_lea.vmem %s14, %s3962
        $region134: #{ltsm_conv_forward.1} parent=109 // pred_fallthru
          _
      $region110: #{ltsm_conv_forward.1} parent=5 // pred_fallthru
        _
      %p3964 = scmp.le.s32.totalorder 2, %s22
      // Predicated region
      $region135: #{ltsm_conv_forward.1} parent=5 // pred_check
        %p3965 = pneg %p3964
      $region136: #{ltsm_conv_forward.1} parent=5 // pred_check_branch
        %3967 = sbr.rel (%p3965) target = $region138
      $region137: #{ltsm_conv_forward.1} parent=5 // pred_region
        %s3968 = ssub.s32 %s22, 2
      $region138: #{ltsm_conv_forward.1} parent=5 // pred_fallthru
        _
    $region6: #{ltsm_conv_forward.1} parent=1 // loop_footer
      %s26 = sadd.s32 1, %s22
    $region7: #{ltsm_conv_forward.1} parent=1 // loop_footer_branch
      %21 = sbr.rel target = $region3
    $region8: #{ltsm_conv_forward.1} parent=1 // loop_exit
      _
    %3969 = vsyncpa [#allocation6], 1
    %s3970 = scalar_lea.sflag [#allocation6], 1
    %3971 = vsyncpa %s3970, 1

// kernel: ltsm_conv_forward.1
$region0: #{ltsm_conv_forward.1}
  #allocation0 [shape = 'u32[]', space=smem, size = 0x4, offset = 0x4, fixed_abs, tag = 'smem constant byte address 0x4 - core index']
  #allocation1 [shape = 'u32[144,128]{1,0:T(1,128)}', space=vmem, size = 0x12000, scoped, tag = 'internal scratch']
  #allocation2 [shape = 'f32[16,512]{1,0:T(8,128)}', space=vmem, size = 0x8000, scoped, tag = 'scratch operand']
  #allocation3 [shape = 'bf16[7,16,384]{2,1,0:T(16,128)(2,1)}', space=vmem, size = 0x15000, scoped, tag = 'scratch operand']
  #allocation4 [shape = 'f32[1,1]{1,0:T(1,128)S(6)}', space=smem, size = 0x200, scoped, tag = 'scoped memory for ltsm_conv_forward.1']
  %s0 = inlined_call_operand.vmem [shape: f32[1,7], index: 0, kind: input, shape index: {}]
  %s1 = inlined_call_operand.<no memory space> [shape: f32[1,1], index: 1, kind: input, shape index: {}]
  %s2 = inlined_call_operand.vmem [shape: bf16[16,1792], index: 2, kind: input, shape index: {}]
  %s3 = inlined_call_operand.vmem [shape: bf16[256,512], index: 3, kind: input, shape index: {}]
  %s4 = inlined_call_operand.vmem [shape: f32[1,512], index: 4, kind: input, shape index: {}]
  %s5 = inlined_call_operand.vmem [shape: bf16[512,384], index: 5, kind: input, shape index: {}]
  %s6 = inlined_call_operand.vmem [shape: f32[1,384], index: 6, kind: input, shape index: {}]
  %s7 = inlined_call_operand.vmem [shape: bf16[128,384], index: 7, kind: input, shape index: {}]
  %s8 = inlined_call_operand.vmem [shape: f32[1,384], index: 8, kind: input, shape index: {}]
  %s9 = inlined_call_operand.vmem [shape: bf16[128,256], index: 9, kind: input, shape index: {}]
  %s10 = inlined_call_operand.vmem [shape: bf16[512,256], index: 10, kind: input, shape index: {}]
  %s11 = inlined_call_operand.vmem [shape: f32[1,256], index: 11, kind: input, shape index: {}]
  %s12 = inlined_call_operand.vmem [shape: bf16[256,128], index: 12, kind: input, shape index: {}]
  %s13 = inlined_call_operand.vmem [shape: f32[1,128], index: 13, kind: input, shape index: {}]
  %s14 = inlined_call_operand.vmem [shape: f32[16,128], index: 14, kind: output, shape index: {}]
  %s15 = sld [smem:[#allocation0]]
  $region139: #{ltsm_conv_forward.1} parent=0
    _
  %s17 = ssub.s32 1, %s15
  %s18 = scalar_select 0, %s17, %s15
  %19 = sst [smem:[#allocation4]] %s1
  $region1: #{ltsm_conv_forward.1} parent=0
    #allocation5 [shape = 'u8[512]{0}', space=smem, size = 0x200, scoped, tag = 'input window, operand 0, single buffered']
    #allocation6 [shape = 's32[2]{0}', space=sflag, size = 0x8, scoped, tag = 'scoped memory for ltsm_conv_forward.1']
    #allocation7 [shape = 'u8[16384]{0}', space=vmem, size = 0x4000, scoped, tag = 'input window, operand 2']
    %20 = vsyncpa [#allocation6], 0
    loop: start=0, step=1, limit=9
    $region2: #{ltsm_conv_forward.1} parent=1 // loop_pre_header
      _
    $region3: #{ltsm_conv_forward.1} parent=1 // loop_header
      %s22 = sphi 0, %s26
      %p23 = scmp.ge.s32.totalorder %s22, 9
      %s29 = sphi 0, %s41
      %s30 = sphi 0, %s37
      %s31 = sphi 0, %s29
      %s32 = sphi 0, %s30
      %s33 = sphi 0, %s31
      %s34 = sphi 0, %s32
      %s42 = sphi 0, %s42
      %s44 = sphi 0, %s42
      %s45 = sphi 0, %s44
      %s59 = sphi 0, %s45
      %s63 = sphi 0, %s63
      %s65 = sphi 0, %s63
      %s66 = sphi 0, %s65
      %s80 = sphi 0, %s66
      %s88 = sphi 0, %s90
      %s91 = sphi 0, %s88
      %s92 = sphi 0, %s91
      %s108 = sphi 0, %s92
      %s112 = sphi 0, %s112
      %s114 = sphi 0, %s112
      %s115 = sphi 0, %s114
      %s129 = sphi 0, %s115
      %s133 = sphi 0, %s133
      %s135 = sphi 0, %s133
      %s136 = sphi 0, %s135
      %s150 = sphi 0, %s136
      %s154 = sphi 0, %s154
      %s156 = sphi 0, %s154
      %s157 = sphi 0, %s156
      %s171 = sphi 0, %s157
      %s175 = sphi 0, %s175
      %s177 = sphi 0, %s175
      %s178 = sphi 0, %s177
      %s192 = sphi 0, %s178
      %s196 = sphi 0, %s196
      %s198 = sphi 0, %s196
      %s199 = sphi 0, %s198
      %s213 = sphi 0, %s199
      %s217 = sphi 0, %s217
      %s219 = sphi 0, %s217
      %s220 = sphi 0, %s219
      %s234 = sphi 0, %s220
      %s238 = sphi 0, %s238
      %s240 = sphi 0, %s238
      %s241 = sphi 0, %s240
      %s255 = sphi 0, %s241
      %s259 = sphi 0, %s259
      %s261 = sphi 0, %s259
      %s262 = sphi 0, %s261
      %s276 = sphi 0, %s262
      %s280 = sphi 0, %s280
      %s282 = sphi 0, %s280
      %s283 = sphi 0, %s282
      %s297 = sphi 0, %s283
      %s301 = sphi 0, %s301
      %s303 = sphi 0, %s301
      %s304 = sphi 0, %s303
      %s318 = sphi 0, %s304
      %s322 = sphi 0, %s322
      %s324 = sphi 0, %s322
      %s325 = sphi 0, %s324
      %s339 = sphi 0, %s325
      %s345 = sphi 0, %s347
      %s348 = sphi 0, %s345
      %s349 = sphi 0, %s348
      %s365 = sphi 0, %s349
    $region4: #{ltsm_conv_forward.1} parent=1 // loop_header_branch
      %25 = sbr.rel (%p23) target = $region8
    $region5: #{ltsm_conv_forward.1} parent=1 // loop_body
      %s27 = ssub.s32 %s22, 1
      %s28 = ssub.s32 %s22, 2
      %s35 = sadd.s32 1, %s30
      %p36 = scmp.ge.s32.totalorder %s35, 7
      %s37 = scalar_select %p36, 0, %s35
      %s38 = sadd.s32 1, %s29
      %s39 = scalar_select %p36, %s38, %s29
      %p40 = scmp.ge.s32.totalorder %s39, 1
      %s41 = scalar_select %p40, 0, %s39
      %s43 = sadd.s32 %s42, 1
      %p46 = scmp.eq.s32.totalorder %s22, 6
      %p47 = scmp.ne.s32.totalorder %s42, %s44
      %p48 = scmp.eq.s32.totalorder %s22, 0
      %p49 = por %p47, %p48
      %p50 = scmp.ne.s32.totalorder %s42, %s44
      %p51 = scmp.eq.s32.totalorder %s27, 6
      %p52 = por %p50, %p51
      %p53 = scmp.ne.s32.totalorder %s44, %s45
      %p54 = scmp.eq.s32.totalorder %s27, 0
      %p55 = por %p53, %p54
      %p56 = scmp.ne.s32.totalorder %s44, %s45
      %p57 = scmp.eq.s32.totalorder %s28, 6
      %p58 = por %p56, %p57
      %p60 = scmp.ne.s32.totalorder %s45, %s59
      %p61 = scmp.eq.s32.totalorder %s28, 0
      %p62 = por %p60, %p61
      %s64 = sadd.s32 %s63, 1
      %p67 = scmp.eq.s32.totalorder %s22, 6
      %p68 = scmp.ne.s32.totalorder %s63, %s65
      %p69 = scmp.eq.s32.totalorder %s22, 0
      %p70 = por %p68, %p69
      %p71 = scmp.ne.s32.totalorder %s63, %s65
      %p72 = scmp.eq.s32.totalorder %s27, 6
      %p73 = por %p71, %p72
      %p74 = scmp.ne.s32.totalorder %s65, %s66
      %p75 = scmp.eq.s32.totalorder %s27, 0
      %p76 = por %p74, %p75
      %p77 = scmp.ne.s32.totalorder %s65, %s66
      %p78 = scmp.eq.s32.totalorder %s28, 6
      %p79 = por %p77, %p78
      %p81 = scmp.ne.s32.totalorder %s66, %s80
      %p82 = scmp.eq.s32.totalorder %s28, 0
      %p83 = por %p81, %p82
      %s84 = ssub.s32 %s29, %s41
      %s85 = ssub.s32 %s30, %s37
      %s86 = sor.u32 %s84, %s85
      %p87 = scmp.eq.s32.totalorder %s86, 0
      %s89 = sadd.s32 %s88, 1
      %s90 = scalar_select %p87, %s88, %s89
      %p93 = pneg %p87
      %p94 = scmp.eq.s32.totalorder %s22, 6
      %p95 = por %p93, %p94
      %p96 = scmp.ne.s32.totalorder %s88, %s91
      %p97 = scmp.eq.s32.totalorder %s22, 0
      %p98 = por %p96, %p97
      %p99 = scmp.ne.s32.totalorder %s88, %s91
      %p100 = scmp.eq.s32.totalorder %s27, 6
      %p101 = por %p99, %p100
      %p102 = scmp.ne.s32.totalorder %s91, %s92
      %p103 = scmp.eq.s32.totalorder %s27, 0
      %p104 = por %p102, %p103
      %p105 = scmp.ne.s32.totalorder %s91, %s92
      %p106 = scmp.eq.s32.totalorder %s28, 6
      %p107 = por %p105, %p106
      %p109 = scmp.ne.s32.totalorder %s92, %s108
      %p110 = scmp.eq.s32.totalorder %s28, 0
      %p111 = por %p109, %p110
      %s113 = sadd.s32 %s112, 1
      %p116 = scmp.eq.s32.totalorder %s22, 6
      %p117 = scmp.ne.s32.totalorder %s112, %s114
      %p118 = scmp.eq.s32.totalorder %s22, 0
      %p119 = por %p117, %p118
      %p120 = scmp.ne.s32.totalorder %s112, %s114
      %p121 = scmp.eq.s32.totalorder %s27, 6
      %p122 = por %p120, %p121
      %p123 = scmp.ne.s32.totalorder %s114, %s115
      %p124 = scmp.eq.s32.totalorder %s27, 0
      %p125 = por %p123, %p124
      %p126 = scmp.ne.s32.totalorder %s114, %s115
      %p127 = scmp.eq.s32.totalorder %s28, 6
      %p128 = por %p126, %p127
      %p130 = scmp.ne.s32.totalorder %s115, %s129
      %p131 = scmp.eq.s32.totalorder %s28, 0
      %p132 = por %p130, %p131
      %s134 = sadd.s32 %s133, 1
      %p137 = scmp.eq.s32.totalorder %s22, 6
      %p138 = scmp.ne.s32.totalorder %s133, %s135
      %p139 = scmp.eq.s32.totalorder %s22, 0
      %p140 = por %p138, %p139
      %p141 = scmp.ne.s32.totalorder %s133, %s135
      %p142 = scmp.eq.s32.totalorder %s27, 6
      %p143 = por %p141, %p142
      %p144 = scmp.ne.s32.totalorder %s135, %s136
      %p145 = scmp.eq.s32.totalorder %s27, 0
      %p146 = por %p144, %p145
      %p147 = scmp.ne.s32.totalorder %s135, %s136
      %p148 = scmp.eq.s32.totalorder %s28, 6
      %p149 = por %p147, %p148
      %p151 = scmp.ne.s32.totalorder %s136, %s150
      %p152 = scmp.eq.s32.totalorder %s28, 0
      %p153 = por %p151, %p152
      %s155 = sadd.s32 %s154, 1
      %p158 = scmp.eq.s32.totalorder %s22, 6
      %p159 = scmp.ne.s32.totalorder %s154, %s156
      %p160 = scmp.eq.s32.totalorder %s22, 0
      %p161 = por %p159, %p160
      %p162 = scmp.ne.s32.totalorder %s154, %s156
      %p163 = scmp.eq.s32.totalorder %s27, 6
      %p164 = por %p162, %p163
      %p165 = scmp.ne.s32.totalorder %s156, %s157
      %p166 = scmp.eq.s32.totalorder %s27, 0
      %p167 = por %p165, %p166
      %p168 = scmp.ne.s32.totalorder %s156, %s157
      %p169 = scmp.eq.s32.totalorder %s28, 6
      %p170 = por %p168, %p169
      %p172 = scmp.ne.s32.totalorder %s157, %s171
      %p173 = scmp.eq.s32.totalorder %s28, 0
      %p174 = por %p172, %p173
      %s176 = sadd.s32 %s175, 1
      %p179 = scmp.eq.s32.totalorder %s22, 6
      %p180 = scmp.ne.s32.totalorder %s175, %s177
      %p181 = scmp.eq.s32.totalorder %s22, 0
      %p182 = por %p180, %p181
      %p183 = scmp.ne.s32.totalorder %s175, %s177
      %p184 = scmp.eq.s32.totalorder %s27, 6
      %p185 = por %p183, %p184
      %p186 = scmp.ne.s32.totalorder %s177, %s178
      %p187 = scmp.eq.s32.totalorder %s27, 0
      %p188 = por %p186, %p187
      %p189 = scmp.ne.s32.totalorder %s177, %s178
      %p190 = scmp.eq.s32.totalorder %s28, 6
      %p191 = por %p189, %p190
      %p193 = scmp.ne.s32.totalorder %s178, %s192
      %p194 = scmp.eq.s32.totalorder %s28, 0
      %p195 = por %p193, %p194
      %s197 = sadd.s32 %s196, 1
      %p200 = scmp.eq.s32.totalorder %s22, 6
      %p201 = scmp.ne.s32.totalorder %s196, %s198
      %p202 = scmp.eq.s32.totalorder %s22, 0
      %p203 = por %p201, %p202
      %p204 = scmp.ne.s32.totalorder %s196, %s198
      %p205 = scmp.eq.s32.totalorder %s27, 6
      %p206 = por %p204, %p205
      %p207 = scmp.ne.s32.totalorder %s198, %s199
      %p208 = scmp.eq.s32.totalorder %s27, 0
      %p209 = por %p207, %p208
      %p210 = scmp.ne.s32.totalorder %s198, %s199
      %p211 = scmp.eq.s32.totalorder %s28, 6
      %p212 = por %p210, %p211
      %p214 = scmp.ne.s32.totalorder %s199, %s213
      %p215 = scmp.eq.s32.totalorder %s28, 0
      %p216 = por %p214, %p215
      %s218 = sadd.s32 %s217, 1
      %p221 = scmp.eq.s32.totalorder %s22, 6
      %p222 = scmp.ne.s32.totalorder %s217, %s219
      %p223 = scmp.eq.s32.totalorder %s22, 0
      %p224 = por %p222, %p223
      %p225 = scmp.ne.s32.totalorder %s217, %s219
      %p226 = scmp.eq.s32.totalorder %s27, 6
      %p227 = por %p225, %p226
      %p228 = scmp.ne.s32.totalorder %s219, %s220
      %p229 = scmp.eq.s32.totalorder %s27, 0
      %p230 = por %p228, %p229
      %p231 = scmp.ne.s32.totalorder %s219, %s220
      %p232 = scmp.eq.s32.totalorder %s28, 6
      %p233 = por %p231, %p232
      %p235 = scmp.ne.s32.totalorder %s220, %s234
      %p236 = scmp.eq.s32.totalorder %s28, 0
      %p237 = por %p235, %p236
      %s239 = sadd.s32 %s238, 1
      %p242 = scmp.eq.s32.totalorder %s22, 6
      %p243 = scmp.ne.s32.totalorder %s238, %s240
      %p244 = scmp.eq.s32.totalorder %s22, 0
      %p245 = por %p243, %p244
      %p246 = scmp.ne.s32.totalorder %s238, %s240
      %p247 = scmp.eq.s32.totalorder %s27, 6
      %p248 = por %p246, %p247
      %p249 = scmp.ne.s32.totalorder %s240, %s241
      %p250 = scmp.eq.s32.totalorder %s27, 0
      %p251 = por %p249, %p250
      %p252 = scmp.ne.s32.totalorder %s240, %s241
      %p253 = scmp.eq.s32.totalorder %s28, 6
      %p254 = por %p252, %p253
      %p256 = scmp.ne.s32.totalorder %s241, %s255
      %p257 = scmp.eq.s32.totalorder %s28, 0
      %p258 = por %p256, %p257
      %s260 = sadd.s32 %s259, 1
      %p263 = scmp.eq.s32.totalorder %s22, 6
      %p264 = scmp.ne.s32.totalorder %s259, %s261
      %p265 = scmp.eq.s32.totalorder %s22, 0
      %p266 = por %p264, %p265
      %p267 = scmp.ne.s32.totalorder %s259, %s261
      %p268 = scmp.eq.s32.totalorder %s27, 6
      %p269 = por %p267, %p268
      %p270 = scmp.ne.s32.totalorder %s261, %s262
      %p271 = scmp.eq.s32.totalorder %s27, 0
      %p272 = por %p270, %p271
      %p273 = scmp.ne.s32.totalorder %s261, %s262
      %p274 = scmp.eq.s32.totalorder %s28, 6
      %p275 = por %p273, %p274
      %p277 = scmp.ne.s32.totalorder %s262, %s276
      %p278 = scmp.eq.s32.totalorder %s28, 0
      %p279 = por %p277, %p278
      %s281 = sadd.s32 %s280, 1
      %p284 = scmp.eq.s32.totalorder %s22, 6
      %p285 = scmp.ne.s32.totalorder %s280, %s282
      %p286 = scmp.eq.s32.totalorder %s22, 0
      %p287 = por %p285, %p286
      %p288 = scmp.ne.s32.totalorder %s280, %s282
      %p289 = scmp.eq.s32.totalorder %s27, 6
      %p290 = por %p288, %p289
      %p291 = scmp.ne.s32.totalorder %s282, %s283
      %p292 = scmp.eq.s32.totalorder %s27, 0
      %p293 = por %p291, %p292
      %p294 = scmp.ne.s32.totalorder %s282, %s283
      %p295 = scmp.eq.s32.totalorder %s28, 6
      %p296 = por %p294, %p295
      %p298 = scmp.ne.s32.totalorder %s283, %s297
      %p299 = scmp.eq.s32.totalorder %s28, 0
      %p300 = por %p298, %p299
      %s302 = sadd.s32 %s301, 1
      %p305 = scmp.eq.s32.totalorder %s22, 6
      %p306 = scmp.ne.s32.totalorder %s301, %s303
      %p307 = scmp.eq.s32.totalorder %s22, 0
      %p308 = por %p306, %p307
      %p309 = scmp.ne.s32.totalorder %s301, %s303
      %p310 = scmp.eq.s32.totalorder %s27, 6
      %p311 = por %p309, %p310
      %p312 = scmp.ne.s32.totalorder %s303, %s304
      %p313 = scmp.eq.s32.totalorder %s27, 0
      %p314 = por %p312, %p313
      %p315 = scmp.ne.s32.totalorder %s303, %s304
      %p316 = scmp.eq.s32.totalorder %s28, 6
      %p317 = por %p315, %p316
      %p319 = scmp.ne.s32.totalorder %s304, %s318
      %p320 = scmp.eq.s32.totalorder %s28, 0
      %p321 = por %p319, %p320
      %s323 = sadd.s32 %s322, 1
      %p326 = scmp.eq.s32.totalorder %s22, 6
      %p327 = scmp.ne.s32.totalorder %s322, %s324
      %p328 = scmp.eq.s32.totalorder %s22, 0
      %p329 = por %p327, %p328
      %p330 = scmp.ne.s32.totalorder %s322, %s324
      %p331 = scmp.eq.s32.totalorder %s27, 6
      %p332 = por %p330, %p331
      %p333 = scmp.ne.s32.totalorder %s324, %s325
      %p334 = scmp.eq.s32.totalorder %s27, 0
      %p335 = por %p333, %p334
      %p336 = scmp.ne.s32.totalorder %s324, %s325
      %p337 = scmp.eq.s32.totalorder %s28, 6
      %p338 = por %p336, %p337
      %p340 = scmp.ne.s32.totalorder %s325, %s339
      %p341 = scmp.eq.s32.totalorder %s28, 0
      %p342 = por %p340, %p341
      %s343 = ssub.s32 %s29, %s41
      %p344 = scmp.eq.s32.totalorder %s343, 0
      %s346 = sadd.s32 %s345, 1
      %s347 = scalar_select %p344, %s345, %s346
      %p350 = pneg %p344
      %p351 = scmp.eq.s32.totalorder %s22, 6
      %p352 = por %p350, %p351
      %p353 = scmp.ne.s32.totalorder %s345, %s348
      %p354 = scmp.eq.s32.totalorder %s22, 0
      %p355 = por %p353, %p354
      %p356 = scmp.ne.s32.totalorder %s345, %s348
      %p357 = scmp.eq.s32.totalorder %s27, 6
      %p358 = por %p356, %p357
      %p359 = scmp.ne.s32.totalorder %s348, %s349
      %p360 = scmp.eq.s32.totalorder %s27, 0
      %p361 = por %p359, %p360
      %p362 = scmp.ne.s32.totalorder %s348, %s349
      %p363 = scmp.eq.s32.totalorder %s28, 6
      %p364 = por %p362, %p363
      %p366 = scmp.ne.s32.totalorder %s349, %s365
      %p367 = scmp.eq.s32.totalorder %s28, 0
      %p368 = por %p366, %p367
      %p369 = scmp.le.s32.totalorder 1, %s22
      %p370 = scmp.lt.s32.totalorder %s22, 8
      %p371 = pnand %p369, %p370
      %p372 = pneg %p371
      // Predicated region
      $region9: #{ltsm_conv_forward.1} parent=5 // pred_check
        _
      $region10: #{ltsm_conv_forward.1} parent=5 // pred_check_branch
        %374 = sbr.rel (%p371) target = $region12
      $region11: #{ltsm_conv_forward.1} parent=5 // pred_region
        %s375 = ssub.s32 %s22, 1
        // Predicated region
        $region13: #{ltsm_conv_forward.1} parent=11 // pred_check
          %p376 = pneg %p55
        $region14: #{ltsm_conv_forward.1} parent=11 // pred_check_branch
          %378 = sbr.rel (%p376) target = $region16
        $region15: #{ltsm_conv_forward.1} parent=11 // pred_region
          %s380 = ssub.s32 16, 16
          %381 = vsyncadd [#allocation6], %s380
          %s383 = sshll.u32 %s0, 4
          %s384 = int_to_ptr.vmem [resolvable:$true] %s383
          %386 = dma.vmem_to_smem %s384, 16, [#allocation5], [#allocation6]
        $region16: #{ltsm_conv_forward.1} parent=11 // pred_fallthru
          _
        // Predicated region
        $region17: #{ltsm_conv_forward.1} parent=11 // pred_check
          %p387 = pneg %p76
        $region18: #{ltsm_conv_forward.1} parent=11 // pred_check_branch
          %389 = sbr.rel (%p387) target = $region20
        $region19: #{ltsm_conv_forward.1} parent=11 // pred_region
          _
        $region20: #{ltsm_conv_forward.1} parent=11 // pred_fallthru
          _
        // Predicated region
        $region21: #{ltsm_conv_forward.1} parent=11 // pred_check
          %p390 = pneg %p125
        $region22: #{ltsm_conv_forward.1} parent=11 // pred_check_branch
          %392 = sbr.rel (%p390) target = $region24
        $region23: #{ltsm_conv_forward.1} parent=11 // pred_region
          _
        $region24: #{ltsm_conv_forward.1} parent=11 // pred_fallthru
          _
        // Predicated region
        $region25: #{ltsm_conv_forward.1} parent=11 // pred_check
          %p393 = pneg %p146
        $region26: #{ltsm_conv_forward.1} parent=11 // pred_check_branch
          %395 = sbr.rel (%p393) target = $region28
        $region27: #{ltsm_conv_forward.1} parent=11 // pred_region
          _
        $region28: #{ltsm_conv_forward.1} parent=11 // pred_fallthru
          _
        // Predicated region
        $region29: #{ltsm_conv_forward.1} parent=11 // pred_check
          %p396 = pneg %p167
        $region30: #{ltsm_conv_forward.1} parent=11 // pred_check_branch
          %398 = sbr.rel (%p396) target = $region32
        $region31: #{ltsm_conv_forward.1} parent=11 // pred_region
          _
        $region32: #{ltsm_conv_forward.1} parent=11 // pred_fallthru
          _
        // Predicated region
        $region33: #{ltsm_conv_forward.1} parent=11 // pred_check
          %p399 = pneg %p188
        $region34: #{ltsm_conv_forward.1} parent=11 // pred_check_branch
          %401 = sbr.rel (%p399) target = $region36
        $region35: #{ltsm_conv_forward.1} parent=11 // pred_region
          _
        $region36: #{ltsm_conv_forward.1} parent=11 // pred_fallthru
          _
        // Predicated region
        $region37: #{ltsm_conv_forward.1} parent=11 // pred_check
          %p402 = pneg %p209
        $region38: #{ltsm_conv_forward.1} parent=11 // pred_check_branch
          %404 = sbr.rel (%p402) target = $region40
        $region39: #{ltsm_conv_forward.1} parent=11 // pred_region
          _
        $region40: #{ltsm_conv_forward.1} parent=11 // pred_fallthru
          _
        // Predicated region
        $region41: #{ltsm_conv_forward.1} parent=11 // pred_check
          %p405 = pneg %p230
        $region42: #{ltsm_conv_forward.1} parent=11 // pred_check_branch
          %407 = sbr.rel (%p405) target = $region44
        $region43: #{ltsm_conv_forward.1} parent=11 // pred_region
          _
        $region44: #{ltsm_conv_forward.1} parent=11 // pred_fallthru
          _
        // Predicated region
        $region45: #{ltsm_conv_forward.1} parent=11 // pred_check
          %p408 = pneg %p251
        $region46: #{ltsm_conv_forward.1} parent=11 // pred_check_branch
          %410 = sbr.rel (%p408) target = $region48
        $region47: #{ltsm_conv_forward.1} parent=11 // pred_region
          _
        $region48: #{ltsm_conv_forward.1} parent=11 // pred_fallthru
          _
        // Predicated region
        $region49: #{ltsm_conv_forward.1} parent=11 // pred_check
          %p411 = pneg %p272
        $region50: #{ltsm_conv_forward.1} parent=11 // pred_check_branch
          %413 = sbr.rel (%p411) target = $region52
        $region51: #{ltsm_conv_forward.1} parent=11 // pred_region
          _
        $region52: #{ltsm_conv_forward.1} parent=11 // pred_fallthru
          _
        // Predicated region
        $region53: #{ltsm_conv_forward.1} parent=11 // pred_check
          %p414 = pneg %p293
        $region54: #{ltsm_conv_forward.1} parent=11 // pred_check_branch
          %416 = sbr.rel (%p414) target = $region56
        $region55: #{ltsm_conv_forward.1} parent=11 // pred_region
          _
        $region56: #{ltsm_conv_forward.1} parent=11 // pred_fallthru
          _
        // Predicated region
        $region57: #{ltsm_conv_forward.1} parent=11 // pred_check
          %p417 = pneg %p314
        $region58: #{ltsm_conv_forward.1} parent=11 // pred_check_branch
          %419 = sbr.rel (%p417) target = $region60
        $region59: #{ltsm_conv_forward.1} parent=11 // pred_region
          _
        $region60: #{ltsm_conv_forward.1} parent=11 // pred_fallthru
          _
        // Predicated region
        $region61: #{ltsm_conv_forward.1} parent=11 // pred_check
          %p420 = pneg %p335
        $region62: #{ltsm_conv_forward.1} parent=11 // pred_check_branch
          %422 = sbr.rel (%p420) target = $region64
        $region63: #{ltsm_conv_forward.1} parent=11 // pred_region
          _
        $region64: #{ltsm_conv_forward.1} parent=11 // pred_fallthru
          _
      $region12: #{ltsm_conv_forward.1} parent=5 // pred_fallthru
        _
      %p423 = scmp.lt.s32.totalorder %s22, 7
      // Predicated region
      $region65: #{ltsm_conv_forward.1} parent=5 // pred_check
        %p424 = pneg %p423
      $region66: #{ltsm_conv_forward.1} parent=5 // pred_check_branch
        %426 = sbr.rel (%p424) target = $region68
      $region67: #{ltsm_conv_forward.1} parent=5 // pred_region
        // Predicated region
        $region69: #{ltsm_conv_forward.1} parent=67 // pred_check
          %p427 = pneg %p98
        $region70: #{ltsm_conv_forward.1} parent=67 // pred_check_branch
          %429 = sbr.rel (%p427) target = $region72
        $region71: #{ltsm_conv_forward.1} parent=67 // pred_region
          %s430 = sand.u32 %s88, 1
          %s431 = sand.u32 %s88, 1
          %s432 = smul.addr %s431, 16
          %s433 = scalar_lea.vmem [#allocation7], %s432
          %s434 = smul.u32 2, %s29
          %s435 = smul.u32 2, %s30
          %s436 = smul.addr %s434, 14
          %s437 = sadd.s32 %s435, %s436
          %s438 = smul.addr %s437, 4
          %s439 = scalar_lea.vmem %s2, %s438
          // Predicated region
          $region73: #{ltsm_conv_forward.1} parent=71 // pred_check
            _
          $region74: #{ltsm_conv_forward.1} parent=71 // pred_check_branch
            %441 = sbr.rel (0) target = $region76
          $region75: #{ltsm_conv_forward.1} parent=71 // pred_region
            // Predicated region
            $region77: #{ltsm_conv_forward.1} parent=75 // pred_check
              _
            $region78: #{ltsm_conv_forward.1} parent=75 // pred_check_branch
              %443 = sbr.rel (0) target = $region80
            $region79: #{ltsm_conv_forward.1} parent=75 // pred_region
              // Predicated region
              $region92: #{ltsm_conv_forward.1} parent=79 // pred_check
                _
              $region93: #{ltsm_conv_forward.1} parent=79 // pred_check_branch
                %460 = sbr.rel (0) target = $region95
              $region94: #{ltsm_conv_forward.1} parent=79 // pred_region
                loop: start=0, step=1, limit=1
                $region96: #{ltsm_conv_forward.1} parent=94 // loop_pre_header
                  _
                $region97: #{ltsm_conv_forward.1} parent=94 // loop_header
                  %s462 = sphi 0, %s466
                  %p463 = scmp.ge.s32.totalorder %s462, 1
                  %s467 = sphi %s439, %s439
                  %s468 = sphi %s433, %s433
                $region98: #{ltsm_conv_forward.1} parent=94 // loop_header_branch
                  %465 = sbr.rel (%p463) target = $region102
                $region99: #{ltsm_conv_forward.1} parent=94 // loop_body
                  %v469 = vld [vmem:[%s467] sm:$0xff]
                  %470 = vst [vmem:[%s468] sm:$0xff] %v469
                  %v471 = vld [vmem:[%s467 + $0x38] sm:$0xff]
                  %472 = vst [vmem:[%s468 + $0x8] sm:$0xff] %v471
                $region100: #{ltsm_conv_forward.1} parent=94 // loop_footer
                  %s466 = sadd.s32 1, %s462
                $region101: #{ltsm_conv_forward.1} parent=94 // loop_footer_branch
                  %461 = sbr.rel target = $region97
                $region102: #{ltsm_conv_forward.1} parent=94 // loop_exit
                  _
              $region95: #{ltsm_conv_forward.1} parent=79 // pred_fallthru
                _
              // Predicated region
              $region103: #{ltsm_conv_forward.1} parent=79 // pred_check
                _
              $region104: #{ltsm_conv_forward.1} parent=79 // pred_check_branch
                %474 = sbr.rel target = $region106
              $region105: #{ltsm_conv_forward.1} parent=79 // pred_region
                _
              $region106: #{ltsm_conv_forward.1} parent=79 // pred_fallthru
                _
            $region80: #{ltsm_conv_forward.1} parent=75 // pred_fallthru
              _
            // Predicated region
            $region81: #{ltsm_conv_forward.1} parent=75 // pred_check
              _
            $region82: #{ltsm_conv_forward.1} parent=75 // pred_check_branch
              %445 = sbr.rel target = $region84
            $region83: #{ltsm_conv_forward.1} parent=75 // pred_region
              loop: start=0, step=1, limit=1
              $region85: #{ltsm_conv_forward.1} parent=83 // loop_pre_header
                _
              $region86: #{ltsm_conv_forward.1} parent=83 // loop_header
                %s448 = sphi 0, %s452
                %p449 = scmp.ge.s32.totalorder %s448, 1
                %s453 = sphi %s439, %s439
                %s454 = sphi %s433, %s433
              $region87: #{ltsm_conv_forward.1} parent=83 // loop_header_branch
                %451 = sbr.rel (%p449) target = $region91
              $region88: #{ltsm_conv_forward.1} parent=83 // loop_body
                %v455 = vld [vmem:[%s453] sm:$0xff]
                %456 = vst [vmem:[%s454] sm:$0xff] %v455
                %v457 = vld [vmem:[%s453 + $0x38] sm:$0xff]
                %458 = vst [vmem:[%s454 + $0x8] sm:$0xff] %v457
              $region89: #{ltsm_conv_forward.1} parent=83 // loop_footer
                %s452 = sadd.s32 1, %s448
              $region90: #{ltsm_conv_forward.1} parent=83 // loop_footer_branch
                %447 = sbr.rel target = $region86
              $region91: #{ltsm_conv_forward.1} parent=83 // loop_exit
                _
            $region84: #{ltsm_conv_forward.1} parent=75 // pred_fallthru
              _
          $region76: #{ltsm_conv_forward.1} parent=71 // pred_fallthru
            _
          %475 = vnop
        $region72: #{ltsm_conv_forward.1} parent=67 // pred_fallthru
          _
      $region68: #{ltsm_conv_forward.1} parent=5 // pred_fallthru
        _
      %p476 = scmp.le.s32.totalorder 1, %s22
      %p477 = scmp.lt.s32.totalorder %s22, 8
      %p478 = pnand %p476, %p477
      %p479 = pneg %p478
      // Predicated region
      $region107: #{ltsm_conv_forward.1} parent=5 // pred_check
        _
      $region108: #{ltsm_conv_forward.1} parent=5 // pred_check_branch
        %481 = sbr.rel (%p478) target = $region110
      $region109: #{ltsm_conv_forward.1} parent=5 // pred_region
        %s482 = ssub.s32 %s22, 1
        // Predicated region
        $region111: #{ltsm_conv_forward.1} parent=109 // pred_check
          %p483 = pneg %p55
        $region112: #{ltsm_conv_forward.1} parent=109 // pred_check_branch
          %485 = sbr.rel (%p483) target = $region114
        $region113: #{ltsm_conv_forward.1} parent=109 // pred_region
          %486 = dma.done [#allocation6], 16
        $region114: #{ltsm_conv_forward.1} parent=109 // pred_fallthru
          _
        %s487 = sand.u32 %s91, 1
        %s488 = sand.u32 %s91, 1
        %s489 = smul.addr %s488, 16
        %s490 = scalar_lea.vmem [#allocation7], %s489
        // Predicated region
        $region115: #{ltsm_conv_forward.1} parent=109 // pred_check
          %p491 = pneg %p104
        $region116: #{ltsm_conv_forward.1} parent=109 // pred_check_branch
          %493 = sbr.rel (%p491) target = $region118
        $region117: #{ltsm_conv_forward.1} parent=109 // pred_region
          _
        $region118: #{ltsm_conv_forward.1} parent=109 // pred_fallthru
          _
        %494 = sfence
        %p495 = pneg %p55
        %p496 = pneg %p52
        %p497 = pneg %p76
        %p498 = pneg %p73
        %s499 = sand.u32 %s91, 1
        %s500 = sand.u32 %s91, 1
        %s501 = smul.addr %s500, 16
        %s502 = scalar_lea.vmem [#allocation7], %s501
        %p503 = pneg %p104
        %p504 = pneg %p101
        %p505 = pneg %p125
        %p506 = pneg %p122
        %p507 = pneg %p146
        %p508 = pneg %p143
        %p509 = pneg %p167
        %p510 = pneg %p164
        %p511 = pneg %p188
        %p512 = pneg %p185
        %p513 = pneg %p209
        %p514 = pneg %p206
        %p515 = pneg %p230
        %p516 = pneg %p227
        %p517 = pneg %p251
        %p518 = pneg %p248
        %p519 = pneg %p272
        %p520 = pneg %p269
        %p521 = pneg %p293
        %p522 = pneg %p290
        %p523 = pneg %p314
        %p524 = pneg %p311
        %p525 = pneg %p335
        %p526 = pneg %p332
        %p527 = pneg %p361
        %p528 = pneg %p358
        %s529 = smul.u32 2, %s31
        %p530 = scmp.lt.s32.totalorder %s529, 1
        %s531 = scalar_select %p530, %s529, 1
        %s532 = smul.addr %s531, 8
        %s533 = scalar_lea.vmem %s14, %s532
        %s534 = smul.u32 2, %s31
        %s535 = smul.u32 2, %s32
        %s536 = smul.u32 2, %s31
        %p537 = scmp.lt.s32.totalorder %s536, 1
        %s538 = scalar_select %p537, %s536, 1
        %s539 = smul.addr %s538, 8
        %s540 = scalar_lea.vmem %s14, %s539
        %s541 = smul.u32 2, %s31
        %p543 = scmp.eq.s32.totalorder %s32, 0
        // Predicated region
        $region119: #{ltsm_conv_forward.1} parent=109 // pred_check
          %p544 = pneg %p543
        $region120: #{ltsm_conv_forward.1} parent=109 // pred_check_branch
          %546 = sbr.rel (%p544) target = $region122
        $region121: #{ltsm_conv_forward.1} parent=109 // pred_region
          %547 = vst [vmem:[#allocation2] sm:$0xff] 0.0
          %548 = vst [vmem:[#allocation2 + $0x8] sm:$0xff] 0.0
          %549 = vst [vmem:[#allocation2 + $0x10] sm:$0xff] 0.0
          %550 = vst [vmem:[#allocation2 + $0x18] sm:$0xff] 0.0
          %551 = vst [vmem:[#allocation2 + $0x20] sm:$0xff] 0.0
          %552 = vst [vmem:[#allocation2 + $0x28] sm:$0xff] 0.0
          %553 = vst [vmem:[#allocation2 + $0x30] sm:$0xff] 0.0
          %554 = vst [vmem:[#allocation2 + $0x38] sm:$0xff] 0.0
        $region122: #{ltsm_conv_forward.1} parent=109 // pred_fallthru
          _
        %v555 = vld [vmem:[%s490] sm:$0xff]
        %v556 = vld [vmem:[%s490 + $0x8] sm:$0xff]
        %v557 = vld [vmem:[%s3] sm:$0xff]
        %v558 = vld [vmem:[%s3 + $0x8] sm:$0xff]
        %v559 = vld [vmem:[%s3 + $0x10] sm:$0xff]
        %v560 = vld [vmem:[%s3 + $0x18] sm:$0xff]
        %v561 = vld [vmem:[%s3 + $0x20] sm:$0xff]
        %v562 = vld [vmem:[%s3 + $0x28] sm:$0xff]
        %v563 = vld [vmem:[%s3 + $0x30] sm:$0xff]
        %v564 = vld [vmem:[%s3 + $0x38] sm:$0xff]
        %v565 = vld [vmem:[%s3 + $0x40] sm:$0xff]
        %v566 = vld [vmem:[%s3 + $0x48] sm:$0xff]
        %v567 = vld [vmem:[%s3 + $0x50] sm:$0xff]
        %v568 = vld [vmem:[%s3 + $0x58] sm:$0xff]
        %v569 = vld [vmem:[%s3 + $0x60] sm:$0xff]
        %v570 = vld [vmem:[%s3 + $0x68] sm:$0xff]
        %v571 = vld [vmem:[%s3 + $0x70] sm:$0xff]
        %v572 = vld [vmem:[%s3 + $0x78] sm:$0xff]
        %v573 = vld [vmem:[%s3 + $0x80] sm:$0xff]
        %v574 = vld [vmem:[%s3 + $0x88] sm:$0xff]
        %v575 = vld [vmem:[%s3 + $0x90] sm:$0xff]
        %v576 = vld [vmem:[%s3 + $0x98] sm:$0xff]
        %v577 = vld [vmem:[%s3 + $0xa0] sm:$0xff]
        %v578 = vld [vmem:[%s3 + $0xa8] sm:$0xff]
        %v579 = vld [vmem:[%s3 + $0xb0] sm:$0xff]
        %v580 = vld [vmem:[%s3 + $0xb8] sm:$0xff]
        %v581 = vld [vmem:[%s3 + $0xc0] sm:$0xff]
        %v582 = vld [vmem:[%s3 + $0xc8] sm:$0xff]
        %v583 = vld [vmem:[%s3 + $0xd0] sm:$0xff]
        %v584 = vld [vmem:[%s3 + $0xd8] sm:$0xff]
        %v585 = vld [vmem:[%s3 + $0xe0] sm:$0xff]
        %v586 = vld [vmem:[%s3 + $0xe8] sm:$0xff]
        %v587 = vld [vmem:[%s3 + $0xf0] sm:$0xff]
        %v588 = vld [vmem:[%s3 + $0xf8] sm:$0xff]
        %v589 = vld [vmem:[%s3 + $0x100] sm:$0xff]
        %v590 = vld [vmem:[%s3 + $0x108] sm:$0xff]
        %v591 = vld [vmem:[%s3 + $0x110] sm:$0xff]
        %v592 = vld [vmem:[%s3 + $0x118] sm:$0xff]
        %v593 = vld [vmem:[%s3 + $0x120] sm:$0xff]
        %v594 = vld [vmem:[%s3 + $0x128] sm:$0xff]
        %v595 = vld [vmem:[%s3 + $0x130] sm:$0xff]
        %v596 = vld [vmem:[%s3 + $0x138] sm:$0xff]
        %v597 = vld [vmem:[%s3 + $0x140] sm:$0xff]
        %v598 = vld [vmem:[%s3 + $0x148] sm:$0xff]
        %v599 = vld [vmem:[%s3 + $0x150] sm:$0xff]
        %v600 = vld [vmem:[%s3 + $0x158] sm:$0xff]
        %v601 = vld [vmem:[%s3 + $0x160] sm:$0xff]
        %v602 = vld [vmem:[%s3 + $0x168] sm:$0xff]
        %v603 = vld [vmem:[%s3 + $0x170] sm:$0xff]
        %v604 = vld [vmem:[%s3 + $0x178] sm:$0xff]
        %v605 = vld [vmem:[%s3 + $0x180] sm:$0xff]
        %v606 = vld [vmem:[%s3 + $0x188] sm:$0xff]
        %v607 = vld [vmem:[%s3 + $0x190] sm:$0xff]
        %v608 = vld [vmem:[%s3 + $0x198] sm:$0xff]
        %v609 = vld [vmem:[%s3 + $0x1a0] sm:$0xff]
        %v610 = vld [vmem:[%s3 + $0x1a8] sm:$0xff]
        %v611 = vld [vmem:[%s3 + $0x1b0] sm:$0xff]
        %v612 = vld [vmem:[%s3 + $0x1b8] sm:$0xff]
        %v613 = vld [vmem:[%s3 + $0x1c0] sm:$0xff]
        %v614 = vld [vmem:[%s3 + $0x1c8] sm:$0xff]
        %v615 = vld [vmem:[%s3 + $0x1d0] sm:$0xff]
        %v616 = vld [vmem:[%s3 + $0x1d8] sm:$0xff]
        %v617 = vld [vmem:[%s3 + $0x1e0] sm:$0xff]
        %v618 = vld [vmem:[%s3 + $0x1e8] sm:$0xff]
        %v619 = vld [vmem:[%s3 + $0x1f0] sm:$0xff]
        %v620 = vld [vmem:[%s3 + $0x1f8] sm:$0xff]
        %v621 = vld [vmem:[%s4] sm:$0xf]
        %v623 = vlaneseq
        %v624 = vshrl.u32 %v623, 7
        %v625 = vsub.s32 0, %v624
        %v626 = vrot.slane %v621, %v625
        %v627 = vlaneseq
        %v628 = vshrl.u32 %v627, 7
        %v629 = vsub.s32 1, %v628
        %v630 = vrot.slane %v621, %v629
        %v631 = vlaneseq
        %v632 = vshrl.u32 %v631, 7
        %v633 = vsub.s32 2, %v632
        %v634 = vrot.slane %v621, %v633
        %v635 = vlaneseq
        %v636 = vshrl.u32 %v635, 7
        %v637 = vsub.s32 3, %v636
        %v638 = vrot.slane %v621, %v637
        %v645 = vunpack.c.l.b16 %v555
        %v646 = vunpack.c.h.b16 %v555
        %v647 = vunpack.c.l.b16 %v556
        %v648 = vunpack.c.h.b16 %v556
        %v649 = vpack.c.b16 %v647, %v645
        %v650 = vpack.c.b16 %v648, %v646
        %v717 = vunpack.c.l.b16 %v557
        %v718 = vunpack.c.h.b16 %v557
        %v719 = vunpack.c.l.b16 %v558
        %v720 = vunpack.c.h.b16 %v558
        %v721 = vunpack.c.l.b16 %v559
        %v722 = vunpack.c.h.b16 %v559
        %v723 = vunpack.c.l.b16 %v560
        %v724 = vunpack.c.h.b16 %v560
        %v725 = vunpack.c.l.b16 %v561
        %v726 = vunpack.c.h.b16 %v561
        %v727 = vunpack.c.l.b16 %v562
        %v728 = vunpack.c.h.b16 %v562
        %v729 = vunpack.c.l.b16 %v563
        %v730 = vunpack.c.h.b16 %v563
        %v731 = vunpack.c.l.b16 %v564
        %v732 = vunpack.c.h.b16 %v564
        %v733 = vunpack.c.l.b16 %v565
        %v734 = vunpack.c.h.b16 %v565
        %v735 = vunpack.c.l.b16 %v566
        %v736 = vunpack.c.h.b16 %v566
        %v737 = vunpack.c.l.b16 %v567
        %v738 = vunpack.c.h.b16 %v567
        %v739 = vunpack.c.l.b16 %v568
        %v740 = vunpack.c.h.b16 %v568
        %v741 = vunpack.c.l.b16 %v569
        %v742 = vunpack.c.h.b16 %v569
        %v743 = vunpack.c.l.b16 %v570
        %v744 = vunpack.c.h.b16 %v570
        %v745 = vunpack.c.l.b16 %v571
        %v746 = vunpack.c.h.b16 %v571
        %v747 = vunpack.c.l.b16 %v572
        %v748 = vunpack.c.h.b16 %v572
        %v749 = vunpack.c.l.b16 %v573
        %v750 = vunpack.c.h.b16 %v573
        %v751 = vunpack.c.l.b16 %v574
        %v752 = vunpack.c.h.b16 %v574
        %v753 = vunpack.c.l.b16 %v575
        %v754 = vunpack.c.h.b16 %v575
        %v755 = vunpack.c.l.b16 %v576
        %v756 = vunpack.c.h.b16 %v576
        %v757 = vunpack.c.l.b16 %v577
        %v758 = vunpack.c.h.b16 %v577
        %v759 = vunpack.c.l.b16 %v578
        %v760 = vunpack.c.h.b16 %v578
        %v761 = vunpack.c.l.b16 %v579
        %v762 = vunpack.c.h.b16 %v579
        %v763 = vunpack.c.l.b16 %v580
        %v764 = vunpack.c.h.b16 %v580
        %v765 = vunpack.c.l.b16 %v581
        %v766 = vunpack.c.h.b16 %v581
        %v767 = vunpack.c.l.b16 %v582
        %v768 = vunpack.c.h.b16 %v582
        %v769 = vunpack.c.l.b16 %v583
        %v770 = vunpack.c.h.b16 %v583
        %v771 = vunpack.c.l.b16 %v584
        %v772 = vunpack.c.h.b16 %v584
        %v773 = vunpack.c.l.b16 %v585
        %v774 = vunpack.c.h.b16 %v585
        %v775 = vunpack.c.l.b16 %v586
        %v776 = vunpack.c.h.b16 %v586
        %v777 = vunpack.c.l.b16 %v587
        %v778 = vunpack.c.h.b16 %v587
        %v779 = vunpack.c.l.b16 %v588
        %v780 = vunpack.c.h.b16 %v588
        %v781 = vunpack.c.l.b16 %v589
        %v782 = vunpack.c.h.b16 %v589
        %v783 = vunpack.c.l.b16 %v590
        %v784 = vunpack.c.h.b16 %v590
        %v785 = vunpack.c.l.b16 %v591
        %v786 = vunpack.c.h.b16 %v591
        %v787 = vunpack.c.l.b16 %v592
        %v788 = vunpack.c.h.b16 %v592
        %v789 = vunpack.c.l.b16 %v593
        %v790 = vunpack.c.h.b16 %v593
        %v791 = vunpack.c.l.b16 %v594
        %v792 = vunpack.c.h.b16 %v594
        %v793 = vunpack.c.l.b16 %v595
        %v794 = vunpack.c.h.b16 %v595
        %v795 = vunpack.c.l.b16 %v596
        %v796 = vunpack.c.h.b16 %v596
        %v797 = vunpack.c.l.b16 %v597
        %v798 = vunpack.c.h.b16 %v597
        %v799 = vunpack.c.l.b16 %v598
        %v800 = vunpack.c.h.b16 %v598
        %v801 = vunpack.c.l.b16 %v599
        %v802 = vunpack.c.h.b16 %v599
        %v803 = vunpack.c.l.b16 %v600
        %v804 = vunpack.c.h.b16 %v600
        %v805 = vunpack.c.l.b16 %v601
        %v806 = vunpack.c.h.b16 %v601
        %v807 = vunpack.c.l.b16 %v602
        %v808 = vunpack.c.h.b16 %v602
        %v809 = vunpack.c.l.b16 %v603
        %v810 = vunpack.c.h.b16 %v603
        %v811 = vunpack.c.l.b16 %v604
        %v812 = vunpack.c.h.b16 %v604
        %v813 = vunpack.c.l.b16 %v605
        %v814 = vunpack.c.h.b16 %v605
        %v815 = vunpack.c.l.b16 %v606
        %v816 = vunpack.c.h.b16 %v606
        %v817 = vunpack.c.l.b16 %v607
        %v818 = vunpack.c.h.b16 %v607
        %v819 = vunpack.c.l.b16 %v608
        %v820 = vunpack.c.h.b16 %v608
        %v821 = vunpack.c.l.b16 %v609
        %v822 = vunpack.c.h.b16 %v609
        %v823 = vunpack.c.l.b16 %v610
        %v824 = vunpack.c.h.b16 %v610
        %v825 = vunpack.c.l.b16 %v611
        %v826 = vunpack.c.h.b16 %v611
        %v827 = vunpack.c.l.b16 %v612
        %v828 = vunpack.c.h.b16 %v612
        %v829 = vunpack.c.l.b16 %v613
        %v830 = vunpack.c.h.b16 %v613
        %v831 = vunpack.c.l.b16 %v614
        %v832 = vunpack.c.h.b16 %v614
        %v833 = vunpack.c.l.b16 %v615
        %v834 = vunpack.c.h.b16 %v615
        %v835 = vunpack.c.l.b16 %v616
        %v836 = vunpack.c.h.b16 %v616
        %v837 = vunpack.c.l.b16 %v617
        %v838 = vunpack.c.h.b16 %v617
        %v839 = vunpack.c.l.b16 %v618
        %v840 = vunpack.c.h.b16 %v618
        %v841 = vunpack.c.l.b16 %v619
        %v842 = vunpack.c.h.b16 %v619
        %v843 = vunpack.c.l.b16 %v620
        %v844 = vunpack.c.h.b16 %v620
        %v845 = vpack.c.b16 %v721, %v717
        %v846 = vpack.c.b16 %v722, %v718
        %v847 = vpack.c.b16 %v723, %v719
        %v848 = vpack.c.b16 %v724, %v720
        %v849 = vpack.c.b16 %v729, %v725
        %v850 = vpack.c.b16 %v730, %v726
        %v851 = vpack.c.b16 %v731, %v727
        %v852 = vpack.c.b16 %v732, %v728
        %v853 = vpack.c.b16 %v737, %v733
        %v854 = vpack.c.b16 %v738, %v734
        %v855 = vpack.c.b16 %v739, %v735
        %v856 = vpack.c.b16 %v740, %v736
        %v857 = vpack.c.b16 %v745, %v741
        %v858 = vpack.c.b16 %v746, %v742
        %v859 = vpack.c.b16 %v747, %v743
        %v860 = vpack.c.b16 %v748, %v744
        %v861 = vpack.c.b16 %v753, %v749
        %v862 = vpack.c.b16 %v754, %v750
        %v863 = vpack.c.b16 %v755, %v751
        %v864 = vpack.c.b16 %v756, %v752
        %v865 = vpack.c.b16 %v761, %v757
        %v866 = vpack.c.b16 %v762, %v758
        %v867 = vpack.c.b16 %v763, %v759
        %v868 = vpack.c.b16 %v764, %v760
        %v869 = vpack.c.b16 %v769, %v765
        %v870 = vpack.c.b16 %v770, %v766
        %v871 = vpack.c.b16 %v771, %v767
        %v872 = vpack.c.b16 %v772, %v768
        %v873 = vpack.c.b16 %v777, %v773
        %v874 = vpack.c.b16 %v778, %v774
        %v875 = vpack.c.b16 %v779, %v775
        %v876 = vpack.c.b16 %v780, %v776
        %v877 = vpack.c.b16 %v785, %v781
        %v878 = vpack.c.b16 %v786, %v782
        %v879 = vpack.c.b16 %v787, %v783
        %v880 = vpack.c.b16 %v788, %v784
        %v881 = vpack.c.b16 %v793, %v789
        %v882 = vpack.c.b16 %v794, %v790
        %v883 = vpack.c.b16 %v795, %v791
        %v884 = vpack.c.b16 %v796, %v792
        %v885 = vpack.c.b16 %v801, %v797
        %v886 = vpack.c.b16 %v802, %v798
        %v887 = vpack.c.b16 %v803, %v799
        %v888 = vpack.c.b16 %v804, %v800
        %v889 = vpack.c.b16 %v809, %v805
        %v890 = vpack.c.b16 %v810, %v806
        %v891 = vpack.c.b16 %v811, %v807
        %v892 = vpack.c.b16 %v812, %v808
        %v893 = vpack.c.b16 %v817, %v813
        %v894 = vpack.c.b16 %v818, %v814
        %v895 = vpack.c.b16 %v819, %v815
        %v896 = vpack.c.b16 %v820, %v816
        %v897 = vpack.c.b16 %v825, %v821
        %v898 = vpack.c.b16 %v826, %v822
        %v899 = vpack.c.b16 %v827, %v823
        %v900 = vpack.c.b16 %v828, %v824
        %v901 = vpack.c.b16 %v833, %v829
        %v902 = vpack.c.b16 %v834, %v830
        %v903 = vpack.c.b16 %v835, %v831
        %v904 = vpack.c.b16 %v836, %v832
        %v905 = vpack.c.b16 %v841, %v837
        %v906 = vpack.c.b16 %v842, %v838
        %v907 = vpack.c.b16 %v843, %v839
        %v908 = vpack.c.b16 %v844, %v840
        %973 = vmatprep.subr.bf16.mxu0 %v846
        %974 = vmatpush1.bf16.msra.mxu0 %v845
        %975 = vmatprep.subr.bf16.mxu0 %v850
        %976 = vmatpush1.bf16.msra.mxu0 %v849
        %977 = vmatprep.subr.bf16.mxu0 %v854
        %978 = vmatpush1.bf16.msra.mxu0 %v853
        %979 = vmatprep.subr.bf16.mxu0 %v858
        %980 = vmatpush1.bf16.msra.mxu0 %v857
        %981 = vmatprep.subr.bf16.mxu0 %v862
        %982 = vmatpush1.bf16.msra.mxu0 %v861
        %983 = vmatprep.subr.bf16.mxu0 %v866
        %984 = vmatpush1.bf16.msra.mxu0 %v865
        %985 = vmatprep.subr.bf16.mxu0 %v870
        %986 = vmatpush1.bf16.msra.mxu0 %v869
        %987 = vmatprep.subr.bf16.mxu0 %v874
        %988 = vmatpush1.bf16.msra.mxu0 %v873
        %989 = vmatprep.subr.bf16.mxu0 %v878
        %990 = vmatpush1.bf16.msra.mxu0 %v877
        %991 = vmatprep.subr.bf16.mxu0 %v882
        %992 = vmatpush1.bf16.msra.mxu0 %v881
        %993 = vmatprep.subr.bf16.mxu0 %v886
        %994 = vmatpush1.bf16.msra.mxu0 %v885
        %995 = vmatprep.subr.bf16.mxu0 %v890
        %996 = vmatpush1.bf16.msra.mxu0 %v889
        %997 = vmatprep.subr.bf16.mxu0 %v894
        %998 = vmatpush1.bf16.msra.mxu0 %v893
        %999 = vmatprep.subr.bf16.mxu0 %v898
        %1000 = vmatpush1.bf16.msra.mxu0 %v897
        %1001 = vmatprep.subr.bf16.mxu0 %v902
        %1002 = vmatpush1.bf16.msra.mxu0 %v901
        %1003 = vmatprep.subr.bf16.mxu0 %v906
        %1004 = vmatpush1.bf16.msra.mxu0 %v905
        %1005 = vmatprep.mubr.bf16.mxu0 %v650
        %1006 = vmatmul.mubr.bf16.gmra.mrb[0].mxu0 %v649
        %v1007 = vpop.f32.mrb[0].mxu0
        %v1008 = vadd.f32 %v626, %v1007
        %v1009 = vpop.f32.mrb[0].mxu0
        %v1010 = vadd.f32 %v630, %v1009
        %v1011 = vpop.f32.mrb[0].mxu0
        %v1012 = vadd.f32 %v626, %v1011
        %v1013 = vpop.f32.mrb[0].mxu0
        %v1014 = vadd.f32 %v630, %v1013
        %1015 = vdwg.mxu0
        %1016 = vmatprep.subr.bf16.mxu0 %v848
        %1017 = vmatpush1.bf16.msra.mxu0 %v847
        %1018 = vmatprep.subr.bf16.mxu0 %v852
        %1019 = vmatpush1.bf16.msra.mxu0 %v851
        %1020 = vmatprep.subr.bf16.mxu0 %v856
        %1021 = vmatpush1.bf16.msra.mxu0 %v855
        %1022 = vmatprep.subr.bf16.mxu0 %v860
        %1023 = vmatpush1.bf16.msra.mxu0 %v859
        %1024 = vmatprep.subr.bf16.mxu0 %v864
        %1025 = vmatpush1.bf16.msra.mxu0 %v863
        %1026 = vmatprep.subr.bf16.mxu0 %v868
        %1027 = vmatpush1.bf16.msra.mxu0 %v867
        %1028 = vmatprep.subr.bf16.mxu0 %v872
        %1029 = vmatpush1.bf16.msra.mxu0 %v871
        %1030 = vmatprep.subr.bf16.mxu0 %v876
        %1031 = vmatpush1.bf16.msra.mxu0 %v875
        %1032 = vmatprep.subr.bf16.mxu0 %v880
        %1033 = vmatpush1.bf16.msra.mxu0 %v879
        %1034 = vmatprep.subr.bf16.mxu0 %v884
        %1035 = vmatpush1.bf16.msra.mxu0 %v883
        %1036 = vmatprep.subr.bf16.mxu0 %v888
        %1037 = vmatpush1.bf16.msra.mxu0 %v887
        %1038 = vmatprep.subr.bf16.mxu0 %v892
        %1039 = vmatpush1.bf16.msra.mxu0 %v891
        %1040 = vmatprep.subr.bf16.mxu0 %v896
        %1041 = vmatpush1.bf16.msra.mxu0 %v895
        %1042 = vmatprep.subr.bf16.mxu0 %v900
        %1043 = vmatpush1.bf16.msra.mxu0 %v899
        %1044 = vmatprep.subr.bf16.mxu0 %v904
        %1045 = vmatpush1.bf16.msra.mxu0 %v903
        %1046 = vmatprep.subr.bf16.mxu0 %v908
        %1047 = vmatpush1.bf16.msra.mxu0 %v907
        %1048 = vmatprep.mubr.bf16.mxu0 %v650
        %1049 = vmatmul.mubr.bf16.gmra.mrb[0].mxu0 %v649
        %v1050 = vpop.f32.mrb[0].mxu0
        %v1051 = vadd.f32 %v634, %v1050
        %v1052 = vpop.f32.mrb[0].mxu0
        %v1053 = vadd.f32 %v638, %v1052
        %v1054 = vpop.f32.mrb[0].mxu0
        %v1055 = vadd.f32 %v634, %v1054
        %v1056 = vpop.f32.mrb[0].mxu0
        %v1057 = vadd.f32 %v638, %v1056
        %1058 = vdwg.mxu0
        %v1059 = vmax.f32 %v1008, 0.0
        %v1060 = vmax.f32 %v1010, 0.0
        %v1061 = vmax.f32 %v1051, 0.0
        %v1062 = vmax.f32 %v1053, 0.0
        %v1063 = vmax.f32 %v1012, 0.0
        %v1064 = vmax.f32 %v1014, 0.0
        %v1065 = vmax.f32 %v1055, 0.0
        %v1066 = vmax.f32 %v1057, 0.0
        %v1067 = vld [vmem:[#allocation2] sm:$0xff]
        %v1068 = vld [vmem:[#allocation2 + $0x8] sm:$0xff]
        %v1069 = vld [vmem:[#allocation2 + $0x10] sm:$0xff]
        %v1070 = vld [vmem:[#allocation2 + $0x18] sm:$0xff]
        %v1071 = vld [vmem:[#allocation2 + $0x20] sm:$0xff]
        %v1072 = vld [vmem:[#allocation2 + $0x28] sm:$0xff]
        %v1073 = vld [vmem:[#allocation2 + $0x30] sm:$0xff]
        %v1074 = vld [vmem:[#allocation2 + $0x38] sm:$0xff]
        %s1075 = sld [smem:[#allocation5 + %s32]]
        %v1076 = vstv %s1075
        %v1077 = vmul.f32 %v1076, %v1059
        %v1078 = vmul.f32 %v1076, %v1060
        %v1079 = vmul.f32 %v1076, %v1061
        %v1080 = vmul.f32 %v1076, %v1062
        %v1081 = vmul.f32 %v1076, %v1063
        %v1082 = vmul.f32 %v1076, %v1064
        %v1083 = vmul.f32 %v1076, %v1065
        %v1084 = vmul.f32 %v1076, %v1066
        %v1085 = vadd.f32 %v1067, %v1077
        %v1086 = vadd.f32 %v1068, %v1078
        %v1087 = vadd.f32 %v1069, %v1079
        %v1088 = vadd.f32 %v1070, %v1080
        %v1089 = vadd.f32 %v1071, %v1081
        %v1090 = vadd.f32 %v1072, %v1082
        %v1091 = vadd.f32 %v1073, %v1083
        %v1092 = vadd.f32 %v1074, %v1084
        %1093 = vst [vmem:[#allocation2] sm:$0xff] %v1085
        %1094 = vst [vmem:[#allocation2 + $0x8] sm:$0xff] %v1086
        %1095 = vst [vmem:[#allocation2 + $0x10] sm:$0xff] %v1087
        %1096 = vst [vmem:[#allocation2 + $0x18] sm:$0xff] %v1088
        %1097 = vst [vmem:[#allocation2 + $0x20] sm:$0xff] %v1089
        %1098 = vst [vmem:[#allocation2 + $0x28] sm:$0xff] %v1090
        %1099 = vst [vmem:[#allocation2 + $0x30] sm:$0xff] %v1091
        %1100 = vst [vmem:[#allocation2 + $0x38] sm:$0xff] %v1092
        %v1101 = vpack.c.bf16 %v1063, %v1059
        %v1102 = vpack.c.bf16 %v1064, %v1060
        %v1103 = vpack.c.bf16 %v1065, %v1061
        %v1104 = vpack.c.bf16 %v1066, %v1062
        %v1105 = vld [vmem:[%s5] sm:$0xff]
        %v1106 = vld [vmem:[%s5 + $0x8] sm:$0xf]
        %v1107 = vld [vmem:[%s5 + $0xc] sm:$0xff]
        %v1108 = vld [vmem:[%s5 + $0x14] sm:$0xf]
        %v1109 = vld [vmem:[%s5 + $0x18] sm:$0xff]
        %v1110 = vld [vmem:[%s5 + $0x20] sm:$0xf]
        %v1111 = vld [vmem:[%s5 + $0x24] sm:$0xff]
        %v1112 = vld [vmem:[%s5 + $0x2c] sm:$0xf]
        %v1113 = vld [vmem:[%s5 + $0x30] sm:$0xff]
        %v1114 = vld [vmem:[%s5 + $0x38] sm:$0xf]
        %v1115 = vld [vmem:[%s5 + $0x3c] sm:$0xff]
        %v1116 = vld [vmem:[%s5 + $0x44] sm:$0xf]
        %v1117 = vld [vmem:[%s5 + $0x48] sm:$0xff]
        %v1118 = vld [vmem:[%s5 + $0x50] sm:$0xf]
        %v1119 = vld [vmem:[%s5 + $0x54] sm:$0xff]
        %v1120 = vld [vmem:[%s5 + $0x5c] sm:$0xf]
        %v1121 = vld [vmem:[%s5 + $0x60] sm:$0xff]
        %v1122 = vld [vmem:[%s5 + $0x68] sm:$0xf]
        %v1123 = vld [vmem:[%s5 + $0x6c] sm:$0xff]
        %v1124 = vld [vmem:[%s5 + $0x74] sm:$0xf]
        %v1125 = vld [vmem:[%s5 + $0x78] sm:$0xff]
        %v1126 = vld [vmem:[%s5 + $0x80] sm:$0xf]
        %v1127 = vld [vmem:[%s5 + $0x84] sm:$0xff]
        %v1128 = vld [vmem:[%s5 + $0x8c] sm:$0xf]
        %v1129 = vld [vmem:[%s5 + $0x90] sm:$0xff]
        %v1130 = vld [vmem:[%s5 + $0x98] sm:$0xf]
        %v1131 = vld [vmem:[%s5 + $0x9c] sm:$0xff]
        %v1132 = vld [vmem:[%s5 + $0xa4] sm:$0xf]
        %v1133 = vld [vmem:[%s5 + $0xa8] sm:$0xff]
        %v1134 = vld [vmem:[%s5 + $0xb0] sm:$0xf]
        %v1135 = vld [vmem:[%s5 + $0xb4] sm:$0xff]
        %v1136 = vld [vmem:[%s5 + $0xbc] sm:$0xf]
        %v1137 = vld [vmem:[%s5 + $0xc0] sm:$0xff]
        %v1138 = vld [vmem:[%s5 + $0xc8] sm:$0xf]
        %v1139 = vld [vmem:[%s5 + $0xcc] sm:$0xff]
        %v1140 = vld [vmem:[%s5 + $0xd4] sm:$0xf]
        %v1141 = vld [vmem:[%s5 + $0xd8] sm:$0xff]
        %v1142 = vld [vmem:[%s5 + $0xe0] sm:$0xf]
        %v1143 = vld [vmem:[%s5 + $0xe4] sm:$0xff]
        %v1144 = vld [vmem:[%s5 + $0xec] sm:$0xf]
        %v1145 = vld [vmem:[%s5 + $0xf0] sm:$0xff]
        %v1146 = vld [vmem:[%s5 + $0xf8] sm:$0xf]
        %v1147 = vld [vmem:[%s5 + $0xfc] sm:$0xff]
        %v1148 = vld [vmem:[%s5 + $0x104] sm:$0xf]
        %v1149 = vld [vmem:[%s5 + $0x108] sm:$0xff]
        %v1150 = vld [vmem:[%s5 + $0x110] sm:$0xf]
        %v1151 = vld [vmem:[%s5 + $0x114] sm:$0xff]
        %v1152 = vld [vmem:[%s5 + $0x11c] sm:$0xf]
        %v1153 = vld [vmem:[%s5 + $0x120] sm:$0xff]
        %v1154 = vld [vmem:[%s5 + $0x128] sm:$0xf]
        %v1155 = vld [vmem:[%s5 + $0x12c] sm:$0xff]
        %v1156 = vld [vmem:[%s5 + $0x134] sm:$0xf]
        %v1157 = vld [vmem:[%s5 + $0x138] sm:$0xff]
        %v1158 = vld [vmem:[%s5 + $0x140] sm:$0xf]
        %v1159 = vld [vmem:[%s5 + $0x144] sm:$0xff]
        %v1160 = vld [vmem:[%s5 + $0x14c] sm:$0xf]
        %v1161 = vld [vmem:[%s5 + $0x150] sm:$0xff]
        %v1162 = vld [vmem:[%s5 + $0x158] sm:$0xf]
        %v1163 = vld [vmem:[%s5 + $0x15c] sm:$0xff]
        %v1164 = vld [vmem:[%s5 + $0x164] sm:$0xf]
        %v1165 = vld [vmem:[%s5 + $0x168] sm:$0xff]
        %v1166 = vld [vmem:[%s5 + $0x170] sm:$0xf]
        %v1167 = vld [vmem:[%s5 + $0x174] sm:$0xff]
        %v1168 = vld [vmem:[%s5 + $0x17c] sm:$0xf]
        %v1169 = vld [vmem:[%s5 + $0x180] sm:$0xff]
        %v1170 = vld [vmem:[%s5 + $0x188] sm:$0xf]
        %v1171 = vld [vmem:[%s5 + $0x18c] sm:$0xff]
        %v1172 = vld [vmem:[%s5 + $0x194] sm:$0xf]
        %v1173 = vld [vmem:[%s5 + $0x198] sm:$0xff]
        %v1174 = vld [vmem:[%s5 + $0x1a0] sm:$0xf]
        %v1175 = vld [vmem:[%s5 + $0x1a4] sm:$0xff]
        %v1176 = vld [vmem:[%s5 + $0x1ac] sm:$0xf]
        %v1177 = vld [vmem:[%s5 + $0x1b0] sm:$0xff]
        %v1178 = vld [vmem:[%s5 + $0x1b8] sm:$0xf]
        %v1179 = vld [vmem:[%s5 + $0x1bc] sm:$0xff]
        %v1180 = vld [vmem:[%s5 + $0x1c4] sm:$0xf]
        %v1181 = vld [vmem:[%s5 + $0x1c8] sm:$0xff]
        %v1182 = vld [vmem:[%s5 + $0x1d0] sm:$0xf]
        %v1183 = vld [vmem:[%s5 + $0x1d4] sm:$0xff]
        %v1184 = vld [vmem:[%s5 + $0x1dc] sm:$0xf]
        %v1185 = vld [vmem:[%s5 + $0x1e0] sm:$0xff]
        %v1186 = vld [vmem:[%s5 + $0x1e8] sm:$0xf]
        %v1187 = vld [vmem:[%s5 + $0x1ec] sm:$0xff]
        %v1188 = vld [vmem:[%s5 + $0x1f4] sm:$0xf]
        %v1189 = vld [vmem:[%s5 + $0x1f8] sm:$0xff]
        %v1190 = vld [vmem:[%s5 + $0x200] sm:$0xf]
        %v1191 = vld [vmem:[%s5 + $0x204] sm:$0xff]
        %v1192 = vld [vmem:[%s5 + $0x20c] sm:$0xf]
        %v1193 = vld [vmem:[%s5 + $0x210] sm:$0xff]
        %v1194 = vld [vmem:[%s5 + $0x218] sm:$0xf]
        %v1195 = vld [vmem:[%s5 + $0x21c] sm:$0xff]
        %v1196 = vld [vmem:[%s5 + $0x224] sm:$0xf]
        %v1197 = vld [vmem:[%s5 + $0x228] sm:$0xff]
        %v1198 = vld [vmem:[%s5 + $0x230] sm:$0xf]
        %v1199 = vld [vmem:[%s5 + $0x234] sm:$0xff]
        %v1200 = vld [vmem:[%s5 + $0x23c] sm:$0xf]
        %v1201 = vld [vmem:[%s5 + $0x240] sm:$0xff]
        %v1202 = vld [vmem:[%s5 + $0x248] sm:$0xf]
        %v1203 = vld [vmem:[%s5 + $0x24c] sm:$0xff]
        %v1204 = vld [vmem:[%s5 + $0x254] sm:$0xf]
        %v1205 = vld [vmem:[%s5 + $0x258] sm:$0xff]
        %v1206 = vld [vmem:[%s5 + $0x260] sm:$0xf]
        %v1207 = vld [vmem:[%s5 + $0x264] sm:$0xff]
        %v1208 = vld [vmem:[%s5 + $0x26c] sm:$0xf]
        %v1209 = vld [vmem:[%s5 + $0x270] sm:$0xff]
        %v1210 = vld [vmem:[%s5 + $0x278] sm:$0xf]
        %v1211 = vld [vmem:[%s5 + $0x27c] sm:$0xff]
        %v1212 = vld [vmem:[%s5 + $0x284] sm:$0xf]
        %v1213 = vld [vmem:[%s5 + $0x288] sm:$0xff]
        %v1214 = vld [vmem:[%s5 + $0x290] sm:$0xf]
        %v1215 = vld [vmem:[%s5 + $0x294] sm:$0xff]
        %v1216 = vld [vmem:[%s5 + $0x29c] sm:$0xf]
        %v1217 = vld [vmem:[%s5 + $0x2a0] sm:$0xff]
        %v1218 = vld [vmem:[%s5 + $0x2a8] sm:$0xf]
        %v1219 = vld [vmem:[%s5 + $0x2ac] sm:$0xff]
        %v1220 = vld [vmem:[%s5 + $0x2b4] sm:$0xf]
        %v1221 = vld [vmem:[%s5 + $0x2b8] sm:$0xff]
        %v1222 = vld [vmem:[%s5 + $0x2c0] sm:$0xf]
        %v1223 = vld [vmem:[%s5 + $0x2c4] sm:$0xff]
        %v1224 = vld [vmem:[%s5 + $0x2cc] sm:$0xf]
        %v1225 = vld [vmem:[%s5 + $0x2d0] sm:$0xff]
        %v1226 = vld [vmem:[%s5 + $0x2d8] sm:$0xf]
        %v1227 = vld [vmem:[%s5 + $0x2dc] sm:$0xff]
        %v1228 = vld [vmem:[%s5 + $0x2e4] sm:$0xf]
        %v1229 = vld [vmem:[%s5 + $0x2e8] sm:$0xff]
        %v1230 = vld [vmem:[%s5 + $0x2f0] sm:$0xf]
        %v1231 = vld [vmem:[%s5 + $0x2f4] sm:$0xff]
        %v1232 = vld [vmem:[%s5 + $0x2fc] sm:$0xf]
        %v1361 = vunpack.c.l.b16 %v1105
        %v1362 = vunpack.c.h.b16 %v1105
        %v1363 = vunpack.c.l.b16 %v1106
        %v1364 = vunpack.c.l.b16 %v1107
        %v1365 = vunpack.c.h.b16 %v1107
        %v1366 = vunpack.c.l.b16 %v1108
        %v1367 = vunpack.c.l.b16 %v1109
        %v1368 = vunpack.c.h.b16 %v1109
        %v1369 = vunpack.c.l.b16 %v1110
        %v1370 = vunpack.c.l.b16 %v1111
        %v1371 = vunpack.c.h.b16 %v1111
        %v1372 = vunpack.c.l.b16 %v1112
        %v1373 = vunpack.c.l.b16 %v1113
        %v1374 = vunpack.c.h.b16 %v1113
        %v1375 = vunpack.c.l.b16 %v1114
        %v1376 = vunpack.c.l.b16 %v1115
        %v1377 = vunpack.c.h.b16 %v1115
        %v1378 = vunpack.c.l.b16 %v1116
        %v1379 = vunpack.c.l.b16 %v1117
        %v1380 = vunpack.c.h.b16 %v1117
        %v1381 = vunpack.c.l.b16 %v1118
        %v1382 = vunpack.c.l.b16 %v1119
        %v1383 = vunpack.c.h.b16 %v1119
        %v1384 = vunpack.c.l.b16 %v1120
        %v1385 = vunpack.c.l.b16 %v1121
        %v1386 = vunpack.c.h.b16 %v1121
        %v1387 = vunpack.c.l.b16 %v1122
        %v1388 = vunpack.c.l.b16 %v1123
        %v1389 = vunpack.c.h.b16 %v1123
        %v1390 = vunpack.c.l.b16 %v1124
        %v1391 = vunpack.c.l.b16 %v1125
        %v1392 = vunpack.c.h.b16 %v1125
        %v1393 = vunpack.c.l.b16 %v1126
        %v1394 = vunpack.c.l.b16 %v1127
        %v1395 = vunpack.c.h.b16 %v1127
        %v1396 = vunpack.c.l.b16 %v1128
        %v1397 = vunpack.c.l.b16 %v1129
        %v1398 = vunpack.c.h.b16 %v1129
        %v1399 = vunpack.c.l.b16 %v1130
        %v1400 = vunpack.c.l.b16 %v1131
        %v1401 = vunpack.c.h.b16 %v1131
        %v1402 = vunpack.c.l.b16 %v1132
        %v1403 = vunpack.c.l.b16 %v1133
        %v1404 = vunpack.c.h.b16 %v1133
        %v1405 = vunpack.c.l.b16 %v1134
        %v1406 = vunpack.c.l.b16 %v1135
        %v1407 = vunpack.c.h.b16 %v1135
        %v1408 = vunpack.c.l.b16 %v1136
        %v1409 = vunpack.c.l.b16 %v1137
        %v1410 = vunpack.c.h.b16 %v1137
        %v1411 = vunpack.c.l.b16 %v1138
        %v1412 = vunpack.c.l.b16 %v1139
        %v1413 = vunpack.c.h.b16 %v1139
        %v1414 = vunpack.c.l.b16 %v1140
        %v1415 = vunpack.c.l.b16 %v1141
        %v1416 = vunpack.c.h.b16 %v1141
        %v1417 = vunpack.c.l.b16 %v1142
        %v1418 = vunpack.c.l.b16 %v1143
        %v1419 = vunpack.c.h.b16 %v1143
        %v1420 = vunpack.c.l.b16 %v1144
        %v1421 = vunpack.c.l.b16 %v1145
        %v1422 = vunpack.c.h.b16 %v1145
        %v1423 = vunpack.c.l.b16 %v1146
        %v1424 = vunpack.c.l.b16 %v1147
        %v1425 = vunpack.c.h.b16 %v1147
        %v1426 = vunpack.c.l.b16 %v1148
        %v1427 = vunpack.c.l.b16 %v1149
        %v1428 = vunpack.c.h.b16 %v1149
        %v1429 = vunpack.c.l.b16 %v1150
        %v1430 = vunpack.c.l.b16 %v1151
        %v1431 = vunpack.c.h.b16 %v1151
        %v1432 = vunpack.c.l.b16 %v1152
        %v1433 = vunpack.c.l.b16 %v1153
        %v1434 = vunpack.c.h.b16 %v1153
        %v1435 = vunpack.c.l.b16 %v1154
        %v1436 = vunpack.c.l.b16 %v1155
        %v1437 = vunpack.c.h.b16 %v1155
        %v1438 = vunpack.c.l.b16 %v1156
        %v1439 = vunpack.c.l.b16 %v1157
        %v1440 = vunpack.c.h.b16 %v1157
        %v1441 = vunpack.c.l.b16 %v1158
        %v1442 = vunpack.c.l.b16 %v1159
        %v1443 = vunpack.c.h.b16 %v1159
        %v1444 = vunpack.c.l.b16 %v1160
        %v1445 = vunpack.c.l.b16 %v1161
        %v1446 = vunpack.c.h.b16 %v1161
        %v1447 = vunpack.c.l.b16 %v1162
        %v1448 = vunpack.c.l.b16 %v1163
        %v1449 = vunpack.c.h.b16 %v1163
        %v1450 = vunpack.c.l.b16 %v1164
        %v1451 = vunpack.c.l.b16 %v1165
        %v1452 = vunpack.c.h.b16 %v1165
        %v1453 = vunpack.c.l.b16 %v1166
        %v1454 = vunpack.c.l.b16 %v1167
        %v1455 = vunpack.c.h.b16 %v1167
        %v1456 = vunpack.c.l.b16 %v1168
        %v1457 = vunpack.c.l.b16 %v1169
        %v1458 = vunpack.c.h.b16 %v1169
        %v1459 = vunpack.c.l.b16 %v1170
        %v1460 = vunpack.c.l.b16 %v1171
        %v1461 = vunpack.c.h.b16 %v1171
        %v1462 = vunpack.c.l.b16 %v1172
        %v1463 = vunpack.c.l.b16 %v1173
        %v1464 = vunpack.c.h.b16 %v1173
        %v1465 = vunpack.c.l.b16 %v1174
        %v1466 = vunpack.c.l.b16 %v1175
        %v1467 = vunpack.c.h.b16 %v1175
        %v1468 = vunpack.c.l.b16 %v1176
        %v1469 = vunpack.c.l.b16 %v1177
        %v1470 = vunpack.c.h.b16 %v1177
        %v1471 = vunpack.c.l.b16 %v1178
        %v1472 = vunpack.c.l.b16 %v1179
        %v1473 = vunpack.c.h.b16 %v1179
        %v1474 = vunpack.c.l.b16 %v1180
        %v1475 = vunpack.c.l.b16 %v1181
        %v1476 = vunpack.c.h.b16 %v1181
        %v1477 = vunpack.c.l.b16 %v1182
        %v1478 = vunpack.c.l.b16 %v1183
        %v1479 = vunpack.c.h.b16 %v1183
        %v1480 = vunpack.c.l.b16 %v1184
        %v1481 = vunpack.c.l.b16 %v1185
        %v1482 = vunpack.c.h.b16 %v1185
        %v1483 = vunpack.c.l.b16 %v1186
        %v1484 = vunpack.c.l.b16 %v1187
        %v1485 = vunpack.c.h.b16 %v1187
        %v1486 = vunpack.c.l.b16 %v1188
        %v1487 = vunpack.c.l.b16 %v1189
        %v1488 = vunpack.c.h.b16 %v1189
        %v1489 = vunpack.c.l.b16 %v1190
        %v1490 = vunpack.c.l.b16 %v1191
        %v1491 = vunpack.c.h.b16 %v1191
        %v1492 = vunpack.c.l.b16 %v1192
        %v1493 = vunpack.c.l.b16 %v1193
        %v1494 = vunpack.c.h.b16 %v1193
        %v1495 = vunpack.c.l.b16 %v1194
        %v1496 = vunpack.c.l.b16 %v1195
        %v1497 = vunpack.c.h.b16 %v1195
        %v1498 = vunpack.c.l.b16 %v1196
        %v1499 = vunpack.c.l.b16 %v1197
        %v1500 = vunpack.c.h.b16 %v1197
        %v1501 = vunpack.c.l.b16 %v1198
        %v1502 = vunpack.c.l.b16 %v1199
        %v1503 = vunpack.c.h.b16 %v1199
        %v1504 = vunpack.c.l.b16 %v1200
        %v1505 = vunpack.c.l.b16 %v1201
        %v1506 = vunpack.c.h.b16 %v1201
        %v1507 = vunpack.c.l.b16 %v1202
        %v1508 = vunpack.c.l.b16 %v1203
        %v1509 = vunpack.c.h.b16 %v1203
        %v1510 = vunpack.c.l.b16 %v1204
        %v1511 = vunpack.c.l.b16 %v1205
        %v1512 = vunpack.c.h.b16 %v1205
        %v1513 = vunpack.c.l.b16 %v1206
        %v1514 = vunpack.c.l.b16 %v1207
        %v1515 = vunpack.c.h.b16 %v1207
        %v1516 = vunpack.c.l.b16 %v1208
        %v1517 = vunpack.c.l.b16 %v1209
        %v1518 = vunpack.c.h.b16 %v1209
        %v1519 = vunpack.c.l.b16 %v1210
        %v1520 = vunpack.c.l.b16 %v1211
        %v1521 = vunpack.c.h.b16 %v1211
        %v1522 = vunpack.c.l.b16 %v1212
        %v1523 = vunpack.c.l.b16 %v1213
        %v1524 = vunpack.c.h.b16 %v1213
        %v1525 = vunpack.c.l.b16 %v1214
        %v1526 = vunpack.c.l.b16 %v1215
        %v1527 = vunpack.c.h.b16 %v1215
        %v1528 = vunpack.c.l.b16 %v1216
        %v1529 = vunpack.c.l.b16 %v1217
        %v1530 = vunpack.c.h.b16 %v1217
        %v1531 = vunpack.c.l.b16 %v1218
        %v1532 = vunpack.c.l.b16 %v1219
        %v1533 = vunpack.c.h.b16 %v1219
        %v1534 = vunpack.c.l.b16 %v1220
        %v1535 = vunpack.c.l.b16 %v1221
        %v1536 = vunpack.c.h.b16 %v1221
        %v1537 = vunpack.c.l.b16 %v1222
        %v1538 = vunpack.c.l.b16 %v1223
        %v1539 = vunpack.c.h.b16 %v1223
        %v1540 = vunpack.c.l.b16 %v1224
        %v1541 = vunpack.c.l.b16 %v1225
        %v1542 = vunpack.c.h.b16 %v1225
        %v1543 = vunpack.c.l.b16 %v1226
        %v1544 = vunpack.c.l.b16 %v1227
        %v1545 = vunpack.c.h.b16 %v1227
        %v1546 = vunpack.c.l.b16 %v1228
        %v1547 = vunpack.c.l.b16 %v1229
        %v1548 = vunpack.c.h.b16 %v1229
        %v1549 = vunpack.c.l.b16 %v1230
        %v1550 = vunpack.c.l.b16 %v1231
        %v1551 = vunpack.c.h.b16 %v1231
        %v1552 = vunpack.c.l.b16 %v1232
        %v1553 = vpack.c.b16 %v1364, %v1361
        %v1554 = vpack.c.b16 %v1365, %v1362
        %v1555 = vpack.c.b16 %v1366, %v1363
        %v1556 = vpack.c.b16 %v1370, %v1367
        %v1557 = vpack.c.b16 %v1371, %v1368
        %v1558 = vpack.c.b16 %v1372, %v1369
        %v1559 = vpack.c.b16 %v1376, %v1373
        %v1560 = vpack.c.b16 %v1377, %v1374
        %v1561 = vpack.c.b16 %v1378, %v1375
        %v1562 = vpack.c.b16 %v1382, %v1379
        %v1563 = vpack.c.b16 %v1383, %v1380
        %v1564 = vpack.c.b16 %v1384, %v1381
        %v1565 = vpack.c.b16 %v1388, %v1385
        %v1566 = vpack.c.b16 %v1389, %v1386
        %v1567 = vpack.c.b16 %v1390, %v1387
        %v1568 = vpack.c.b16 %v1394, %v1391
        %v1569 = vpack.c.b16 %v1395, %v1392
        %v1570 = vpack.c.b16 %v1396, %v1393
        %v1571 = vpack.c.b16 %v1400, %v1397
        %v1572 = vpack.c.b16 %v1401, %v1398
        %v1573 = vpack.c.b16 %v1402, %v1399
        %v1574 = vpack.c.b16 %v1406, %v1403
        %v1575 = vpack.c.b16 %v1407, %v1404
        %v1576 = vpack.c.b16 %v1408, %v1405
        %v1577 = vpack.c.b16 %v1412, %v1409
        %v1578 = vpack.c.b16 %v1413, %v1410
        %v1579 = vpack.c.b16 %v1414, %v1411
        %v1580 = vpack.c.b16 %v1418, %v1415
        %v1581 = vpack.c.b16 %v1419, %v1416
        %v1582 = vpack.c.b16 %v1420, %v1417
        %v1583 = vpack.c.b16 %v1424, %v1421
        %v1584 = vpack.c.b16 %v1425, %v1422
        %v1585 = vpack.c.b16 %v1426, %v1423
        %v1586 = vpack.c.b16 %v1430, %v1427
        %v1587 = vpack.c.b16 %v1431, %v1428
        %v1588 = vpack.c.b16 %v1432, %v1429
        %v1589 = vpack.c.b16 %v1436, %v1433
        %v1590 = vpack.c.b16 %v1437, %v1434
        %v1591 = vpack.c.b16 %v1438, %v1435
        %v1592 = vpack.c.b16 %v1442, %v1439
        %v1593 = vpack.c.b16 %v1443, %v1440
        %v1594 = vpack.c.b16 %v1444, %v1441
        %v1595 = vpack.c.b16 %v1448, %v1445
        %v1596 = vpack.c.b16 %v1449, %v1446
        %v1597 = vpack.c.b16 %v1450, %v1447
        %v1598 = vpack.c.b16 %v1454, %v1451
        %v1599 = vpack.c.b16 %v1455, %v1452
        %v1600 = vpack.c.b16 %v1456, %v1453
        %v1601 = vpack.c.b16 %v1460, %v1457
        %v1602 = vpack.c.b16 %v1461, %v1458
        %v1603 = vpack.c.b16 %v1462, %v1459
        %v1604 = vpack.c.b16 %v1466, %v1463
        %v1605 = vpack.c.b16 %v1467, %v1464
        %v1606 = vpack.c.b16 %v1468, %v1465
        %v1607 = vpack.c.b16 %v1472, %v1469
        %v1608 = vpack.c.b16 %v1473, %v1470
        %v1609 = vpack.c.b16 %v1474, %v1471
        %v1610 = vpack.c.b16 %v1478, %v1475
        %v1611 = vpack.c.b16 %v1479, %v1476
        %v1612 = vpack.c.b16 %v1480, %v1477
        %v1613 = vpack.c.b16 %v1484, %v1481
        %v1614 = vpack.c.b16 %v1485, %v1482
        %v1615 = vpack.c.b16 %v1486, %v1483
        %v1616 = vpack.c.b16 %v1490, %v1487
        %v1617 = vpack.c.b16 %v1491, %v1488
        %v1618 = vpack.c.b16 %v1492, %v1489
        %v1619 = vpack.c.b16 %v1496, %v1493
        %v1620 = vpack.c.b16 %v1497, %v1494
        %v1621 = vpack.c.b16 %v1498, %v1495
        %v1622 = vpack.c.b16 %v1502, %v1499
        %v1623 = vpack.c.b16 %v1503, %v1500
        %v1624 = vpack.c.b16 %v1504, %v1501
        %v1625 = vpack.c.b16 %v1508, %v1505
        %v1626 = vpack.c.b16 %v1509, %v1506
        %v1627 = vpack.c.b16 %v1510, %v1507
        %v1628 = vpack.c.b16 %v1514, %v1511
        %v1629 = vpack.c.b16 %v1515, %v1512
        %v1630 = vpack.c.b16 %v1516, %v1513
        %v1631 = vpack.c.b16 %v1520, %v1517
        %v1632 = vpack.c.b16 %v1521, %v1518
        %v1633 = vpack.c.b16 %v1522, %v1519
        %v1634 = vpack.c.b16 %v1526, %v1523
        %v1635 = vpack.c.b16 %v1527, %v1524
        %v1636 = vpack.c.b16 %v1528, %v1525
        %v1637 = vpack.c.b16 %v1532, %v1529
        %v1638 = vpack.c.b16 %v1533, %v1530
        %v1639 = vpack.c.b16 %v1534, %v1531
        %v1640 = vpack.c.b16 %v1538, %v1535
        %v1641 = vpack.c.b16 %v1539, %v1536
        %v1642 = vpack.c.b16 %v1540, %v1537
        %v1643 = vpack.c.b16 %v1544, %v1541
        %v1644 = vpack.c.b16 %v1545, %v1542
        %v1645 = vpack.c.b16 %v1546, %v1543
        %v1646 = vpack.c.b16 %v1550, %v1547
        %v1647 = vpack.c.b16 %v1551, %v1548
        %v1648 = vpack.c.b16 %v1552, %v1549
        %1745 = vmatprep.subr.bf16.mxu0 %v1554
        %1746 = vmatpush1.bf16.msra.mxu0 %v1553
        %1747 = vmatprep.subr.bf16.mxu0 %v1557
        %1748 = vmatpush1.bf16.msra.mxu0 %v1556
        %1749 = vmatprep.subr.bf16.mxu0 %v1560
        %1750 = vmatpush1.bf16.msra.mxu0 %v1559
        %1751 = vmatprep.subr.bf16.mxu0 %v1563
        %1752 = vmatpush1.bf16.msra.mxu0 %v1562
        %1753 = vmatprep.subr.bf16.mxu0 %v1566
        %1754 = vmatpush1.bf16.msra.mxu0 %v1565
        %1755 = vmatprep.subr.bf16.mxu0 %v1569
        %1756 = vmatpush1.bf16.msra.mxu0 %v1568
        %1757 = vmatprep.subr.bf16.mxu0 %v1572
        %1758 = vmatpush1.bf16.msra.mxu0 %v1571
        %1759 = vmatprep.subr.bf16.mxu0 %v1575
        %1760 = vmatpush1.bf16.msra.mxu0 %v1574
        %1761 = vmatprep.subr.bf16.mxu0 %v1578
        %1762 = vmatpush1.bf16.msra.mxu0 %v1577
        %1763 = vmatprep.subr.bf16.mxu0 %v1581
        %1764 = vmatpush1.bf16.msra.mxu0 %v1580
        %1765 = vmatprep.subr.bf16.mxu0 %v1584
        %1766 = vmatpush1.bf16.msra.mxu0 %v1583
        %1767 = vmatprep.subr.bf16.mxu0 %v1587
        %1768 = vmatpush1.bf16.msra.mxu0 %v1586
        %1769 = vmatprep.subr.bf16.mxu0 %v1590
        %1770 = vmatpush1.bf16.msra.mxu0 %v1589
        %1771 = vmatprep.subr.bf16.mxu0 %v1593
        %1772 = vmatpush1.bf16.msra.mxu0 %v1592
        %1773 = vmatprep.subr.bf16.mxu0 %v1596
        %1774 = vmatpush1.bf16.msra.mxu0 %v1595
        %1775 = vmatprep.subr.bf16.mxu0 %v1599
        %1776 = vmatpush1.bf16.msra.mxu0 %v1598
        %1777 = vmatprep.mubr.bf16.mxu0 %v1102
        %1778 = vmatmul.mubr.bf16.gmra.mrb[0].mxu0 %v1101
        %v1779 = vpop.f32.mrb[0].mxu0
        %v1780 = vadd.f32 0.0, %v1779
        %v1781 = vpop.f32.mrb[0].mxu0
        %v1782 = vadd.f32 0.0, %v1781
        %v1783 = vpop.f32.mrb[0].mxu0
        %v1784 = vadd.f32 0.0, %v1783
        %v1785 = vpop.f32.mrb[0].mxu0
        %v1786 = vadd.f32 0.0, %v1785
        %1787 = vdwg.mxu0
        %1788 = vmatprep.subr.bf16.mxu0 %v1602
        %1789 = vmatpush1.bf16.msra.mxu0 %v1601
        %1790 = vmatprep.subr.bf16.mxu0 %v1605
        %1791 = vmatpush1.bf16.msra.mxu0 %v1604
        %1792 = vmatprep.subr.bf16.mxu0 %v1608
        %1793 = vmatpush1.bf16.msra.mxu0 %v1607
        %1794 = vmatprep.subr.bf16.mxu0 %v1611
        %1795 = vmatpush1.bf16.msra.mxu0 %v1610
        %1796 = vmatprep.subr.bf16.mxu0 %v1614
        %1797 = vmatpush1.bf16.msra.mxu0 %v1613
        %1798 = vmatprep.subr.bf16.mxu0 %v1617
        %1799 = vmatpush1.bf16.msra.mxu0 %v1616
        %1800 = vmatprep.subr.bf16.mxu0 %v1620
        %1801 = vmatpush1.bf16.msra.mxu0 %v1619
        %1802 = vmatprep.subr.bf16.mxu0 %v1623
        %1803 = vmatpush1.bf16.msra.mxu0 %v1622
        %1804 = vmatprep.subr.bf16.mxu0 %v1626
        %1805 = vmatpush1.bf16.msra.mxu0 %v1625
        %1806 = vmatprep.subr.bf16.mxu0 %v1629
        %1807 = vmatpush1.bf16.msra.mxu0 %v1628
        %1808 = vmatprep.subr.bf16.mxu0 %v1632
        %1809 = vmatpush1.bf16.msra.mxu0 %v1631
        %1810 = vmatprep.subr.bf16.mxu0 %v1635
        %1811 = vmatpush1.bf16.msra.mxu0 %v1634
        %1812 = vmatprep.subr.bf16.mxu0 %v1638
        %1813 = vmatpush1.bf16.msra.mxu0 %v1637
        %1814 = vmatprep.subr.bf16.mxu0 %v1641
        %1815 = vmatpush1.bf16.msra.mxu0 %v1640
        %1816 = vmatprep.subr.bf16.mxu0 %v1644
        %1817 = vmatpush1.bf16.msra.mxu0 %v1643
        %1818 = vmatprep.subr.bf16.mxu0 %v1647
        %1819 = vmatpush1.bf16.msra.mxu0 %v1646
        %1820 = vmatprep.mubr.bf16.mxu0 %v1104
        %1821 = vmatmul.mubr.bf16.gmra.mrb[0].mxu0 %v1103
        %v1822 = vpop.f32.mrb[0].mxu0
        %v1823 = vadd.f32 %v1780, %v1822
        %v1824 = vpop.f32.mrb[0].mxu0
        %v1825 = vadd.f32 %v1782, %v1824
        %v1826 = vpop.f32.mrb[0].mxu0
        %v1827 = vadd.f32 %v1784, %v1826
        %v1828 = vpop.f32.mrb[0].mxu0
        %v1829 = vadd.f32 %v1786, %v1828
        %1830 = vdwg.mxu0
        %1831 = vmatprep.subr.bf16.mxu0 0
        %1832 = vmatpush1.bf16.msra.mxu0 %v1555
        %1833 = vmatprep.subr.bf16.mxu0 0
        %1834 = vmatpush1.bf16.msra.mxu0 %v1558
        %1835 = vmatprep.subr.bf16.mxu0 0
        %1836 = vmatpush1.bf16.msra.mxu0 %v1561
        %1837 = vmatprep.subr.bf16.mxu0 0
        %1838 = vmatpush1.bf16.msra.mxu0 %v1564
        %1839 = vmatprep.subr.bf16.mxu0 0
        %1840 = vmatpush1.bf16.msra.mxu0 %v1567
        %1841 = vmatprep.subr.bf16.mxu0 0
        %1842 = vmatpush1.bf16.msra.mxu0 %v1570
        %1843 = vmatprep.subr.bf16.mxu0 0
        %1844 = vmatpush1.bf16.msra.mxu0 %v1573
        %1845 = vmatprep.subr.bf16.mxu0 0
        %1846 = vmatpush1.bf16.msra.mxu0 %v1576
        %1847 = vmatprep.subr.bf16.mxu0 0
        %1848 = vmatpush1.bf16.msra.mxu0 %v1579
        %1849 = vmatprep.subr.bf16.mxu0 0
        %1850 = vmatpush1.bf16.msra.mxu0 %v1582
        %1851 = vmatprep.subr.bf16.mxu0 0
        %1852 = vmatpush1.bf16.msra.mxu0 %v1585
        %1853 = vmatprep.subr.bf16.mxu0 0
        %1854 = vmatpush1.bf16.msra.mxu0 %v1588
        %1855 = vmatprep.subr.bf16.mxu0 0
        %1856 = vmatpush1.bf16.msra.mxu0 %v1591
        %1857 = vmatprep.subr.bf16.mxu0 0
        %1858 = vmatpush1.bf16.msra.mxu0 %v1594
        %1859 = vmatprep.subr.bf16.mxu0 0
        %1860 = vmatpush1.bf16.msra.mxu0 %v1597
        %1861 = vmatprep.subr.bf16.mxu0 0
        %1862 = vmatpush1.bf16.msra.mxu0 %v1600
        %1863 = vmatprep.mubr.bf16.mxu0 %v1102
        %1864 = vmatmul.mubr.bf16.gmra.mrb[0].mxu0 %v1101
        %v1865 = vpop.f32.mrb[0].mxu0
        %v1866 = vadd.f32 0.0, %v1865
        %v1867 = vpop.f32.mrb[0].mxu0
        %v1868 = vpop.f32.mrb[0].mxu0
        %v1869 = vadd.f32 0.0, %v1868
        %v1870 = vpop.f32.mrb[0].mxu0
        %1871 = vdwg.mxu0
        %1872 = vmatprep.subr.bf16.mxu0 0
        %1873 = vmatpush1.bf16.msra.mxu0 %v1603
        %1874 = vmatprep.subr.bf16.mxu0 0
        %1875 = vmatpush1.bf16.msra.mxu0 %v1606
        %1876 = vmatprep.subr.bf16.mxu0 0
        %1877 = vmatpush1.bf16.msra.mxu0 %v1609
        %1878 = vmatprep.subr.bf16.mxu0 0
        %1879 = vmatpush1.bf16.msra.mxu0 %v1612
        %1880 = vmatprep.subr.bf16.mxu0 0
        %1881 = vmatpush1.bf16.msra.mxu0 %v1615
        %1882 = vmatprep.subr.bf16.mxu0 0
        %1883 = vmatpush1.bf16.msra.mxu0 %v1618
        %1884 = vmatprep.subr.bf16.mxu0 0
        %1885 = vmatpush1.bf16.msra.mxu0 %v1621
        %1886 = vmatprep.subr.bf16.mxu0 0
        %1887 = vmatpush1.bf16.msra.mxu0 %v1624
        %1888 = vmatprep.subr.bf16.mxu0 0
        %1889 = vmatpush1.bf16.msra.mxu0 %v1627
        %1890 = vmatprep.subr.bf16.mxu0 0
        %1891 = vmatpush1.bf16.msra.mxu0 %v1630
        %1892 = vmatprep.subr.bf16.mxu0 0
        %1893 = vmatpush1.bf16.msra.mxu0 %v1633
        %1894 = vmatprep.subr.bf16.mxu0 0
        %1895 = vmatpush1.bf16.msra.mxu0 %v1636
        %1896 = vmatprep.subr.bf16.mxu0 0
        %1897 = vmatpush1.bf16.msra.mxu0 %v1639
        %1898 = vmatprep.subr.bf16.mxu0 0
        %1899 = vmatpush1.bf16.msra.mxu0 %v1642
        %1900 = vmatprep.subr.bf16.mxu0 0
        %1901 = vmatpush1.bf16.msra.mxu0 %v1645
        %1902 = vmatprep.subr.bf16.mxu0 0
        %1903 = vmatpush1.bf16.msra.mxu0 %v1648
        %1904 = vmatprep.mubr.bf16.mxu0 %v1104
        %1905 = vmatmul.mubr.bf16.gmra.mrb[0].mxu0 %v1103
        %v1906 = vpop.f32.mrb[0].mxu0
        %v1907 = vadd.f32 %v1866, %v1906
        %v1908 = vpop.f32.mrb[0].mxu0
        %v1909 = vpop.f32.mrb[0].mxu0
        %v1910 = vadd.f32 %v1869, %v1909
        %v1911 = vpop.f32.mrb[0].mxu0
        %1912 = vdwg.mxu0
        %v1913 = vpack.c.bf16 %v1827, %v1823
        %v1914 = vpack.c.bf16 %v1829, %v1825
        %v1915 = vpack.c.bf16 %v1910, %v1907
        %s1916 = smul.u32 %s32, 3
        %s1917 = smul.addr %s1916, 8
        %s1918 = scalar_lea.vmem [#allocation3], %s1917
        %1919 = vst [vmem:[%s1918] sm:$0xff] %v1913
        %1920 = vst [vmem:[%s1918 + $0x8] sm:$0xff] %v1914
        %1921 = vst [vmem:[%s1918 + $0x10] sm:$0xff] %v1915
        %p1922 = scmp.eq.s32.totalorder %s32, 6
        // Predicated region
        $region123: #{ltsm_conv_forward.1} parent=109 // pred_check
          %p1923 = pneg %p1922
        $region124: #{ltsm_conv_forward.1} parent=109 // pred_check_branch
          %1925 = sbr.rel (%p1923) target = $region126
        $region125: #{ltsm_conv_forward.1} parent=109 // pred_region
          %v1926 = vld [vmem:[#allocation2] sm:$0xff]
          %v1927 = vld [vmem:[#allocation2 + $0x8] sm:$0xff]
          %v1928 = vld [vmem:[#allocation2 + $0x10] sm:$0xff]
          %v1929 = vld [vmem:[#allocation2 + $0x18] sm:$0xff]
          %v1930 = vld [vmem:[#allocation2 + $0x20] sm:$0xff]
          %v1931 = vld [vmem:[#allocation2 + $0x28] sm:$0xff]
          %v1932 = vld [vmem:[#allocation2 + $0x30] sm:$0xff]
          %v1933 = vld [vmem:[#allocation2 + $0x38] sm:$0xff]
          %s1934 = sld [smem:[#allocation4]]
          %v1935 = vstv %s1934
          %v1936 = vadd.f32 %v1926, %v1935
          %v1937 = vadd.f32 %v1927, %v1935
          %v1938 = vadd.f32 %v1928, %v1935
          %v1939 = vadd.f32 %v1929, %v1935
          %v1940 = vadd.f32 %v1930, %v1935
          %v1941 = vadd.f32 %v1931, %v1935
          %v1942 = vadd.f32 %v1932, %v1935
          %v1943 = vadd.f32 %v1933, %v1935
          %v1944 = vld [vmem:[#allocation3] sm:$0xff]
          %v1945 = vld [vmem:[#allocation3 + $0x8] sm:$0xff]
          %v1946 = vld [vmem:[#allocation3 + $0x10] sm:$0xff]
          %v1947 = vunpack.c.l.bf16 %v1944
          %v1948 = vunpack.c.l.bf16 %v1945
          %v1949 = vunpack.c.l.bf16 %v1946
          %v1950 = vunpack.c.h.bf16 %v1944
          %v1951 = vunpack.c.h.bf16 %v1945
          %v1952 = vunpack.c.h.bf16 %v1946
          %v1953 = vld [vmem:[%s6] sm:$0x7]
          %v1955 = vlaneseq
          %v1956 = vshrl.u32 %v1955, 7
          %v1957 = vsub.s32 0, %v1956
          %v1958 = vrot.slane %v1953, %v1957
          %v1959 = vlaneseq
          %v1960 = vshrl.u32 %v1959, 7
          %v1961 = vsub.s32 1, %v1960
          %v1962 = vrot.slane %v1953, %v1961
          %v1963 = vlaneseq
          %v1964 = vshrl.u32 %v1963, 7
          %v1965 = vsub.s32 2, %v1964
          %v1966 = vrot.slane %v1953, %v1965
          %v1970 = vadd.f32 %v1947, %v1958
          %v1971 = vadd.f32 %v1948, %v1962
          %v1972 = vadd.f32 %v1949, %v1966
          %v1973 = vadd.f32 %v1950, %v1958
          %v1974 = vadd.f32 %v1951, %v1962
          %v1975 = vadd.f32 %v1952, %v1966
          %v1976 = vld [vmem:[%s7] sm:$0xff]
          %v1977 = vld [vmem:[%s7 + $0x8] sm:$0xf]
          %v1978 = vld [vmem:[%s7 + $0xc] sm:$0xff]
          %v1979 = vld [vmem:[%s7 + $0x14] sm:$0xf]
          %v1980 = vld [vmem:[%s7 + $0x18] sm:$0xff]
          %v1981 = vld [vmem:[%s7 + $0x20] sm:$0xf]
          %v1982 = vld [vmem:[%s7 + $0x24] sm:$0xff]
          %v1983 = vld [vmem:[%s7 + $0x2c] sm:$0xf]
          %v1984 = vld [vmem:[%s7 + $0x30] sm:$0xff]
          %v1985 = vld [vmem:[%s7 + $0x38] sm:$0xf]
          %v1986 = vld [vmem:[%s7 + $0x3c] sm:$0xff]
          %v1987 = vld [vmem:[%s7 + $0x44] sm:$0xf]
          %v1988 = vld [vmem:[%s7 + $0x48] sm:$0xff]
          %v1989 = vld [vmem:[%s7 + $0x50] sm:$0xf]
          %v1990 = vld [vmem:[%s7 + $0x54] sm:$0xff]
          %v1991 = vld [vmem:[%s7 + $0x5c] sm:$0xf]
          %v1992 = vld [vmem:[%s7 + $0x60] sm:$0xff]
          %v1993 = vld [vmem:[%s7 + $0x68] sm:$0xf]
          %v1994 = vld [vmem:[%s7 + $0x6c] sm:$0xff]
          %v1995 = vld [vmem:[%s7 + $0x74] sm:$0xf]
          %v1996 = vld [vmem:[%s7 + $0x78] sm:$0xff]
          %v1997 = vld [vmem:[%s7 + $0x80] sm:$0xf]
          %v1998 = vld [vmem:[%s7 + $0x84] sm:$0xff]
          %v1999 = vld [vmem:[%s7 + $0x8c] sm:$0xf]
          %v2000 = vld [vmem:[%s7 + $0x90] sm:$0xff]
          %v2001 = vld [vmem:[%s7 + $0x98] sm:$0xf]
          %v2002 = vld [vmem:[%s7 + $0x9c] sm:$0xff]
          %v2003 = vld [vmem:[%s7 + $0xa4] sm:$0xf]
          %v2004 = vld [vmem:[%s7 + $0xa8] sm:$0xff]
          %v2005 = vld [vmem:[%s7 + $0xb0] sm:$0xf]
          %v2006 = vld [vmem:[%s7 + $0xb4] sm:$0xff]
          %v2007 = vld [vmem:[%s7 + $0xbc] sm:$0xf]
          %v2008 = vld [vmem:[%s8] sm:$0x7]
          %v2010 = vlaneseq
          %v2011 = vshrl.u32 %v2010, 7
          %v2012 = vsub.s32 0, %v2011
          %v2013 = vrot.slane %v2008, %v2012
          %v2014 = vlaneseq
          %v2015 = vshrl.u32 %v2014, 7
          %v2016 = vsub.s32 1, %v2015
          %v2017 = vrot.slane %v2008, %v2016
          %v2018 = vlaneseq
          %v2019 = vshrl.u32 %v2018, 7
          %v2020 = vsub.s32 2, %v2019
          %v2021 = vrot.slane %v2008, %v2020
          %v2057 = vunpack.c.l.b16 %v1976
          %v2058 = vunpack.c.h.b16 %v1976
          %v2059 = vunpack.c.l.b16 %v1977
          %v2060 = vunpack.c.l.b16 %v1978
          %v2061 = vunpack.c.h.b16 %v1978
          %v2062 = vunpack.c.l.b16 %v1979
          %v2063 = vunpack.c.l.b16 %v1980
          %v2064 = vunpack.c.h.b16 %v1980
          %v2065 = vunpack.c.l.b16 %v1981
          %v2066 = vunpack.c.l.b16 %v1982
          %v2067 = vunpack.c.h.b16 %v1982
          %v2068 = vunpack.c.l.b16 %v1983
          %v2069 = vunpack.c.l.b16 %v1984
          %v2070 = vunpack.c.h.b16 %v1984
          %v2071 = vunpack.c.l.b16 %v1985
          %v2072 = vunpack.c.l.b16 %v1986
          %v2073 = vunpack.c.h.b16 %v1986
          %v2074 = vunpack.c.l.b16 %v1987
          %v2075 = vunpack.c.l.b16 %v1988
          %v2076 = vunpack.c.h.b16 %v1988
          %v2077 = vunpack.c.l.b16 %v1989
          %v2078 = vunpack.c.l.b16 %v1990
          %v2079 = vunpack.c.h.b16 %v1990
          %v2080 = vunpack.c.l.b16 %v1991
          %v2081 = vunpack.c.l.b16 %v1992
          %v2082 = vunpack.c.h.b16 %v1992
          %v2083 = vunpack.c.l.b16 %v1993
          %v2084 = vunpack.c.l.b16 %v1994
          %v2085 = vunpack.c.h.b16 %v1994
          %v2086 = vunpack.c.l.b16 %v1995
          %v2087 = vunpack.c.l.b16 %v1996
          %v2088 = vunpack.c.h.b16 %v1996
          %v2089 = vunpack.c.l.b16 %v1997
          %v2090 = vunpack.c.l.b16 %v1998
          %v2091 = vunpack.c.h.b16 %v1998
          %v2092 = vunpack.c.l.b16 %v1999
          %v2093 = vunpack.c.l.b16 %v2000
          %v2094 = vunpack.c.h.b16 %v2000
          %v2095 = vunpack.c.l.b16 %v2001
          %v2096 = vunpack.c.l.b16 %v2002
          %v2097 = vunpack.c.h.b16 %v2002
          %v2098 = vunpack.c.l.b16 %v2003
          %v2099 = vunpack.c.l.b16 %v2004
          %v2100 = vunpack.c.h.b16 %v2004
          %v2101 = vunpack.c.l.b16 %v2005
          %v2102 = vunpack.c.l.b16 %v2006
          %v2103 = vunpack.c.h.b16 %v2006
          %v2104 = vunpack.c.l.b16 %v2007
          %v2105 = vpack.c.b16 %v2060, %v2057
          %v2106 = vpack.c.b16 %v2061, %v2058
          %v2107 = vpack.c.b16 %v2062, %v2059
          %v2108 = vpack.c.b16 %v2066, %v2063
          %v2109 = vpack.c.b16 %v2067, %v2064
          %v2110 = vpack.c.b16 %v2068, %v2065
          %v2111 = vpack.c.b16 %v2072, %v2069
          %v2112 = vpack.c.b16 %v2073, %v2070
          %v2113 = vpack.c.b16 %v2074, %v2071
          %v2114 = vpack.c.b16 %v2078, %v2075
          %v2115 = vpack.c.b16 %v2079, %v2076
          %v2116 = vpack.c.b16 %v2080, %v2077
          %v2117 = vpack.c.b16 %v2084, %v2081
          %v2118 = vpack.c.b16 %v2085, %v2082
          %v2119 = vpack.c.b16 %v2086, %v2083
          %v2120 = vpack.c.b16 %v2090, %v2087
          %v2121 = vpack.c.b16 %v2091, %v2088
          %v2122 = vpack.c.b16 %v2092, %v2089
          %v2123 = vpack.c.b16 %v2096, %v2093
          %v2124 = vpack.c.b16 %v2097, %v2094
          %v2125 = vpack.c.b16 %v2098, %v2095
          %v2126 = vpack.c.b16 %v2102, %v2099
          %v2127 = vpack.c.b16 %v2103, %v2100
          %v2128 = vpack.c.b16 %v2104, %v2101
          %2153 = vmatprep.subr.bf16.mxu0 %v2106
          %2154 = vmatpush1.bf16.msra.mxu0 %v2105
          %2155 = vmatprep.subr.bf16.mxu0 %v2109
          %2156 = vmatpush1.bf16.msra.mxu0 %v2108
          %2157 = vmatprep.subr.bf16.mxu0 %v2112
          %2158 = vmatpush1.bf16.msra.mxu0 %v2111
          %2159 = vmatprep.subr.bf16.mxu0 %v2115
          %2160 = vmatpush1.bf16.msra.mxu0 %v2114
          %2161 = vmatprep.subr.bf16.mxu0 %v2118
          %2162 = vmatpush1.bf16.msra.mxu0 %v2117
          %2163 = vmatprep.subr.bf16.mxu0 %v2121
          %2164 = vmatpush1.bf16.msra.mxu0 %v2120
          %2165 = vmatprep.subr.bf16.mxu0 %v2124
          %2166 = vmatpush1.bf16.msra.mxu0 %v2123
          %2167 = vmatprep.subr.bf16.mxu0 %v2127
          %2168 = vmatpush1.bf16.msra.mxu0 %v2126
          %2169 = vmatprep.subr.bf16.mxu0 0
          %2170 = vmatpush1.bf16.msra.mxu0 0
          %2171 = vmatprep.subr.bf16.mxu0 0
          %2172 = vmatpush1.bf16.msra.mxu0 0
          %2173 = vmatprep.subr.bf16.mxu0 0
          %2174 = vmatpush1.bf16.msra.mxu0 0
          %2175 = vmatprep.subr.bf16.mxu0 0
          %2176 = vmatpush1.bf16.msra.mxu0 0
          %2177 = vmatprep.subr.bf16.mxu0 0
          %2178 = vmatpush1.bf16.msra.mxu0 0
          %2179 = vmatprep.subr.bf16.mxu0 0
          %2180 = vmatpush1.bf16.msra.mxu0 0
          %2181 = vmatprep.subr.bf16.mxu0 0
          %2182 = vmatpush1.bf16.msra.mxu0 0
          %2183 = vmatprep.subr.bf16.mxu0 0
          %2184 = vmatpush1.bf16.msra.mxu0 0
          %2185 = vmatprep.mubr.bf16.mxu0 0
          %2186 = vmatmul.mubr.bf16.gmra.mrb[0].mxu0 0
          %v2187 = vpop.f32.mrb[0].mxu0
          %v2188 = vadd.f32 %v2013, %v2187
          %v2189 = vpop.f32.mrb[0].mxu0
          %v2190 = vadd.f32 %v2017, %v2189
          %v2191 = vpop.f32.mrb[0].mxu0
          %v2192 = vadd.f32 %v2013, %v2191
          %v2193 = vpop.f32.mrb[0].mxu0
          %v2194 = vadd.f32 %v2017, %v2193
          %2195 = vdwg.mxu0
          %2196 = vmatprep.subr.bf16.mxu0 0
          %2197 = vmatpush1.bf16.msra.mxu0 %v2107
          %2198 = vmatprep.subr.bf16.mxu0 0
          %2199 = vmatpush1.bf16.msra.mxu0 %v2110
          %2200 = vmatprep.subr.bf16.mxu0 0
          %2201 = vmatpush1.bf16.msra.mxu0 %v2113
          %2202 = vmatprep.subr.bf16.mxu0 0
          %2203 = vmatpush1.bf16.msra.mxu0 %v2116
          %2204 = vmatprep.subr.bf16.mxu0 0
          %2205 = vmatpush1.bf16.msra.mxu0 %v2119
          %2206 = vmatprep.subr.bf16.mxu0 0
          %2207 = vmatpush1.bf16.msra.mxu0 %v2122
          %2208 = vmatprep.subr.bf16.mxu0 0
          %2209 = vmatpush1.bf16.msra.mxu0 %v2125
          %2210 = vmatprep.subr.bf16.mxu0 0
          %2211 = vmatpush1.bf16.msra.mxu0 %v2128
          %2212 = vmatprep.subr.bf16.mxu0 0
          %2213 = vmatpush1.bf16.msra.mxu0 0
          %2214 = vmatprep.subr.bf16.mxu0 0
          %2215 = vmatpush1.bf16.msra.mxu0 0
          %2216 = vmatprep.subr.bf16.mxu0 0
          %2217 = vmatpush1.bf16.msra.mxu0 0
          %2218 = vmatprep.subr.bf16.mxu0 0
          %2219 = vmatpush1.bf16.msra.mxu0 0
          %2220 = vmatprep.subr.bf16.mxu0 0
          %2221 = vmatpush1.bf16.msra.mxu0 0
          %2222 = vmatprep.subr.bf16.mxu0 0
          %2223 = vmatpush1.bf16.msra.mxu0 0
          %2224 = vmatprep.subr.bf16.mxu0 0
          %2225 = vmatpush1.bf16.msra.mxu0 0
          %2226 = vmatprep.subr.bf16.mxu0 0
          %2227 = vmatpush1.bf16.msra.mxu0 0
          %2228 = vmatprep.mubr.bf16.mxu0 0
          %2229 = vmatmul.mubr.bf16.gmra.mrb[0].mxu0 0
          %v2230 = vpop.f32.mrb[0].mxu0
          %v2231 = vadd.f32 %v2021, %v2230
          %v2232 = vpop.f32.mrb[0].mxu0
          %v2233 = vpop.f32.mrb[0].mxu0
          %v2234 = vadd.f32 %v2021, %v2233
          %v2235 = vpop.f32.mrb[0].mxu0
          %2236 = vdwg.mxu0
          %v2237 = vadd.f32 %v1970, %v2188
          %v2238 = vadd.f32 %v1973, %v2192
          %v2239 = vxor.u32 %v2237, 2147483648
          %v2240 = vxor.u32 %v2238, 2147483648
          %v2241 = vmul.f32 %v2239, 1.442695
          %v2242 = vpow.pop %v2241
          %v2243 = vmul.f32 %v2240, 1.442695
          %v2244 = vpow.pop %v2243
          %v2245 = vadd.f32 %v2242, 1.0
          %v2246 = vadd.f32 %v2244, 1.0
          %v2247 = vrcp.pop %v2245
          %v2248 = vmul.f32 1.0, %v2247
          %v2249 = vrcp.pop %v2246
          %v2250 = vmul.f32 1.0, %v2249
          %v2251 = vadd.f32 %v1971, %v2190
          %v2252 = vadd.f32 %v1974, %v2194
          %v2253 = vxor.u32 %v2251, 2147483648
          %v2254 = vxor.u32 %v2252, 2147483648
          %v2255 = vmul.f32 %v2253, 1.442695
          %v2256 = vpow.pop %v2255
          %v2257 = vmul.f32 %v2254, 1.442695
          %v2258 = vpow.pop %v2257
          %v2259 = vadd.f32 %v2256, 1.0
          %v2260 = vadd.f32 %v2258, 1.0
          %v2261 = vrcp.pop %v2259
          %v2262 = vmul.f32 1.0, %v2261
          %v2263 = vrcp.pop %v2260
          %v2264 = vmul.f32 1.0, %v2263
          %v2265 = vmul.f32 %v2248, %v2231
          %v2266 = vmul.f32 %v2250, %v2234
          %v2267 = vadd.f32 %v1972, %v2265
          %v2268 = vadd.f32 %v1975, %v2266
          %v2269 = vtanh.pop %v2267
          %v2270 = vtanh.pop %v2268
          %v2271 = vsub.f32 1.0, %v2262
          %v2272 = vsub.f32 1.0, %v2264
          %v2273 = vmul.f32 %v2271, %v2269
          %v2274 = vmul.f32 %v2272, %v2270
          %v2275 = vmul.f32 %v2262, 0.0
          %v2276 = vmul.f32 %v2264, 0.0
          %v2277 = vadd.f32 %v2273, %v2275
          %v2278 = vadd.f32 %v2274, %v2276
          %s2279 = scalar_lea.vmem [#allocation3], 24
          %v2280 = vld [vmem:[%s2279] sm:$0xff]
          %v2281 = vld [vmem:[%s2279 + $0x8] sm:$0xff]
          %v2282 = vld [vmem:[%s2279 + $0x10] sm:$0xff]
          %v2283 = vunpack.c.l.bf16 %v2280
          %v2284 = vunpack.c.l.bf16 %v2281
          %v2285 = vunpack.c.l.bf16 %v2282
          %v2286 = vunpack.c.h.bf16 %v2280
          %v2287 = vunpack.c.h.bf16 %v2281
          %v2288 = vunpack.c.h.bf16 %v2282
          %v2289 = vadd.f32 %v2283, %v1958
          %v2290 = vadd.f32 %v2284, %v1962
          %v2291 = vadd.f32 %v2285, %v1966
          %v2292 = vadd.f32 %v2286, %v1958
          %v2293 = vadd.f32 %v2287, %v1962
          %v2294 = vadd.f32 %v2288, %v1966
          %v2295 = vpack.c.bf16 %v2278, %v2277
          %2296 = vmatprep.subr.bf16.mxu0 %v2106
          %2297 = vmatpush1.bf16.msra.mxu0 %v2105
          %2298 = vmatprep.subr.bf16.mxu0 %v2109
          %2299 = vmatpush1.bf16.msra.mxu0 %v2108
          %2300 = vmatprep.subr.bf16.mxu0 %v2112
          %2301 = vmatpush1.bf16.msra.mxu0 %v2111
          %2302 = vmatprep.subr.bf16.mxu0 %v2115
          %2303 = vmatpush1.bf16.msra.mxu0 %v2114
          %2304 = vmatprep.subr.bf16.mxu0 %v2118
          %2305 = vmatpush1.bf16.msra.mxu0 %v2117
          %2306 = vmatprep.subr.bf16.mxu0 %v2121
          %2307 = vmatpush1.bf16.msra.mxu0 %v2120
          %2308 = vmatprep.subr.bf16.mxu0 %v2124
          %2309 = vmatpush1.bf16.msra.mxu0 %v2123
          %2310 = vmatprep.subr.bf16.mxu0 %v2127
          %2311 = vmatpush1.bf16.msra.mxu0 %v2126
          %2312 = vmatprep.subr.bf16.mxu0 0
          %2313 = vmatpush1.bf16.msra.mxu0 0
          %2314 = vmatprep.subr.bf16.mxu0 0
          %2315 = vmatpush1.bf16.msra.mxu0 0
          %2316 = vmatprep.subr.bf16.mxu0 0
          %2317 = vmatpush1.bf16.msra.mxu0 0
          %2318 = vmatprep.subr.bf16.mxu0 0
          %2319 = vmatpush1.bf16.msra.mxu0 0
          %2320 = vmatprep.subr.bf16.mxu0 0
          %2321 = vmatpush1.bf16.msra.mxu0 0
          %2322 = vmatprep.subr.bf16.mxu0 0
          %2323 = vmatpush1.bf16.msra.mxu0 0
          %2324 = vmatprep.subr.bf16.mxu0 0
          %2325 = vmatpush1.bf16.msra.mxu0 0
          %2326 = vmatprep.subr.bf16.mxu0 0
          %2327 = vmatpush1.bf16.msra.mxu0 0
          %2328 = vmatprep.mubr.bf16.mxu0 0
          %2329 = vmatmul.mubr.bf16.gmra.mrb[0].mxu0 %v2295
          %v2330 = vpop.f32.mrb[0].mxu0
          %v2331 = vadd.f32 %v2013, %v2330
          %v2332 = vpop.f32.mrb[0].mxu0
          %v2333 = vadd.f32 %v2017, %v2332
          %v2334 = vpop.f32.mrb[0].mxu0
          %v2335 = vadd.f32 %v2013, %v2334
          %v2336 = vpop.f32.mrb[0].mxu0
          %v2337 = vadd.f32 %v2017, %v2336
          %2338 = vdwg.mxu0
          %2339 = vmatprep.subr.bf16.mxu0 0
          %2340 = vmatpush1.bf16.msra.mxu0 %v2107
          %2341 = vmatprep.subr.bf16.mxu0 0
          %2342 = vmatpush1.bf16.msra.mxu0 %v2110
          %2343 = vmatprep.subr.bf16.mxu0 0
          %2344 = vmatpush1.bf16.msra.mxu0 %v2113
          %2345 = vmatprep.subr.bf16.mxu0 0
          %2346 = vmatpush1.bf16.msra.mxu0 %v2116
          %2347 = vmatprep.subr.bf16.mxu0 0
          %2348 = vmatpush1.bf16.msra.mxu0 %v2119
          %2349 = vmatprep.subr.bf16.mxu0 0
          %2350 = vmatpush1.bf16.msra.mxu0 %v2122
          %2351 = vmatprep.subr.bf16.mxu0 0
          %2352 = vmatpush1.bf16.msra.mxu0 %v2125
          %2353 = vmatprep.subr.bf16.mxu0 0
          %2354 = vmatpush1.bf16.msra.mxu0 %v2128
          %2355 = vmatprep.subr.bf16.mxu0 0
          %2356 = vmatpush1.bf16.msra.mxu0 0
          %2357 = vmatprep.subr.bf16.mxu0 0
          %2358 = vmatpush1.bf16.msra.mxu0 0
          %2359 = vmatprep.subr.bf16.mxu0 0
          %2360 = vmatpush1.bf16.msra.mxu0 0
          %2361 = vmatprep.subr.bf16.mxu0 0
          %2362 = vmatpush1.bf16.msra.mxu0 0
          %2363 = vmatprep.subr.bf16.mxu0 0
          %2364 = vmatpush1.bf16.msra.mxu0 0
          %2365 = vmatprep.subr.bf16.mxu0 0
          %2366 = vmatpush1.bf16.msra.mxu0 0
          %2367 = vmatprep.subr.bf16.mxu0 0
          %2368 = vmatpush1.bf16.msra.mxu0 0
          %2369 = vmatprep.subr.bf16.mxu0 0
          %2370 = vmatpush1.bf16.msra.mxu0 0
          %2371 = vmatprep.mubr.bf16.mxu0 0
          %2372 = vmatmul.mubr.bf16.gmra.mrb[0].mxu0 %v2295
          %v2373 = vpop.f32.mrb[0].mxu0
          %v2374 = vadd.f32 %v2021, %v2373
          %v2375 = vpop.f32.mrb[0].mxu0
          %v2376 = vpop.f32.mrb[0].mxu0
          %v2377 = vadd.f32 %v2021, %v2376
          %v2378 = vpop.f32.mrb[0].mxu0
          %2379 = vdwg.mxu0
          %v2380 = vadd.f32 %v2289, %v2331
          %v2381 = vadd.f32 %v2292, %v2335
          %v2382 = vxor.u32 %v2380, 2147483648
          %v2383 = vxor.u32 %v2381, 2147483648
          %v2384 = vmul.f32 %v2382, 1.442695
          %v2385 = vpow.pop %v2384
          %v2386 = vmul.f32 %v2383, 1.442695
          %v2387 = vpow.pop %v2386
          %v2388 = vadd.f32 %v2385, 1.0
          %v2389 = vadd.f32 %v2387, 1.0
          %v2390 = vrcp.pop %v2388
          %v2391 = vmul.f32 1.0, %v2390
          %v2392 = vrcp.pop %v2389
          %v2393 = vmul.f32 1.0, %v2392
          %v2394 = vadd.f32 %v2290, %v2333
          %v2395 = vadd.f32 %v2293, %v2337
          %v2396 = vxor.u32 %v2394, 2147483648
          %v2397 = vxor.u32 %v2395, 2147483648
          %v2398 = vmul.f32 %v2396, 1.442695
          %v2399 = vpow.pop %v2398
          %v2400 = vmul.f32 %v2397, 1.442695
          %v2401 = vpow.pop %v2400
          %v2402 = vadd.f32 %v2399, 1.0
          %v2403 = vadd.f32 %v2401, 1.0
          %v2404 = vrcp.pop %v2402
          %v2405 = vmul.f32 1.0, %v2404
          %v2406 = vrcp.pop %v2403
          %v2407 = vmul.f32 1.0, %v2406
          %v2408 = vmul.f32 %v2391, %v2374
          %v2409 = vmul.f32 %v2393, %v2377
          %v2410 = vadd.f32 %v2291, %v2408
          %v2411 = vadd.f32 %v2294, %v2409
          %v2412 = vtanh.pop %v2410
          %v2413 = vtanh.pop %v2411
          %v2414 = vsub.f32 1.0, %v2405
          %v2415 = vsub.f32 1.0, %v2407
          %v2416 = vmul.f32 %v2414, %v2412
          %v2417 = vmul.f32 %v2415, %v2413
          %v2418 = vmul.f32 %v2405, %v2277
          %v2419 = vmul.f32 %v2407, %v2278
          %v2420 = vadd.f32 %v2416, %v2418
          %v2421 = vadd.f32 %v2417, %v2419
          %s2422 = scalar_lea.vmem [#allocation3], 48
          %v2423 = vld [vmem:[%s2422] sm:$0xff]
          %v2424 = vld [vmem:[%s2422 + $0x8] sm:$0xff]
          %v2425 = vld [vmem:[%s2422 + $0x10] sm:$0xff]
          %v2426 = vunpack.c.l.bf16 %v2423
          %v2427 = vunpack.c.l.bf16 %v2424
          %v2428 = vunpack.c.l.bf16 %v2425
          %v2429 = vunpack.c.h.bf16 %v2423
          %v2430 = vunpack.c.h.bf16 %v2424
          %v2431 = vunpack.c.h.bf16 %v2425
          %v2432 = vadd.f32 %v2426, %v1958
          %v2433 = vadd.f32 %v2427, %v1962
          %v2434 = vadd.f32 %v2428, %v1966
          %v2435 = vadd.f32 %v2429, %v1958
          %v2436 = vadd.f32 %v2430, %v1962
          %v2437 = vadd.f32 %v2431, %v1966
          %v2438 = vpack.c.bf16 %v2421, %v2420
          %2439 = vmatprep.subr.bf16.mxu0 %v2106
          %2440 = vmatpush1.bf16.msra.mxu0 %v2105
          %2441 = vmatprep.subr.bf16.mxu0 %v2109
          %2442 = vmatpush1.bf16.msra.mxu0 %v2108
          %2443 = vmatprep.subr.bf16.mxu0 %v2112
          %2444 = vmatpush1.bf16.msra.mxu0 %v2111
          %2445 = vmatprep.subr.bf16.mxu0 %v2115
          %2446 = vmatpush1.bf16.msra.mxu0 %v2114
          %2447 = vmatprep.subr.bf16.mxu0 %v2118
          %2448 = vmatpush1.bf16.msra.mxu0 %v2117
          %2449 = vmatprep.subr.bf16.mxu0 %v2121
          %2450 = vmatpush1.bf16.msra.mxu0 %v2120
          %2451 = vmatprep.subr.bf16.mxu0 %v2124
          %2452 = vmatpush1.bf16.msra.mxu0 %v2123
          %2453 = vmatprep.subr.bf16.mxu0 %v2127
          %2454 = vmatpush1.bf16.msra.mxu0 %v2126
          %2455 = vmatprep.subr.bf16.mxu0 0
          %2456 = vmatpush1.bf16.msra.mxu0 0
          %2457 = vmatprep.subr.bf16.mxu0 0
          %2458 = vmatpush1.bf16.msra.mxu0 0
          %2459 = vmatprep.subr.bf16.mxu0 0
          %2460 = vmatpush1.bf16.msra.mxu0 0
          %2461 = vmatprep.subr.bf16.mxu0 0
          %2462 = vmatpush1.bf16.msra.mxu0 0
          %2463 = vmatprep.subr.bf16.mxu0 0
          %2464 = vmatpush1.bf16.msra.mxu0 0
          %2465 = vmatprep.subr.bf16.mxu0 0
          %2466 = vmatpush1.bf16.msra.mxu0 0
          %2467 = vmatprep.subr.bf16.mxu0 0
          %2468 = vmatpush1.bf16.msra.mxu0 0
          %2469 = vmatprep.subr.bf16.mxu0 0
          %2470 = vmatpush1.bf16.msra.mxu0 0
          %2471 = vmatprep.mubr.bf16.mxu0 0
          %2472 = vmatmul.mubr.bf16.gmra.mrb[0].mxu0 %v2438
          %v2473 = vpop.f32.mrb[0].mxu0
          %v2474 = vadd.f32 %v2013, %v2473
          %v2475 = vpop.f32.mrb[0].mxu0
          %v2476 = vadd.f32 %v2017, %v2475
          %v2477 = vpop.f32.mrb[0].mxu0
          %v2478 = vadd.f32 %v2013, %v2477
          %v2479 = vpop.f32.mrb[0].mxu0
          %v2480 = vadd.f32 %v2017, %v2479
          %2481 = vdwg.mxu0
          %2482 = vmatprep.subr.bf16.mxu0 0
          %2483 = vmatpush1.bf16.msra.mxu0 %v2107
          %2484 = vmatprep.subr.bf16.mxu0 0
          %2485 = vmatpush1.bf16.msra.mxu0 %v2110
          %2486 = vmatprep.subr.bf16.mxu0 0
          %2487 = vmatpush1.bf16.msra.mxu0 %v2113
          %2488 = vmatprep.subr.bf16.mxu0 0
          %2489 = vmatpush1.bf16.msra.mxu0 %v2116
          %2490 = vmatprep.subr.bf16.mxu0 0
          %2491 = vmatpush1.bf16.msra.mxu0 %v2119
          %2492 = vmatprep.subr.bf16.mxu0 0
          %2493 = vmatpush1.bf16.msra.mxu0 %v2122
          %2494 = vmatprep.subr.bf16.mxu0 0
          %2495 = vmatpush1.bf16.msra.mxu0 %v2125
          %2496 = vmatprep.subr.bf16.mxu0 0
          %2497 = vmatpush1.bf16.msra.mxu0 %v2128
          %2498 = vmatprep.subr.bf16.mxu0 0
          %2499 = vmatpush1.bf16.msra.mxu0 0
          %2500 = vmatprep.subr.bf16.mxu0 0
          %2501 = vmatpush1.bf16.msra.mxu0 0
          %2502 = vmatprep.subr.bf16.mxu0 0
          %2503 = vmatpush1.bf16.msra.mxu0 0
          %2504 = vmatprep.subr.bf16.mxu0 0
          %2505 = vmatpush1.bf16.msra.mxu0 0
          %2506 = vmatprep.subr.bf16.mxu0 0
          %2507 = vmatpush1.bf16.msra.mxu0 0
          %2508 = vmatprep.subr.bf16.mxu0 0
          %2509 = vmatpush1.bf16.msra.mxu0 0
          %2510 = vmatprep.subr.bf16.mxu0 0
          %2511 = vmatpush1.bf16.msra.mxu0 0
          %2512 = vmatprep.subr.bf16.mxu0 0
          %2513 = vmatpush1.bf16.msra.mxu0 0
          %2514 = vmatprep.mubr.bf16.mxu0 0
          %2515 = vmatmul.mubr.bf16.gmra.mrb[0].mxu0 %v2438
          %v2516 = vpop.f32.mrb[0].mxu0
          %v2517 = vadd.f32 %v2021, %v2516
          %v2518 = vpop.f32.mrb[0].mxu0
          %v2519 = vpop.f32.mrb[0].mxu0
          %v2520 = vadd.f32 %v2021, %v2519
          %v2521 = vpop.f32.mrb[0].mxu0
          %2522 = vdwg.mxu0
          %v2523 = vadd.f32 %v2432, %v2474
          %v2524 = vadd.f32 %v2435, %v2478
          %v2525 = vxor.u32 %v2523, 2147483648
          %v2526 = vxor.u32 %v2524, 2147483648
          %v2527 = vmul.f32 %v2525, 1.442695
          %v2528 = vpow.pop %v2527
          %v2529 = vmul.f32 %v2526, 1.442695
          %v2530 = vpow.pop %v2529
          %v2531 = vadd.f32 %v2528, 1.0
          %v2532 = vadd.f32 %v2530, 1.0
          %v2533 = vrcp.pop %v2531
          %v2534 = vmul.f32 1.0, %v2533
          %v2535 = vrcp.pop %v2532
          %v2536 = vmul.f32 1.0, %v2535
          %v2537 = vadd.f32 %v2433, %v2476
          %v2538 = vadd.f32 %v2436, %v2480
          %v2539 = vxor.u32 %v2537, 2147483648
          %v2540 = vxor.u32 %v2538, 2147483648
          %v2541 = vmul.f32 %v2539, 1.442695
          %v2542 = vpow.pop %v2541
          %v2543 = vmul.f32 %v2540, 1.442695
          %v2544 = vpow.pop %v2543
          %v2545 = vadd.f32 %v2542, 1.0
          %v2546 = vadd.f32 %v2544, 1.0
          %v2547 = vrcp.pop %v2545
          %v2548 = vmul.f32 1.0, %v2547
          %v2549 = vrcp.pop %v2546
          %v2550 = vmul.f32 1.0, %v2549
          %v2551 = vmul.f32 %v2534, %v2517
          %v2552 = vmul.f32 %v2536, %v2520
          %v2553 = vadd.f32 %v2434, %v2551
          %v2554 = vadd.f32 %v2437, %v2552
          %v2555 = vtanh.pop %v2553
          %v2556 = vtanh.pop %v2554
          %v2557 = vsub.f32 1.0, %v2548
          %v2558 = vsub.f32 1.0, %v2550
          %v2559 = vmul.f32 %v2557, %v2555
          %v2560 = vmul.f32 %v2558, %v2556
          %v2561 = vmul.f32 %v2548, %v2420
          %v2562 = vmul.f32 %v2550, %v2421
          %v2563 = vadd.f32 %v2559, %v2561
          %v2564 = vadd.f32 %v2560, %v2562
          %s2565 = scalar_lea.vmem [#allocation3], 72
          %v2566 = vld [vmem:[%s2565] sm:$0xff]
          %v2567 = vld [vmem:[%s2565 + $0x8] sm:$0xff]
          %v2568 = vld [vmem:[%s2565 + $0x10] sm:$0xff]
          %v2569 = vunpack.c.l.bf16 %v2566
          %v2570 = vunpack.c.l.bf16 %v2567
          %v2571 = vunpack.c.l.bf16 %v2568
          %v2572 = vunpack.c.h.bf16 %v2566
          %v2573 = vunpack.c.h.bf16 %v2567
          %v2574 = vunpack.c.h.bf16 %v2568
          %v2575 = vadd.f32 %v2569, %v1958
          %v2576 = vadd.f32 %v2570, %v1962
          %v2577 = vadd.f32 %v2571, %v1966
          %v2578 = vadd.f32 %v2572, %v1958
          %v2579 = vadd.f32 %v2573, %v1962
          %v2580 = vadd.f32 %v2574, %v1966
          %v2581 = vpack.c.bf16 %v2564, %v2563
          %2582 = vmatprep.subr.bf16.mxu0 %v2106
          %2583 = vmatpush1.bf16.msra.mxu0 %v2105
          %2584 = vmatprep.subr.bf16.mxu0 %v2109
          %2585 = vmatpush1.bf16.msra.mxu0 %v2108
          %2586 = vmatprep.subr.bf16.mxu0 %v2112
          %2587 = vmatpush1.bf16.msra.mxu0 %v2111
          %2588 = vmatprep.subr.bf16.mxu0 %v2115
          %2589 = vmatpush1.bf16.msra.mxu0 %v2114
          %2590 = vmatprep.subr.bf16.mxu0 %v2118
          %2591 = vmatpush1.bf16.msra.mxu0 %v2117
          %2592 = vmatprep.subr.bf16.mxu0 %v2121
          %2593 = vmatpush1.bf16.msra.mxu0 %v2120
          %2594 = vmatprep.subr.bf16.mxu0 %v2124
          %2595 = vmatpush1.bf16.msra.mxu0 %v2123
          %2596 = vmatprep.subr.bf16.mxu0 %v2127
          %2597 = vmatpush1.bf16.msra.mxu0 %v2126
          %2598 = vmatprep.subr.bf16.mxu0 0
          %2599 = vmatpush1.bf16.msra.mxu0 0
          %2600 = vmatprep.subr.bf16.mxu0 0
          %2601 = vmatpush1.bf16.msra.mxu0 0
          %2602 = vmatprep.subr.bf16.mxu0 0
          %2603 = vmatpush1.bf16.msra.mxu0 0
          %2604 = vmatprep.subr.bf16.mxu0 0
          %2605 = vmatpush1.bf16.msra.mxu0 0
          %2606 = vmatprep.subr.bf16.mxu0 0
          %2607 = vmatpush1.bf16.msra.mxu0 0
          %2608 = vmatprep.subr.bf16.mxu0 0
          %2609 = vmatpush1.bf16.msra.mxu0 0
          %2610 = vmatprep.subr.bf16.mxu0 0
          %2611 = vmatpush1.bf16.msra.mxu0 0
          %2612 = vmatprep.subr.bf16.mxu0 0
          %2613 = vmatpush1.bf16.msra.mxu0 0
          %2614 = vmatprep.mubr.bf16.mxu0 0
          %2615 = vmatmul.mubr.bf16.gmra.mrb[0].mxu0 %v2581
          %v2616 = vpop.f32.mrb[0].mxu0
          %v2617 = vadd.f32 %v2013, %v2616
          %v2618 = vpop.f32.mrb[0].mxu0
          %v2619 = vadd.f32 %v2017, %v2618
          %v2620 = vpop.f32.mrb[0].mxu0
          %v2621 = vadd.f32 %v2013, %v2620
          %v2622 = vpop.f32.mrb[0].mxu0
          %v2623 = vadd.f32 %v2017, %v2622
          %2624 = vdwg.mxu0
          %2625 = vmatprep.subr.bf16.mxu0 0
          %2626 = vmatpush1.bf16.msra.mxu0 %v2107
          %2627 = vmatprep.subr.bf16.mxu0 0
          %2628 = vmatpush1.bf16.msra.mxu0 %v2110
          %2629 = vmatprep.subr.bf16.mxu0 0
          %2630 = vmatpush1.bf16.msra.mxu0 %v2113
          %2631 = vmatprep.subr.bf16.mxu0 0
          %2632 = vmatpush1.bf16.msra.mxu0 %v2116
          %2633 = vmatprep.subr.bf16.mxu0 0
          %2634 = vmatpush1.bf16.msra.mxu0 %v2119
          %2635 = vmatprep.subr.bf16.mxu0 0
          %2636 = vmatpush1.bf16.msra.mxu0 %v2122
          %2637 = vmatprep.subr.bf16.mxu0 0
          %2638 = vmatpush1.bf16.msra.mxu0 %v2125
          %2639 = vmatprep.subr.bf16.mxu0 0
          %2640 = vmatpush1.bf16.msra.mxu0 %v2128
          %2641 = vmatprep.subr.bf16.mxu0 0
          %2642 = vmatpush1.bf16.msra.mxu0 0
          %2643 = vmatprep.subr.bf16.mxu0 0
          %2644 = vmatpush1.bf16.msra.mxu0 0
          %2645 = vmatprep.subr.bf16.mxu0 0
          %2646 = vmatpush1.bf16.msra.mxu0 0
          %2647 = vmatprep.subr.bf16.mxu0 0
          %2648 = vmatpush1.bf16.msra.mxu0 0
          %2649 = vmatprep.subr.bf16.mxu0 0
          %2650 = vmatpush1.bf16.msra.mxu0 0
          %2651 = vmatprep.subr.bf16.mxu0 0
          %2652 = vmatpush1.bf16.msra.mxu0 0
          %2653 = vmatprep.subr.bf16.mxu0 0
          %2654 = vmatpush1.bf16.msra.mxu0 0
          %2655 = vmatprep.subr.bf16.mxu0 0
          %2656 = vmatpush1.bf16.msra.mxu0 0
          %2657 = vmatprep.mubr.bf16.mxu0 0
          %2658 = vmatmul.mubr.bf16.gmra.mrb[0].mxu0 %v2581
          %v2659 = vpop.f32.mrb[0].mxu0
          %v2660 = vadd.f32 %v2021, %v2659
          %v2661 = vpop.f32.mrb[0].mxu0
          %v2662 = vpop.f32.mrb[0].mxu0
          %v2663 = vadd.f32 %v2021, %v2662
          %v2664 = vpop.f32.mrb[0].mxu0
          %2665 = vdwg.mxu0
          %v2666 = vadd.f32 %v2575, %v2617
          %v2667 = vadd.f32 %v2578, %v2621
          %v2668 = vxor.u32 %v2666, 2147483648
          %v2669 = vxor.u32 %v2667, 2147483648
          %v2670 = vmul.f32 %v2668, 1.442695
          %v2671 = vpow.pop %v2670
          %v2672 = vmul.f32 %v2669, 1.442695
          %v2673 = vpow.pop %v2672
          %v2674 = vadd.f32 %v2671, 1.0
          %v2675 = vadd.f32 %v2673, 1.0
          %v2676 = vrcp.pop %v2674
          %v2677 = vmul.f32 1.0, %v2676
          %v2678 = vrcp.pop %v2675
          %v2679 = vmul.f32 1.0, %v2678
          %v2680 = vadd.f32 %v2576, %v2619
          %v2681 = vadd.f32 %v2579, %v2623
          %v2682 = vxor.u32 %v2680, 2147483648
          %v2683 = vxor.u32 %v2681, 2147483648
          %v2684 = vmul.f32 %v2682, 1.442695
          %v2685 = vpow.pop %v2684
          %v2686 = vmul.f32 %v2683, 1.442695
          %v2687 = vpow.pop %v2686
          %v2688 = vadd.f32 %v2685, 1.0
          %v2689 = vadd.f32 %v2687, 1.0
          %v2690 = vrcp.pop %v2688
          %v2691 = vmul.f32 1.0, %v2690
          %v2692 = vrcp.pop %v2689
          %v2693 = vmul.f32 1.0, %v2692
          %v2694 = vmul.f32 %v2677, %v2660
          %v2695 = vmul.f32 %v2679, %v2663
          %v2696 = vadd.f32 %v2577, %v2694
          %v2697 = vadd.f32 %v2580, %v2695
          %v2698 = vtanh.pop %v2696
          %v2699 = vtanh.pop %v2697
          %v2700 = vsub.f32 1.0, %v2691
          %v2701 = vsub.f32 1.0, %v2693
          %v2702 = vmul.f32 %v2700, %v2698
          %v2703 = vmul.f32 %v2701, %v2699
          %v2704 = vmul.f32 %v2691, %v2563
          %v2705 = vmul.f32 %v2693, %v2564
          %v2706 = vadd.f32 %v2702, %v2704
          %v2707 = vadd.f32 %v2703, %v2705
          %s2708 = scalar_lea.vmem [#allocation3], 96
          %v2709 = vld [vmem:[%s2708] sm:$0xff]
          %v2710 = vld [vmem:[%s2708 + $0x8] sm:$0xff]
          %v2711 = vld [vmem:[%s2708 + $0x10] sm:$0xff]
          %v2712 = vunpack.c.l.bf16 %v2709
          %v2713 = vunpack.c.l.bf16 %v2710
          %v2714 = vunpack.c.l.bf16 %v2711
          %v2715 = vunpack.c.h.bf16 %v2709
          %v2716 = vunpack.c.h.bf16 %v2710
          %v2717 = vunpack.c.h.bf16 %v2711
          %v2718 = vadd.f32 %v2712, %v1958
          %v2719 = vadd.f32 %v2713, %v1962
          %v2720 = vadd.f32 %v2714, %v1966
          %v2721 = vadd.f32 %v2715, %v1958
          %v2722 = vadd.f32 %v2716, %v1962
          %v2723 = vadd.f32 %v2717, %v1966
          %v2724 = vpack.c.bf16 %v2707, %v2706
          %2725 = vmatprep.subr.bf16.mxu0 %v2106
          %2726 = vmatpush1.bf16.msra.mxu0 %v2105
          %2727 = vmatprep.subr.bf16.mxu0 %v2109
          %2728 = vmatpush1.bf16.msra.mxu0 %v2108
          %2729 = vmatprep.subr.bf16.mxu0 %v2112
          %2730 = vmatpush1.bf16.msra.mxu0 %v2111
          %2731 = vmatprep.subr.bf16.mxu0 %v2115
          %2732 = vmatpush1.bf16.msra.mxu0 %v2114
          %2733 = vmatprep.subr.bf16.mxu0 %v2118
          %2734 = vmatpush1.bf16.msra.mxu0 %v2117
          %2735 = vmatprep.subr.bf16.mxu0 %v2121
          %2736 = vmatpush1.bf16.msra.mxu0 %v2120
          %2737 = vmatprep.subr.bf16.mxu0 %v2124
          %2738 = vmatpush1.bf16.msra.mxu0 %v2123
          %2739 = vmatprep.subr.bf16.mxu0 %v2127
          %2740 = vmatpush1.bf16.msra.mxu0 %v2126
          %2741 = vmatprep.subr.bf16.mxu0 0
          %2742 = vmatpush1.bf16.msra.mxu0 0
          %2743 = vmatprep.subr.bf16.mxu0 0
          %2744 = vmatpush1.bf16.msra.mxu0 0
          %2745 = vmatprep.subr.bf16.mxu0 0
          %2746 = vmatpush1.bf16.msra.mxu0 0
          %2747 = vmatprep.subr.bf16.mxu0 0
          %2748 = vmatpush1.bf16.msra.mxu0 0
          %2749 = vmatprep.subr.bf16.mxu0 0
          %2750 = vmatpush1.bf16.msra.mxu0 0
          %2751 = vmatprep.subr.bf16.mxu0 0
          %2752 = vmatpush1.bf16.msra.mxu0 0
          %2753 = vmatprep.subr.bf16.mxu0 0
          %2754 = vmatpush1.bf16.msra.mxu0 0
          %2755 = vmatprep.subr.bf16.mxu0 0
          %2756 = vmatpush1.bf16.msra.mxu0 0
          %2757 = vmatprep.mubr.bf16.mxu0 0
          %2758 = vmatmul.mubr.bf16.gmra.mrb[0].mxu0 %v2724
          %v2759 = vpop.f32.mrb[0].mxu0
          %v2760 = vadd.f32 %v2013, %v2759
          %v2761 = vpop.f32.mrb[0].mxu0
          %v2762 = vadd.f32 %v2017, %v2761
          %v2763 = vpop.f32.mrb[0].mxu0
          %v2764 = vadd.f32 %v2013, %v2763
          %v2765 = vpop.f32.mrb[0].mxu0
          %v2766 = vadd.f32 %v2017, %v2765
          %2767 = vdwg.mxu0
          %2768 = vmatprep.subr.bf16.mxu0 0
          %2769 = vmatpush1.bf16.msra.mxu0 %v2107
          %2770 = vmatprep.subr.bf16.mxu0 0
          %2771 = vmatpush1.bf16.msra.mxu0 %v2110
          %2772 = vmatprep.subr.bf16.mxu0 0
          %2773 = vmatpush1.bf16.msra.mxu0 %v2113
          %2774 = vmatprep.subr.bf16.mxu0 0
          %2775 = vmatpush1.bf16.msra.mxu0 %v2116
          %2776 = vmatprep.subr.bf16.mxu0 0
          %2777 = vmatpush1.bf16.msra.mxu0 %v2119
          %2778 = vmatprep.subr.bf16.mxu0 0
          %2779 = vmatpush1.bf16.msra.mxu0 %v2122
          %2780 = vmatprep.subr.bf16.mxu0 0
          %2781 = vmatpush1.bf16.msra.mxu0 %v2125
          %2782 = vmatprep.subr.bf16.mxu0 0
          %2783 = vmatpush1.bf16.msra.mxu0 %v2128
          %2784 = vmatprep.subr.bf16.mxu0 0
          %2785 = vmatpush1.bf16.msra.mxu0 0
          %2786 = vmatprep.subr.bf16.mxu0 0
          %2787 = vmatpush1.bf16.msra.mxu0 0
          %2788 = vmatprep.subr.bf16.mxu0 0
          %2789 = vmatpush1.bf16.msra.mxu0 0
          %2790 = vmatprep.subr.bf16.mxu0 0
          %2791 = vmatpush1.bf16.msra.mxu0 0
          %2792 = vmatprep.subr.bf16.mxu0 0
          %2793 = vmatpush1.bf16.msra.mxu0 0
          %2794 = vmatprep.subr.bf16.mxu0 0
          %2795 = vmatpush1.bf16.msra.mxu0 0
          %2796 = vmatprep.subr.bf16.mxu0 0
          %2797 = vmatpush1.bf16.msra.mxu0 0
          %2798 = vmatprep.subr.bf16.mxu0 0
          %2799 = vmatpush1.bf16.msra.mxu0 0
          %2800 = vmatprep.mubr.bf16.mxu0 0
          %2801 = vmatmul.mubr.bf16.gmra.mrb[0].mxu0 %v2724
          %v2802 = vpop.f32.mrb[0].mxu0
          %v2803 = vadd.f32 %v2021, %v2802
          %v2804 = vpop.f32.mrb[0].mxu0
          %v2805 = vpop.f32.mrb[0].mxu0
          %v2806 = vadd.f32 %v2021, %v2805
          %v2807 = vpop.f32.mrb[0].mxu0
          %2808 = vdwg.mxu0
          %v2809 = vadd.f32 %v2718, %v2760
          %v2810 = vadd.f32 %v2721, %v2764
          %v2811 = vxor.u32 %v2809, 2147483648
          %v2812 = vxor.u32 %v2810, 2147483648
          %v2813 = vmul.f32 %v2811, 1.442695
          %v2814 = vpow.pop %v2813
          %v2815 = vmul.f32 %v2812, 1.442695
          %v2816 = vpow.pop %v2815
          %v2817 = vadd.f32 %v2814, 1.0
          %v2818 = vadd.f32 %v2816, 1.0
          %v2819 = vrcp.pop %v2817
          %v2820 = vmul.f32 1.0, %v2819
          %v2821 = vrcp.pop %v2818
          %v2822 = vmul.f32 1.0, %v2821
          %v2823 = vadd.f32 %v2719, %v2762
          %v2824 = vadd.f32 %v2722, %v2766
          %v2825 = vxor.u32 %v2823, 2147483648
          %v2826 = vxor.u32 %v2824, 2147483648
          %v2827 = vmul.f32 %v2825, 1.442695
          %v2828 = vpow.pop %v2827
          %v2829 = vmul.f32 %v2826, 1.442695
          %v2830 = vpow.pop %v2829
          %v2831 = vadd.f32 %v2828, 1.0
          %v2832 = vadd.f32 %v2830, 1.0
          %v2833 = vrcp.pop %v2831
          %v2834 = vmul.f32 1.0, %v2833
          %v2835 = vrcp.pop %v2832
          %v2836 = vmul.f32 1.0, %v2835
          %v2837 = vmul.f32 %v2820, %v2803
          %v2838 = vmul.f32 %v2822, %v2806
          %v2839 = vadd.f32 %v2720, %v2837
          %v2840 = vadd.f32 %v2723, %v2838
          %v2841 = vtanh.pop %v2839
          %v2842 = vtanh.pop %v2840
          %v2843 = vsub.f32 1.0, %v2834
          %v2844 = vsub.f32 1.0, %v2836
          %v2845 = vmul.f32 %v2843, %v2841
          %v2846 = vmul.f32 %v2844, %v2842
          %v2847 = vmul.f32 %v2834, %v2706
          %v2848 = vmul.f32 %v2836, %v2707
          %v2849 = vadd.f32 %v2845, %v2847
          %v2850 = vadd.f32 %v2846, %v2848
          %s2851 = scalar_lea.vmem [#allocation3], 120
          %v2852 = vld [vmem:[%s2851] sm:$0xff]
          %v2853 = vld [vmem:[%s2851 + $0x8] sm:$0xff]
          %v2854 = vld [vmem:[%s2851 + $0x10] sm:$0xff]
          %v2855 = vunpack.c.l.bf16 %v2852
          %v2856 = vunpack.c.l.bf16 %v2853
          %v2857 = vunpack.c.l.bf16 %v2854
          %v2858 = vunpack.c.h.bf16 %v2852
          %v2859 = vunpack.c.h.bf16 %v2853
          %v2860 = vunpack.c.h.bf16 %v2854
          %v2861 = vadd.f32 %v2855, %v1958
          %v2862 = vadd.f32 %v2856, %v1962
          %v2863 = vadd.f32 %v2857, %v1966
          %v2864 = vadd.f32 %v2858, %v1958
          %v2865 = vadd.f32 %v2859, %v1962
          %v2866 = vadd.f32 %v2860, %v1966
          %v2867 = vpack.c.bf16 %v2850, %v2849
          %2868 = vmatprep.subr.bf16.mxu0 %v2106
          %2869 = vmatpush1.bf16.msra.mxu0 %v2105
          %2870 = vmatprep.subr.bf16.mxu0 %v2109
          %2871 = vmatpush1.bf16.msra.mxu0 %v2108
          %2872 = vmatprep.subr.bf16.mxu0 %v2112
          %2873 = vmatpush1.bf16.msra.mxu0 %v2111
          %2874 = vmatprep.subr.bf16.mxu0 %v2115
          %2875 = vmatpush1.bf16.msra.mxu0 %v2114
          %2876 = vmatprep.subr.bf16.mxu0 %v2118
          %2877 = vmatpush1.bf16.msra.mxu0 %v2117
          %2878 = vmatprep.subr.bf16.mxu0 %v2121
          %2879 = vmatpush1.bf16.msra.mxu0 %v2120
          %2880 = vmatprep.subr.bf16.mxu0 %v2124
          %2881 = vmatpush1.bf16.msra.mxu0 %v2123
          %2882 = vmatprep.subr.bf16.mxu0 %v2127
          %2883 = vmatpush1.bf16.msra.mxu0 %v2126
          %2884 = vmatprep.subr.bf16.mxu0 0
          %2885 = vmatpush1.bf16.msra.mxu0 0
          %2886 = vmatprep.subr.bf16.mxu0 0
          %2887 = vmatpush1.bf16.msra.mxu0 0
          %2888 = vmatprep.subr.bf16.mxu0 0
          %2889 = vmatpush1.bf16.msra.mxu0 0
          %2890 = vmatprep.subr.bf16.mxu0 0
          %2891 = vmatpush1.bf16.msra.mxu0 0
          %2892 = vmatprep.subr.bf16.mxu0 0
          %2893 = vmatpush1.bf16.msra.mxu0 0
          %2894 = vmatprep.subr.bf16.mxu0 0
          %2895 = vmatpush1.bf16.msra.mxu0 0
          %2896 = vmatprep.subr.bf16.mxu0 0
          %2897 = vmatpush1.bf16.msra.mxu0 0
          %2898 = vmatprep.subr.bf16.mxu0 0
          %2899 = vmatpush1.bf16.msra.mxu0 0
          %2900 = vmatprep.mubr.bf16.mxu0 0
          %2901 = vmatmul.mubr.bf16.gmra.mrb[0].mxu0 %v2867
          %v2902 = vpop.f32.mrb[0].mxu0
          %v2903 = vadd.f32 %v2013, %v2902
          %v2904 = vpop.f32.mrb[0].mxu0
          %v2905 = vadd.f32 %v2017, %v2904
          %v2906 = vpop.f32.mrb[0].mxu0
          %v2907 = vadd.f32 %v2013, %v2906
          %v2908 = vpop.f32.mrb[0].mxu0
          %v2909 = vadd.f32 %v2017, %v2908
          %2910 = vdwg.mxu0
          %2911 = vmatprep.subr.bf16.mxu0 0
          %2912 = vmatpush1.bf16.msra.mxu0 %v2107
          %2913 = vmatprep.subr.bf16.mxu0 0
          %2914 = vmatpush1.bf16.msra.mxu0 %v2110
          %2915 = vmatprep.subr.bf16.mxu0 0
          %2916 = vmatpush1.bf16.msra.mxu0 %v2113
          %2917 = vmatprep.subr.bf16.mxu0 0
          %2918 = vmatpush1.bf16.msra.mxu0 %v2116
          %2919 = vmatprep.subr.bf16.mxu0 0
          %2920 = vmatpush1.bf16.msra.mxu0 %v2119
          %2921 = vmatprep.subr.bf16.mxu0 0
          %2922 = vmatpush1.bf16.msra.mxu0 %v2122
          %2923 = vmatprep.subr.bf16.mxu0 0
          %2924 = vmatpush1.bf16.msra.mxu0 %v2125
          %2925 = vmatprep.subr.bf16.mxu0 0
          %2926 = vmatpush1.bf16.msra.mxu0 %v2128
          %2927 = vmatprep.subr.bf16.mxu0 0
          %2928 = vmatpush1.bf16.msra.mxu0 0
          %2929 = vmatprep.subr.bf16.mxu0 0
          %2930 = vmatpush1.bf16.msra.mxu0 0
          %2931 = vmatprep.subr.bf16.mxu0 0
          %2932 = vmatpush1.bf16.msra.mxu0 0
          %2933 = vmatprep.subr.bf16.mxu0 0
          %2934 = vmatpush1.bf16.msra.mxu0 0
          %2935 = vmatprep.subr.bf16.mxu0 0
          %2936 = vmatpush1.bf16.msra.mxu0 0
          %2937 = vmatprep.subr.bf16.mxu0 0
          %2938 = vmatpush1.bf16.msra.mxu0 0
          %2939 = vmatprep.subr.bf16.mxu0 0
          %2940 = vmatpush1.bf16.msra.mxu0 0
          %2941 = vmatprep.subr.bf16.mxu0 0
          %2942 = vmatpush1.bf16.msra.mxu0 0
          %2943 = vmatprep.mubr.bf16.mxu0 0
          %2944 = vmatmul.mubr.bf16.gmra.mrb[0].mxu0 %v2867
          %v2945 = vpop.f32.mrb[0].mxu0
          %v2946 = vadd.f32 %v2021, %v2945
          %v2947 = vpop.f32.mrb[0].mxu0
          %v2948 = vpop.f32.mrb[0].mxu0
          %v2949 = vadd.f32 %v2021, %v2948
          %v2950 = vpop.f32.mrb[0].mxu0
          %2951 = vdwg.mxu0
          %v2952 = vadd.f32 %v2861, %v2903
          %v2953 = vadd.f32 %v2864, %v2907
          %v2954 = vxor.u32 %v2952, 2147483648
          %v2955 = vxor.u32 %v2953, 2147483648
          %v2956 = vmul.f32 %v2954, 1.442695
          %v2957 = vpow.pop %v2956
          %v2958 = vmul.f32 %v2955, 1.442695
          %v2959 = vpow.pop %v2958
          %v2960 = vadd.f32 %v2957, 1.0
          %v2961 = vadd.f32 %v2959, 1.0
          %v2962 = vrcp.pop %v2960
          %v2963 = vmul.f32 1.0, %v2962
          %v2964 = vrcp.pop %v2961
          %v2965 = vmul.f32 1.0, %v2964
          %v2966 = vadd.f32 %v2862, %v2905
          %v2967 = vadd.f32 %v2865, %v2909
          %v2968 = vxor.u32 %v2966, 2147483648
          %v2969 = vxor.u32 %v2967, 2147483648
          %v2970 = vmul.f32 %v2968, 1.442695
          %v2971 = vpow.pop %v2970
          %v2972 = vmul.f32 %v2969, 1.442695
          %v2973 = vpow.pop %v2972
          %v2974 = vadd.f32 %v2971, 1.0
          %v2975 = vadd.f32 %v2973, 1.0
          %v2976 = vrcp.pop %v2974
          %v2977 = vmul.f32 1.0, %v2976
          %v2978 = vrcp.pop %v2975
          %v2979 = vmul.f32 1.0, %v2978
          %v2980 = vmul.f32 %v2963, %v2946
          %v2981 = vmul.f32 %v2965, %v2949
          %v2982 = vadd.f32 %v2863, %v2980
          %v2983 = vadd.f32 %v2866, %v2981
          %v2984 = vtanh.pop %v2982
          %v2985 = vtanh.pop %v2983
          %v2986 = vsub.f32 1.0, %v2977
          %v2987 = vsub.f32 1.0, %v2979
          %v2988 = vmul.f32 %v2986, %v2984
          %v2989 = vmul.f32 %v2987, %v2985
          %v2990 = vmul.f32 %v2977, %v2849
          %v2991 = vmul.f32 %v2979, %v2850
          %v2992 = vadd.f32 %v2988, %v2990
          %v2993 = vadd.f32 %v2989, %v2991
          %s2994 = scalar_lea.vmem [#allocation3], 144
          %v2995 = vld [vmem:[%s2994] sm:$0xff]
          %v2996 = vld [vmem:[%s2994 + $0x8] sm:$0xff]
          %v2997 = vld [vmem:[%s2994 + $0x10] sm:$0xff]
          %v2998 = vunpack.c.l.bf16 %v2995
          %v2999 = vunpack.c.l.bf16 %v2996
          %v3000 = vunpack.c.l.bf16 %v2997
          %v3001 = vunpack.c.h.bf16 %v2995
          %v3002 = vunpack.c.h.bf16 %v2996
          %v3003 = vunpack.c.h.bf16 %v2997
          %v3004 = vadd.f32 %v2998, %v1958
          %v3005 = vadd.f32 %v2999, %v1962
          %v3006 = vadd.f32 %v3000, %v1966
          %v3007 = vadd.f32 %v3001, %v1958
          %v3008 = vadd.f32 %v3002, %v1962
          %v3009 = vadd.f32 %v3003, %v1966
          %v3010 = vpack.c.bf16 %v2993, %v2992
          %3011 = vmatprep.subr.bf16.mxu0 %v2106
          %3012 = vmatpush1.bf16.msra.mxu0 %v2105
          %3013 = vmatprep.subr.bf16.mxu0 %v2109
          %3014 = vmatpush1.bf16.msra.mxu0 %v2108
          %3015 = vmatprep.subr.bf16.mxu0 %v2112
          %3016 = vmatpush1.bf16.msra.mxu0 %v2111
          %3017 = vmatprep.subr.bf16.mxu0 %v2115
          %3018 = vmatpush1.bf16.msra.mxu0 %v2114
          %3019 = vmatprep.subr.bf16.mxu0 %v2118
          %3020 = vmatpush1.bf16.msra.mxu0 %v2117
          %3021 = vmatprep.subr.bf16.mxu0 %v2121
          %3022 = vmatpush1.bf16.msra.mxu0 %v2120
          %3023 = vmatprep.subr.bf16.mxu0 %v2124
          %3024 = vmatpush1.bf16.msra.mxu0 %v2123
          %3025 = vmatprep.subr.bf16.mxu0 %v2127
          %3026 = vmatpush1.bf16.msra.mxu0 %v2126
          %3027 = vmatprep.subr.bf16.mxu0 0
          %3028 = vmatpush1.bf16.msra.mxu0 0
          %3029 = vmatprep.subr.bf16.mxu0 0
          %3030 = vmatpush1.bf16.msra.mxu0 0
          %3031 = vmatprep.subr.bf16.mxu0 0
          %3032 = vmatpush1.bf16.msra.mxu0 0
          %3033 = vmatprep.subr.bf16.mxu0 0
          %3034 = vmatpush1.bf16.msra.mxu0 0
          %3035 = vmatprep.subr.bf16.mxu0 0
          %3036 = vmatpush1.bf16.msra.mxu0 0
          %3037 = vmatprep.subr.bf16.mxu0 0
          %3038 = vmatpush1.bf16.msra.mxu0 0
          %3039 = vmatprep.subr.bf16.mxu0 0
          %3040 = vmatpush1.bf16.msra.mxu0 0
          %3041 = vmatprep.subr.bf16.mxu0 0
          %3042 = vmatpush1.bf16.msra.mxu0 0
          %3043 = vmatprep.mubr.bf16.mxu0 0
          %3044 = vmatmul.mubr.bf16.gmra.mrb[0].mxu0 %v3010
          %v3045 = vpop.f32.mrb[0].mxu0
          %v3046 = vadd.f32 %v2013, %v3045
          %v3047 = vpop.f32.mrb[0].mxu0
          %v3048 = vadd.f32 %v2017, %v3047
          %v3049 = vpop.f32.mrb[0].mxu0
          %v3050 = vadd.f32 %v2013, %v3049
          %v3051 = vpop.f32.mrb[0].mxu0
          %v3052 = vadd.f32 %v2017, %v3051
          %3053 = vdwg.mxu0
          %3054 = vmatprep.subr.bf16.mxu0 0
          %3055 = vmatpush1.bf16.msra.mxu0 %v2107
          %3056 = vmatprep.subr.bf16.mxu0 0
          %3057 = vmatpush1.bf16.msra.mxu0 %v2110
          %3058 = vmatprep.subr.bf16.mxu0 0
          %3059 = vmatpush1.bf16.msra.mxu0 %v2113
          %3060 = vmatprep.subr.bf16.mxu0 0
          %3061 = vmatpush1.bf16.msra.mxu0 %v2116
          %3062 = vmatprep.subr.bf16.mxu0 0
          %3063 = vmatpush1.bf16.msra.mxu0 %v2119
          %3064 = vmatprep.subr.bf16.mxu0 0
          %3065 = vmatpush1.bf16.msra.mxu0 %v2122
          %3066 = vmatprep.subr.bf16.mxu0 0
          %3067 = vmatpush1.bf16.msra.mxu0 %v2125
          %3068 = vmatprep.subr.bf16.mxu0 0
          %3069 = vmatpush1.bf16.msra.mxu0 %v2128
          %3070 = vmatprep.subr.bf16.mxu0 0
          %3071 = vmatpush1.bf16.msra.mxu0 0
          %3072 = vmatprep.subr.bf16.mxu0 0
          %3073 = vmatpush1.bf16.msra.mxu0 0
          %3074 = vmatprep.subr.bf16.mxu0 0
          %3075 = vmatpush1.bf16.msra.mxu0 0
          %3076 = vmatprep.subr.bf16.mxu0 0
          %3077 = vmatpush1.bf16.msra.mxu0 0
          %3078 = vmatprep.subr.bf16.mxu0 0
          %3079 = vmatpush1.bf16.msra.mxu0 0
          %3080 = vmatprep.subr.bf16.mxu0 0
          %3081 = vmatpush1.bf16.msra.mxu0 0
          %3082 = vmatprep.subr.bf16.mxu0 0
          %3083 = vmatpush1.bf16.msra.mxu0 0
          %3084 = vmatprep.subr.bf16.mxu0 0
          %3085 = vmatpush1.bf16.msra.mxu0 0
          %3086 = vmatprep.mubr.bf16.mxu0 0
          %3087 = vmatmul.mubr.bf16.gmra.mrb[0].mxu0 %v3010
          %v3088 = vpop.f32.mrb[0].mxu0
          %v3089 = vadd.f32 %v2021, %v3088
          %v3090 = vpop.f32.mrb[0].mxu0
          %v3091 = vpop.f32.mrb[0].mxu0
          %v3092 = vadd.f32 %v2021, %v3091
          %v3093 = vpop.f32.mrb[0].mxu0
          %3094 = vdwg.mxu0
          %v3095 = vadd.f32 %v3004, %v3046
          %v3096 = vadd.f32 %v3007, %v3050
          %v3097 = vxor.u32 %v3095, 2147483648
          %v3098 = vxor.u32 %v3096, 2147483648
          %v3099 = vmul.f32 %v3097, 1.442695
          %v3100 = vpow.pop %v3099
          %v3101 = vmul.f32 %v3098, 1.442695
          %v3102 = vpow.pop %v3101
          %v3103 = vadd.f32 %v3100, 1.0
          %v3104 = vadd.f32 %v3102, 1.0
          %v3105 = vrcp.pop %v3103
          %v3106 = vmul.f32 1.0, %v3105
          %v3107 = vrcp.pop %v3104
          %v3108 = vmul.f32 1.0, %v3107
          %v3109 = vadd.f32 %v3005, %v3048
          %v3110 = vadd.f32 %v3008, %v3052
          %v3111 = vxor.u32 %v3109, 2147483648
          %v3112 = vxor.u32 %v3110, 2147483648
          %v3113 = vmul.f32 %v3111, 1.442695
          %v3114 = vpow.pop %v3113
          %v3115 = vmul.f32 %v3112, 1.442695
          %v3116 = vpow.pop %v3115
          %v3117 = vadd.f32 %v3114, 1.0
          %v3118 = vadd.f32 %v3116, 1.0
          %v3119 = vrcp.pop %v3117
          %v3120 = vmul.f32 1.0, %v3119
          %v3121 = vrcp.pop %v3118
          %v3122 = vmul.f32 1.0, %v3121
          %v3123 = vmul.f32 %v3106, %v3089
          %v3124 = vmul.f32 %v3108, %v3092
          %v3125 = vadd.f32 %v3006, %v3123
          %v3126 = vadd.f32 %v3009, %v3124
          %v3127 = vtanh.pop %v3125
          %v3128 = vtanh.pop %v3126
          %v3129 = vsub.f32 1.0, %v3120
          %v3130 = vsub.f32 1.0, %v3122
          %v3131 = vmul.f32 %v3129, %v3127
          %v3132 = vmul.f32 %v3130, %v3128
          %v3133 = vmul.f32 %v3120, %v2992
          %v3134 = vmul.f32 %v3122, %v2993
          %v3135 = vadd.f32 %v3131, %v3133
          %v3136 = vadd.f32 %v3132, %v3134
          %v3137 = vpack.c.bf16 %v3136, %v3135
          %v3138 = vld [vmem:[%s9] sm:$0xff]
          %v3139 = vld [vmem:[%s9 + $0x8] sm:$0xff]
          %v3140 = vld [vmem:[%s9 + $0x10] sm:$0xff]
          %v3141 = vld [vmem:[%s9 + $0x18] sm:$0xff]
          %v3142 = vld [vmem:[%s9 + $0x20] sm:$0xff]
          %v3143 = vld [vmem:[%s9 + $0x28] sm:$0xff]
          %v3144 = vld [vmem:[%s9 + $0x30] sm:$0xff]
          %v3145 = vld [vmem:[%s9 + $0x38] sm:$0xff]
          %v3146 = vld [vmem:[%s9 + $0x40] sm:$0xff]
          %v3147 = vld [vmem:[%s9 + $0x48] sm:$0xff]
          %v3148 = vld [vmem:[%s9 + $0x50] sm:$0xff]
          %v3149 = vld [vmem:[%s9 + $0x58] sm:$0xff]
          %v3150 = vld [vmem:[%s9 + $0x60] sm:$0xff]
          %v3151 = vld [vmem:[%s9 + $0x68] sm:$0xff]
          %v3152 = vld [vmem:[%s9 + $0x70] sm:$0xff]
          %v3153 = vld [vmem:[%s9 + $0x78] sm:$0xff]
          %v3154 = vpack.c.bf16 %v1940, %v1936
          %v3155 = vpack.c.bf16 %v1941, %v1937
          %v3156 = vpack.c.bf16 %v1942, %v1938
          %v3157 = vpack.c.bf16 %v1943, %v1939
          %v3158 = vld [vmem:[%s10] sm:$0xff]
          %v3159 = vld [vmem:[%s10 + $0x8] sm:$0xff]
          %v3160 = vld [vmem:[%s10 + $0x10] sm:$0xff]
          %v3161 = vld [vmem:[%s10 + $0x18] sm:$0xff]
          %v3162 = vld [vmem:[%s10 + $0x20] sm:$0xff]
          %v3163 = vld [vmem:[%s10 + $0x28] sm:$0xff]
          %v3164 = vld [vmem:[%s10 + $0x30] sm:$0xff]
          %v3165 = vld [vmem:[%s10 + $0x38] sm:$0xff]
          %v3166 = vld [vmem:[%s10 + $0x40] sm:$0xff]
          %v3167 = vld [vmem:[%s10 + $0x48] sm:$0xff]
          %v3168 = vld [vmem:[%s10 + $0x50] sm:$0xff]
          %v3169 = vld [vmem:[%s10 + $0x58] sm:$0xff]
          %v3170 = vld [vmem:[%s10 + $0x60] sm:$0xff]
          %v3171 = vld [vmem:[%s10 + $0x68] sm:$0xff]
          %v3172 = vld [vmem:[%s10 + $0x70] sm:$0xff]
          %v3173 = vld [vmem:[%s10 + $0x78] sm:$0xff]
          %v3174 = vld [vmem:[%s10 + $0x80] sm:$0xff]
          %v3175 = vld [vmem:[%s10 + $0x88] sm:$0xff]
          %v3176 = vld [vmem:[%s10 + $0x90] sm:$0xff]
          %v3177 = vld [vmem:[%s10 + $0x98] sm:$0xff]
          %v3178 = vld [vmem:[%s10 + $0xa0] sm:$0xff]
          %v3179 = vld [vmem:[%s10 + $0xa8] sm:$0xff]
          %v3180 = vld [vmem:[%s10 + $0xb0] sm:$0xff]
          %v3181 = vld [vmem:[%s10 + $0xb8] sm:$0xff]
          %v3182 = vld [vmem:[%s10 + $0xc0] sm:$0xff]
          %v3183 = vld [vmem:[%s10 + $0xc8] sm:$0xff]
          %v3184 = vld [vmem:[%s10 + $0xd0] sm:$0xff]
          %v3185 = vld [vmem:[%s10 + $0xd8] sm:$0xff]
          %v3186 = vld [vmem:[%s10 + $0xe0] sm:$0xff]
          %v3187 = vld [vmem:[%s10 + $0xe8] sm:$0xff]
          %v3188 = vld [vmem:[%s10 + $0xf0] sm:$0xff]
          %v3189 = vld [vmem:[%s10 + $0xf8] sm:$0xff]
          %v3190 = vld [vmem:[%s10 + $0x100] sm:$0xff]
          %v3191 = vld [vmem:[%s10 + $0x108] sm:$0xff]
          %v3192 = vld [vmem:[%s10 + $0x110] sm:$0xff]
          %v3193 = vld [vmem:[%s10 + $0x118] sm:$0xff]
          %v3194 = vld [vmem:[%s10 + $0x120] sm:$0xff]
          %v3195 = vld [vmem:[%s10 + $0x128] sm:$0xff]
          %v3196 = vld [vmem:[%s10 + $0x130] sm:$0xff]
          %v3197 = vld [vmem:[%s10 + $0x138] sm:$0xff]
          %v3198 = vld [vmem:[%s10 + $0x140] sm:$0xff]
          %v3199 = vld [vmem:[%s10 + $0x148] sm:$0xff]
          %v3200 = vld [vmem:[%s10 + $0x150] sm:$0xff]
          %v3201 = vld [vmem:[%s10 + $0x158] sm:$0xff]
          %v3202 = vld [vmem:[%s10 + $0x160] sm:$0xff]
          %v3203 = vld [vmem:[%s10 + $0x168] sm:$0xff]
          %v3204 = vld [vmem:[%s10 + $0x170] sm:$0xff]
          %v3205 = vld [vmem:[%s10 + $0x178] sm:$0xff]
          %v3206 = vld [vmem:[%s10 + $0x180] sm:$0xff]
          %v3207 = vld [vmem:[%s10 + $0x188] sm:$0xff]
          %v3208 = vld [vmem:[%s10 + $0x190] sm:$0xff]
          %v3209 = vld [vmem:[%s10 + $0x198] sm:$0xff]
          %v3210 = vld [vmem:[%s10 + $0x1a0] sm:$0xff]
          %v3211 = vld [vmem:[%s10 + $0x1a8] sm:$0xff]
          %v3212 = vld [vmem:[%s10 + $0x1b0] sm:$0xff]
          %v3213 = vld [vmem:[%s10 + $0x1b8] sm:$0xff]
          %v3214 = vld [vmem:[%s10 + $0x1c0] sm:$0xff]
          %v3215 = vld [vmem:[%s10 + $0x1c8] sm:$0xff]
          %v3216 = vld [vmem:[%s10 + $0x1d0] sm:$0xff]
          %v3217 = vld [vmem:[%s10 + $0x1d8] sm:$0xff]
          %v3218 = vld [vmem:[%s10 + $0x1e0] sm:$0xff]
          %v3219 = vld [vmem:[%s10 + $0x1e8] sm:$0xff]
          %v3220 = vld [vmem:[%s10 + $0x1f0] sm:$0xff]
          %v3221 = vld [vmem:[%s10 + $0x1f8] sm:$0xff]
          %v3286 = vunpack.c.l.b16 %v3158
          %v3287 = vunpack.c.h.b16 %v3158
          %v3288 = vunpack.c.l.b16 %v3159
          %v3289 = vunpack.c.h.b16 %v3159
          %v3290 = vunpack.c.l.b16 %v3160
          %v3291 = vunpack.c.h.b16 %v3160
          %v3292 = vunpack.c.l.b16 %v3161
          %v3293 = vunpack.c.h.b16 %v3161
          %v3294 = vunpack.c.l.b16 %v3162
          %v3295 = vunpack.c.h.b16 %v3162
          %v3296 = vunpack.c.l.b16 %v3163
          %v3297 = vunpack.c.h.b16 %v3163
          %v3298 = vunpack.c.l.b16 %v3164
          %v3299 = vunpack.c.h.b16 %v3164
          %v3300 = vunpack.c.l.b16 %v3165
          %v3301 = vunpack.c.h.b16 %v3165
          %v3302 = vunpack.c.l.b16 %v3166
          %v3303 = vunpack.c.h.b16 %v3166
          %v3304 = vunpack.c.l.b16 %v3167
          %v3305 = vunpack.c.h.b16 %v3167
          %v3306 = vunpack.c.l.b16 %v3168
          %v3307 = vunpack.c.h.b16 %v3168
          %v3308 = vunpack.c.l.b16 %v3169
          %v3309 = vunpack.c.h.b16 %v3169
          %v3310 = vunpack.c.l.b16 %v3170
          %v3311 = vunpack.c.h.b16 %v3170
          %v3312 = vunpack.c.l.b16 %v3171
          %v3313 = vunpack.c.h.b16 %v3171
          %v3314 = vunpack.c.l.b16 %v3172
          %v3315 = vunpack.c.h.b16 %v3172
          %v3316 = vunpack.c.l.b16 %v3173
          %v3317 = vunpack.c.h.b16 %v3173
          %v3318 = vunpack.c.l.b16 %v3174
          %v3319 = vunpack.c.h.b16 %v3174
          %v3320 = vunpack.c.l.b16 %v3175
          %v3321 = vunpack.c.h.b16 %v3175
          %v3322 = vunpack.c.l.b16 %v3176
          %v3323 = vunpack.c.h.b16 %v3176
          %v3324 = vunpack.c.l.b16 %v3177
          %v3325 = vunpack.c.h.b16 %v3177
          %v3326 = vunpack.c.l.b16 %v3178
          %v3327 = vunpack.c.h.b16 %v3178
          %v3328 = vunpack.c.l.b16 %v3179
          %v3329 = vunpack.c.h.b16 %v3179
          %v3330 = vunpack.c.l.b16 %v3180
          %v3331 = vunpack.c.h.b16 %v3180
          %v3332 = vunpack.c.l.b16 %v3181
          %v3333 = vunpack.c.h.b16 %v3181
          %v3334 = vunpack.c.l.b16 %v3182
          %v3335 = vunpack.c.h.b16 %v3182
          %v3336 = vunpack.c.l.b16 %v3183
          %v3337 = vunpack.c.h.b16 %v3183
          %v3338 = vunpack.c.l.b16 %v3184
          %v3339 = vunpack.c.h.b16 %v3184
          %v3340 = vunpack.c.l.b16 %v3185
          %v3341 = vunpack.c.h.b16 %v3185
          %v3342 = vunpack.c.l.b16 %v3186
          %v3343 = vunpack.c.h.b16 %v3186
          %v3344 = vunpack.c.l.b16 %v3187
          %v3345 = vunpack.c.h.b16 %v3187
          %v3346 = vunpack.c.l.b16 %v3188
          %v3347 = vunpack.c.h.b16 %v3188
          %v3348 = vunpack.c.l.b16 %v3189
          %v3349 = vunpack.c.h.b16 %v3189
          %v3350 = vunpack.c.l.b16 %v3190
          %v3351 = vunpack.c.h.b16 %v3190
          %v3352 = vunpack.c.l.b16 %v3191
          %v3353 = vunpack.c.h.b16 %v3191
          %v3354 = vunpack.c.l.b16 %v3192
          %v3355 = vunpack.c.h.b16 %v3192
          %v3356 = vunpack.c.l.b16 %v3193
          %v3357 = vunpack.c.h.b16 %v3193
          %v3358 = vunpack.c.l.b16 %v3194
          %v3359 = vunpack.c.h.b16 %v3194
          %v3360 = vunpack.c.l.b16 %v3195
          %v3361 = vunpack.c.h.b16 %v3195
          %v3362 = vunpack.c.l.b16 %v3196
          %v3363 = vunpack.c.h.b16 %v3196
          %v3364 = vunpack.c.l.b16 %v3197
          %v3365 = vunpack.c.h.b16 %v3197
          %v3366 = vunpack.c.l.b16 %v3198
          %v3367 = vunpack.c.h.b16 %v3198
          %v3368 = vunpack.c.l.b16 %v3199
          %v3369 = vunpack.c.h.b16 %v3199
          %v3370 = vunpack.c.l.b16 %v3200
          %v3371 = vunpack.c.h.b16 %v3200
          %v3372 = vunpack.c.l.b16 %v3201
          %v3373 = vunpack.c.h.b16 %v3201
          %v3374 = vunpack.c.l.b16 %v3202
          %v3375 = vunpack.c.h.b16 %v3202
          %v3376 = vunpack.c.l.b16 %v3203
          %v3377 = vunpack.c.h.b16 %v3203
          %v3378 = vunpack.c.l.b16 %v3204
          %v3379 = vunpack.c.h.b16 %v3204
          %v3380 = vunpack.c.l.b16 %v3205
          %v3381 = vunpack.c.h.b16 %v3205
          %v3382 = vunpack.c.l.b16 %v3206
          %v3383 = vunpack.c.h.b16 %v3206
          %v3384 = vunpack.c.l.b16 %v3207
          %v3385 = vunpack.c.h.b16 %v3207
          %v3386 = vunpack.c.l.b16 %v3208
          %v3387 = vunpack.c.h.b16 %v3208
          %v3388 = vunpack.c.l.b16 %v3209
          %v3389 = vunpack.c.h.b16 %v3209
          %v3390 = vunpack.c.l.b16 %v3210
          %v3391 = vunpack.c.h.b16 %v3210
          %v3392 = vunpack.c.l.b16 %v3211
          %v3393 = vunpack.c.h.b16 %v3211
          %v3394 = vunpack.c.l.b16 %v3212
          %v3395 = vunpack.c.h.b16 %v3212
          %v3396 = vunpack.c.l.b16 %v3213
          %v3397 = vunpack.c.h.b16 %v3213
          %v3398 = vunpack.c.l.b16 %v3214
          %v3399 = vunpack.c.h.b16 %v3214
          %v3400 = vunpack.c.l.b16 %v3215
          %v3401 = vunpack.c.h.b16 %v3215
          %v3402 = vunpack.c.l.b16 %v3216
          %v3403 = vunpack.c.h.b16 %v3216
          %v3404 = vunpack.c.l.b16 %v3217
          %v3405 = vunpack.c.h.b16 %v3217
          %v3406 = vunpack.c.l.b16 %v3218
          %v3407 = vunpack.c.h.b16 %v3218
          %v3408 = vunpack.c.l.b16 %v3219
          %v3409 = vunpack.c.h.b16 %v3219
          %v3410 = vunpack.c.l.b16 %v3220
          %v3411 = vunpack.c.h.b16 %v3220
          %v3412 = vunpack.c.l.b16 %v3221
          %v3413 = vunpack.c.h.b16 %v3221
          %v3414 = vpack.c.b16 %v3288, %v3286
          %v3415 = vpack.c.b16 %v3289, %v3287
          %v3416 = vpack.c.b16 %v3292, %v3290
          %v3417 = vpack.c.b16 %v3293, %v3291
          %v3418 = vpack.c.b16 %v3296, %v3294
          %v3419 = vpack.c.b16 %v3297, %v3295
          %v3420 = vpack.c.b16 %v3300, %v3298
          %v3421 = vpack.c.b16 %v3301, %v3299
          %v3422 = vpack.c.b16 %v3304, %v3302
          %v3423 = vpack.c.b16 %v3305, %v3303
          %v3424 = vpack.c.b16 %v3308, %v3306
          %v3425 = vpack.c.b16 %v3309, %v3307
          %v3426 = vpack.c.b16 %v3312, %v3310
          %v3427 = vpack.c.b16 %v3313, %v3311
          %v3428 = vpack.c.b16 %v3316, %v3314
          %v3429 = vpack.c.b16 %v3317, %v3315
          %v3430 = vpack.c.b16 %v3320, %v3318
          %v3431 = vpack.c.b16 %v3321, %v3319
          %v3432 = vpack.c.b16 %v3324, %v3322
          %v3433 = vpack.c.b16 %v3325, %v3323
          %v3434 = vpack.c.b16 %v3328, %v3326
          %v3435 = vpack.c.b16 %v3329, %v3327
          %v3436 = vpack.c.b16 %v3332, %v3330
          %v3437 = vpack.c.b16 %v3333, %v3331
          %v3438 = vpack.c.b16 %v3336, %v3334
          %v3439 = vpack.c.b16 %v3337, %v3335
          %v3440 = vpack.c.b16 %v3340, %v3338
          %v3441 = vpack.c.b16 %v3341, %v3339
          %v3442 = vpack.c.b16 %v3344, %v3342
          %v3443 = vpack.c.b16 %v3345, %v3343
          %v3444 = vpack.c.b16 %v3348, %v3346
          %v3445 = vpack.c.b16 %v3349, %v3347
          %v3446 = vpack.c.b16 %v3352, %v3350
          %v3447 = vpack.c.b16 %v3353, %v3351
          %v3448 = vpack.c.b16 %v3356, %v3354
          %v3449 = vpack.c.b16 %v3357, %v3355
          %v3450 = vpack.c.b16 %v3360, %v3358
          %v3451 = vpack.c.b16 %v3361, %v3359
          %v3452 = vpack.c.b16 %v3364, %v3362
          %v3453 = vpack.c.b16 %v3365, %v3363
          %v3454 = vpack.c.b16 %v3368, %v3366
          %v3455 = vpack.c.b16 %v3369, %v3367
          %v3456 = vpack.c.b16 %v3372, %v3370
          %v3457 = vpack.c.b16 %v3373, %v3371
          %v3458 = vpack.c.b16 %v3376, %v3374
          %v3459 = vpack.c.b16 %v3377, %v3375
          %v3460 = vpack.c.b16 %v3380, %v3378
          %v3461 = vpack.c.b16 %v3381, %v3379
          %v3462 = vpack.c.b16 %v3384, %v3382
          %v3463 = vpack.c.b16 %v3385, %v3383
          %v3464 = vpack.c.b16 %v3388, %v3386
          %v3465 = vpack.c.b16 %v3389, %v3387
          %v3466 = vpack.c.b16 %v3392, %v3390
          %v3467 = vpack.c.b16 %v3393, %v3391
          %v3468 = vpack.c.b16 %v3396, %v3394
          %v3469 = vpack.c.b16 %v3397, %v3395
          %v3470 = vpack.c.b16 %v3400, %v3398
          %v3471 = vpack.c.b16 %v3401, %v3399
          %v3472 = vpack.c.b16 %v3404, %v3402
          %v3473 = vpack.c.b16 %v3405, %v3403
          %v3474 = vpack.c.b16 %v3408, %v3406
          %v3475 = vpack.c.b16 %v3409, %v3407
          %v3476 = vpack.c.b16 %v3412, %v3410
          %v3477 = vpack.c.b16 %v3413, %v3411
          %3542 = vmatprep.subr.bf16.mxu0 %v3415
          %3543 = vmatpush1.bf16.msra.mxu0 %v3414
          %3544 = vmatprep.subr.bf16.mxu0 %v3417
          %3545 = vmatpush1.bf16.msra.mxu0 %v3416
          %3546 = vmatprep.subr.bf16.mxu0 %v3419
          %3547 = vmatpush1.bf16.msra.mxu0 %v3418
          %3548 = vmatprep.subr.bf16.mxu0 %v3421
          %3549 = vmatpush1.bf16.msra.mxu0 %v3420
          %3550 = vmatprep.subr.bf16.mxu0 %v3423
          %3551 = vmatpush1.bf16.msra.mxu0 %v3422
          %3552 = vmatprep.subr.bf16.mxu0 %v3425
          %3553 = vmatpush1.bf16.msra.mxu0 %v3424
          %3554 = vmatprep.subr.bf16.mxu0 %v3427
          %3555 = vmatpush1.bf16.msra.mxu0 %v3426
          %3556 = vmatprep.subr.bf16.mxu0 %v3429
          %3557 = vmatpush1.bf16.msra.mxu0 %v3428
          %3558 = vmatprep.subr.bf16.mxu0 %v3431
          %3559 = vmatpush1.bf16.msra.mxu0 %v3430
          %3560 = vmatprep.subr.bf16.mxu0 %v3433
          %3561 = vmatpush1.bf16.msra.mxu0 %v3432
          %3562 = vmatprep.subr.bf16.mxu0 %v3435
          %3563 = vmatpush1.bf16.msra.mxu0 %v3434
          %3564 = vmatprep.subr.bf16.mxu0 %v3437
          %3565 = vmatpush1.bf16.msra.mxu0 %v3436
          %3566 = vmatprep.subr.bf16.mxu0 %v3439
          %3567 = vmatpush1.bf16.msra.mxu0 %v3438
          %3568 = vmatprep.subr.bf16.mxu0 %v3441
          %3569 = vmatpush1.bf16.msra.mxu0 %v3440
          %3570 = vmatprep.subr.bf16.mxu0 %v3443
          %3571 = vmatpush1.bf16.msra.mxu0 %v3442
          %3572 = vmatprep.subr.bf16.mxu0 %v3445
          %3573 = vmatpush1.bf16.msra.mxu0 %v3444
          %3574 = vmatprep.mubr.bf16.mxu0 %v3155
          %3575 = vmatmul.mubr.bf16.gmra.mrb[0].mxu0 %v3154
          %v3576 = vpop.f32.mrb[0].mxu0
          %v3577 = vadd.f32 0.0, %v3576
          %v3578 = vpop.f32.mrb[0].mxu0
          %v3579 = vadd.f32 0.0, %v3578
          %v3580 = vpop.f32.mrb[0].mxu0
          %v3581 = vadd.f32 0.0, %v3580
          %v3582 = vpop.f32.mrb[0].mxu0
          %v3583 = vadd.f32 0.0, %v3582
          %3584 = vdwg.mxu0
          %3585 = vmatprep.subr.bf16.mxu0 %v3447
          %3586 = vmatpush1.bf16.msra.mxu0 %v3446
          %3587 = vmatprep.subr.bf16.mxu0 %v3449
          %3588 = vmatpush1.bf16.msra.mxu0 %v3448
          %3589 = vmatprep.subr.bf16.mxu0 %v3451
          %3590 = vmatpush1.bf16.msra.mxu0 %v3450
          %3591 = vmatprep.subr.bf16.mxu0 %v3453
          %3592 = vmatpush1.bf16.msra.mxu0 %v3452
          %3593 = vmatprep.subr.bf16.mxu0 %v3455
          %3594 = vmatpush1.bf16.msra.mxu0 %v3454
          %3595 = vmatprep.subr.bf16.mxu0 %v3457
          %3596 = vmatpush1.bf16.msra.mxu0 %v3456
          %3597 = vmatprep.subr.bf16.mxu0 %v3459
          %3598 = vmatpush1.bf16.msra.mxu0 %v3458
          %3599 = vmatprep.subr.bf16.mxu0 %v3461
          %3600 = vmatpush1.bf16.msra.mxu0 %v3460
          %3601 = vmatprep.subr.bf16.mxu0 %v3463
          %3602 = vmatpush1.bf16.msra.mxu0 %v3462
          %3603 = vmatprep.subr.bf16.mxu0 %v3465
          %3604 = vmatpush1.bf16.msra.mxu0 %v3464
          %3605 = vmatprep.subr.bf16.mxu0 %v3467
          %3606 = vmatpush1.bf16.msra.mxu0 %v3466
          %3607 = vmatprep.subr.bf16.mxu0 %v3469
          %3608 = vmatpush1.bf16.msra.mxu0 %v3468
          %3609 = vmatprep.subr.bf16.mxu0 %v3471
          %3610 = vmatpush1.bf16.msra.mxu0 %v3470
          %3611 = vmatprep.subr.bf16.mxu0 %v3473
          %3612 = vmatpush1.bf16.msra.mxu0 %v3472
          %3613 = vmatprep.subr.bf16.mxu0 %v3475
          %3614 = vmatpush1.bf16.msra.mxu0 %v3474
          %3615 = vmatprep.subr.bf16.mxu0 %v3477
          %3616 = vmatpush1.bf16.msra.mxu0 %v3476
          %3617 = vmatprep.mubr.bf16.mxu0 %v3157
          %3618 = vmatmul.mubr.bf16.gmra.mrb[0].mxu0 %v3156
          %v3619 = vpop.f32.mrb[0].mxu0
          %v3620 = vadd.f32 %v3577, %v3619
          %v3621 = vpop.f32.mrb[0].mxu0
          %v3622 = vadd.f32 %v3579, %v3621
          %v3623 = vpop.f32.mrb[0].mxu0
          %v3624 = vadd.f32 %v3581, %v3623
          %v3625 = vpop.f32.mrb[0].mxu0
          %v3626 = vadd.f32 %v3583, %v3625
          %3627 = vdwg.mxu0
          %v3644 = vunpack.c.l.b16 %v3138
          %v3645 = vunpack.c.h.b16 %v3138
          %v3646 = vunpack.c.l.b16 %v3139
          %v3647 = vunpack.c.h.b16 %v3139
          %v3648 = vunpack.c.l.b16 %v3140
          %v3649 = vunpack.c.h.b16 %v3140
          %v3650 = vunpack.c.l.b16 %v3141
          %v3651 = vunpack.c.h.b16 %v3141
          %v3652 = vunpack.c.l.b16 %v3142
          %v3653 = vunpack.c.h.b16 %v3142
          %v3654 = vunpack.c.l.b16 %v3143
          %v3655 = vunpack.c.h.b16 %v3143
          %v3656 = vunpack.c.l.b16 %v3144
          %v3657 = vunpack.c.h.b16 %v3144
          %v3658 = vunpack.c.l.b16 %v3145
          %v3659 = vunpack.c.h.b16 %v3145
          %v3660 = vunpack.c.l.b16 %v3146
          %v3661 = vunpack.c.h.b16 %v3146
          %v3662 = vunpack.c.l.b16 %v3147
          %v3663 = vunpack.c.h.b16 %v3147
          %v3664 = vunpack.c.l.b16 %v3148
          %v3665 = vunpack.c.h.b16 %v3148
          %v3666 = vunpack.c.l.b16 %v3149
          %v3667 = vunpack.c.h.b16 %v3149
          %v3668 = vunpack.c.l.b16 %v3150
          %v3669 = vunpack.c.h.b16 %v3150
          %v3670 = vunpack.c.l.b16 %v3151
          %v3671 = vunpack.c.h.b16 %v3151
          %v3672 = vunpack.c.l.b16 %v3152
          %v3673 = vunpack.c.h.b16 %v3152
          %v3674 = vunpack.c.l.b16 %v3153
          %v3675 = vunpack.c.h.b16 %v3153
          %v3676 = vpack.c.b16 %v3646, %v3644
          %v3677 = vpack.c.b16 %v3647, %v3645
          %v3678 = vpack.c.b16 %v3650, %v3648
          %v3679 = vpack.c.b16 %v3651, %v3649
          %v3680 = vpack.c.b16 %v3654, %v3652
          %v3681 = vpack.c.b16 %v3655, %v3653
          %v3682 = vpack.c.b16 %v3658, %v3656
          %v3683 = vpack.c.b16 %v3659, %v3657
          %v3684 = vpack.c.b16 %v3662, %v3660
          %v3685 = vpack.c.b16 %v3663, %v3661
          %v3686 = vpack.c.b16 %v3666, %v3664
          %v3687 = vpack.c.b16 %v3667, %v3665
          %v3688 = vpack.c.b16 %v3670, %v3668
          %v3689 = vpack.c.b16 %v3671, %v3669
          %v3690 = vpack.c.b16 %v3674, %v3672
          %v3691 = vpack.c.b16 %v3675, %v3673
          %3708 = vmatprep.subr.bf16.mxu0 %v3677
          %3709 = vmatpush1.bf16.msra.mxu0 %v3676
          %3710 = vmatprep.subr.bf16.mxu0 %v3679
          %3711 = vmatpush1.bf16.msra.mxu0 %v3678
          %3712 = vmatprep.subr.bf16.mxu0 %v3681
          %3713 = vmatpush1.bf16.msra.mxu0 %v3680
          %3714 = vmatprep.subr.bf16.mxu0 %v3683
          %3715 = vmatpush1.bf16.msra.mxu0 %v3682
          %3716 = vmatprep.subr.bf16.mxu0 %v3685
          %3717 = vmatpush1.bf16.msra.mxu0 %v3684
          %3718 = vmatprep.subr.bf16.mxu0 %v3687
          %3719 = vmatpush1.bf16.msra.mxu0 %v3686
          %3720 = vmatprep.subr.bf16.mxu0 %v3689
          %3721 = vmatpush1.bf16.msra.mxu0 %v3688
          %3722 = vmatprep.subr.bf16.mxu0 %v3691
          %3723 = vmatpush1.bf16.msra.mxu0 %v3690
          %3724 = vmatprep.subr.bf16.mxu0 0
          %3725 = vmatpush1.bf16.msra.mxu0 0
          %3726 = vmatprep.subr.bf16.mxu0 0
          %3727 = vmatpush1.bf16.msra.mxu0 0
          %3728 = vmatprep.subr.bf16.mxu0 0
          %3729 = vmatpush1.bf16.msra.mxu0 0
          %3730 = vmatprep.subr.bf16.mxu0 0
          %3731 = vmatpush1.bf16.msra.mxu0 0
          %3732 = vmatprep.subr.bf16.mxu0 0
          %3733 = vmatpush1.bf16.msra.mxu0 0
          %3734 = vmatprep.subr.bf16.mxu0 0
          %3735 = vmatpush1.bf16.msra.mxu0 0
          %3736 = vmatprep.subr.bf16.mxu0 0
          %3737 = vmatpush1.bf16.msra.mxu0 0
          %3738 = vmatprep.subr.bf16.mxu0 0
          %3739 = vmatpush1.bf16.msra.mxu0 0
          %3740 = vmatprep.mubr.bf16.mxu0 0
          %3741 = vmatmul.mubr.bf16.gmra.mrb[0].mxu0 %v3137
          %v3742 = vpop.f32.mrb[0].mxu0
          %v3743 = vadd.f32 %v3620, %v3742
          %v3744 = vpop.f32.mrb[0].mxu0
          %v3745 = vadd.f32 %v3622, %v3744
          %v3746 = vpop.f32.mrb[0].mxu0
          %v3747 = vadd.f32 %v3624, %v3746
          %v3748 = vpop.f32.mrb[0].mxu0
          %v3749 = vadd.f32 %v3626, %v3748
          %3750 = vdwg.mxu0
          %v3751 = vld [vmem:[%s11] sm:$0x3]
          %v3753 = vlaneseq
          %v3754 = vshrl.u32 %v3753, 7
          %v3755 = vsub.s32 0, %v3754
          %v3756 = vrot.slane %v3751, %v3755
          %v3757 = vlaneseq
          %v3758 = vshrl.u32 %v3757, 7
          %v3759 = vsub.s32 1, %v3758
          %v3760 = vrot.slane %v3751, %v3759
          %v3763 = vadd.f32 %v3743, %v3756
          %v3764 = vadd.f32 %v3745, %v3760
          %v3765 = vadd.f32 %v3747, %v3756
          %v3766 = vadd.f32 %v3749, %v3760
          %v3767 = vpack.c.bf16 %v3765, %v3763
          %v3768 = vpack.c.bf16 %v3766, %v3764
          %v3769 = vld [vmem:[%s12] sm:$0xf]
          %v3770 = vld [vmem:[%s12 + $0x4] sm:$0xf]
          %v3771 = vld [vmem:[%s12 + $0x8] sm:$0xf]
          %v3772 = vld [vmem:[%s12 + $0xc] sm:$0xf]
          %v3773 = vld [vmem:[%s12 + $0x10] sm:$0xf]
          %v3774 = vld [vmem:[%s12 + $0x14] sm:$0xf]
          %v3775 = vld [vmem:[%s12 + $0x18] sm:$0xf]
          %v3776 = vld [vmem:[%s12 + $0x1c] sm:$0xf]
          %v3777 = vld [vmem:[%s12 + $0x20] sm:$0xf]
          %v3778 = vld [vmem:[%s12 + $0x24] sm:$0xf]
          %v3779 = vld [vmem:[%s12 + $0x28] sm:$0xf]
          %v3780 = vld [vmem:[%s12 + $0x2c] sm:$0xf]
          %v3781 = vld [vmem:[%s12 + $0x30] sm:$0xf]
          %v3782 = vld [vmem:[%s12 + $0x34] sm:$0xf]
          %v3783 = vld [vmem:[%s12 + $0x38] sm:$0xf]
          %v3784 = vld [vmem:[%s12 + $0x3c] sm:$0xf]
          %v3785 = vld [vmem:[%s12 + $0x40] sm:$0xf]
          %v3786 = vld [vmem:[%s12 + $0x44] sm:$0xf]
          %v3787 = vld [vmem:[%s12 + $0x48] sm:$0xf]
          %v3788 = vld [vmem:[%s12 + $0x4c] sm:$0xf]
          %v3789 = vld [vmem:[%s12 + $0x50] sm:$0xf]
          %v3790 = vld [vmem:[%s12 + $0x54] sm:$0xf]
          %v3791 = vld [vmem:[%s12 + $0x58] sm:$0xf]
          %v3792 = vld [vmem:[%s12 + $0x5c] sm:$0xf]
          %v3793 = vld [vmem:[%s12 + $0x60] sm:$0xf]
          %v3794 = vld [vmem:[%s12 + $0x64] sm:$0xf]
          %v3795 = vld [vmem:[%s12 + $0x68] sm:$0xf]
          %v3796 = vld [vmem:[%s12 + $0x6c] sm:$0xf]
          %v3797 = vld [vmem:[%s12 + $0x70] sm:$0xf]
          %v3798 = vld [vmem:[%s12 + $0x74] sm:$0xf]
          %v3799 = vld [vmem:[%s12 + $0x78] sm:$0xf]
          %v3800 = vld [vmem:[%s12 + $0x7c] sm:$0xf]
          %v3801 = vld [vmem:[%s13] sm:$0x1]
          %v3803 = vlaneseq
          %v3804 = vshrl.u32 %v3803, 7
          %v3805 = vsub.s32 0, %v3804
          %v3806 = vrot.slane %v3801, %v3805
          %v3840 = vunpack.c.l.b16 %v3769
          %v3841 = vunpack.c.l.b16 %v3770
          %v3842 = vunpack.c.l.b16 %v3771
          %v3843 = vunpack.c.l.b16 %v3772
          %v3844 = vunpack.c.l.b16 %v3773
          %v3845 = vunpack.c.l.b16 %v3774
          %v3846 = vunpack.c.l.b16 %v3775
          %v3847 = vunpack.c.l.b16 %v3776
          %v3848 = vunpack.c.l.b16 %v3777
          %v3849 = vunpack.c.l.b16 %v3778
          %v3850 = vunpack.c.l.b16 %v3779
          %v3851 = vunpack.c.l.b16 %v3780
          %v3852 = vunpack.c.l.b16 %v3781
          %v3853 = vunpack.c.l.b16 %v3782
          %v3854 = vunpack.c.l.b16 %v3783
          %v3855 = vunpack.c.l.b16 %v3784
          %v3856 = vunpack.c.l.b16 %v3785
          %v3857 = vunpack.c.l.b16 %v3786
          %v3858 = vunpack.c.l.b16 %v3787
          %v3859 = vunpack.c.l.b16 %v3788
          %v3860 = vunpack.c.l.b16 %v3789
          %v3861 = vunpack.c.l.b16 %v3790
          %v3862 = vunpack.c.l.b16 %v3791
          %v3863 = vunpack.c.l.b16 %v3792
          %v3864 = vunpack.c.l.b16 %v3793
          %v3865 = vunpack.c.l.b16 %v3794
          %v3866 = vunpack.c.l.b16 %v3795
          %v3867 = vunpack.c.l.b16 %v3796
          %v3868 = vunpack.c.l.b16 %v3797
          %v3869 = vunpack.c.l.b16 %v3798
          %v3870 = vunpack.c.l.b16 %v3799
          %v3871 = vunpack.c.l.b16 %v3800
          %v3872 = vpack.c.b16 %v3841, %v3840
          %v3873 = vpack.c.b16 %v3843, %v3842
          %v3874 = vpack.c.b16 %v3845, %v3844
          %v3875 = vpack.c.b16 %v3847, %v3846
          %v3876 = vpack.c.b16 %v3849, %v3848
          %v3877 = vpack.c.b16 %v3851, %v3850
          %v3878 = vpack.c.b16 %v3853, %v3852
          %v3879 = vpack.c.b16 %v3855, %v3854
          %v3880 = vpack.c.b16 %v3857, %v3856
          %v3881 = vpack.c.b16 %v3859, %v3858
          %v3882 = vpack.c.b16 %v3861, %v3860
          %v3883 = vpack.c.b16 %v3863, %v3862
          %v3884 = vpack.c.b16 %v3865, %v3864
          %v3885 = vpack.c.b16 %v3867, %v3866
          %v3886 = vpack.c.b16 %v3869, %v3868
          %v3887 = vpack.c.b16 %v3871, %v3870
          %3904 = vmatprep.subr.bf16.mxu0 0
          %3905 = vmatpush1.bf16.msra.mxu0 %v3872
          %3906 = vmatprep.subr.bf16.mxu0 0
          %3907 = vmatpush1.bf16.msra.mxu0 %v3873
          %3908 = vmatprep.subr.bf16.mxu0 0
          %3909 = vmatpush1.bf16.msra.mxu0 %v3874
          %3910 = vmatprep.subr.bf16.mxu0 0
          %3911 = vmatpush1.bf16.msra.mxu0 %v3875
          %3912 = vmatprep.subr.bf16.mxu0 0
          %3913 = vmatpush1.bf16.msra.mxu0 %v3876
          %3914 = vmatprep.subr.bf16.mxu0 0
          %3915 = vmatpush1.bf16.msra.mxu0 %v3877
          %3916 = vmatprep.subr.bf16.mxu0 0
          %3917 = vmatpush1.bf16.msra.mxu0 %v3878
          %3918 = vmatprep.subr.bf16.mxu0 0
          %3919 = vmatpush1.bf16.msra.mxu0 %v3879
          %3920 = vmatprep.subr.bf16.mxu0 0
          %3921 = vmatpush1.bf16.msra.mxu0 %v3880
          %3922 = vmatprep.subr.bf16.mxu0 0
          %3923 = vmatpush1.bf16.msra.mxu0 %v3881
          %3924 = vmatprep.subr.bf16.mxu0 0
          %3925 = vmatpush1.bf16.msra.mxu0 %v3882
          %3926 = vmatprep.subr.bf16.mxu0 0
          %3927 = vmatpush1.bf16.msra.mxu0 %v3883
          %3928 = vmatprep.subr.bf16.mxu0 0
          %3929 = vmatpush1.bf16.msra.mxu0 %v3884
          %3930 = vmatprep.subr.bf16.mxu0 0
          %3931 = vmatpush1.bf16.msra.mxu0 %v3885
          %3932 = vmatprep.subr.bf16.mxu0 0
          %3933 = vmatpush1.bf16.msra.mxu0 %v3886
          %3934 = vmatprep.subr.bf16.mxu0 0
          %3935 = vmatpush1.bf16.msra.mxu0 %v3887
          %3936 = vmatprep.mubr.bf16.mxu0 %v3768
          %3937 = vmatmul.mubr.bf16.gmra.mrb[0].mxu0 %v3767
          %v3938 = vpop.f32.mrb[0].mxu0
          %v3939 = vadd.f32 %v3806, %v3938
          %v3940 = vpop.f32.mrb[0].mxu0
          %v3941 = vpop.f32.mrb[0].mxu0
          %v3942 = vadd.f32 %v3806, %v3941
          %v3943 = vpop.f32.mrb[0].mxu0
          %3944 = vdwg.mxu0
          %3945 = vst [vmem:[%s540] sm:$0xff] %v3939
          %3946 = vst [vmem:[%s540 + $0x8] sm:$0xff] %v3942
        $region126: #{ltsm_conv_forward.1} parent=109 // pred_fallthru
          _
        %s3947 = smul.u32 2, %s31
        %p3948 = scmp.lt.s32.totalorder %s3947, 1
        %s3949 = scalar_select %p3948, %s3947, 1
        %s3950 = smul.addr %s3949, 8
        %s3951 = scalar_lea.vmem %s14, %s3950
        // Predicated region
        $region127: #{ltsm_conv_forward.1} parent=109 // pred_check
          %p3952 = pneg %p358
        $region128: #{ltsm_conv_forward.1} parent=109 // pred_check_branch
          %3954 = sbr.rel (%p3952) target = $region130
        $region129: #{ltsm_conv_forward.1} parent=109 // pred_region
          %s3955 = smul.u32 2, %s31
        $region130: #{ltsm_conv_forward.1} parent=109 // pred_fallthru
          _
        // Predicated region
        $region131: #{ltsm_conv_forward.1} parent=109 // pred_check
          %p3956 = pneg %p358
        $region132: #{ltsm_conv_forward.1} parent=109 // pred_check_branch
          %3958 = sbr.rel (%p3956) target = $region134
        $region133: #{ltsm_conv_forward.1} parent=109 // pred_region
          %s3959 = smul.u32 2, %s31
          %p3960 = scmp.lt.s32.totalorder %s3959, 1
          %s3961 = scalar_select %p3960, %s3959, 1
          %s3962 = smul.addr %s3961, 8
          %s3963 = scalar_lea.vmem %s14, %s3962
        $region134: #{ltsm_conv_forward.1} parent=109 // pred_fallthru
          _
      $region110: #{ltsm_conv_forward.1} parent=5 // pred_fallthru
        _
      %p3964 = scmp.le.s32.totalorder 2, %s22
      // Predicated region
      $region135: #{ltsm_conv_forward.1} parent=5 // pred_check
        %p3965 = pneg %p3964
      $region136: #{ltsm_conv_forward.1} parent=5 // pred_check_branch
        %3967 = sbr.rel (%p3965) target = $region138
      $region137: #{ltsm_conv_forward.1} parent=5 // pred_region
        %s3968 = ssub.s32 %s22, 2
      $region138: #{ltsm_conv_forward.1} parent=5 // pred_fallthru
        _
    $region6: #{ltsm_conv_forward.1} parent=1 // loop_footer
      %s26 = sadd.s32 1, %s22
    $region7: #{ltsm_conv_forward.1} parent=1 // loop_footer_branch
      %21 = sbr.rel target = $region3
    $region8: #{ltsm_conv_forward.1} parent=1 // loop_exit
      _
    %3969 = vsyncpa [#allocation6], 1
    %s3970 = scalar_lea.sflag [#allocation6], 1
    %3971 = vsyncpa %s3970, 1

</llo_original>
